<compile_context>
chip_gen: v7x
topology: tpu7x:2x2x1
jax: 0.10.0
libtpu: 0.0.40
codegen_flags: <defaults>
</compile_context>

<pallas_src>
import functools

import jax
import jax.numpy as jnp
from jax import lax
from jax.experimental import pallas as pl
from jax.experimental.pallas import tpu as pltpu


# ----------------------------- Pallas kernels -------------------------------


def _mm_bias_kernel(x_ref, w_ref, b_ref, o_ref):
    """o = (x @ w) + b   (BN scale already folded into w)."""
    y = jnp.dot(x_ref[...], w_ref[...], preferred_element_type=jnp.float32)
    o_ref[...] = (y + b_ref[...]).astype(o_ref.dtype)


def _sk_branches_kernel(x_ref, w_ref, b_ref, f0_ref, f1_ref, pooled_ref,
                        acc0_ref, acc1_ref, pool_ref, *, H, W, Wp):
    """Both SK branches (3x3x3 and 5x5x5 conv + folded BN + ReLU) in one pass
    over the shared pad=2 volume, plus the masked spatial sum of the summed
    post-ReLU branch features (what the SK attention pooling needs).

    grid = (N, D, 5): the last axis walks the 5x5x5 branch's depth taps; the
    3x3x3 branch is active on the three central taps (kd in {1,2,3}).  All
    in-plane taps are static slices of the padded (Hp*Wp, Cin) depth slab.
    Row trick: outputs live on an (H, W+4) row grid so every in-plane tap is
    ONE contiguous static slice; columns w >= W are garbage, masked out of the
    pooled sum here and dropped from the features at the very end.
    """
    d = pl.program_id(1)
    kd = pl.program_id(2)
    R = H * Wp
    Cin = x_ref.shape[-1]

    @pl.when(kd == 0)
    def _():
        acc0_ref[...] = jnp.zeros_like(acc0_ref)
        acc1_ref[...] = jnp.zeros_like(acc1_ref)

    @pl.when((kd == 0) & (d == 0))
    def _():
        pool_ref[...] = jnp.zeros_like(pool_ref)

    # 5x5 branch: 25 in-plane taps on every depth tap (static ref slices).
    for kh in range(5):
        for kw in range(5):
            r0 = kh * Wp + kw
            xt = x_ref[0, 0, r0:r0 + R, :]                        # (R, Cin) bf16
            c0 = (kh * 5 + kw) * Cin
            acc1_ref[...] += jnp.dot(xt, w_ref[0, c0:c0 + Cin, :],
                                     preferred_element_type=jnp.float32)

    # 3x3 branch: only the three central depth taps participate.
    @pl.when((kd >= 1) & (kd <= 3))
    def _():
        for kh in range(3):
            for kw in range(3):
                r0 = (1 + kh) * Wp + (1 + kw)
                xt = x_ref[0, 0, r0:r0 + R, :]
                c0 = (25 + kh * 3 + kw) * Cin
                acc0_ref[...] += jnp.dot(xt, w_ref[0, c0:c0 + Cin, :],
                                         preferred_element_type=jnp.float32)

    @pl.when(kd == 4)
    def _():
        f0 = jnp.maximum(acc0_ref[...] + b_ref[0:1, :], 0.0)      # (R, Cout) f32
        f1 = jnp.maximum(acc1_ref[...] + b_ref[1:2, :], 0.0)
        f0_ref[0, 0] = f0.astype(f0_ref.dtype)
        f1_ref[0, 0] = f1.astype(f1_ref.dtype)
        # masked spatial sum of fea_sum = f0 + f1 (columns w >= W are garbage).
        rows = lax.broadcasted_iota(jnp.int32, (R, 1), 0)
        valid = (rows % Wp) < W
        pool_ref[...] += jnp.sum(jnp.where(valid, f0 + f1, 0.0),
                                 axis=0, keepdims=True)

    @pl.when((kd == 4) & (d == pl.num_programs(1) - 1))
    def _():
        pooled_ref[0] = pool_ref[...]


def _final_kernel(f0_ref, f1_ref, a0_ref, a1_ref, x_ref, wt2_ref, wsc_ref,
                  b_ref, o_ref):
    """Fused tail: SK branch combine + BN(sk) + trans2 (1x1 conv + BN) +
    shortcut (1x1 conv + BN) + residual add + final ReLU.

    BN(sk) and both trailing BN affines are pre-folded into wt2 / wsc / b, and
    the per-sample attention vectors a0/a1 are broadcast in-VMEM (no repeat).
    """
    f0 = f0_ref[0, 0].astype(jnp.float32)                         # (R, inner)
    f1 = f1_ref[0, 0].astype(jnp.float32)
    sk = f0 * a0_ref[0] + f1 * a1_ref[0]                          # (R, inner) f32
    y = jnp.dot(sk.astype(jnp.bfloat16), wt2_ref[...],
                preferred_element_type=jnp.float32)
    y = y + jnp.dot(x_ref[0, 0], wsc_ref[...],
                    preferred_element_type=jnp.float32)
    o_ref[0, 0] = jnp.maximum(y + b_ref[...], 0.0)


# ------------------------------ call wrappers --------------------------------


def _pick_tile_m(m, target=512):
    """Largest multiple-of-8 divisor of m not exceeding target (else m)."""
    t = min(target, m)
    while t > 8:
        if m % t == 0 and t % 8 == 0:
            return t
        t -= 8
    return m


def matmul_bias(x, w, b, out_dtype=jnp.bfloat16):
    """Tiled-over-M Pallas matmul with fused bias epilogue (1x1x1 conv + BN)."""
    M, K = x.shape
    Nc = w.shape[1]
    tm = _pick_tile_m(M)
    return pl.pallas_call(
        _mm_bias_kernel,
        grid=(M // tm,),
        in_specs=[
            pl.BlockSpec((tm, K), lambda i: (i, 0)),
            pl.BlockSpec((K, Nc), lambda i: (0, 0)),
            pl.BlockSpec((1, Nc), lambda i: (0, 0)),
        ],
        out_specs=pl.BlockSpec((tm, Nc), lambda i: (i, 0)),
        out_shape=jax.ShapeDtypeStruct((M, Nc), out_dtype),
        compiler_params=pltpu.CompilerParams(dimension_semantics=("parallel",)),
    )(x, w, b)


def skconv_branches(x_pad, w_cat, b_cat, *, H, W):
    """Both SK conv branches fused over the shared pad=2 volume.

    x_pad: (N, D+4, (H+5)*(W+4), Cin) bf16
    w_cat: (5, 34*Cin, Cout) bf16  (25 taps of the 5x5 branch, then 9 taps of
           the 3x3 branch whose depth slabs are zero-padded to 5; BN folded)
    b_cat: (2, Cout) f32 (row 0: 3x3 branch, row 1: 5x5 branch)
    Returns f0, f1: (N, D, H*(W+4), Cout) bf16 (columns w >= W are garbage)
            pooled: (N, 1, Cout) f32 (masked spatial sum of f0 + f1)
    """
    N, Dp, Spad, Cin = x_pad.shape
    D = Dp - 4
    Cout = b_cat.shape[-1]
    Wp = W + 4
    R = H * Wp

    return pl.pallas_call(
        functools.partial(_sk_branches_kernel, H=H, W=W, Wp=Wp),
        grid=(N, D, 5),
        in_specs=[
            pl.BlockSpec((1, 1, Spad, Cin), lambda n, d, kd: (n, d + kd, 0, 0)),
            pl.BlockSpec((1, 34 * Cin, Cout), lambda n, d, kd: (kd, 0, 0)),
            pl.BlockSpec((2, Cout), lambda n, d, kd: (0, 0)),
        ],
        out_specs=(
            pl.BlockSpec((1, 1, R, Cout), lambda n, d, kd: (n, d, 0, 0)),
            pl.BlockSpec((1, 1, R, Cout), lambda n, d, kd: (n, d, 0, 0)),
            pl.BlockSpec((1, 1, Cout), lambda n, d, kd: (n, 0, 0)),
        ),
        out_shape=(
            jax.ShapeDtypeStruct((N, D, R, Cout), jnp.bfloat16),
            jax.ShapeDtypeStruct((N, D, R, Cout), jnp.bfloat16),
            jax.ShapeDtypeStruct((N, 1, Cout), jnp.float32),
        ),
        scratch_shapes=[
            pltpu.VMEM((R, Cout), jnp.float32),   # 3x3 conv accumulator
            pltpu.VMEM((R, Cout), jnp.float32),   # 5x5 conv accumulator
            pltpu.VMEM((1, Cout), jnp.float32),   # pooled-sum accumulator
        ],
        compiler_params=pltpu.CompilerParams(
            dimension_semantics=("parallel", "arbitrary", "arbitrary")),
    )(x_pad, w_cat, b_cat)


def final_fused(f0, f1, a0, a1, x_wp, w_t2, w_sc, b_fin):
    N, D, R, inner = f0.shape
    Cin = x_wp.shape[-1]
    out_ch = w_t2.shape[-1]
    return pl.pallas_call(
        _final_kernel,
        grid=(N, D),
        in_specs=[
            pl.BlockSpec((1, 1, R, inner), lambda n, d: (n, d, 0, 0)),
            pl.BlockSpec((1, 1, R, inner), lambda n, d: (n, d, 0, 0)),
            pl.BlockSpec((1, 1, inner), lambda n, d: (n, 0, 0)),
            pl.BlockSpec((1, 1, inner), lambda n, d: (n, 0, 0)),
            pl.BlockSpec((1, 1, R, Cin), lambda n, d: (n, d, 0, 0)),
            pl.BlockSpec((inner, out_ch), lambda n, d: (0, 0)),
            pl.BlockSpec((Cin, out_ch), lambda n, d: (0, 0)),
            pl.BlockSpec((1, out_ch), lambda n, d: (0, 0)),
        ],
        out_specs=pl.BlockSpec((1, 1, R, out_ch), lambda n, d: (n, d, 0, 0)),
        out_shape=jax.ShapeDtypeStruct((N, D, R, out_ch), jnp.float32),
        compiler_params=pltpu.CompilerParams(
            dimension_semantics=("parallel", "parallel")),
    )(f0, f1, a0, a1, x_wp, w_t2, w_sc, b_fin)


# ------------------------------- parameters ----------------------------------


def fold_bn(gamma, beta, mean, var, eps=1e-5):
    s = gamma / jnp.sqrt(var + eps)
    return s, beta - mean * s


def init_params(key, in_ch, out_ch, ratio=4, min_ch=32):
    """Random eval-mode parameters, pre-folded for the fused Pallas kernels."""
    inner = out_ch // 2
    dim = max(inner // ratio, min_ch)
    ki = iter(jax.random.split(key, 64))

    def w(shape, std=0.1):
        return std * jax.random.normal(next(ki), shape, jnp.float32)

    def bn(c):
        gamma = 1.0 + 0.1 * jax.random.normal(next(ki), (c,), jnp.float32)
        beta = 0.1 * jax.random.normal(next(ki), (c,), jnp.float32)
        mean = 0.05 * jax.random.normal(next(ki), (c,), jnp.float32)
        var = 1.0 + 0.1 * jnp.abs(jax.random.normal(next(ki), (c,), jnp.float32))
        return fold_bn(gamma, beta, mean, var)

    p = {}

    # trans1: 1x1x1 conv + BN (no act); scale folded into weight columns.
    w_t1 = w((in_ch, inner))
    s, b = bn(inner)
    p["w_t1"] = (w_t1 * s[None, :]).astype(jnp.bfloat16)
    p["b_t1"] = b.reshape(1, inner)

    # SK branch convs (BN scale folded into Cout columns), packed into a single
    # (5, 34*Cin, Cout) slab: the first 25 Cin-chunks of each depth slab are the
    # 5x5 branch taps, the next 9 are the 3x3 branch taps (its 3 depth slabs are
    # zero-padded to 5 so the grid's kd axis indexes both branches).
    w3 = w((3, 3, 3, inner, inner))
    s3, b3 = bn(inner)
    w3 = (w3 * s3).reshape(3, 9 * inner, inner)
    w3 = jnp.pad(w3, ((1, 1), (0, 0), (0, 0)))
    w5 = w((5, 5, 5, inner, inner))
    s5, b5 = bn(inner)
    w5 = (w5 * s5).reshape(5, 25 * inner, inner)
    p["w_sk"] = jnp.concatenate([w5, w3], axis=1).astype(jnp.bfloat16)
    p["b_sk"] = jnp.stack([b3, b5], axis=0)           # (2, inner) f32

    # SK attention FCs (tiny -> evaluated in XLA, kept in f32).
    p["w_fc"] = w((inner, dim));   p["b_fc"] = w((dim,), 0.05)
    p["w_fc0"] = w((dim, inner));  p["b_fc0"] = w((inner,), 0.05)
    p["w_fc1"] = w((dim, inner));  p["b_fc1"] = w((inner,), 0.05)

    # BN after SKConv (s_sk, b_sk) folded through trans2 (conv + BN):
    #   ((sk*s_sk + b_sk) @ W_t2)*s_t2 + b_t2
    #     = sk @ (s_sk[:,None]*W_t2*s_t2[None,:]) + (b_sk @ (W_t2*s_t2) + b_t2)
    s_sk, b_sk = bn(inner)
    w_t2 = w((inner, out_ch))
    s_t2, b_t2 = bn(out_ch)
    w_t2s = w_t2 * s_t2[None, :]
    p["w_t2f"] = (s_sk[:, None] * w_t2s).astype(jnp.bfloat16)
    b_t2f = b_sk @ w_t2s + b_t2

    # shortcut: 1x1x1 conv + BN (identity if in_ch == out_ch).
    if in_ch != out_ch:
        w_sc = w((in_ch, out_ch))
        s_sc, b_sc = bn(out_ch)
        w_scf = w_sc * s_sc[None, :]
    else:
        w_scf = jnp.eye(in_ch, dtype=jnp.float32)
        b_sc = jnp.zeros((out_ch,), jnp.float32)
    p["w_scf"] = w_scf.astype(jnp.bfloat16)

    # single fused epilogue bias for the final kernel.
    p["b_fin"] = (b_t2f + b_sc).reshape(1, out_ch)
    return p


# --------------------------------- forward -----------------------------------


def sk_block_forward(x, p):
    """x: (N, C_in, D, H, W) float32 -> (N, C_out, D, H, W) float32."""
    N, Cin, D, H, W = x.shape
    inner = p["w_t1"].shape[1]
    out_ch = p["w_t2f"].shape[1]
    Wp = W + 4
    R = H * Wp
    M = N * D * H * W

    # NCDHW -> NDHWC
    x_cl = jnp.transpose(x, (0, 2, 3, 4, 1))
    x_rows = x_cl.reshape(M, Cin).astype(jnp.bfloat16)

    # trans1 (1x1x1 conv + BN), tiled over M.
    t1 = matmul_bias(x_rows, p["w_t1"], p["b_t1"])                # (M, inner) bf16

    # Single pad=2 zero-padded copy serves both conv branches (no HBM im2col).
    # H gets one extra trailing pad row so the W-padded row trick stays in bounds.
    t1_vol = t1.reshape(N, D, H, W, inner)
    t1_pad = jnp.pad(t1_vol, ((0, 0), (2, 2), (2, 3), (2, 2), (0, 0)))
    t1_pad = t1_pad.reshape(N, D + 4, (H + 5) * Wp, inner)

    f0, f1, pooled = skconv_branches(t1_pad, p["w_sk"], p["b_sk"], H=H, W=W)

    # SK attention (tiny (N, inner) matrices -> plain XLA, f32).
    pooled = pooled[:, 0, :] / float(D * H * W)
    fea_fc = pooled @ p["w_fc"] + p["b_fc"]
    v0 = fea_fc @ p["w_fc0"] + p["b_fc0"]
    v1 = fea_fc @ p["w_fc1"] + p["b_fc1"]
    attn = jax.nn.softmax(jnp.stack([v0, v1], axis=1), axis=1)    # (N, 2, inner)
    a0 = attn[:, 0:1, :]                                          # (N, 1, inner)
    a1 = attn[:, 1:2, :]

    # Shortcut input laid out on the same W-padded row grid as the branches.
    x_wp = jnp.pad(x_cl, ((0, 0), (0, 0), (0, 0), (0, Wp - W), (0, 0)))
    x_wp = x_wp.reshape(N, D, R, Cin).astype(jnp.bfloat16)

    out_rows = final_fused(f0, f1, a0, a1, x_wp,
                           p["w_t2f"], p["w_scf"], p["b_fin"])    # (N,D,R,out) f32

    out = out_rows.reshape(N, D, H, Wp, out_ch)[:, :, :, :W, :]
    return jnp.transpose(out, (0, 4, 1, 2, 3))                    # NCDHW


# ----------------------------------- main -------------------------------------


if __name__ == "__main__":
    key = jax.random.PRNGKey(0)
    kx, kp = jax.random.split(key)

    N, C_IN, C_OUT, D, H, W = 2, 8, 16, 8, 8, 8
    x = jax.random.normal(kx, (N, C_IN, D, H, W), jnp.float32)
    params = init_params(kp, C_IN, C_OUT)

    fwd = jax.jit(sk_block_forward)
    out = jax.block_until_ready(fwd(x, params))

    assert out.shape == (N, C_OUT, D, H, W), out.shape
    assert bool(jnp.all(jnp.isfinite(out)))
    assert bool(jnp.all(out >= 0.0))   # final ReLU
    print("KERNEL_OK")
</pallas_src>

<mosaic_0001>
module attributes {stable_mosaic.version = 11 : i64} {
  func.func @_mm_bias_kernel(%arg0: i32, %arg1: memref<512x8xbf16, #tpu.memory_space<vmem>>, %arg2: memref<8x8xbf16, #tpu.memory_space<vmem>>, %arg3: memref<1x8xf32, #tpu.memory_space<vmem>>, %arg4: memref<512x8xbf16, #tpu.memory_space<vmem>>) attributes {dimension_semantics = [#tpu.dimension_semantics<parallel>], iteration_bounds = array<i64: 2>, scalar_prefetch = 0 : i64, scratch_operands = 0 : i64, tpu.core_type = #tpu.core_type<tc>, window_params = [{transform_indices = @transform_0, window_bounds = array<i64: 512, 8>}, {pipeline_mode = #tpu.pipeline_mode<synchronous>, transform_indices = @transform_1, window_bounds = array<i64: 8, 8>}, {pipeline_mode = #tpu.pipeline_mode<synchronous>, transform_indices = @transform_2, window_bounds = array<i64: 1, 8>}, {transform_indices = @transform_3, window_bounds = array<i64: 512, 8>}]} {
    %c0 = arith.constant 0 : index
    %c0_0 = arith.constant 0 : index
    %0 = vector.load %arg1[%c0, %c0_0] : memref<512x8xbf16, #tpu.memory_space<vmem>>, vector<512x8xbf16>
    %c0_1 = arith.constant 0 : index
    %c0_2 = arith.constant 0 : index
    %1 = vector.load %arg2[%c0_1, %c0_2] : memref<8x8xbf16, #tpu.memory_space<vmem>>, vector<8x8xbf16>
    %cst = arith.constant dense<0.000000e+00> : vector<512x8xf32>
    %2 = tpu.matmul %0, %1, %cst {dimension_numbers = #tpu.dot_dimension_numbers<[1], [0], [0], [1], [0, 0, 1, 1], [], []>} : vector<512x8xbf16>, vector<8x8xbf16>, vector<512x8xf32> -> vector<512x8xf32>
    %c0_3 = arith.constant 0 : index
    %c0_4 = arith.constant 0 : index
    %3 = vector.load %arg3[%c0_3, %c0_4] : memref<1x8xf32, #tpu.memory_space<vmem>>, vector<1x8xf32>
    %4 = vector.broadcast %3 : vector<1x8xf32> to vector<512x8xf32>
    %5 = arith.addf %2, %4 : vector<512x8xf32>
    %6 = arith.truncf %5 : vector<512x8xf32> to vector<512x8xbf16>
    %c0_5 = arith.constant 0 : index
    %c0_6 = arith.constant 0 : index
    %7 = vector.load %arg4[%c0_5, %c0_6] : memref<512x8xbf16, #tpu.memory_space<vmem>>, vector<512x8xbf16>
    tpu.vector_store %arg4[%c0_5, %c0_6], %6 {strides = array<i32>} : memref<512x8xbf16, #tpu.memory_space<vmem>>, vector<512x8xbf16>,
    return
  }
  func.func @transform_0(%arg0: i32) -> (i32, i32) {
    %c0_i32 = arith.constant 0 : i32
    %c0_i32_0 = arith.constant 0 : i32
    return %arg0, %c0_i32 : i32, i32
  }
  func.func @transform_1(%arg0: i32) -> (i32, i32) {
    %c0_i32 = arith.constant 0 : i32
    %c0_i32_0 = arith.constant 0 : i32
    %c0_i32_1 = arith.constant 0 : i32
    return %c0_i32, %c0_i32_0 : i32, i32
  }
  func.func @transform_2(%arg0: i32) -> (i32, i32) {
    %c0_i32 = arith.constant 0 : i32
    %c0_i32_0 = arith.constant 0 : i32
    %c0_i32_1 = arith.constant 0 : i32
    return %c0_i32, %c0_i32_0 : i32, i32
  }
  func.func @transform_3(%arg0: i32) -> (i32, i32) {
    %c0_i32 = arith.constant 0 : i32
    %c0_i32_0 = arith.constant 0 : i32
    return %arg0, %c0_i32 : i32, i32
  }
}

module attributes {stable_mosaic.version = 11 : i64} {
  func.func @_sk_branches_kernel(%arg0: i32, %arg1: i32, %arg2: i32, %arg3: memref<1x1x156x8xbf16, #tpu.memory_space<vmem>>, %arg4: memref<1x272x8xbf16, #tpu.memory_space<vmem>>, %arg5: memref<2x8xf32, #tpu.memory_space<vmem>>, %arg6: memref<1x1x96x8xbf16, #tpu.memory_space<vmem>>, %arg7: memref<1x1x96x8xbf16, #tpu.memory_space<vmem>>, %arg8: memref<1x1x8xf32, #tpu.memory_space<vmem>>, %arg9: memref<96x8xf32, #tpu.memory_space<vmem>>, %arg10: memref<96x8xf32, #tpu.memory_space<vmem>>, %arg11: memref<1x8xf32, #tpu.memory_space<vmem>>) attributes {dimension_semantics = [#tpu.dimension_semantics<parallel>, #tpu.dimension_semantics<arbitrary>, #tpu.dimension_semantics<arbitrary>], iteration_bounds = array<i64: 2, 8, 5>, scalar_prefetch = 0 : i64, scratch_operands = 3 : i64, tpu.core_type = #tpu.core_type<tc>, window_params = [{transform_indices = @transform_0, window_bounds = array<i64: 1, 1, 156, 8>}, {transform_indices = @transform_1, window_bounds = array<i64: 1, 272, 8>}, {pipeline_mode = #tpu.pipeline_mode<synchronous>, transform_indices = @transform_2, window_bounds = array<i64: 2, 8>}, {transform_indices = @transform_3, window_bounds = array<i64: 1, 1, 96, 8>}, {transform_indices = @transform_4, window_bounds = array<i64: 1, 1, 96, 8>}, {transform_indices = @transform_5, window_bounds = array<i64: 1, 1, 8>}]} {
    %c0_i32 = arith.constant 0 : i32
    %0 = arith.cmpi eq, %arg2, %c0_i32 : i32
    %1 = arith.extui %0 : i1 to i32
    %c0_i32_0 = arith.constant 0 : i32
    %2 = arith.cmpi ne, %1, %c0_i32_0 : i32
    scf.if %2 {
      %cst_262 = arith.constant 0.000000e+00 : f32
      %221 = vector.broadcast %cst_262 : f32 to vector<96x8xf32>
      %c0_263 = arith.constant 0 : index
      %c0_264 = arith.constant 0 : index
      %222 = vector.load %arg9[%c0_263, %c0_264] : memref<96x8xf32, #tpu.memory_space<vmem>>, vector<96x8xf32>
      tpu.vector_store %arg9[%c0_263, %c0_264], %221 {strides = array<i32>} : memref<96x8xf32, #tpu.memory_space<vmem>>, vector<96x8xf32>,
      %cst_265 = arith.constant 0.000000e+00 : f32
      %223 = vector.broadcast %cst_265 : f32 to vector<96x8xf32>
      %c0_266 = arith.constant 0 : index
      %c0_267 = arith.constant 0 : index
      %224 = vector.load %arg10[%c0_266, %c0_267] : memref<96x8xf32, #tpu.memory_space<vmem>>, vector<96x8xf32>
      tpu.vector_store %arg10[%c0_266, %c0_267], %223 {strides = array<i32>} : memref<96x8xf32, #tpu.memory_space<vmem>>, vector<96x8xf32>,
    } else {
    }
    %c0_i32_1 = arith.constant 0 : i32
    %3 = arith.cmpi eq, %arg2, %c0_i32_1 : i32
    %c0_i32_2 = arith.constant 0 : i32
    %4 = arith.cmpi eq, %arg1, %c0_i32_2 : i32
    %5 = arith.andi %3, %4 : i1
    %6 = arith.extui %5 : i1 to i32
    %c0_i32_3 = arith.constant 0 : i32
    %7 = arith.cmpi ne, %6, %c0_i32_3 : i32
    scf.if %7 {
      %cst_262 = arith.constant 0.000000e+00 : f32
      %221 = vector.broadcast %cst_262 : f32 to vector<1x8xf32>
      %c0_263 = arith.constant 0 : index
      %c0_264 = arith.constant 0 : index
      %222 = vector.load %arg11[%c0_263, %c0_264] : memref<1x8xf32, #tpu.memory_space<vmem>>, vector<1x8xf32>
      tpu.vector_store %arg11[%c0_263, %c0_264], %221 {strides = array<i32>} : memref<1x8xf32, #tpu.memory_space<vmem>>, vector<1x8xf32>,
    } else {
    }
    %c0 = arith.constant 0 : index
    %c0_4 = arith.constant 0 : index
    %c0_5 = arith.constant 0 : index
    %c0_6 = arith.constant 0 : index
    %8 = vector.load %arg3[%c0, %c0_4, %c0_5, %c0_6] : memref<1x1x156x8xbf16, #tpu.memory_space<vmem>>, vector<1x1x96x8xbf16>
    %9 = vector.shape_cast %8 : vector<1x1x96x8xbf16> to vector<96x8xbf16>
    %c0_7 = arith.constant 0 : index
    %c0_8 = arith.constant 0 : index
    %10 = vector.load %arg10[%c0_7, %c0_8] : memref<96x8xf32, #tpu.memory_space<vmem>>, vector<96x8xf32>
    %c0_9 = arith.constant 0 : index
    %c0_10 = arith.constant 0 : index
    %c0_11 = arith.constant 0 : index
    %11 = vector.load %arg4[%c0_9, %c0_10, %c0_11] : memref<1x272x8xbf16, #tpu.memory_space<vmem>>, vector<1x8x8xbf16>
    %12 = vector.shape_cast %11 : vector<1x8x8xbf16> to vector<8x8xbf16>
    %cst = arith.constant dense<0.000000e+00> : vector<96x8xf32>
    %13 = tpu.matmul %9, %12, %cst {dimension_numbers = #tpu.dot_dimension_numbers<[1], [0], [0], [1], [0, 0, 1, 1], [], []>} : vector<96x8xbf16>, vector<8x8xbf16>, vector<96x8xf32> -> vector<96x8xf32>
    %14 = arith.addf %10, %13 : vector<96x8xf32>
    %c0_12 = arith.constant 0 : index
    %c0_13 = arith.constant 0 : index
    %15 = vector.load %arg10[%c0_12, %c0_13] : memref<96x8xf32, #tpu.memory_space<vmem>>, vector<96x8xf32>
    tpu.vector_store %arg10[%c0_12, %c0_13], %14 {strides = array<i32>} : memref<96x8xf32, #tpu.memory_space<vmem>>, vector<96x8xf32>,
    %c0_14 = arith.constant 0 : index
    %c0_15 = arith.constant 0 : index
    %c1 = arith.constant 1 : index
    %c0_16 = arith.constant 0 : index
    %16 = vector.load %arg3[%c0_14, %c0_15, %c1, %c0_16] : memref<1x1x156x8xbf16, #tpu.memory_space<vmem>>, vector<1x1x96x8xbf16>
    %17 = vector.shape_cast %16 : vector<1x1x96x8xbf16> to vector<96x8xbf16>
    %c0_17 = arith.constant 0 : index
    %c0_18 = arith.constant 0 : index
    %18 = vector.load %arg10[%c0_17, %c0_18] : memref<96x8xf32, #tpu.memory_space<vmem>>, vector<96x8xf32>
    %c0_19 = arith.constant 0 : index
    %c8 = arith.constant 8 : index
    %c0_20 = arith.constant 0 : index
    %19 = vector.load %arg4[%c0_19, %c8, %c0_20] : memref<1x272x8xbf16, #tpu.memory_space<vmem>>, vector<1x8x8xbf16>
    %20 = vector.shape_cast %19 : vector<1x8x8xbf16> to vector<8x8xbf16>
    %cst_21 = arith.constant dense<0.000000e+00> : vector<96x8xf32>
    %21 = tpu.matmul %17, %20, %cst_21 {dimension_numbers = #tpu.dot_dimension_numbers<[1], [0], [0], [1], [0, 0, 1, 1], [], []>} : vector<96x8xbf16>, vector<8x8xbf16>, vector<96x8xf32> -> vector<96x8xf32>
    %22 = arith.addf %18, %21 : vector<96x8xf32>
    %c0_22 = arith.constant 0 : index
    %c0_23 = arith.constant 0 : index
    %23 = vector.load %arg10[%c0_22, %c0_23] : memref<96x8xf32, #tpu.memory_space<vmem>>, vector<96x8xf32>
    tpu.vector_store %arg10[%c0_22, %c0_23], %22 {strides = array<i32>} : memref<96x8xf32, #tpu.memory_space<vmem>>, vector<96x8xf32>,
    %c0_24 = arith.constant 0 : index
    %c0_25 = arith.constant 0 : index
    %c2 = arith.constant 2 : index
    %c0_26 = arith.constant 0 : index
    %24 = vector.load %arg3[%c0_24, %c0_25, %c2, %c0_26] : memref<1x1x156x8xbf16, #tpu.memory_space<vmem>>, vector<1x1x96x8xbf16>
    %25 = vector.shape_cast %24 : vector<1x1x96x8xbf16> to vector<96x8xbf16>
    %c0_27 = arith.constant 0 : index
    %c0_28 = arith.constant 0 : index
    %26 = vector.load %arg10[%c0_27, %c0_28] : memref<96x8xf32, #tpu.memory_space<vmem>>, vector<96x8xf32>
    %c0_29 = arith.constant 0 : index
    %c16 = arith.constant 16 : index
    %c0_30 = arith.constant 0 : index
    %27 = vector.load %arg4[%c0_29, %c16, %c0_30] : memref<1x272x8xbf16, #tpu.memory_space<vmem>>, vector<1x8x8xbf16>
    %28 = vector.shape_cast %27 : vector<1x8x8xbf16> to vector<8x8xbf16>
    %cst_31 = arith.constant dense<0.000000e+00> : vector<96x8xf32>
    %29 = tpu.matmul %25, %28, %cst_31 {dimension_numbers = #tpu.dot_dimension_numbers<[1], [0], [0], [1], [0, 0, 1, 1], [], []>} : vector<96x8xbf16>, vector<8x8xbf16>, vector<96x8xf32> -> vector<96x8xf32>
    %30 = arith.addf %26, %29 : vector<96x8xf32>
    %c0_32 = arith.constant 0 : index
    %c0_33 = arith.constant 0 : index
    %31 = vector.load %arg10[%c0_32, %c0_33] : memref<96x8xf32, #tpu.memory_space<vmem>>, vector<96x8xf32>
    tpu.vector_store %arg10[%c0_32, %c0_33], %30 {strides = array<i32>} : memref<96x8xf32, #tpu.memory_space<vmem>>, vector<96x8xf32>,
    %c0_34 = arith.constant 0 : index
    %c0_35 = arith.constant 0 : index
    %c3 = arith.constant 3 : index
    %c0_36 = arith.constant 0 : index
    %32 = vector.load %arg3[%c0_34, %c0_35, %c3, %c0_36] : memref<1x1x156x8xbf16, #tpu.memory_space<vmem>>, vector<1x1x96x8xbf16>
    %33 = vector.shape_cast %32 : vector<1x1x96x8xbf16> to vector<96x8xbf16>
    %c0_37 = arith.constant 0 : index
    %c0_38 = arith.constant 0 : index
    %34 = vector.load %arg10[%c0_37, %c0_38] : memref<96x8xf32, #tpu.memory_space<vmem>>, vector<96x8xf32>
    %c0_39 = arith.constant 0 : index
    %c24 = arith.constant 24 : index
    %c0_40 = arith.constant 0 : index
    %35 = vector.load %arg4[%c0_39, %c24, %c0_40] : memref<1x272x8xbf16, #tpu.memory_space<vmem>>, vector<1x8x8xbf16>
    %36 = vector.shape_cast %35 : vector<1x8x8xbf16> to vector<8x8xbf16>
    %cst_41 = arith.constant dense<0.000000e+00> : vector<96x8xf32>
    %37 = tpu.matmul %33, %36, %cst_41 {dimension_numbers = #tpu.dot_dimension_numbers<[1], [0], [0], [1], [0, 0, 1, 1], [], []>} : vector<96x8xbf16>, vector<8x8xbf16>, vector<96x8xf32> -> vector<96x8xf32>
    %38 = arith.addf %34, %37 : vector<96x8xf32>
    %c0_42 = arith.constant 0 : index
    %c0_43 = arith.constant 0 : index
    %39 = vector.load %arg10[%c0_42, %c0_43] : memref<96x8xf32, #tpu.memory_space<vmem>>, vector<96x8xf32>
    tpu.vector_store %arg10[%c0_42, %c0_43], %38 {strides = array<i32>} : memref<96x8xf32, #tpu.memory_space<vmem>>, vector<96x8xf32>,
    %c0_44 = arith.constant 0 : index
    %c0_45 = arith.constant 0 : index
    %c4 = arith.constant 4 : index
    %c0_46 = arith.constant 0 : index
    %40 = vector.load %arg3[%c0_44, %c0_45, %c4, %c0_46] : memref<1x1x156x8xbf16, #tpu.memory_space<vmem>>, vector<1x1x96x8xbf16>
    %41 = vector.shape_cast %40 : vector<1x1x96x8xbf16> to vector<96x8xbf16>
    %c0_47 = arith.constant 0 : index
    %c0_48 = arith.constant 0 : index
    %42 = vector.load %arg10[%c0_47, %c0_48] : memref<96x8xf32, #tpu.memory_space<vmem>>, vector<96x8xf32>
    %c0_49 = arith.constant 0 : index
    %c32 = arith.constant 32 : index
    %c0_50 = arith.constant 0 : index
    %43 = vector.load %arg4[%c0_49, %c32, %c0_50] : memref<1x272x8xbf16, #tpu.memory_space<vmem>>, vector<1x8x8xbf16>
    %44 = vector.shape_cast %43 : vector<1x8x8xbf16> to vector<8x8xbf16>
    %cst_51 = arith.constant dense<0.000000e+00> : vector<96x8xf32>
    %45 = tpu.matmul %41, %44, %cst_51 {dimension_numbers = #tpu.dot_dimension_numbers<[1], [0], [0], [1], [0, 0, 1, 1], [], []>} : vector<96x8xbf16>, vector<8x8xbf16>, vector<96x8xf32> -> vector<96x8xf32>
    %46 = arith.addf %42, %45 : vector<96x8xf32>
    %c0_52 = arith.constant 0 : index
    %c0_53 = arith.constant 0 : index
    %47 = vector.load %arg10[%c0_52, %c0_53] : memref<96x8xf32, #tpu.memory_space<vmem>>, vector<96x8xf32>
    tpu.vector_store %arg10[%c0_52, %c0_53], %46 {strides = array<i32>} : memref<96x8xf32, #tpu.memory_space<vmem>>, vector<96x8xf32>,
    %c0_54 = arith.constant 0 : index
    %c0_55 = arith.constant 0 : index
    %c12 = arith.constant 12 : index
    %c0_56 = arith.constant 0 : index
    %48 = vector.load %arg3[%c0_54, %c0_55, %c12, %c0_56] : memref<1x1x156x8xbf16, #tpu.memory_space<vmem>>, vector<1x1x96x8xbf16>
    %49 = vector.shape_cast %48 : vector<1x1x96x8xbf16> to vector<96x8xbf16>
    %c0_57 = arith.constant 0 : index
    %c0_58 = arith.constant 0 : index
    %50 = vector.load %arg10[%c0_57, %c0_58] : memref<96x8xf32, #tpu.memory_space<vmem>>, vector<96x8xf32>
    %c0_59 = arith.constant 0 : index
    %c40 = arith.constant 40 : index
    %c0_60 = arith.constant 0 : index
    %51 = vector.load %arg4[%c0_59, %c40, %c0_60] : memref<1x272x8xbf16, #tpu.memory_space<vmem>>, vector<1x8x8xbf16>
    %52 = vector.shape_cast %51 : vector<1x8x8xbf16> to vector<8x8xbf16>
    %cst_61 = arith.constant dense<0.000000e+00> : vector<96x8xf32>
    %53 = tpu.matmul %49, %52, %cst_61 {dimension_numbers = #tpu.dot_dimension_numbers<[1], [0], [0], [1], [0, 0, 1, 1], [], []>} : vector<96x8xbf16>, vector<8x8xbf16>, vector<96x8xf32> -> vector<96x8xf32>
    %54 = arith.addf %50, %53 : vector<96x8xf32>
    %c0_62 = arith.constant 0 : index
    %c0_63 = arith.constant 0 : index
    %55 = vector.load %arg10[%c0_62, %c0_63] : memref<96x8xf32, #tpu.memory_space<vmem>>, vector<96x8xf32>
    tpu.vector_store %arg10[%c0_62, %c0_63], %54 {strides = array<i32>} : memref<96x8xf32, #tpu.memory_space<vmem>>, vector<96x8xf32>,
    %c0_64 = arith.constant 0 : index
    %c0_65 = arith.constant 0 : index
    %c13 = arith.constant 13 : index
    %c0_66 = arith.constant 0 : index
    %56 = vector.load %arg3[%c0_64, %c0_65, %c13, %c0_66] : memref<1x1x156x8xbf16, #tpu.memory_space<vmem>>, vector<1x1x96x8xbf16>
    %57 = vector.shape_cast %56 : vector<1x1x96x8xbf16> to vector<96x8xbf16>
    %c0_67 = arith.constant 0 : index
    %c0_68 = arith.constant 0 : index
    %58 = vector.load %arg10[%c0_67, %c0_68] : memref<96x8xf32, #tpu.memory_space<vmem>>, vector<96x8xf32>
    %c0_69 = arith.constant 0 : index
    %c48 = arith.constant 48 : index
    %c0_70 = arith.constant 0 : index
    %59 = vector.load %arg4[%c0_69, %c48, %c0_70] : memref<1x272x8xbf16, #tpu.memory_space<vmem>>, vector<1x8x8xbf16>
    %60 = vector.shape_cast %59 : vector<1x8x8xbf16> to vector<8x8xbf16>
    %cst_71 = arith.constant dense<0.000000e+00> : vector<96x8xf32>
    %61 = tpu.matmul %57, %60, %cst_71 {dimension_numbers = #tpu.dot_dimension_numbers<[1], [0], [0], [1], [0, 0, 1, 1], [], []>} : vector<96x8xbf16>, vector<8x8xbf16>, vector<96x8xf32> -> vector<96x8xf32>
    %62 = arith.addf %58, %61 : vector<96x8xf32>
    %c0_72 = arith.constant 0 : index
    %c0_73 = arith.constant 0 : index
    %63 = vector.load %arg10[%c0_72, %c0_73] : memref<96x8xf32, #tpu.memory_space<vmem>>, vector<96x8xf32>
    tpu.vector_store %arg10[%c0_72, %c0_73], %62 {strides = array<i32>} : memref<96x8xf32, #tpu.memory_space<vmem>>, vector<96x8xf32>,
    %c0_74 = arith.constant 0 : index
    %c0_75 = arith.constant 0 : index
    %c14 = arith.constant 14 : index
    %c0_76 = arith.constant 0 : index
    %64 = vector.load %arg3[%c0_74, %c0_75, %c14, %c0_76] : memref<1x1x156x8xbf16, #tpu.memory_space<vmem>>, vector<1x1x96x8xbf16>
    %65 = vector.shape_cast %64 : vector<1x1x96x8xbf16> to vector<96x8xbf16>
    %c0_77 = arith.constant 0 : index
    %c0_78 = arith.constant 0 : index
    %66 = vector.load %arg10[%c0_77, %c0_78] : memref<96x8xf32, #tpu.memory_space<vmem>>, vector<96x8xf32>
    %c0_79 = arith.constant 0 : index
    %c56 = arith.constant 56 : index
    %c0_80 = arith.constant 0 : index
    %67 = vector.load %arg4[%c0_79, %c56, %c0_80] : memref<1x272x8xbf16, #tpu.memory_space<vmem>>, vector<1x8x8xbf16>
    %68 = vector.shape_cast %67 : vector<1x8x8xbf16> to vector<8x8xbf16>
    %cst_81 = arith.constant dense<0.000000e+00> : vector<96x8xf32>
    %69 = tpu.matmul %65, %68, %cst_81 {dimension_numbers = #tpu.dot_dimension_numbers<[1], [0], [0], [1], [0, 0, 1, 1], [], []>} : vector<96x8xbf16>, vector<8x8xbf16>, vector<96x8xf32> -> vector<96x8xf32>
    %70 = arith.addf %66, %69 : vector<96x8xf32>
    %c0_82 = arith.constant 0 : index
    %c0_83 = arith.constant 0 : index
    %71 = vector.load %arg10[%c0_82, %c0_83] : memref<96x8xf32, #tpu.memory_space<vmem>>, vector<96x8xf32>
    tpu.vector_store %arg10[%c0_82, %c0_83], %70 {strides = array<i32>} : memref<96x8xf32, #tpu.memory_space<vmem>>, vector<96x8xf32>,
    %c0_84 = arith.constant 0 : index
    %c0_85 = arith.constant 0 : index
    %c15 = arith.constant 15 : index
    %c0_86 = arith.constant 0 : index
    %72 = vector.load %arg3[%c0_84, %c0_85, %c15, %c0_86] : memref<1x1x156x8xbf16, #tpu.memory_space<vmem>>, vector<1x1x96x8xbf16>
    %73 = vector.shape_cast %72 : vector<1x1x96x8xbf16> to vector<96x8xbf16>
    %c0_87 = arith.constant 0 : index
    %c0_88 = arith.constant 0 : index
    %74 = vector.load %arg10[%c0_87, %c0_88] : memref<96x8xf32, #tpu.memory_space<vmem>>, vector<96x8xf32>
    %c0_89 = arith.constant 0 : index
    %c64 = arith.constant 64 : index
    %c0_90 = arith.constant 0 : index
    %75 = vector.load %arg4[%c0_89, %c64, %c0_90] : memref<1x272x8xbf16, #tpu.memory_space<vmem>>, vector<1x8x8xbf16>
    %76 = vector.shape_cast %75 : vector<1x8x8xbf16> to vector<8x8xbf16>
    %cst_91 = arith.constant dense<0.000000e+00> : vector<96x8xf32>
    %77 = tpu.matmul %73, %76, %cst_91 {dimension_numbers = #tpu.dot_dimension_numbers<[1], [0], [0], [1], [0, 0, 1, 1], [], []>} : vector<96x8xbf16>, vector<8x8xbf16>, vector<96x8xf32> -> vector<96x8xf32>
    %78 = arith.addf %74, %77 : vector<96x8xf32>
    %c0_92 = arith.constant 0 : index
    %c0_93 = arith.constant 0 : index
    %79 = vector.load %arg10[%c0_92, %c0_93] : memref<96x8xf32, #tpu.memory_space<vmem>>, vector<96x8xf32>
    tpu.vector_store %arg10[%c0_92, %c0_93], %78 {strides = array<i32>} : memref<96x8xf32, #tpu.memory_space<vmem>>, vector<96x8xf32>,
    %c0_94 = arith.constant 0 : index
    %c0_95 = arith.constant 0 : index
    %c16_96 = arith.constant 16 : index
    %c0_97 = arith.constant 0 : index
    %80 = vector.load %arg3[%c0_94, %c0_95, %c16_96, %c0_97] : memref<1x1x156x8xbf16, #tpu.memory_space<vmem>>, vector<1x1x96x8xbf16>
    %81 = vector.shape_cast %80 : vector<1x1x96x8xbf16> to vector<96x8xbf16>
    %c0_98 = arith.constant 0 : index
    %c0_99 = arith.constant 0 : index
    %82 = vector.load %arg10[%c0_98, %c0_99] : memref<96x8xf32, #tpu.memory_space<vmem>>, vector<96x8xf32>
    %c0_100 = arith.constant 0 : index
    %c72 = arith.constant 72 : index
    %c0_101 = arith.constant 0 : index
    %83 = vector.load %arg4[%c0_100, %c72, %c0_101] : memref<1x272x8xbf16, #tpu.memory_space<vmem>>, vector<1x8x8xbf16>
    %84 = vector.shape_cast %83 : vector<1x8x8xbf16> to vector<8x8xbf16>
    %cst_102 = arith.constant dense<0.000000e+00> : vector<96x8xf32>
    %85 = tpu.matmul %81, %84, %cst_102 {dimension_numbers = #tpu.dot_dimension_numbers<[1], [0], [0], [1], [0, 0, 1, 1], [], []>} : vector<96x8xbf16>, vector<8x8xbf16>, vector<96x8xf32> -> vector<96x8xf32>
    %86 = arith.addf %82, %85 : vector<96x8xf32>
    %c0_103 = arith.constant 0 : index
    %c0_104 = arith.constant 0 : index
    %87 = vector.load %arg10[%c0_103, %c0_104] : memref<96x8xf32, #tpu.memory_space<vmem>>, vector<96x8xf32>
    tpu.vector_store %arg10[%c0_103, %c0_104], %86 {strides = array<i32>} : memref<96x8xf32, #tpu.memory_space<vmem>>, vector<96x8xf32>,
    %c0_105 = arith.constant 0 : index
    %c0_106 = arith.constant 0 : index
    %c24_107 = arith.constant 24 : index
    %c0_108 = arith.constant 0 : index
    %88 = vector.load %arg3[%c0_105, %c0_106, %c24_107, %c0_108] : memref<1x1x156x8xbf16, #tpu.memory_space<vmem>>, vector<1x1x96x8xbf16>
    %89 = vector.shape_cast %88 : vector<1x1x96x8xbf16> to vector<96x8xbf16>
    %c0_109 = arith.constant 0 : index
    %c0_110 = arith.constant 0 : index
    %90 = vector.load %arg10[%c0_109, %c0_110] : memref<96x8xf32, #tpu.memory_space<vmem>>, vector<96x8xf32>
    %c0_111 = arith.constant 0 : index
    %c80 = arith.constant 80 : index
    %c0_112 = arith.constant 0 : index
    %91 = vector.load %arg4[%c0_111, %c80, %c0_112] : memref<1x272x8xbf16, #tpu.memory_space<vmem>>, vector<1x8x8xbf16>
    %92 = vector.shape_cast %91 : vector<1x8x8xbf16> to vector<8x8xbf16>
    %cst_113 = arith.constant dense<0.000000e+00> : vector<96x8xf32>
    %93 = tpu.matmul %89, %92, %cst_113 {dimension_numbers = #tpu.dot_dimension_numbers<[1], [0], [0], [1], [0, 0, 1, 1], [], []>} : vector<96x8xbf16>, vector<8x8xbf16>, vector<96x8xf32> -> vector<96x8xf32>
    %94 = arith.addf %90, %93 : vector<96x8xf32>
    %c0_114 = arith.constant 0 : index
    %c0_115 = arith.constant 0 : index
    %95 = vector.load %arg10[%c0_114, %c0_115] : memref<96x8xf32, #tpu.memory_space<vmem>>, vector<96x8xf32>
    tpu.vector_store %arg10[%c0_114, %c0_115], %94 {strides = array<i32>} : memref<96x8xf32, #tpu.memory_space<vmem>>, vector<96x8xf32>,
    %c0_116 = arith.constant 0 : index
    %c0_117 = arith.constant 0 : index
    %c25 = arith.constant 25 : index
    %c0_118 = arith.constant 0 : index
    %96 = vector.load %arg3[%c0_116, %c0_117, %c25, %c0_118] : memref<1x1x156x8xbf16, #tpu.memory_space<vmem>>, vector<1x1x96x8xbf16>
    %97 = vector.shape_cast %96 : vector<1x1x96x8xbf16> to vector<96x8xbf16>
    %c0_119 = arith.constant 0 : index
    %c0_120 = arith.constant 0 : index
    %98 = vector.load %arg10[%c0_119, %c0_120] : memref<96x8xf32, #tpu.memory_space<vmem>>, vector<96x8xf32>
    %c0_121 = arith.constant 0 : index
    %c88 = arith.constant 88 : index
    %c0_122 = arith.constant 0 : index
    %99 = vector.load %arg4[%c0_121, %c88, %c0_122] : memref<1x272x8xbf16, #tpu.memory_space<vmem>>, vector<1x8x8xbf16>
    %100 = vector.shape_cast %99 : vector<1x8x8xbf16> to vector<8x8xbf16>
    %cst_123 = arith.constant dense<0.000000e+00> : vector<96x8xf32>
    %101 = tpu.matmul %97, %100, %cst_123 {dimension_numbers = #tpu.dot_dimension_numbers<[1], [0], [0], [1], [0, 0, 1, 1], [], []>} : vector<96x8xbf16>, vector<8x8xbf16>, vector<96x8xf32> -> vector<96x8xf32>
    %102 = arith.addf %98, %101 : vector<96x8xf32>
    %c0_124 = arith.constant 0 : index
    %c0_125 = arith.constant 0 : index
    %103 = vector.load %arg10[%c0_124, %c0_125] : memref<96x8xf32, #tpu.memory_space<vmem>>, vector<96x8xf32>
    tpu.vector_store %arg10[%c0_124, %c0_125], %102 {strides = array<i32>} : memref<96x8xf32, #tpu.memory_space<vmem>>, vector<96x8xf32>,
    %c0_126 = arith.constant 0 : index
    %c0_127 = arith.constant 0 : index
    %c26 = arith.constant 26 : index
    %c0_128 = arith.constant 0 : index
    %104 = vector.load %arg3[%c0_126, %c0_127, %c26, %c0_128] : memref<1x1x156x8xbf16, #tpu.memory_space<vmem>>, vector<1x1x96x8xbf16>
    %105 = vector.shape_cast %104 : vector<1x1x96x8xbf16> to vector<96x8xbf16>
    %c0_129 = arith.constant 0 : index
    %c0_130 = arith.constant 0 : index
    %106 = vector.load %arg10[%c0_129, %c0_130] : memref<96x8xf32, #tpu.memory_space<vmem>>, vector<96x8xf32>
    %c0_131 = arith.constant 0 : index
    %c96 = arith.constant 96 : index
    %c0_132 = arith.constant 0 : index
    %107 = vector.load %arg4[%c0_131, %c96, %c0_132] : memref<1x272x8xbf16, #tpu.memory_space<vmem>>, vector<1x8x8xbf16>
    %108 = vector.shape_cast %107 : vector<1x8x8xbf16> to vector<8x8xbf16>
    %cst_133 = arith.constant dense<0.000000e+00> : vector<96x8xf32>
    %109 = tpu.matmul %105, %108, %cst_133 {dimension_numbers = #tpu.dot_dimension_numbers<[1], [0], [0], [1], [0, 0, 1, 1], [], []>} : vector<96x8xbf16>, vector<8x8xbf16>, vector<96x8xf32> -> vector<96x8xf32>
    %110 = arith.addf %106, %109 : vector<96x8xf32>
    %c0_134 = arith.constant 0 : index
    %c0_135 = arith.constant 0 : index
    %111 = vector.load %arg10[%c0_134, %c0_135] : memref<96x8xf32, #tpu.memory_space<vmem>>, vector<96x8xf32>
    tpu.vector_store %arg10[%c0_134, %c0_135], %110 {strides = array<i32>} : memref<96x8xf32, #tpu.memory_space<vmem>>, vector<96x8xf32>,
    %c0_136 = arith.constant 0 : index
    %c0_137 = arith.constant 0 : index
    %c27 = arith.constant 27 : index
    %c0_138 = arith.constant 0 : index
    %112 = vector.load %arg3[%c0_136, %c0_137, %c27, %c0_138] : memref<1x1x156x8xbf16, #tpu.memory_space<vmem>>, vector<1x1x96x8xbf16>
    %113 = vector.shape_cast %112 : vector<1x1x96x8xbf16> to vector<96x8xbf16>
    %c0_139 = arith.constant 0 : index
    %c0_140 = arith.constant 0 : index
    %114 = vector.load %arg10[%c0_139, %c0_140] : memref<96x8xf32, #tpu.memory_space<vmem>>, vector<96x8xf32>
    %c0_141 = arith.constant 0 : index
    %c104 = arith.constant 104 : index
    %c0_142 = arith.constant 0 : index
    %115 = vector.load %arg4[%c0_141, %c104, %c0_142] : memref<1x272x8xbf16, #tpu.memory_space<vmem>>, vector<1x8x8xbf16>
    %116 = vector.shape_cast %115 : vector<1x8x8xbf16> to vector<8x8xbf16>
    %cst_143 = arith.constant dense<0.000000e+00> : vector<96x8xf32>
    %117 = tpu.matmul %113, %116, %cst_143 {dimension_numbers = #tpu.dot_dimension_numbers<[1], [0], [0], [1], [0, 0, 1, 1], [], []>} : vector<96x8xbf16>, vector<8x8xbf16>, vector<96x8xf32> -> vector<96x8xf32>
    %118 = arith.addf %114, %117 : vector<96x8xf32>
    %c0_144 = arith.constant 0 : index
    %c0_145 = arith.constant 0 : index
    %119 = vector.load %arg10[%c0_144, %c0_145] : memref<96x8xf32, #tpu.memory_space<vmem>>, vector<96x8xf32>
    tpu.vector_store %arg10[%c0_144, %c0_145], %118 {strides = array<i32>} : memref<96x8xf32, #tpu.memory_space<vmem>>, vector<96x8xf32>,
    %c0_146 = arith.constant 0 : index
    %c0_147 = arith.constant 0 : index
    %c28 = arith.constant 28 : index
    %c0_148 = arith.constant 0 : index
    %120 = vector.load %arg3[%c0_146, %c0_147, %c28, %c0_148] : memref<1x1x156x8xbf16, #tpu.memory_space<vmem>>, vector<1x1x96x8xbf16>
    %121 = vector.shape_cast %120 : vector<1x1x96x8xbf16> to vector<96x8xbf16>
    %c0_149 = arith.constant 0 : index
    %c0_150 = arith.constant 0 : index
    %122 = vector.load %arg10[%c0_149, %c0_150] : memref<96x8xf32, #tpu.memory_space<vmem>>, vector<96x8xf32>
    %c0_151 = arith.constant 0 : index
    %c112 = arith.constant 112 : index
    %c0_152 = arith.constant 0 : index
    %123 = vector.load %arg4[%c0_151, %c112, %c0_152] : memref<1x272x8xbf16, #tpu.memory_space<vmem>>, vector<1x8x8xbf16>
    %124 = vector.shape_cast %123 : vector<1x8x8xbf16> to vector<8x8xbf16>
    %cst_153 = arith.constant dense<0.000000e+00> : vector<96x8xf32>
    %125 = tpu.matmul %121, %124, %cst_153 {dimension_numbers = #tpu.dot_dimension_numbers<[1], [0], [0], [1], [0, 0, 1, 1], [], []>} : vector<96x8xbf16>, vector<8x8xbf16>, vector<96x8xf32> -> vector<96x8xf32>
    %126 = arith.addf %122, %125 : vector<96x8xf32>
    %c0_154 = arith.constant 0 : index
    %c0_155 = arith.constant 0 : index
    %127 = vector.load %arg10[%c0_154, %c0_155] : memref<96x8xf32, #tpu.memory_space<vmem>>, vector<96x8xf32>
    tpu.vector_store %arg10[%c0_154, %c0_155], %126 {strides = array<i32>} : memref<96x8xf32, #tpu.memory_space<vmem>>, vector<96x8xf32>,
    %c0_156 = arith.constant 0 : index
    %c0_157 = arith.constant 0 : index
    %c36 = arith.constant 36 : index
    %c0_158 = arith.constant 0 : index
    %128 = vector.load %arg3[%c0_156, %c0_157, %c36, %c0_158] : memref<1x1x156x8xbf16, #tpu.memory_space<vmem>>, vector<1x1x96x8xbf16>
    %129 = vector.shape_cast %128 : vector<1x1x96x8xbf16> to vector<96x8xbf16>
    %c0_159 = arith.constant 0 : index
    %c0_160 = arith.constant 0 : index
    %130 = vector.load %arg10[%c0_159, %c0_160] : memref<96x8xf32, #tpu.memory_space<vmem>>, vector<96x8xf32>
    %c0_161 = arith.constant 0 : index
    %c120 = arith.constant 120 : index
    %c0_162 = arith.constant 0 : index
    %131 = vector.load %arg4[%c0_161, %c120, %c0_162] : memref<1x272x8xbf16, #tpu.memory_space<vmem>>, vector<1x8x8xbf16>
    %132 = vector.shape_cast %131 : vector<1x8x8xbf16> to vector<8x8xbf16>
    %cst_163 = arith.constant dense<0.000000e+00> : vector<96x8xf32>
    %133 = tpu.matmul %129, %132, %cst_163 {dimension_numbers = #tpu.dot_dimension_numbers<[1], [0], [0], [1], [0, 0, 1, 1], [], []>} : vector<96x8xbf16>, vector<8x8xbf16>, vector<96x8xf32> -> vector<96x8xf32>
    %134 = arith.addf %130, %133 : vector<96x8xf32>
    %c0_164 = arith.constant 0 : index
    %c0_165 = arith.constant 0 : index
    %135 = vector.load %arg10[%c0_164, %c0_165] : memref<96x8xf32, #tpu.memory_space<vmem>>, vector<96x8xf32>
    tpu.vector_store %arg10[%c0_164, %c0_165], %134 {strides = array<i32>} : memref<96x8xf32, #tpu.memory_space<vmem>>, vector<96x8xf32>,
    %c0_166 = arith.constant 0 : index
    %c0_167 = arith.constant 0 : index
    %c37 = arith.constant 37 : index
    %c0_168 = arith.constant 0 : index
    %136 = vector.load %arg3[%c0_166, %c0_167, %c37, %c0_168] : memref<1x1x156x8xbf16, #tpu.memory_space<vmem>>, vector<1x1x96x8xbf16>
    %137 = vector.shape_cast %136 : vector<1x1x96x8xbf16> to vector<96x8xbf16>
    %c0_169 = arith.constant 0 : index
    %c0_170 = arith.constant 0 : index
    %138 = vector.load %arg10[%c0_169, %c0_170] : memref<96x8xf32, #tpu.memory_space<vmem>>, vector<96x8xf32>
    %c0_171 = arith.constant 0 : index
    %c128 = arith.constant 128 : index
    %c0_172 = arith.constant 0 : index
    %139 = vector.load %arg4[%c0_171, %c128, %c0_172] : memref<1x272x8xbf16, #tpu.memory_space<vmem>>, vector<1x8x8xbf16>
    %140 = vector.shape_cast %139 : vector<1x8x8xbf16> to vector<8x8xbf16>
    %cst_173 = arith.constant dense<0.000000e+00> : vector<96x8xf32>
    %141 = tpu.matmul %137, %140, %cst_173 {dimension_numbers = #tpu.dot_dimension_numbers<[1], [0], [0], [1], [0, 0, 1, 1], [], []>} : vector<96x8xbf16>, vector<8x8xbf16>, vector<96x8xf32> -> vector<96x8xf32>
    %142 = arith.addf %138, %141 : vector<96x8xf32>
    %c0_174 = arith.constant 0 : index
    %c0_175 = arith.constant 0 : index
    %143 = vector.load %arg10[%c0_174, %c0_175] : memref<96x8xf32, #tpu.memory_space<vmem>>, vector<96x8xf32>
    tpu.vector_store %arg10[%c0_174, %c0_175], %142 {strides = array<i32>} : memref<96x8xf32, #tpu.memory_space<vmem>>, vector<96x8xf32>,
    %c0_176 = arith.constant 0 : index
    %c0_177 = arith.constant 0 : index
    %c38 = arith.constant 38 : index
    %c0_178 = arith.constant 0 : index
    %144 = vector.load %arg3[%c0_176, %c0_177, %c38, %c0_178] : memref<1x1x156x8xbf16, #tpu.memory_space<vmem>>, vector<1x1x96x8xbf16>
    %145 = vector.shape_cast %144 : vector<1x1x96x8xbf16> to vector<96x8xbf16>
    %c0_179 = arith.constant 0 : index
    %c0_180 = arith.constant 0 : index
    %146 = vector.load %arg10[%c0_179, %c0_180] : memref<96x8xf32, #tpu.memory_space<vmem>>, vector<96x8xf32>
    %c0_181 = arith.constant 0 : index
    %c136 = arith.constant 136 : index
    %c0_182 = arith.constant 0 : index
    %147 = vector.load %arg4[%c0_181, %c136, %c0_182] : memref<1x272x8xbf16, #tpu.memory_space<vmem>>, vector<1x8x8xbf16>
    %148 = vector.shape_cast %147 : vector<1x8x8xbf16> to vector<8x8xbf16>
    %cst_183 = arith.constant dense<0.000000e+00> : vector<96x8xf32>
    %149 = tpu.matmul %145, %148, %cst_183 {dimension_numbers = #tpu.dot_dimension_numbers<[1], [0], [0], [1], [0, 0, 1, 1], [], []>} : vector<96x8xbf16>, vector<8x8xbf16>, vector<96x8xf32> -> vector<96x8xf32>
    %150 = arith.addf %146, %149 : vector<96x8xf32>
    %c0_184 = arith.constant 0 : index
    %c0_185 = arith.constant 0 : index
    %151 = vector.load %arg10[%c0_184, %c0_185] : memref<96x8xf32, #tpu.memory_space<vmem>>, vector<96x8xf32>
    tpu.vector_store %arg10[%c0_184, %c0_185], %150 {strides = array<i32>} : memref<96x8xf32, #tpu.memory_space<vmem>>, vector<96x8xf32>,
    %c0_186 = arith.constant 0 : index
    %c0_187 = arith.constant 0 : index
    %c39 = arith.constant 39 : index
    %c0_188 = arith.constant 0 : index
    %152 = vector.load %arg3[%c0_186, %c0_187, %c39, %c0_188] : memref<1x1x156x8xbf16, #tpu.memory_space<vmem>>, vector<1x1x96x8xbf16>
    %153 = vector.shape_cast %152 : vector<1x1x96x8xbf16> to vector<96x8xbf16>
    %c0_189 = arith.constant 0 : index
    %c0_190 = arith.constant 0 : index
    %154 = vector.load %arg10[%c0_189, %c0_190] : memref<96x8xf32, #tpu.memory_space<vmem>>, vector<96x8xf32>
    %c0_191 = arith.constant 0 : index
    %c144 = arith.constant 144 : index
    %c0_192 = arith.constant 0 : index
    %155 = vector.load %arg4[%c0_191, %c144, %c0_192] : memref<1x272x8xbf16, #tpu.memory_space<vmem>>, vector<1x8x8xbf16>
    %156 = vector.shape_cast %155 : vector<1x8x8xbf16> to vector<8x8xbf16>
    %cst_193 = arith.constant dense<0.000000e+00> : vector<96x8xf32>
    %157 = tpu.matmul %153, %156, %cst_193 {dimension_numbers = #tpu.dot_dimension_numbers<[1], [0], [0], [1], [0, 0, 1, 1], [], []>} : vector<96x8xbf16>, vector<8x8xbf16>, vector<96x8xf32> -> vector<96x8xf32>
    %158 = arith.addf %154, %157 : vector<96x8xf32>
    %c0_194 = arith.constant 0 : index
    %c0_195 = arith.constant 0 : index
    %159 = vector.load %arg10[%c0_194, %c0_195] : memref<96x8xf32, #tpu.memory_space<vmem>>, vector<96x8xf32>
    tpu.vector_store %arg10[%c0_194, %c0_195], %158 {strides = array<i32>} : memref<96x8xf32, #tpu.memory_space<vmem>>, vector<96x8xf32>,
    %c0_196 = arith.constant 0 : index
    %c0_197 = arith.constant 0 : index
    %c40_198 = arith.constant 40 : index
    %c0_199 = arith.constant 0 : index
    %160 = vector.load %arg3[%c0_196, %c0_197, %c40_198, %c0_199] : memref<1x1x156x8xbf16, #tpu.memory_space<vmem>>, vector<1x1x96x8xbf16>
    %161 = vector.shape_cast %160 : vector<1x1x96x8xbf16> to vector<96x8xbf16>
    %c0_200 = arith.constant 0 : index
    %c0_201 = arith.constant 0 : index
    %162 = vector.load %arg10[%c0_200, %c0_201] : memref<96x8xf32, #tpu.memory_space<vmem>>, vector<96x8xf32>
    %c0_202 = arith.constant 0 : index
    %c152 = arith.constant 152 : index
    %c0_203 = arith.constant 0 : index
    %163 = vector.load %arg4[%c0_202, %c152, %c0_203] : memref<1x272x8xbf16, #tpu.memory_space<vmem>>, vector<1x8x8xbf16>
    %164 = vector.shape_cast %163 : vector<1x8x8xbf16> to vector<8x8xbf16>
    %cst_204 = arith.constant dense<0.000000e+00> : vector<96x8xf32>
    %165 = tpu.matmul %161, %164, %cst_204 {dimension_numbers = #tpu.dot_dimension_numbers<[1], [0], [0], [1], [0, 0, 1, 1], [], []>} : vector<96x8xbf16>, vector<8x8xbf16>, vector<96x8xf32> -> vector<96x8xf32>
    %166 = arith.addf %162, %165 : vector<96x8xf32>
    %c0_205 = arith.constant 0 : index
    %c0_206 = arith.constant 0 : index
    %167 = vector.load %arg10[%c0_205, %c0_206] : memref<96x8xf32, #tpu.memory_space<vmem>>, vector<96x8xf32>
    tpu.vector_store %arg10[%c0_205, %c0_206], %166 {strides = array<i32>} : memref<96x8xf32, #tpu.memory_space<vmem>>, vector<96x8xf32>,
    %c0_207 = arith.constant 0 : index
    %c0_208 = arith.constant 0 : index
    %c48_209 = arith.constant 48 : index
    %c0_210 = arith.constant 0 : index
    %168 = vector.load %arg3[%c0_207, %c0_208, %c48_209, %c0_210] : memref<1x1x156x8xbf16, #tpu.memory_space<vmem>>, vector<1x1x96x8xbf16>
    %169 = vector.shape_cast %168 : vector<1x1x96x8xbf16> to vector<96x8xbf16>
    %c0_211 = arith.constant 0 : index
    %c0_212 = arith.constant 0 : index
    %170 = vector.load %arg10[%c0_211, %c0_212] : memref<96x8xf32, #tpu.memory_space<vmem>>, vector<96x8xf32>
    %c0_213 = arith.constant 0 : index
    %c160 = arith.constant 160 : index
    %c0_214 = arith.constant 0 : index
    %171 = vector.load %arg4[%c0_213, %c160, %c0_214] : memref<1x272x8xbf16, #tpu.memory_space<vmem>>, vector<1x8x8xbf16>
    %172 = vector.shape_cast %171 : vector<1x8x8xbf16> to vector<8x8xbf16>
    %cst_215 = arith.constant dense<0.000000e+00> : vector<96x8xf32>
    %173 = tpu.matmul %169, %172, %cst_215 {dimension_numbers = #tpu.dot_dimension_numbers<[1], [0], [0], [1], [0, 0, 1, 1], [], []>} : vector<96x8xbf16>, vector<8x8xbf16>, vector<96x8xf32> -> vector<96x8xf32>
    %174 = arith.addf %170, %173 : vector<96x8xf32>
    %c0_216 = arith.constant 0 : index
    %c0_217 = arith.constant 0 : index
    %175 = vector.load %arg10[%c0_216, %c0_217] : memref<96x8xf32, #tpu.memory_space<vmem>>, vector<96x8xf32>
    tpu.vector_store %arg10[%c0_216, %c0_217], %174 {strides = array<i32>} : memref<96x8xf32, #tpu.memory_space<vmem>>, vector<96x8xf32>,
    %c0_218 = arith.constant 0 : index
    %c0_219 = arith.constant 0 : index
    %c49 = arith.constant 49 : index
    %c0_220 = arith.constant 0 : index
    %176 = vector.load %arg3[%c0_218, %c0_219, %c49, %c0_220] : memref<1x1x156x8xbf16, #tpu.memory_space<vmem>>, vector<1x1x96x8xbf16>
    %177 = vector.shape_cast %176 : vector<1x1x96x8xbf16> to vector<96x8xbf16>
    %c0_221 = arith.constant 0 : index
    %c0_222 = arith.constant 0 : index
    %178 = vector.load %arg10[%c0_221, %c0_222] : memref<96x8xf32, #tpu.memory_space<vmem>>, vector<96x8xf32>
    %c0_223 = arith.constant 0 : index
    %c168 = arith.constant 168 : index
    %c0_224 = arith.constant 0 : index
    %179 = vector.load %arg4[%c0_223, %c168, %c0_224] : memref<1x272x8xbf16, #tpu.memory_space<vmem>>, vector<1x8x8xbf16>
    %180 = vector.shape_cast %179 : vector<1x8x8xbf16> to vector<8x8xbf16>
    %cst_225 = arith.constant dense<0.000000e+00> : vector<96x8xf32>
    %181 = tpu.matmul %177, %180, %cst_225 {dimension_numbers = #tpu.dot_dimension_numbers<[1], [0], [0], [1], [0, 0, 1, 1], [], []>} : vector<96x8xbf16>, vector<8x8xbf16>, vector<96x8xf32> -> vector<96x8xf32>
    %182 = arith.addf %178, %181 : vector<96x8xf32>
    %c0_226 = arith.constant 0 : index
    %c0_227 = arith.constant 0 : index
    %183 = vector.load %arg10[%c0_226, %c0_227] : memref<96x8xf32, #tpu.memory_space<vmem>>, vector<96x8xf32>
    tpu.vector_store %arg10[%c0_226, %c0_227], %182 {strides = array<i32>} : memref<96x8xf32, #tpu.memory_space<vmem>>, vector<96x8xf32>,
    %c0_228 = arith.constant 0 : index
    %c0_229 = arith.constant 0 : index
    %c50 = arith.constant 50 : index
    %c0_230 = arith.constant 0 : index
    %184 = vector.load %arg3[%c0_228, %c0_229, %c50, %c0_230] : memref<1x1x156x8xbf16, #tpu.memory_space<vmem>>, vector<1x1x96x8xbf16>
    %185 = vector.shape_cast %184 : vector<1x1x96x8xbf16> to vector<96x8xbf16>
    %c0_231 = arith.constant 0 : index
    %c0_232 = arith.constant 0 : index
    %186 = vector.load %arg10[%c0_231, %c0_232] : memref<96x8xf32, #tpu.memory_space<vmem>>, vector<96x8xf32>
    %c0_233 = arith.constant 0 : index
    %c176 = arith.constant 176 : index
    %c0_234 = arith.constant 0 : index
    %187 = vector.load %arg4[%c0_233, %c176, %c0_234] : memref<1x272x8xbf16, #tpu.memory_space<vmem>>, vector<1x8x8xbf16>
    %188 = vector.shape_cast %187 : vector<1x8x8xbf16> to vector<8x8xbf16>
    %cst_235 = arith.constant dense<0.000000e+00> : vector<96x8xf32>
    %189 = tpu.matmul %185, %188, %cst_235 {dimension_numbers = #tpu.dot_dimension_numbers<[1], [0], [0], [1], [0, 0, 1, 1], [], []>} : vector<96x8xbf16>, vector<8x8xbf16>, vector<96x8xf32> -> vector<96x8xf32>
    %190 = arith.addf %186, %189 : vector<96x8xf32>
    %c0_236 = arith.constant 0 : index
    %c0_237 = arith.constant 0 : index
    %191 = vector.load %arg10[%c0_236, %c0_237] : memref<96x8xf32, #tpu.memory_space<vmem>>, vector<96x8xf32>
    tpu.vector_store %arg10[%c0_236, %c0_237], %190 {strides = array<i32>} : memref<96x8xf32, #tpu.memory_space<vmem>>, vector<96x8xf32>,
    %c0_238 = arith.constant 0 : index
    %c0_239 = arith.constant 0 : index
    %c51 = arith.constant 51 : index
    %c0_240 = arith.constant 0 : index
    %192 = vector.load %arg3[%c0_238, %c0_239, %c51, %c0_240] : memref<1x1x156x8xbf16, #tpu.memory_space<vmem>>, vector<1x1x96x8xbf16>
    %193 = vector.shape_cast %192 : vector<1x1x96x8xbf16> to vector<96x8xbf16>
    %c0_241 = arith.constant 0 : index
    %c0_242 = arith.constant 0 : index
    %194 = vector.load %arg10[%c0_241, %c0_242] : memref<96x8xf32, #tpu.memory_space<vmem>>, vector<96x8xf32>
    %c0_243 = arith.constant 0 : index
    %c184 = arith.constant 184 : index
    %c0_244 = arith.constant 0 : index
    %195 = vector.load %arg4[%c0_243, %c184, %c0_244] : memref<1x272x8xbf16, #tpu.memory_space<vmem>>, vector<1x8x8xbf16>
    %196 = vector.shape_cast %195 : vector<1x8x8xbf16> to vector<8x8xbf16>
    %cst_245 = arith.constant dense<0.000000e+00> : vector<96x8xf32>
    %197 = tpu.matmul %193, %196, %cst_245 {dimension_numbers = #tpu.dot_dimension_numbers<[1], [0], [0], [1], [0, 0, 1, 1], [], []>} : vector<96x8xbf16>, vector<8x8xbf16>, vector<96x8xf32> -> vector<96x8xf32>
    %198 = arith.addf %194, %197 : vector<96x8xf32>
    %c0_246 = arith.constant 0 : index
    %c0_247 = arith.constant 0 : index
    %199 = vector.load %arg10[%c0_246, %c0_247] : memref<96x8xf32, #tpu.memory_space<vmem>>, vector<96x8xf32>
    tpu.vector_store %arg10[%c0_246, %c0_247], %198 {strides = array<i32>} : memref<96x8xf32, #tpu.memory_space<vmem>>, vector<96x8xf32>,
    %c0_248 = arith.constant 0 : index
    %c0_249 = arith.constant 0 : index
    %c52 = arith.constant 52 : index
    %c0_250 = arith.constant 0 : index
    %200 = vector.load %arg3[%c0_248, %c0_249, %c52, %c0_250] : memref<1x1x156x8xbf16, #tpu.memory_space<vmem>>, vector<1x1x96x8xbf16>
    %201 = vector.shape_cast %200 : vector<1x1x96x8xbf16> to vector<96x8xbf16>
    %c0_251 = arith.constant 0 : index
    %c0_252 = arith.constant 0 : index
    %202 = vector.load %arg10[%c0_251, %c0_252] : memref<96x8xf32, #tpu.memory_space<vmem>>, vector<96x8xf32>
    %c0_253 = arith.constant 0 : index
    %c192 = arith.constant 192 : index
    %c0_254 = arith.constant 0 : index
    %203 = vector.load %arg4[%c0_253, %c192, %c0_254] : memref<1x272x8xbf16, #tpu.memory_space<vmem>>, vector<1x8x8xbf16>
    %204 = vector.shape_cast %203 : vector<1x8x8xbf16> to vector<8x8xbf16>
    %cst_255 = arith.constant dense<0.000000e+00> : vector<96x8xf32>
    %205 = tpu.matmul %201, %204, %cst_255 {dimension_numbers = #tpu.dot_dimension_numbers<[1], [0], [0], [1], [0, 0, 1, 1], [], []>} : vector<96x8xbf16>, vector<8x8xbf16>, vector<96x8xf32> -> vector<96x8xf32>
    %206 = arith.addf %202, %205 : vector<96x8xf32>
    %c0_256 = arith.constant 0 : index
    %c0_257 = arith.constant 0 : index
    %207 = vector.load %arg10[%c0_256, %c0_257] : memref<96x8xf32, #tpu.memory_space<vmem>>, vector<96x8xf32>
    tpu.vector_store %arg10[%c0_256, %c0_257], %206 {strides = array<i32>} : memref<96x8xf32, #tpu.memory_space<vmem>>, vector<96x8xf32>,
    %c1_i32 = arith.constant 1 : i32
    %208 = arith.cmpi sge, %arg2, %c1_i32 : i32
    %c3_i32 = arith.constant 3 : i32
    %209 = arith.cmpi sle, %arg2, %c3_i32 : i32
    %210 = arith.andi %208, %209 : i1
    %211 = arith.extui %210 : i1 to i32
    %c0_i32_258 = arith.constant 0 : i32
    %212 = arith.cmpi ne, %211, %c0_i32_258 : i32
    scf.if %212 {
      %c0_262 = arith.constant 0 : index
      %c0_263 = arith.constant 0 : index
      %c13_264 = arith.constant 13 : index
      %c0_265 = arith.constant 0 : index
      %221 = vector.load %arg3[%c0_262, %c0_263, %c13_264, %c0_265] : memref<1x1x156x8xbf16, #tpu.memory_space<vmem>>, vector<1x1x96x8xbf16>
      %222 = vector.shape_cast %221 : vector<1x1x96x8xbf16> to vector<96x8xbf16>
      %c0_266 = arith.constant 0 : index
      %c0_267 = arith.constant 0 : index
      %223 = vector.load %arg9[%c0_266, %c0_267] : memref<96x8xf32, #tpu.memory_space<vmem>>, vector<96x8xf32>
      %c0_268 = arith.constant 0 : index
      %c200 = arith.constant 200 : index
      %c0_269 = arith.constant 0 : index
      %224 = vector.load %arg4[%c0_268, %c200, %c0_269] : memref<1x272x8xbf16, #tpu.memory_space<vmem>>, vector<1x8x8xbf16>
      %225 = vector.shape_cast %224 : vector<1x8x8xbf16> to vector<8x8xbf16>
      %cst_270 = arith.constant dense<0.000000e+00> : vector<96x8xf32>
      %226 = tpu.matmul %222, %225, %cst_270 {dimension_numbers = #tpu.dot_dimension_numbers<[1], [0], [0], [1], [0, 0, 1, 1], [], []>} : vector<96x8xbf16>, vector<8x8xbf16>, vector<96x8xf32> -> vector<96x8xf32>
      %227 = arith.addf %223, %226 : vector<96x8xf32>
      %c0_271 = arith.constant 0 : index
      %c0_272 = arith.constant 0 : index
      %228 = vector.load %arg9[%c0_271, %c0_272] : memref<96x8xf32, #tpu.memory_space<vmem>>, vector<96x8xf32>
      tpu.vector_store %arg9[%c0_271, %c0_272], %227 {strides = array<i32>} : memref<96x8xf32, #tpu.memory_space<vmem>>, vector<96x8xf32>,
      %c0_273 = arith.constant 0 : index
      %c0_274 = arith.constant 0 : index
      %c14_275 = arith.constant 14 : index
      %c0_276 = arith.constant 0 : index
      %229 = vector.load %arg3[%c0_273, %c0_274, %c14_275, %c0_276] : memref<1x1x156x8xbf16, #tpu.memory_space<vmem>>, vector<1x1x96x8xbf16>
      %230 = vector.shape_cast %229 : vector<1x1x96x8xbf16> to vector<96x8xbf16>
      %c0_277 = arith.constant 0 : index
      %c0_278 = arith.constant 0 : index
      %231 = vector.load %arg9[%c0_277, %c0_278] : memref<96x8xf32, #tpu.memory_space<vmem>>, vector<96x8xf32>
      %c0_279 = arith.constant 0 : index
      %c208 = arith.constant 208 : index
      %c0_280 = arith.constant 0 : index
      %232 = vector.load %arg4[%c0_279, %c208, %c0_280] : memref<1x272x8xbf16, #tpu.memory_space<vmem>>, vector<1x8x8xbf16>
      %233 = vector.shape_cast %232 : vector<1x8x8xbf16> to vector<8x8xbf16>
      %cst_281 = arith.constant dense<0.000000e+00> : vector<96x8xf32>
      %234 = tpu.matmul %230, %233, %cst_281 {dimension_numbers = #tpu.dot_dimension_numbers<[1], [0], [0], [1], [0, 0, 1, 1], [], []>} : vector<96x8xbf16>, vector<8x8xbf16>, vector<96x8xf32> -> vector<96x8xf32>
      %235 = arith.addf %231, %234 : vector<96x8xf32>
      %c0_282 = arith.constant 0 : index
      %c0_283 = arith.constant 0 : index
      %236 = vector.load %arg9[%c0_282, %c0_283] : memref<96x8xf32, #tpu.memory_space<vmem>>, vector<96x8xf32>
      tpu.vector_store %arg9[%c0_282, %c0_283], %235 {strides = array<i32>} : memref<96x8xf32, #tpu.memory_space<vmem>>, vector<96x8xf32>,
      %c0_284 = arith.constant 0 : index
      %c0_285 = arith.constant 0 : index
      %c15_286 = arith.constant 15 : index
      %c0_287 = arith.constant 0 : index
      %237 = vector.load %arg3[%c0_284, %c0_285, %c15_286, %c0_287] : memref<1x1x156x8xbf16, #tpu.memory_space<vmem>>, vector<1x1x96x8xbf16>
      %238 = vector.shape_cast %237 : vector<1x1x96x8xbf16> to vector<96x8xbf16>
      %c0_288 = arith.constant 0 : index
      %c0_289 = arith.constant 0 : index
      %239 = vector.load %arg9[%c0_288, %c0_289] : memref<96x8xf32, #tpu.memory_space<vmem>>, vector<96x8xf32>
      %c0_290 = arith.constant 0 : index
      %c216 = arith.constant 216 : index
      %c0_291 = arith.constant 0 : index
      %240 = vector.load %arg4[%c0_290, %c216, %c0_291] : memref<1x272x8xbf16, #tpu.memory_space<vmem>>, vector<1x8x8xbf16>
      %241 = vector.shape_cast %240 : vector<1x8x8xbf16> to vector<8x8xbf16>
      %cst_292 = arith.constant dense<0.000000e+00> : vector<96x8xf32>
      %242 = tpu.matmul %238, %241, %cst_292 {dimension_numbers = #tpu.dot_dimension_numbers<[1], [0], [0], [1], [0, 0, 1, 1], [], []>} : vector<96x8xbf16>, vector<8x8xbf16>, vector<96x8xf32> -> vector<96x8xf32>
      %243 = arith.addf %239, %242 : vector<96x8xf32>
      %c0_293 = arith.constant 0 : index
      %c0_294 = arith.constant 0 : index
      %244 = vector.load %arg9[%c0_293, %c0_294] : memref<96x8xf32, #tpu.memory_space<vmem>>, vector<96x8xf32>
      tpu.vector_store %arg9[%c0_293, %c0_294], %243 {strides = array<i32>} : memref<96x8xf32, #tpu.memory_space<vmem>>, vector<96x8xf32>,
      %c0_295 = arith.constant 0 : index
      %c0_296 = arith.constant 0 : index
      %c25_297 = arith.constant 25 : index
      %c0_298 = arith.constant 0 : index
      %245 = vector.load %arg3[%c0_295, %c0_296, %c25_297, %c0_298] : memref<1x1x156x8xbf16, #tpu.memory_space<vmem>>, vector<1x1x96x8xbf16>
      %246 = vector.shape_cast %245 : vector<1x1x96x8xbf16> to vector<96x8xbf16>
      %c0_299 = arith.constant 0 : index
      %c0_300 = arith.constant 0 : index
      %247 = vector.load %arg9[%c0_299, %c0_300] : memref<96x8xf32, #tpu.memory_space<vmem>>, vector<96x8xf32>
      %c0_301 = arith.constant 0 : index
      %c224 = arith.constant 224 : index
      %c0_302 = arith.constant 0 : index
      %248 = vector.load %arg4[%c0_301, %c224, %c0_302] : memref<1x272x8xbf16, #tpu.memory_space<vmem>>, vector<1x8x8xbf16>
      %249 = vector.shape_cast %248 : vector<1x8x8xbf16> to vector<8x8xbf16>
      %cst_303 = arith.constant dense<0.000000e+00> : vector<96x8xf32>
      %250 = tpu.matmul %246, %249, %cst_303 {dimension_numbers = #tpu.dot_dimension_numbers<[1], [0], [0], [1], [0, 0, 1, 1], [], []>} : vector<96x8xbf16>, vector<8x8xbf16>, vector<96x8xf32> -> vector<96x8xf32>
      %251 = arith.addf %247, %250 : vector<96x8xf32>
      %c0_304 = arith.constant 0 : index
      %c0_305 = arith.constant 0 : index
      %252 = vector.load %arg9[%c0_304, %c0_305] : memref<96x8xf32, #tpu.memory_space<vmem>>, vector<96x8xf32>
      tpu.vector_store %arg9[%c0_304, %c0_305], %251 {strides = array<i32>} : memref<96x8xf32, #tpu.memory_space<vmem>>, vector<96x8xf32>,
      %c0_306 = arith.constant 0 : index
      %c0_307 = arith.constant 0 : index
      %c26_308 = arith.constant 26 : index
      %c0_309 = arith.constant 0 : index
      %253 = vector.load %arg3[%c0_306, %c0_307, %c26_308, %c0_309] : memref<1x1x156x8xbf16, #tpu.memory_space<vmem>>, vector<1x1x96x8xbf16>
      %254 = vector.shape_cast %253 : vector<1x1x96x8xbf16> to vector<96x8xbf16>
      %c0_310 = arith.constant 0 : index
      %c0_311 = arith.constant 0 : index
      %255 = vector.load %arg9[%c0_310, %c0_311] : memref<96x8xf32, #tpu.memory_space<vmem>>, vector<96x8xf32>
      %c0_312 = arith.constant 0 : index
      %c232 = arith.constant 232 : index
      %c0_313 = arith.constant 0 : index
      %256 = vector.load %arg4[%c0_312, %c232, %c0_313] : memref<1x272x8xbf16, #tpu.memory_space<vmem>>, vector<1x8x8xbf16>
      %257 = vector.shape_cast %256 : vector<1x8x8xbf16> to vector<8x8xbf16>
      %cst_314 = arith.constant dense<0.000000e+00> : vector<96x8xf32>
      %258 = tpu.matmul %254, %257, %cst_314 {dimension_numbers = #tpu.dot_dimension_numbers<[1], [0], [0], [1], [0, 0, 1, 1], [], []>} : vector<96x8xbf16>, vector<8x8xbf16>, vector<96x8xf32> -> vector<96x8xf32>
      %259 = arith.addf %255, %258 : vector<96x8xf32>
      %c0_315 = arith.constant 0 : index
      %c0_316 = arith.constant 0 : index
      %260 = vector.load %arg9[%c0_315, %c0_316] : memref<96x8xf32, #tpu.memory_space<vmem>>, vector<96x8xf32>
      tpu.vector_store %arg9[%c0_315, %c0_316], %259 {strides = array<i32>} : memref<96x8xf32, #tpu.memory_space<vmem>>, vector<96x8xf32>,
      %c0_317 = arith.constant 0 : index
      %c0_318 = arith.constant 0 : index
      %c27_319 = arith.constant 27 : index
      %c0_320 = arith.constant 0 : index
      %261 = vector.load %arg3[%c0_317, %c0_318, %c27_319, %c0_320] : memref<1x1x156x8xbf16, #tpu.memory_space<vmem>>, vector<1x1x96x8xbf16>
      %262 = vector.shape_cast %261 : vector<1x1x96x8xbf16> to vector<96x8xbf16>
      %c0_321 = arith.constant 0 : index
      %c0_322 = arith.constant 0 : index
      %263 = vector.load %arg9[%c0_321, %c0_322] : memref<96x8xf32, #tpu.memory_space<vmem>>, vector<96x8xf32>
      %c0_323 = arith.constant 0 : index
      %c240 = arith.constant 240 : index
      %c0_324 = arith.constant 0 : index
      %264 = vector.load %arg4[%c0_323, %c240, %c0_324] : memref<1x272x8xbf16, #tpu.memory_space<vmem>>, vector<1x8x8xbf16>
      %265 = vector.shape_cast %264 : vector<1x8x8xbf16> to vector<8x8xbf16>
      %cst_325 = arith.constant dense<0.000000e+00> : vector<96x8xf32>
      %266 = tpu.matmul %262, %265, %cst_325 {dimension_numbers = #tpu.dot_dimension_numbers<[1], [0], [0], [1], [0, 0, 1, 1], [], []>} : vector<96x8xbf16>, vector<8x8xbf16>, vector<96x8xf32> -> vector<96x8xf32>
      %267 = arith.addf %263, %266 : vector<96x8xf32>
      %c0_326 = arith.constant 0 : index
      %c0_327 = arith.constant 0 : index
      %268 = vector.load %arg9[%c0_326, %c0_327] : memref<96x8xf32, #tpu.memory_space<vmem>>, vector<96x8xf32>
      tpu.vector_store %arg9[%c0_326, %c0_327], %267 {strides = array<i32>} : memref<96x8xf32, #tpu.memory_space<vmem>>, vector<96x8xf32>,
      %c0_328 = arith.constant 0 : index
      %c0_329 = arith.constant 0 : index
      %c37_330 = arith.constant 37 : index
      %c0_331 = arith.constant 0 : index
      %269 = vector.load %arg3[%c0_328, %c0_329, %c37_330, %c0_331] : memref<1x1x156x8xbf16, #tpu.memory_space<vmem>>, vector<1x1x96x8xbf16>
      %270 = vector.shape_cast %269 : vector<1x1x96x8xbf16> to vector<96x8xbf16>
      %c0_332 = arith.constant 0 : index
      %c0_333 = arith.constant 0 : index
      %271 = vector.load %arg9[%c0_332, %c0_333] : memref<96x8xf32, #tpu.memory_space<vmem>>, vector<96x8xf32>
      %c0_334 = arith.constant 0 : index
      %c248 = arith.constant 248 : index
      %c0_335 = arith.constant 0 : index
      %272 = vector.load %arg4[%c0_334, %c248, %c0_335] : memref<1x272x8xbf16, #tpu.memory_space<vmem>>, vector<1x8x8xbf16>
      %273 = vector.shape_cast %272 : vector<1x8x8xbf16> to vector<8x8xbf16>
      %cst_336 = arith.constant dense<0.000000e+00> : vector<96x8xf32>
      %274 = tpu.matmul %270, %273, %cst_336 {dimension_numbers = #tpu.dot_dimension_numbers<[1], [0], [0], [1], [0, 0, 1, 1], [], []>} : vector<96x8xbf16>, vector<8x8xbf16>, vector<96x8xf32> -> vector<96x8xf32>
      %275 = arith.addf %271, %274 : vector<96x8xf32>
      %c0_337 = arith.constant 0 : index
      %c0_338 = arith.constant 0 : index
      %276 = vector.load %arg9[%c0_337, %c0_338] : memref<96x8xf32, #tpu.memory_space<vmem>>, vector<96x8xf32>
      tpu.vector_store %arg9[%c0_337, %c0_338], %275 {strides = array<i32>} : memref<96x8xf32, #tpu.memory_space<vmem>>, vector<96x8xf32>,
      %c0_339 = arith.constant 0 : index
      %c0_340 = arith.constant 0 : index
      %c38_341 = arith.constant 38 : index
      %c0_342 = arith.constant 0 : index
      %277 = vector.load %arg3[%c0_339, %c0_340, %c38_341, %c0_342] : memref<1x1x156x8xbf16, #tpu.memory_space<vmem>>, vector<1x1x96x8xbf16>
      %278 = vector.shape_cast %277 : vector<1x1x96x8xbf16> to vector<96x8xbf16>
      %c0_343 = arith.constant 0 : index
      %c0_344 = arith.constant 0 : index
      %279 = vector.load %arg9[%c0_343, %c0_344] : memref<96x8xf32, #tpu.memory_space<vmem>>, vector<96x8xf32>
      %c0_345 = arith.constant 0 : index
      %c256 = arith.constant 256 : index
      %c0_346 = arith.constant 0 : index
      %280 = vector.load %arg4[%c0_345, %c256, %c0_346] : memref<1x272x8xbf16, #tpu.memory_space<vmem>>, vector<1x8x8xbf16>
      %281 = vector.shape_cast %280 : vector<1x8x8xbf16> to vector<8x8xbf16>
      %cst_347 = arith.constant dense<0.000000e+00> : vector<96x8xf32>
      %282 = tpu.matmul %278, %281, %cst_347 {dimension_numbers = #tpu.dot_dimension_numbers<[1], [0], [0], [1], [0, 0, 1, 1], [], []>} : vector<96x8xbf16>, vector<8x8xbf16>, vector<96x8xf32> -> vector<96x8xf32>
      %283 = arith.addf %279, %282 : vector<96x8xf32>
      %c0_348 = arith.constant 0 : index
      %c0_349 = arith.constant 0 : index
      %284 = vector.load %arg9[%c0_348, %c0_349] : memref<96x8xf32, #tpu.memory_space<vmem>>, vector<96x8xf32>
      tpu.vector_store %arg9[%c0_348, %c0_349], %283 {strides = array<i32>} : memref<96x8xf32, #tpu.memory_space<vmem>>, vector<96x8xf32>,
      %c0_350 = arith.constant 0 : index
      %c0_351 = arith.constant 0 : index
      %c39_352 = arith.constant 39 : index
      %c0_353 = arith.constant 0 : index
      %285 = vector.load %arg3[%c0_350, %c0_351, %c39_352, %c0_353] : memref<1x1x156x8xbf16, #tpu.memory_space<vmem>>, vector<1x1x96x8xbf16>
      %286 = vector.shape_cast %285 : vector<1x1x96x8xbf16> to vector<96x8xbf16>
      %c0_354 = arith.constant 0 : index
      %c0_355 = arith.constant 0 : index
      %287 = vector.load %arg9[%c0_354, %c0_355] : memref<96x8xf32, #tpu.memory_space<vmem>>, vector<96x8xf32>
      %c0_356 = arith.constant 0 : index
      %c264 = arith.constant 264 : index
      %c0_357 = arith.constant 0 : index
      %288 = vector.load %arg4[%c0_356, %c264, %c0_357] : memref<1x272x8xbf16, #tpu.memory_space<vmem>>, vector<1x8x8xbf16>
      %289 = vector.shape_cast %288 : vector<1x8x8xbf16> to vector<8x8xbf16>
      %cst_358 = arith.constant dense<0.000000e+00> : vector<96x8xf32>
      %290 = tpu.matmul %286, %289, %cst_358 {dimension_numbers = #tpu.dot_dimension_numbers<[1], [0], [0], [1], [0, 0, 1, 1], [], []>} : vector<96x8xbf16>, vector<8x8xbf16>, vector<96x8xf32> -> vector<96x8xf32>
      %291 = arith.addf %287, %290 : vector<96x8xf32>
      %c0_359 = arith.constant 0 : index
      %c0_360 = arith.constant 0 : index
      %292 = vector.load %arg9[%c0_359, %c0_360] : memref<96x8xf32, #tpu.memory_space<vmem>>, vector<96x8xf32>
      tpu.vector_store %arg9[%c0_359, %c0_360], %291 {strides = array<i32>} : memref<96x8xf32, #tpu.memory_space<vmem>>, vector<96x8xf32>,
    } else {
    }
    %c4_i32 = arith.constant 4 : i32
    %213 = arith.cmpi eq, %arg2, %c4_i32 : i32
    %214 = arith.extui %213 : i1 to i32
    %c0_i32_259 = arith.constant 0 : i32
    %215 = arith.cmpi ne, %214, %c0_i32_259 : i32
    scf.if %215 {
      %c0_262 = arith.constant 0 : index
      %c0_263 = arith.constant 0 : index
      %221 = vector.load %arg9[%c0_262, %c0_263] : memref<96x8xf32, #tpu.memory_space<vmem>>, vector<96x8xf32>
      %c0_264 = arith.constant 0 : index
      %c0_265 = arith.constant 0 : index
      %222 = vector.load %arg5[%c0_264, %c0_265] : memref<2x8xf32, #tpu.memory_space<vmem>>, vector<1x8xf32>
      %223 = vector.broadcast %222 : vector<1x8xf32> to vector<96x8xf32>
      %224 = arith.addf %221, %223 : vector<96x8xf32>
      %cst_266 = arith.constant 0.000000e+00 : f32
      %225 = vector.broadcast %cst_266 : f32 to vector<96x8xf32>
      %226 = arith.maximumf %224, %225 : vector<96x8xf32>
      %c0_267 = arith.constant 0 : index
      %c0_268 = arith.constant 0 : index
      %227 = vector.load %arg10[%c0_267, %c0_268] : memref<96x8xf32, #tpu.memory_space<vmem>>, vector<96x8xf32>
      %c1_269 = arith.constant 1 : index
      %c0_270 = arith.constant 0 : index
      %228 = vector.load %arg5[%c1_269, %c0_270] : memref<2x8xf32, #tpu.memory_space<vmem>>, vector<1x8xf32>
      %229 = vector.broadcast %228 : vector<1x8xf32> to vector<96x8xf32>
      %230 = arith.addf %227, %229 : vector<96x8xf32>
      %cst_271 = arith.constant 0.000000e+00 : f32
      %231 = vector.broadcast %cst_271 : f32 to vector<96x8xf32>
      %232 = arith.maximumf %230, %231 : vector<96x8xf32>
      %233 = arith.truncf %226 : vector<96x8xf32> to vector<96x8xbf16>
      %c0_272 = arith.constant 0 : index
      %c0_273 = arith.constant 0 : index
      %c0_274 = arith.constant 0 : index
      %c0_275 = arith.constant 0 : index
      %234 = vector.load %arg6[%c0_272, %c0_273, %c0_274, %c0_275] : memref<1x1x96x8xbf16, #tpu.memory_space<vmem>>, vector<1x1x96x8xbf16>
      %235 = vector.shape_cast %234 : vector<1x1x96x8xbf16> to vector<96x8xbf16>
      %236 = vector.shape_cast %233 : vector<96x8xbf16> to vector<1x1x96x8xbf16>
      tpu.vector_store %arg6[%c0_272, %c0_273, %c0_274, %c0_275], %236 {strides = array<i32>} : memref<1x1x96x8xbf16, #tpu.memory_space<vmem>>, vector<1x1x96x8xbf16>,
      %237 = arith.truncf %232 : vector<96x8xf32> to vector<96x8xbf16>
      %c0_276 = arith.constant 0 : index
      %c0_277 = arith.constant 0 : index
      %c0_278 = arith.constant 0 : index
      %c0_279 = arith.constant 0 : index
      %238 = vector.load %arg7[%c0_276, %c0_277, %c0_278, %c0_279] : memref<1x1x96x8xbf16, #tpu.memory_space<vmem>>, vector<1x1x96x8xbf16>
      %239 = vector.shape_cast %238 : vector<1x1x96x8xbf16> to vector<96x8xbf16>
      %240 = vector.shape_cast %237 : vector<96x8xbf16> to vector<1x1x96x8xbf16>
      tpu.vector_store %arg7[%c0_276, %c0_277, %c0_278, %c0_279], %240 {strides = array<i32>} : memref<1x1x96x8xbf16, #tpu.memory_space<vmem>>, vector<1x1x96x8xbf16>,
      %241 = tpu.iota {dimensions = array<i32: 0>} : vector<96x1xi32>
      %c12_i32 = arith.constant 12 : i32
      %c0_i32_280 = arith.constant 0 : i32
      %242 = arith.cmpi eq, %c12_i32, %c0_i32_280 : i32
      %c1_i32_281 = arith.constant 1 : i32
      %243 = arith.select %242, %c1_i32_281, %c12_i32 : i32
      %244 = vector.broadcast %243 : i32 to vector<96x1xi32>
      %245 = arith.remsi %241, %244 : vector<96x1xi32>
      %c0_i32_282 = arith.constant 0 : i32
      %246 = vector.broadcast %c0_i32_282 : i32 to vector<96x1xi32>
      %247 = arith.cmpi ne, %245, %246 : vector<96x1xi32>
      %c0_i32_283 = arith.constant 0 : i32
      %248 = vector.broadcast %c0_i32_283 : i32 to vector<96x1xi32>
      %249 = arith.cmpi slt, %245, %248 : vector<96x1xi32>
      %c0_i32_284 = arith.constant 0 : i32
      %250 = arith.cmpi slt, %243, %c0_i32_284 : i32
      %251 = vector.broadcast %250 : i1 to vector<96x1xi1>
      %252 = vector.broadcast %251 : vector<96x1xi1> to vector<96x1xi1>
      %253 = arith.xori %249, %252 : vector<96x1xi1>
      %254 = arith.andi %253, %247 : vector<96x1xi1>
      %255 = vector.broadcast %243 : i32 to vector<96x1xi32>
      %256 = arith.addi %245, %255 : vector<96x1xi32>
      %257 = arith.select %254, %256, %245 : vector<96x1xi1>, vector<96x1xi32>
      %c8_i32 = arith.constant 8 : i32
      %258 = vector.broadcast %c8_i32 : i32 to vector<96x1xi32>
      %259 = arith.cmpi slt, %257, %258 : vector<96x1xi32>
      %c0_285 = arith.constant 0 : index
      %c0_286 = arith.constant 0 : index
      %260 = vector.load %arg11[%c0_285, %c0_286] : memref<1x8xf32, #tpu.memory_space<vmem>>, vector<1x8xf32>
      %261 = arith.addf %226, %232 : vector<96x8xf32>
      %cst_287 = arith.constant 0.000000e+00 : f32
      %262 = vector.shape_cast %259 : vector<96x1xi1> to vector<96x1xi1>
      %263 = vector.broadcast %262 : vector<96x1xi1> to vector<96x8xi1>
      %264 = vector.broadcast %cst_287 : f32 to vector<96x8xf32>
      %265 = arith.select %263, %261, %264 : vector<96x8xi1>, vector<96x8xf32>
      %cst_288 = arith.constant dense<0.000000e+00> : vector<8xf32>
      %266 = vector.multi_reduction <add>, %265, %cst_288 [0] : vector<96x8xf32> to vector<8xf32>
      %267 = vector.shape_cast %266 : vector<8xf32> to vector<1x8xf32>
      %268 = arith.addf %260, %267 : vector<1x8xf32>
      %c0_289 = arith.constant 0 : index
      %c0_290 = arith.constant 0 : index
      %269 = vector.load %arg11[%c0_289, %c0_290] : memref<1x8xf32, #tpu.memory_space<vmem>>, vector<1x8xf32>
      tpu.vector_store %arg11[%c0_289, %c0_290], %268 {strides = array<i32>} : memref<1x8xf32, #tpu.memory_space<vmem>>, vector<1x8xf32>,
    } else {
    }
    %c4_i32_260 = arith.constant 4 : i32
    %216 = arith.cmpi eq, %arg2, %c4_i32_260 : i32
    %c7_i32 = arith.constant 7 : i32
    %217 = arith.cmpi eq, %arg1, %c7_i32 : i32
    %218 = arith.andi %216, %217 : i1
    %219 = arith.extui %218 : i1 to i32
    %c0_i32_261 = arith.constant 0 : i32
    %220 = arith.cmpi ne, %219, %c0_i32_261 : i32
    scf.if %220 {
      %c0_262 = arith.constant 0 : index
      %c0_263 = arith.constant 0 : index
      %221 = vector.load %arg11[%c0_262, %c0_263] : memref<1x8xf32, #tpu.memory_space<vmem>>, vector<1x8xf32>
      %c0_264 = arith.constant 0 : index
      %c0_265 = arith.constant 0 : index
      %c0_266 = arith.constant 0 : index
      %222 = vector.load %arg8[%c0_264, %c0_265, %c0_266] : memref<1x1x8xf32, #tpu.memory_space<vmem>>, vector<1x1x8xf32>
      %223 = vector.shape_cast %222 : vector<1x1x8xf32> to vector<1x8xf32>
      %224 = vector.shape_cast %221 : vector<1x8xf32> to vector<1x1x8xf32>
      tpu.vector_store %arg8[%c0_264, %c0_265, %c0_266], %224 {strides = array<i32>} : memref<1x1x8xf32, #tpu.memory_space<vmem>>, vector<1x1x8xf32>,
    } else {
    }
    return
  }
  func.func @transform_0(%arg0: i32, %arg1: i32, %arg2: i32) -> (i32, i32, i32, i32) {
    %0 = arith.addi %arg1, %arg2 : i32
    %c0_i32 = arith.constant 0 : i32
    %c0_i32_0 = arith.constant 0 : i32
    %c0_i32_1 = arith.constant 0 : i32
    return %arg0, %0, %c0_i32, %c0_i32_0 : i32, i32, i32, i32
  }
  func.func @transform_1(%arg0: i32, %arg1: i32, %arg2: i32) -> (i32, i32, i32) {
    %c0_i32 = arith.constant 0 : i32
    %c0_i32_0 = arith.constant 0 : i32
    %c0_i32_1 = arith.constant 0 : i32
    return %arg2, %c0_i32, %c0_i32_0 : i32, i32, i32
  }
  func.func @transform_2(%arg0: i32, %arg1: i32, %arg2: i32) -> (i32, i32) {
    %c0_i32 = arith.constant 0 : i32
    %c0_i32_0 = arith.constant 0 : i32
    %c0_i32_1 = arith.constant 0 : i32
    return %c0_i32, %c0_i32_0 : i32, i32
  }
  func.func @transform_3(%arg0: i32, %arg1: i32, %arg2: i32) -> (i32, i32, i32, i32) {
    %c0_i32 = arith.constant 0 : i32
    %c0_i32_0 = arith.constant 0 : i32
    %c0_i32_1 = arith.constant 0 : i32
    return %arg0, %arg1, %c0_i32, %c0_i32_0 : i32, i32, i32, i32
  }
  func.func @transform_4(%arg0: i32, %arg1: i32, %arg2: i32) -> (i32, i32, i32, i32) {
    %c0_i32 = arith.constant 0 : i32
    %c0_i32_0 = arith.constant 0 : i32
    %c0_i32_1 = arith.constant 0 : i32
    return %arg0, %arg1, %c0_i32, %c0_i32_0 : i32, i32, i32, i32
  }
  func.func @transform_5(%arg0: i32, %arg1: i32, %arg2: i32) -> (i32, i32, i32) {
    %c0_i32 = arith.constant 0 : i32
    %c0_i32_0 = arith.constant 0 : i32
    %c0_i32_1 = arith.constant 0 : i32
    return %arg0, %c0_i32, %c0_i32_0 : i32, i32, i32
  }
}

module attributes {stable_mosaic.version = 11 : i64} {
  func.func @_final_kernel(%arg0: i32, %arg1: i32, %arg2: memref<1x1x96x8xbf16, #tpu.memory_space<vmem>>, %arg3: memref<1x1x96x8xbf16, #tpu.memory_space<vmem>>, %arg4: memref<1x1x8xf32, #tpu.memory_space<vmem>>, %arg5: memref<1x1x8xf32, #tpu.memory_space<vmem>>, %arg6: memref<1x1x96x8xbf16, #tpu.memory_space<vmem>>, %arg7: memref<8x16xbf16, #tpu.memory_space<vmem>>, %arg8: memref<8x16xbf16, #tpu.memory_space<vmem>>, %arg9: memref<1x16xf32, #tpu.memory_space<vmem>>, %arg10: memref<1x1x96x16xf32, #tpu.memory_space<vmem>>) attributes {dimension_semantics = [#tpu.dimension_semantics<parallel>, #tpu.dimension_semantics<parallel>], iteration_bounds = array<i64: 2, 8>, scalar_prefetch = 0 : i64, scratch_operands = 0 : i64, tpu.core_type = #tpu.core_type<tc>, window_params = [{transform_indices = @transform_0, window_bounds = array<i64: 1, 1, 96, 8>}, {transform_indices = @transform_1, window_bounds = array<i64: 1, 1, 96, 8>}, {transform_indices = @transform_2, window_bounds = array<i64: 1, 1, 8>}, {transform_indices = @transform_3, window_bounds = array<i64: 1, 1, 8>}, {transform_indices = @transform_4, window_bounds = array<i64: 1, 1, 96, 8>}, {pipeline_mode = #tpu.pipeline_mode<synchronous>, transform_indices = @transform_5, window_bounds = array<i64: 8, 16>}, {pipeline_mode = #tpu.pipeline_mode<synchronous>, transform_indices = @transform_6, window_bounds = array<i64: 8, 16>}, {pipeline_mode = #tpu.pipeline_mode<synchronous>, transform_indices = @transform_7, window_bounds = array<i64: 1, 16>}, {transform_indices = @transform_8, window_bounds = array<i64: 1, 1, 96, 16>}]} {
    %c0 = arith.constant 0 : index
    %c0_0 = arith.constant 0 : index
    %c0_1 = arith.constant 0 : index
    %c0_2 = arith.constant 0 : index
    %0 = vector.load %arg2[%c0, %c0_0, %c0_1, %c0_2] : memref<1x1x96x8xbf16, #tpu.memory_space<vmem>>, vector<1x1x96x8xbf16>
    %1 = vector.shape_cast %0 : vector<1x1x96x8xbf16> to vector<96x8xbf16>
    %2 = arith.extf %1 : vector<96x8xbf16> to vector<96x8xf32>
    %c0_3 = arith.constant 0 : index
    %c0_4 = arith.constant 0 : index
    %c0_5 = arith.constant 0 : index
    %c0_6 = arith.constant 0 : index
    %3 = vector.load %arg3[%c0_3, %c0_4, %c0_5, %c0_6] : memref<1x1x96x8xbf16, #tpu.memory_space<vmem>>, vector<1x1x96x8xbf16>
    %4 = vector.shape_cast %3 : vector<1x1x96x8xbf16> to vector<96x8xbf16>
    %5 = arith.extf %4 : vector<96x8xbf16> to vector<96x8xf32>
    %c0_7 = arith.constant 0 : index
    %c0_8 = arith.constant 0 : index
    %c0_9 = arith.constant 0 : index
    %6 = vector.load %arg4[%c0_7, %c0_8, %c0_9] : memref<1x1x8xf32, #tpu.memory_space<vmem>>, vector<1x1x8xf32>
    %7 = vector.shape_cast %6 : vector<1x1x8xf32> to vector<1x8xf32>
    %8 = vector.broadcast %7 : vector<1x8xf32> to vector<96x8xf32>
    %9 = arith.mulf %2, %8 : vector<96x8xf32>
    %c0_10 = arith.constant 0 : index
    %c0_11 = arith.constant 0 : index
    %c0_12 = arith.constant 0 : index
    %10 = vector.load %arg5[%c0_10, %c0_11, %c0_12] : memref<1x1x8xf32, #tpu.memory_space<vmem>>, vector<1x1x8xf32>
    %11 = vector.shape_cast %10 : vector<1x1x8xf32> to vector<1x8xf32>
    %12 = vector.broadcast %11 : vector<1x8xf32> to vector<96x8xf32>
    %13 = arith.mulf %5, %12 : vector<96x8xf32>
    %14 = arith.addf %9, %13 : vector<96x8xf32>
    %15 = arith.truncf %14 : vector<96x8xf32> to vector<96x8xbf16>
    %c0_13 = arith.constant 0 : index
    %c0_14 = arith.constant 0 : index
    %16 = vector.load %arg7[%c0_13, %c0_14] : memref<8x16xbf16, #tpu.memory_space<vmem>>, vector<8x16xbf16>
    %cst = arith.constant dense<0.000000e+00> : vector<96x16xf32>
    %17 = tpu.matmul %15, %16, %cst {dimension_numbers = #tpu.dot_dimension_numbers<[1], [0], [0], [1], [0, 0, 1, 1], [], []>} : vector<96x8xbf16>, vector<8x16xbf16>, vector<96x16xf32> -> vector<96x16xf32>
    %c0_15 = arith.constant 0 : index
    %c0_16 = arith.constant 0 : index
    %c0_17 = arith.constant 0 : index
    %c0_18 = arith.constant 0 : index
    %18 = vector.load %arg6[%c0_15, %c0_16, %c0_17, %c0_18] : memref<1x1x96x8xbf16, #tpu.memory_space<vmem>>, vector<1x1x96x8xbf16>
    %19 = vector.shape_cast %18 : vector<1x1x96x8xbf16> to vector<96x8xbf16>
    %c0_19 = arith.constant 0 : index
    %c0_20 = arith.constant 0 : index
    %20 = vector.load %arg8[%c0_19, %c0_20] : memref<8x16xbf16, #tpu.memory_space<vmem>>, vector<8x16xbf16>
    %cst_21 = arith.constant dense<0.000000e+00> : vector<96x16xf32>
    %21 = tpu.matmul %19, %20, %cst_21 {dimension_numbers = #tpu.dot_dimension_numbers<[1], [0], [0], [1], [0, 0, 1, 1], [], []>} : vector<96x8xbf16>, vector<8x16xbf16>, vector<96x16xf32> -> vector<96x16xf32>
    %22 = arith.addf %17, %21 : vector<96x16xf32>
    %c0_22 = arith.constant 0 : index
    %c0_23 = arith.constant 0 : index
    %23 = vector.load %arg9[%c0_22, %c0_23] : memref<1x16xf32, #tpu.memory_space<vmem>>, vector<1x16xf32>
    %24 = vector.broadcast %23 : vector<1x16xf32> to vector<96x16xf32>
    %25 = arith.addf %22, %24 : vector<96x16xf32>
    %cst_24 = arith.constant 0.000000e+00 : f32
    %26 = vector.broadcast %cst_24 : f32 to vector<96x16xf32>
    %27 = arith.maximumf %25, %26 : vector<96x16xf32>
    %c0_25 = arith.constant 0 : index
    %c0_26 = arith.constant 0 : index
    %c0_27 = arith.constant 0 : index
    %c0_28 = arith.constant 0 : index
    %28 = vector.load %arg10[%c0_25, %c0_26, %c0_27, %c0_28] : memref<1x1x96x16xf32, #tpu.memory_space<vmem>>, vector<1x1x96x16xf32>
    %29 = vector.shape_cast %28 : vector<1x1x96x16xf32> to vector<96x16xf32>
    %30 = vector.shape_cast %27 : vector<96x16xf32> to vector<1x1x96x16xf32>
    tpu.vector_store %arg10[%c0_25, %c0_26, %c0_27, %c0_28], %30 {strides = array<i32>} : memref<1x1x96x16xf32, #tpu.memory_space<vmem>>, vector<1x1x96x16xf32>,
    return
  }
  func.func @transform_0(%arg0: i32, %arg1: i32) -> (i32, i32, i32, i32) {
    %c0_i32 = arith.constant 0 : i32
    %c0_i32_0 = arith.constant 0 : i32
    %c0_i32_1 = arith.constant 0 : i32
    return %arg0, %arg1, %c0_i32, %c0_i32_0 : i32, i32, i32, i32
  }
  func.func @transform_1(%arg0: i32, %arg1: i32) -> (i32, i32, i32, i32) {
    %c0_i32 = arith.constant 0 : i32
    %c0_i32_0 = arith.constant 0 : i32
    %c0_i32_1 = arith.constant 0 : i32
    return %arg0, %arg1, %c0_i32, %c0_i32_0 : i32, i32, i32, i32
  }
  func.func @transform_2(%arg0: i32, %arg1: i32) -> (i32, i32, i32) {
    %c0_i32 = arith.constant 0 : i32
    %c0_i32_0 = arith.constant 0 : i32
    %c0_i32_1 = arith.constant 0 : i32
    return %arg0, %c0_i32, %c0_i32_0 : i32, i32, i32
  }
  func.func @transform_3(%arg0: i32, %arg1: i32) -> (i32, i32, i32) {
    %c0_i32 = arith.constant 0 : i32
    %c0_i32_0 = arith.constant 0 : i32
    %c0_i32_1 = arith.constant 0 : i32
    return %arg0, %c0_i32, %c0_i32_0 : i32, i32, i32
  }
  func.func @transform_4(%arg0: i32, %arg1: i32) -> (i32, i32, i32, i32) {
    %c0_i32 = arith.constant 0 : i32
    %c0_i32_0 = arith.constant 0 : i32
    %c0_i32_1 = arith.constant 0 : i32
    return %arg0, %arg1, %c0_i32, %c0_i32_0 : i32, i32, i32, i32
  }
  func.func @transform_5(%arg0: i32, %arg1: i32) -> (i32, i32) {
    %c0_i32 = arith.constant 0 : i32
    %c0_i32_0 = arith.constant 0 : i32
    %c0_i32_1 = arith.constant 0 : i32
    return %c0_i32, %c0_i32_0 : i32, i32
  }
  func.func @transform_6(%arg0: i32, %arg1: i32) -> (i32, i32) {
    %c0_i32 = arith.constant 0 : i32
    %c0_i32_0 = arith.constant 0 : i32
    %c0_i32_1 = arith.constant 0 : i32
    return %c0_i32, %c0_i32_0 : i32, i32
  }
  func.func @transform_7(%arg0: i32, %arg1: i32) -> (i32, i32) {
    %c0_i32 = arith.constant 0 : i32
    %c0_i32_0 = arith.constant 0 : i32
    %c0_i32_1 = arith.constant 0 : i32
    return %c0_i32, %c0_i32_0 : i32, i32
  }
  func.func @transform_8(%arg0: i32, %arg1: i32) -> (i32, i32, i32, i32) {
    %c0_i32 = arith.constant 0 : i32
    %c0_i32_0 = arith.constant 0 : i32
    %c0_i32_1 = arith.constant 0 : i32
    return %arg0, %arg1, %c0_i32, %c0_i32_0 : i32, i32, i32, i32
  }
}

</mosaic_0001>

<llo_original>
// kernel: sk_block_forward.3
$region0: #{sk_block_forward.3}
  #allocation0 [shape = 'u32[]', space=smem, size = 0x4, offset = 0x4, fixed_abs, tag = 'smem constant byte address 0x4 - core index']
  #allocation1 [shape = 'u32[144,128]{1,0:T(1,128)}', space=vmem, size = 0x12000, scoped, tag = 'internal scratch']
  %s0 = inlined_call_operand.vmem [shape: bf16[1024,8], index: 0, kind: input, shape index: {}]
  %s1 = inlined_call_operand.vmem [shape: bf16[8,8], index: 1, kind: input, shape index: {}]
  %s2 = inlined_call_operand.vmem [shape: f32[1,8], index: 2, kind: input, shape index: {}]
  %s3 = inlined_call_operand.vmem [shape: bf16[1024,8], index: 3, kind: output, shape index: {}]
  %s4 = sld [smem:[#allocation0]]
  $region45: #{sk_block_forward.3} parent=0
    _
  %s6 = ssub.s32 1, %s4
  %s7 = scalar_select 0, %s6, %s4
  loop: start=0, step=1, limit=4
  $region2: #{sk_block_forward.3} parent=0 // loop_pre_header
    _
  $region3: #{sk_block_forward.3} parent=0 // loop_header
    %s9 = sphi 0, %s13
    %p10 = scmp.ge.s32.totalorder %s9, 4
    %s19 = sphi 0, %s21
    %s22 = sphi 0, %s19
    %s23 = sphi 0, %s22
    %s39 = sphi 0, %s23
    %s43 = sphi 0, %s43
    %s45 = sphi 0, %s43
    %s46 = sphi 0, %s45
    %s60 = sphi 0, %s46
    %s64 = sphi 0, %s64
    %s66 = sphi 0, %s64
    %s67 = sphi 0, %s66
    %s81 = sphi 0, %s67
    %s87 = sphi 0, %s89
    %s90 = sphi 0, %s87
    %s91 = sphi 0, %s90
    %s107 = sphi 0, %s91
  $region4: #{sk_block_forward.3} parent=0 // loop_header_branch
    %12 = sbr.rel (%p10) target = $region8
  $region5: #{sk_block_forward.3} parent=0 // loop_body
    %s14 = ssub.s32 %s9, 1
    %s15 = ssub.s32 %s9, 2
    %s16 = sadd.s32 %s9, 1
    %s17 = ssub.s32 %s9, %s16
    %p18 = scmp.eq.s32.totalorder %s17, 0
    %s20 = sadd.s32 %s19, 1
    %s21 = scalar_select %p18, %s19, %s20
    %p24 = pneg %p18
    %p25 = scmp.eq.s32.totalorder %s9, 1
    %p26 = por %p24, %p25
    %p27 = scmp.ne.s32.totalorder %s19, %s22
    %p28 = scmp.eq.s32.totalorder %s9, 0
    %p29 = por %p27, %p28
    %p30 = scmp.ne.s32.totalorder %s19, %s22
    %p31 = scmp.eq.s32.totalorder %s14, 1
    %p32 = por %p30, %p31
    %p33 = scmp.ne.s32.totalorder %s22, %s23
    %p34 = scmp.eq.s32.totalorder %s14, 0
    %p35 = por %p33, %p34
    %p36 = scmp.ne.s32.totalorder %s22, %s23
    %p37 = scmp.eq.s32.totalorder %s15, 1
    %p38 = por %p36, %p37
    %p40 = scmp.ne.s32.totalorder %s23, %s39
    %p41 = scmp.eq.s32.totalorder %s15, 0
    %p42 = por %p40, %p41
    %s44 = sadd.s32 %s43, 1
    %p47 = scmp.eq.s32.totalorder %s9, 1
    %p48 = scmp.ne.s32.totalorder %s43, %s45
    %p49 = scmp.eq.s32.totalorder %s9, 0
    %p50 = por %p48, %p49
    %p51 = scmp.ne.s32.totalorder %s43, %s45
    %p52 = scmp.eq.s32.totalorder %s14, 1
    %p53 = por %p51, %p52
    %p54 = scmp.ne.s32.totalorder %s45, %s46
    %p55 = scmp.eq.s32.totalorder %s14, 0
    %p56 = por %p54, %p55
    %p57 = scmp.ne.s32.totalorder %s45, %s46
    %p58 = scmp.eq.s32.totalorder %s15, 1
    %p59 = por %p57, %p58
    %p61 = scmp.ne.s32.totalorder %s46, %s60
    %p62 = scmp.eq.s32.totalorder %s15, 0
    %p63 = por %p61, %p62
    %s65 = sadd.s32 %s64, 1
    %p68 = scmp.eq.s32.totalorder %s9, 1
    %p69 = scmp.ne.s32.totalorder %s64, %s66
    %p70 = scmp.eq.s32.totalorder %s9, 0
    %p71 = por %p69, %p70
    %p72 = scmp.ne.s32.totalorder %s64, %s66
    %p73 = scmp.eq.s32.totalorder %s14, 1
    %p74 = por %p72, %p73
    %p75 = scmp.ne.s32.totalorder %s66, %s67
    %p76 = scmp.eq.s32.totalorder %s14, 0
    %p77 = por %p75, %p76
    %p78 = scmp.ne.s32.totalorder %s66, %s67
    %p79 = scmp.eq.s32.totalorder %s15, 1
    %p80 = por %p78, %p79
    %p82 = scmp.ne.s32.totalorder %s67, %s81
    %p83 = scmp.eq.s32.totalorder %s15, 0
    %p84 = por %p82, %p83
    %s85 = ssub.s32 %s9, %s16
    %p86 = scmp.eq.s32.totalorder %s85, 0
    %s88 = sadd.s32 %s87, 1
    %s89 = scalar_select %p86, %s87, %s88
    %p92 = pneg %p86
    %p93 = scmp.eq.s32.totalorder %s9, 1
    %p94 = por %p92, %p93
    %p95 = scmp.ne.s32.totalorder %s87, %s90
    %p96 = scmp.eq.s32.totalorder %s9, 0
    %p97 = por %p95, %p96
    %p98 = scmp.ne.s32.totalorder %s87, %s90
    %p99 = scmp.eq.s32.totalorder %s14, 1
    %p100 = por %p98, %p99
    %p101 = scmp.ne.s32.totalorder %s90, %s91
    %p102 = scmp.eq.s32.totalorder %s14, 0
    %p103 = por %p101, %p102
    %p104 = scmp.ne.s32.totalorder %s90, %s91
    %p105 = scmp.eq.s32.totalorder %s15, 1
    %p106 = por %p104, %p105
    %p108 = scmp.ne.s32.totalorder %s91, %s107
    %p109 = scmp.eq.s32.totalorder %s15, 0
    %p110 = por %p108, %p109
    %p111 = scmp.le.s32.totalorder 1, %s9
    %p112 = scmp.lt.s32.totalorder %s9, 3
    %p113 = pnand %p111, %p112
    %p114 = pneg %p113
    // Predicated region
    $region9: #{sk_block_forward.3} parent=5 // pred_check
      _
    $region10: #{sk_block_forward.3} parent=5 // pred_check_branch
      %116 = sbr.rel (%p113) target = $region12
    $region11: #{sk_block_forward.3} parent=5 // pred_region
      %s117 = ssub.s32 %s9, 1
      // Predicated region
      $region13: #{sk_block_forward.3} parent=11 // pred_check
        %p118 = pneg %p56
      $region14: #{sk_block_forward.3} parent=11 // pred_check_branch
        %120 = sbr.rel (%p118) target = $region16
      $region15: #{sk_block_forward.3} parent=11 // pred_region
        _
      $region16: #{sk_block_forward.3} parent=11 // pred_fallthru
        _
      // Predicated region
      $region17: #{sk_block_forward.3} parent=11 // pred_check
        %p121 = pneg %p77
      $region18: #{sk_block_forward.3} parent=11 // pred_check_branch
        %123 = sbr.rel (%p121) target = $region20
      $region19: #{sk_block_forward.3} parent=11 // pred_region
        _
      $region20: #{sk_block_forward.3} parent=11 // pred_fallthru
        _
    $region12: #{sk_block_forward.3} parent=5 // pred_fallthru
      _
    %p124 = scmp.lt.s32.totalorder %s9, 2
    // Predicated region
    $region21: #{sk_block_forward.3} parent=5 // pred_check
      %p125 = pneg %p124
    $region22: #{sk_block_forward.3} parent=5 // pred_check_branch
      %127 = sbr.rel (%p125) target = $region24
    $region23: #{sk_block_forward.3} parent=5 // pred_region
      // Predicated region
      $region25: #{sk_block_forward.3} parent=23 // pred_check
        %p128 = pneg %p29
      $region26: #{sk_block_forward.3} parent=23 // pred_check_branch
        %130 = sbr.rel (%p128) target = $region28
      $region27: #{sk_block_forward.3} parent=23 // pred_region
        %s131 = smul.u32 64, %s9
        %p132 = scmp.lt.s32.totalorder %s131, 127
        %s133 = scalar_select %p132, %s131, 127
        %s134 = smul.addr %s133, 4
        %s135 = scalar_lea.vmem %s0, %s134
        %s136 = smul.u32 64, %s9
      $region28: #{sk_block_forward.3} parent=23 // pred_fallthru
        _
    $region24: #{sk_block_forward.3} parent=5 // pred_fallthru
      _
    %p137 = scmp.le.s32.totalorder 1, %s9
    %p138 = scmp.lt.s32.totalorder %s9, 3
    %p139 = pnand %p137, %p138
    %p140 = pneg %p139
    // Predicated region
    $region29: #{sk_block_forward.3} parent=5 // pred_check
      _
    $region30: #{sk_block_forward.3} parent=5 // pred_check_branch
      %142 = sbr.rel (%p139) target = $region32
    $region31: #{sk_block_forward.3} parent=5 // pred_region
      %s143 = ssub.s32 %s9, 1
      %s144 = smul.u32 64, %s14
      %p145 = scmp.lt.s32.totalorder %s144, 127
      %s146 = scalar_select %p145, %s144, 127
      %s147 = smul.addr %s146, 4
      %s148 = scalar_lea.vmem %s0, %s147
      %p149 = pneg %p35
      %p150 = pneg %p32
      %p151 = pneg %p56
      %p152 = pneg %p53
      %p153 = pneg %p77
      %p154 = pneg %p74
      %p155 = pneg %p103
      %p156 = pneg %p100
      %s157 = smul.u32 64, %s14
      %p158 = scmp.lt.s32.totalorder %s157, 127
      %s159 = scalar_select %p158, %s157, 127
      %s160 = smul.addr %s159, 4
      %s161 = scalar_lea.vmem %s3, %s160
      %s162 = smul.u32 64, %s14
      %p163 = scmp.lt.s32.totalorder %s162, 127
      %s164 = scalar_select %p163, %s162, 127
      %s165 = smul.addr %s164, 4
      %s166 = scalar_lea.vmem %s0, %s165
      %s167 = smul.u32 64, %s14
      %s168 = smul.u32 64, %s14
      %p169 = scmp.lt.s32.totalorder %s168, 127
      %s170 = scalar_select %p169, %s168, 127
      %s171 = smul.addr %s170, 4
      %s172 = scalar_lea.vmem %s3, %s171
      %s173 = smul.u32 64, %s14
      %v175 = vld [vmem:[%s166] sm:$0xf]
      %v176 = vld [vmem:[%s166 + $0x4] sm:$0xf]
      %v177 = vld [vmem:[%s166 + $0x8] sm:$0xf]
      %v178 = vld [vmem:[%s166 + $0xc] sm:$0xf]
      %v179 = vld [vmem:[%s166 + $0x10] sm:$0xf]
      %v180 = vld [vmem:[%s166 + $0x14] sm:$0xf]
      %v181 = vld [vmem:[%s166 + $0x18] sm:$0xf]
      %v182 = vld [vmem:[%s166 + $0x1c] sm:$0xf]
      %v183 = vld [vmem:[%s166 + $0x20] sm:$0xf]
      %v184 = vld [vmem:[%s166 + $0x24] sm:$0xf]
      %v185 = vld [vmem:[%s166 + $0x28] sm:$0xf]
      %v186 = vld [vmem:[%s166 + $0x2c] sm:$0xf]
      %v187 = vld [vmem:[%s166 + $0x30] sm:$0xf]
      %v188 = vld [vmem:[%s166 + $0x34] sm:$0xf]
      %v189 = vld [vmem:[%s166 + $0x38] sm:$0xf]
      %v190 = vld [vmem:[%s166 + $0x3c] sm:$0xf]
      %v191 = vld [vmem:[%s166 + $0x40] sm:$0xf]
      %v192 = vld [vmem:[%s166 + $0x44] sm:$0xf]
      %v193 = vld [vmem:[%s166 + $0x48] sm:$0xf]
      %v194 = vld [vmem:[%s166 + $0x4c] sm:$0xf]
      %v195 = vld [vmem:[%s166 + $0x50] sm:$0xf]
      %v196 = vld [vmem:[%s166 + $0x54] sm:$0xf]
      %v197 = vld [vmem:[%s166 + $0x58] sm:$0xf]
      %v198 = vld [vmem:[%s166 + $0x5c] sm:$0xf]
      %v199 = vld [vmem:[%s166 + $0x60] sm:$0xf]
      %v200 = vld [vmem:[%s166 + $0x64] sm:$0xf]
      %v201 = vld [vmem:[%s166 + $0x68] sm:$0xf]
      %v202 = vld [vmem:[%s166 + $0x6c] sm:$0xf]
      %v203 = vld [vmem:[%s166 + $0x70] sm:$0xf]
      %v204 = vld [vmem:[%s166 + $0x74] sm:$0xf]
      %v205 = vld [vmem:[%s166 + $0x78] sm:$0xf]
      %v206 = vld [vmem:[%s166 + $0x7c] sm:$0xf]
      %v207 = vld [vmem:[%s166 + $0x80] sm:$0xf]
      %v208 = vld [vmem:[%s166 + $0x84] sm:$0xf]
      %v209 = vld [vmem:[%s166 + $0x88] sm:$0xf]
      %v210 = vld [vmem:[%s166 + $0x8c] sm:$0xf]
      %v211 = vld [vmem:[%s166 + $0x90] sm:$0xf]
      %v212 = vld [vmem:[%s166 + $0x94] sm:$0xf]
      %v213 = vld [vmem:[%s166 + $0x98] sm:$0xf]
      %v214 = vld [vmem:[%s166 + $0x9c] sm:$0xf]
      %v215 = vld [vmem:[%s166 + $0xa0] sm:$0xf]
      %v216 = vld [vmem:[%s166 + $0xa4] sm:$0xf]
      %v217 = vld [vmem:[%s166 + $0xa8] sm:$0xf]
      %v218 = vld [vmem:[%s166 + $0xac] sm:$0xf]
      %v219 = vld [vmem:[%s166 + $0xb0] sm:$0xf]
      %v220 = vld [vmem:[%s166 + $0xb4] sm:$0xf]
      %v221 = vld [vmem:[%s166 + $0xb8] sm:$0xf]
      %v222 = vld [vmem:[%s166 + $0xbc] sm:$0xf]
      %v223 = vld [vmem:[%s166 + $0xc0] sm:$0xf]
      %v224 = vld [vmem:[%s166 + $0xc4] sm:$0xf]
      %v225 = vld [vmem:[%s166 + $0xc8] sm:$0xf]
      %v226 = vld [vmem:[%s166 + $0xcc] sm:$0xf]
      %v227 = vld [vmem:[%s166 + $0xd0] sm:$0xf]
      %v228 = vld [vmem:[%s166 + $0xd4] sm:$0xf]
      %v229 = vld [vmem:[%s166 + $0xd8] sm:$0xf]
      %v230 = vld [vmem:[%s166 + $0xdc] sm:$0xf]
      %v231 = vld [vmem:[%s166 + $0xe0] sm:$0xf]
      %v232 = vld [vmem:[%s166 + $0xe4] sm:$0xf]
      %v233 = vld [vmem:[%s166 + $0xe8] sm:$0xf]
      %v234 = vld [vmem:[%s166 + $0xec] sm:$0xf]
      %v235 = vld [vmem:[%s166 + $0xf0] sm:$0xf]
      %v236 = vld [vmem:[%s166 + $0xf4] sm:$0xf]
      %v237 = vld [vmem:[%s166 + $0xf8] sm:$0xf]
      %v238 = vld [vmem:[%s166 + $0xfc] sm:$0xf]
      %v239 = vld [vmem:[%s1] sm:$0xf]
      %v240 = vld [vmem:[%s2] sm:$0x1]
      %v242 = vlaneseq
      %v243 = vshrl.u32 %v242, 7
      %v244 = vsub.s32 0, %v243
      %v245 = vrot.slane %v240, %v244
      %v311 = vunpack.c.l.b16 %v175
      %v312 = vunpack.c.l.b16 %v176
      %v313 = vunpack.c.l.b16 %v177
      %v314 = vunpack.c.l.b16 %v178
      %v315 = vunpack.c.l.b16 %v179
      %v316 = vunpack.c.l.b16 %v180
      %v317 = vunpack.c.l.b16 %v181
      %v318 = vunpack.c.l.b16 %v182
      %v319 = vunpack.c.l.b16 %v183
      %v320 = vunpack.c.l.b16 %v184
      %v321 = vunpack.c.l.b16 %v185
      %v322 = vunpack.c.l.b16 %v186
      %v323 = vunpack.c.l.b16 %v187
      %v324 = vunpack.c.l.b16 %v188
      %v325 = vunpack.c.l.b16 %v189
      %v326 = vunpack.c.l.b16 %v190
      %v327 = vunpack.c.l.b16 %v191
      %v328 = vunpack.c.l.b16 %v192
      %v329 = vunpack.c.l.b16 %v193
      %v330 = vunpack.c.l.b16 %v194
      %v331 = vunpack.c.l.b16 %v195
      %v332 = vunpack.c.l.b16 %v196
      %v333 = vunpack.c.l.b16 %v197
      %v334 = vunpack.c.l.b16 %v198
      %v335 = vunpack.c.l.b16 %v199
      %v336 = vunpack.c.l.b16 %v200
      %v337 = vunpack.c.l.b16 %v201
      %v338 = vunpack.c.l.b16 %v202
      %v339 = vunpack.c.l.b16 %v203
      %v340 = vunpack.c.l.b16 %v204
      %v341 = vunpack.c.l.b16 %v205
      %v342 = vunpack.c.l.b16 %v206
      %v343 = vunpack.c.l.b16 %v207
      %v344 = vunpack.c.l.b16 %v208
      %v345 = vunpack.c.l.b16 %v209
      %v346 = vunpack.c.l.b16 %v210
      %v347 = vunpack.c.l.b16 %v211
      %v348 = vunpack.c.l.b16 %v212
      %v349 = vunpack.c.l.b16 %v213
      %v350 = vunpack.c.l.b16 %v214
      %v351 = vunpack.c.l.b16 %v215
      %v352 = vunpack.c.l.b16 %v216
      %v353 = vunpack.c.l.b16 %v217
      %v354 = vunpack.c.l.b16 %v218
      %v355 = vunpack.c.l.b16 %v219
      %v356 = vunpack.c.l.b16 %v220
      %v357 = vunpack.c.l.b16 %v221
      %v358 = vunpack.c.l.b16 %v222
      %v359 = vunpack.c.l.b16 %v223
      %v360 = vunpack.c.l.b16 %v224
      %v361 = vunpack.c.l.b16 %v225
      %v362 = vunpack.c.l.b16 %v226
      %v363 = vunpack.c.l.b16 %v227
      %v364 = vunpack.c.l.b16 %v228
      %v365 = vunpack.c.l.b16 %v229
      %v366 = vunpack.c.l.b16 %v230
      %v367 = vunpack.c.l.b16 %v231
      %v368 = vunpack.c.l.b16 %v232
      %v369 = vunpack.c.l.b16 %v233
      %v370 = vunpack.c.l.b16 %v234
      %v371 = vunpack.c.l.b16 %v235
      %v372 = vunpack.c.l.b16 %v236
      %v373 = vunpack.c.l.b16 %v237
      %v374 = vunpack.c.l.b16 %v238
      %v375 = vpack.c.b16 %v312, %v311
      %v376 = vpack.c.b16 %v314, %v313
      %v377 = vpack.c.b16 %v316, %v315
      %v378 = vpack.c.b16 %v318, %v317
      %v379 = vpack.c.b16 %v320, %v319
      %v380 = vpack.c.b16 %v322, %v321
      %v381 = vpack.c.b16 %v324, %v323
      %v382 = vpack.c.b16 %v326, %v325
      %v383 = vpack.c.b16 %v328, %v327
      %v384 = vpack.c.b16 %v330, %v329
      %v385 = vpack.c.b16 %v332, %v331
      %v386 = vpack.c.b16 %v334, %v333
      %v387 = vpack.c.b16 %v336, %v335
      %v388 = vpack.c.b16 %v338, %v337
      %v389 = vpack.c.b16 %v340, %v339
      %v390 = vpack.c.b16 %v342, %v341
      %v391 = vpack.c.b16 %v344, %v343
      %v392 = vpack.c.b16 %v346, %v345
      %v393 = vpack.c.b16 %v348, %v347
      %v394 = vpack.c.b16 %v350, %v349
      %v395 = vpack.c.b16 %v352, %v351
      %v396 = vpack.c.b16 %v354, %v353
      %v397 = vpack.c.b16 %v356, %v355
      %v398 = vpack.c.b16 %v358, %v357
      %v399 = vpack.c.b16 %v360, %v359
      %v400 = vpack.c.b16 %v362, %v361
      %v401 = vpack.c.b16 %v364, %v363
      %v402 = vpack.c.b16 %v366, %v365
      %v403 = vpack.c.b16 %v368, %v367
      %v404 = vpack.c.b16 %v370, %v369
      %v405 = vpack.c.b16 %v372, %v371
      %v406 = vpack.c.b16 %v374, %v373
      %vm407 = vcmask 64512
      %v409 = vsel %vm407, %v375, 0
      %v412 = vsel %vm407, %v376, 0
      %v415 = vsel %vm407, %v377, 0
      %v418 = vsel %vm407, %v378, 0
      %v421 = vsel %vm407, %v379, 0
      %v424 = vsel %vm407, %v380, 0
      %v427 = vsel %vm407, %v381, 0
      %v430 = vsel %vm407, %v382, 0
      %v433 = vsel %vm407, %v383, 0
      %v436 = vsel %vm407, %v384, 0
      %v439 = vsel %vm407, %v385, 0
      %v442 = vsel %vm407, %v386, 0
      %v445 = vsel %vm407, %v387, 0
      %v448 = vsel %vm407, %v388, 0
      %v451 = vsel %vm407, %v389, 0
      %v454 = vsel %vm407, %v390, 0
      %v457 = vsel %vm407, %v391, 0
      %v460 = vsel %vm407, %v392, 0
      %v463 = vsel %vm407, %v393, 0
      %v466 = vsel %vm407, %v394, 0
      %v469 = vsel %vm407, %v395, 0
      %v472 = vsel %vm407, %v396, 0
      %v475 = vsel %vm407, %v397, 0
      %v478 = vsel %vm407, %v398, 0
      %v481 = vsel %vm407, %v399, 0
      %v484 = vsel %vm407, %v400, 0
      %v487 = vsel %vm407, %v401, 0
      %v490 = vsel %vm407, %v402, 0
      %v493 = vsel %vm407, %v403, 0
      %v496 = vsel %vm407, %v404, 0
      %v499 = vsel %vm407, %v405, 0
      %v502 = vsel %vm407, %v406, 0
      %vm504 = vcmask 1043456
      %v506 = vsel %vm504, %v239, 0
      %508 = vmatprep.subr.bf16.mxu0 0
      %509 = vmatpush1.bf16.msra.mxu0 %v506
      %510 = vmatprep.subr.bf16.mxu0 0
      %511 = vmatpush1.bf16.msra.mxu0 0
      %512 = vmatprep.subr.bf16.mxu0 0
      %513 = vmatpush1.bf16.msra.mxu0 0
      %514 = vmatprep.subr.bf16.mxu0 0
      %515 = vmatpush1.bf16.msra.mxu0 0
      %516 = vmatprep.subr.bf16.mxu0 0
      %517 = vmatpush1.bf16.msra.mxu0 0
      %518 = vmatprep.subr.bf16.mxu0 0
      %519 = vmatpush1.bf16.msra.mxu0 0
      %520 = vmatprep.subr.bf16.mxu0 0
      %521 = vmatpush1.bf16.msra.mxu0 0
      %522 = vmatprep.subr.bf16.mxu0 0
      %523 = vmatpush1.bf16.msra.mxu0 0
      %524 = vmatprep.subr.bf16.mxu0 0
      %525 = vmatpush1.bf16.msra.mxu0 0
      %526 = vmatprep.subr.bf16.mxu0 0
      %527 = vmatpush1.bf16.msra.mxu0 0
      %528 = vmatprep.subr.bf16.mxu0 0
      %529 = vmatpush1.bf16.msra.mxu0 0
      %530 = vmatprep.subr.bf16.mxu0 0
      %531 = vmatpush1.bf16.msra.mxu0 0
      %532 = vmatprep.subr.bf16.mxu0 0
      %533 = vmatpush1.bf16.msra.mxu0 0
      %534 = vmatprep.subr.bf16.mxu0 0
      %535 = vmatpush1.bf16.msra.mxu0 0
      %536 = vmatprep.subr.bf16.mxu0 0
      %537 = vmatpush1.bf16.msra.mxu0 0
      %538 = vmatprep.subr.bf16.mxu0 0
      %539 = vmatpush1.bf16.msra.mxu0 0
      %540 = vmatprep.mubr.bf16.mxu0 0
      %541 = vmatmul.mubr.bf16.gmra.mrb[0].mxu0 %v409
      %v542 = vpop.f32.mrb[0].mxu0
      %v543 = vadd.f32 %v245, %v542
      %v544 = vpop.f32.mrb[0].mxu0
      %v545 = vpop.f32.mrb[0].mxu0
      %v546 = vadd.f32 %v245, %v545
      %v547 = vpop.f32.mrb[0].mxu0
      %548 = vmatprep.mubr.bf16.mxu0 0
      %549 = vmatmul.mubr.bf16.gmra.mrb[0].mxu0 %v412
      %v550 = vpop.f32.mrb[0].mxu0
      %v551 = vadd.f32 %v245, %v550
      %v552 = vpop.f32.mrb[0].mxu0
      %v553 = vpop.f32.mrb[0].mxu0
      %v554 = vadd.f32 %v245, %v553
      %v555 = vpop.f32.mrb[0].mxu0
      %556 = vmatprep.mubr.bf16.mxu0 0
      %557 = vmatmul.mubr.bf16.gmra.mrb[0].mxu0 %v415
      %v558 = vpop.f32.mrb[0].mxu0
      %v559 = vadd.f32 %v245, %v558
      %v560 = vpop.f32.mrb[0].mxu0
      %v561 = vpop.f32.mrb[0].mxu0
      %v562 = vadd.f32 %v245, %v561
      %v563 = vpop.f32.mrb[0].mxu0
      %564 = vmatprep.mubr.bf16.mxu0 0
      %565 = vmatmul.mubr.bf16.gmra.mrb[0].mxu0 %v418
      %v566 = vpop.f32.mrb[0].mxu0
      %v567 = vadd.f32 %v245, %v566
      %v568 = vpop.f32.mrb[0].mxu0
      %v569 = vpop.f32.mrb[0].mxu0
      %v570 = vadd.f32 %v245, %v569
      %v571 = vpop.f32.mrb[0].mxu0
      %572 = vmatprep.mubr.bf16.mxu0 0
      %573 = vmatmul.mubr.bf16.gmra.mrb[0].mxu0 %v421
      %v574 = vpop.f32.mrb[0].mxu0
      %v575 = vadd.f32 %v245, %v574
      %v576 = vpop.f32.mrb[0].mxu0
      %v577 = vpop.f32.mrb[0].mxu0
      %v578 = vadd.f32 %v245, %v577
      %v579 = vpop.f32.mrb[0].mxu0
      %580 = vmatprep.mubr.bf16.mxu0 0
      %581 = vmatmul.mubr.bf16.gmra.mrb[0].mxu0 %v424
      %v582 = vpop.f32.mrb[0].mxu0
      %v583 = vadd.f32 %v245, %v582
      %v584 = vpop.f32.mrb[0].mxu0
      %v585 = vpop.f32.mrb[0].mxu0
      %v586 = vadd.f32 %v245, %v585
      %v587 = vpop.f32.mrb[0].mxu0
      %588 = vmatprep.mubr.bf16.mxu0 0
      %589 = vmatmul.mubr.bf16.gmra.mrb[0].mxu0 %v427
      %v590 = vpop.f32.mrb[0].mxu0
      %v591 = vadd.f32 %v245, %v590
      %v592 = vpop.f32.mrb[0].mxu0
      %v593 = vpop.f32.mrb[0].mxu0
      %v594 = vadd.f32 %v245, %v593
      %v595 = vpop.f32.mrb[0].mxu0
      %596 = vmatprep.mubr.bf16.mxu0 0
      %597 = vmatmul.mubr.bf16.gmra.mrb[0].mxu0 %v430
      %v598 = vpop.f32.mrb[0].mxu0
      %v599 = vadd.f32 %v245, %v598
      %v600 = vpop.f32.mrb[0].mxu0
      %v601 = vpop.f32.mrb[0].mxu0
      %v602 = vadd.f32 %v245, %v601
      %v603 = vpop.f32.mrb[0].mxu0
      %604 = vmatprep.mubr.bf16.mxu0 0
      %605 = vmatmul.mubr.bf16.gmra.mrb[0].mxu0 %v433
      %v606 = vpop.f32.mrb[0].mxu0
      %v607 = vadd.f32 %v245, %v606
      %v608 = vpop.f32.mrb[0].mxu0
      %v609 = vpop.f32.mrb[0].mxu0
      %v610 = vadd.f32 %v245, %v609
      %v611 = vpop.f32.mrb[0].mxu0
      %612 = vmatprep.mubr.bf16.mxu0 0
      %613 = vmatmul.mubr.bf16.gmra.mrb[0].mxu0 %v436
      %v614 = vpop.f32.mrb[0].mxu0
      %v615 = vadd.f32 %v245, %v614
      %v616 = vpop.f32.mrb[0].mxu0
      %v617 = vpop.f32.mrb[0].mxu0
      %v618 = vadd.f32 %v245, %v617
      %v619 = vpop.f32.mrb[0].mxu0
      %620 = vmatprep.mubr.bf16.mxu0 0
      %621 = vmatmul.mubr.bf16.gmra.mrb[0].mxu0 %v439
      %v622 = vpop.f32.mrb[0].mxu0
      %v623 = vadd.f32 %v245, %v622
      %v624 = vpop.f32.mrb[0].mxu0
      %v625 = vpop.f32.mrb[0].mxu0
      %v626 = vadd.f32 %v245, %v625
      %v627 = vpop.f32.mrb[0].mxu0
      %628 = vmatprep.mubr.bf16.mxu0 0
      %629 = vmatmul.mubr.bf16.gmra.mrb[0].mxu0 %v442
      %v630 = vpop.f32.mrb[0].mxu0
      %v631 = vadd.f32 %v245, %v630
      %v632 = vpop.f32.mrb[0].mxu0
      %v633 = vpop.f32.mrb[0].mxu0
      %v634 = vadd.f32 %v245, %v633
      %v635 = vpop.f32.mrb[0].mxu0
      %636 = vmatprep.mubr.bf16.mxu0 0
      %637 = vmatmul.mubr.bf16.gmra.mrb[0].mxu0 %v445
      %v638 = vpop.f32.mrb[0].mxu0
      %v639 = vadd.f32 %v245, %v638
      %v640 = vpop.f32.mrb[0].mxu0
      %v641 = vpop.f32.mrb[0].mxu0
      %v642 = vadd.f32 %v245, %v641
      %v643 = vpop.f32.mrb[0].mxu0
      %644 = vmatprep.mubr.bf16.mxu0 0
      %645 = vmatmul.mubr.bf16.gmra.mrb[0].mxu0 %v448
      %v646 = vpop.f32.mrb[0].mxu0
      %v647 = vadd.f32 %v245, %v646
      %v648 = vpop.f32.mrb[0].mxu0
      %v649 = vpop.f32.mrb[0].mxu0
      %v650 = vadd.f32 %v245, %v649
      %v651 = vpop.f32.mrb[0].mxu0
      %652 = vmatprep.mubr.bf16.mxu0 0
      %653 = vmatmul.mubr.bf16.gmra.mrb[0].mxu0 %v451
      %v654 = vpop.f32.mrb[0].mxu0
      %v655 = vadd.f32 %v245, %v654
      %v656 = vpop.f32.mrb[0].mxu0
      %v657 = vpop.f32.mrb[0].mxu0
      %v658 = vadd.f32 %v245, %v657
      %v659 = vpop.f32.mrb[0].mxu0
      %660 = vmatprep.mubr.bf16.mxu0 0
      %661 = vmatmul.mubr.bf16.gmra.mrb[0].mxu0 %v454
      %v662 = vpop.f32.mrb[0].mxu0
      %v663 = vadd.f32 %v245, %v662
      %v664 = vpop.f32.mrb[0].mxu0
      %v665 = vpop.f32.mrb[0].mxu0
      %v666 = vadd.f32 %v245, %v665
      %v667 = vpop.f32.mrb[0].mxu0
      %668 = vmatprep.mubr.bf16.mxu0 0
      %669 = vmatmul.mubr.bf16.gmra.mrb[0].mxu0 %v457
      %v670 = vpop.f32.mrb[0].mxu0
      %v671 = vadd.f32 %v245, %v670
      %v672 = vpop.f32.mrb[0].mxu0
      %v673 = vpop.f32.mrb[0].mxu0
      %v674 = vadd.f32 %v245, %v673
      %v675 = vpop.f32.mrb[0].mxu0
      %676 = vmatprep.mubr.bf16.mxu0 0
      %677 = vmatmul.mubr.bf16.gmra.mrb[0].mxu0 %v460
      %v678 = vpop.f32.mrb[0].mxu0
      %v679 = vadd.f32 %v245, %v678
      %v680 = vpop.f32.mrb[0].mxu0
      %v681 = vpop.f32.mrb[0].mxu0
      %v682 = vadd.f32 %v245, %v681
      %v683 = vpop.f32.mrb[0].mxu0
      %684 = vmatprep.mubr.bf16.mxu0 0
      %685 = vmatmul.mubr.bf16.gmra.mrb[0].mxu0 %v463
      %v686 = vpop.f32.mrb[0].mxu0
      %v687 = vadd.f32 %v245, %v686
      %v688 = vpop.f32.mrb[0].mxu0
      %v689 = vpop.f32.mrb[0].mxu0
      %v690 = vadd.f32 %v245, %v689
      %v691 = vpop.f32.mrb[0].mxu0
      %692 = vmatprep.mubr.bf16.mxu0 0
      %693 = vmatmul.mubr.bf16.gmra.mrb[0].mxu0 %v466
      %v694 = vpop.f32.mrb[0].mxu0
      %v695 = vadd.f32 %v245, %v694
      %v696 = vpop.f32.mrb[0].mxu0
      %v697 = vpop.f32.mrb[0].mxu0
      %v698 = vadd.f32 %v245, %v697
      %v699 = vpop.f32.mrb[0].mxu0
      %700 = vmatprep.mubr.bf16.mxu0 0
      %701 = vmatmul.mubr.bf16.gmra.mrb[0].mxu0 %v469
      %v702 = vpop.f32.mrb[0].mxu0
      %v703 = vadd.f32 %v245, %v702
      %v704 = vpop.f32.mrb[0].mxu0
      %v705 = vpop.f32.mrb[0].mxu0
      %v706 = vadd.f32 %v245, %v705
      %v707 = vpop.f32.mrb[0].mxu0
      %708 = vmatprep.mubr.bf16.mxu0 0
      %709 = vmatmul.mubr.bf16.gmra.mrb[0].mxu0 %v472
      %v710 = vpop.f32.mrb[0].mxu0
      %v711 = vadd.f32 %v245, %v710
      %v712 = vpop.f32.mrb[0].mxu0
      %v713 = vpop.f32.mrb[0].mxu0
      %v714 = vadd.f32 %v245, %v713
      %v715 = vpop.f32.mrb[0].mxu0
      %716 = vmatprep.mubr.bf16.mxu0 0
      %717 = vmatmul.mubr.bf16.gmra.mrb[0].mxu0 %v475
      %v718 = vpop.f32.mrb[0].mxu0
      %v719 = vadd.f32 %v245, %v718
      %v720 = vpop.f32.mrb[0].mxu0
      %v721 = vpop.f32.mrb[0].mxu0
      %v722 = vadd.f32 %v245, %v721
      %v723 = vpop.f32.mrb[0].mxu0
      %724 = vmatprep.mubr.bf16.mxu0 0
      %725 = vmatmul.mubr.bf16.gmra.mrb[0].mxu0 %v478
      %v726 = vpop.f32.mrb[0].mxu0
      %v727 = vadd.f32 %v245, %v726
      %v728 = vpop.f32.mrb[0].mxu0
      %v729 = vpop.f32.mrb[0].mxu0
      %v730 = vadd.f32 %v245, %v729
      %v731 = vpop.f32.mrb[0].mxu0
      %732 = vmatprep.mubr.bf16.mxu0 0
      %733 = vmatmul.mubr.bf16.gmra.mrb[0].mxu0 %v481
      %v734 = vpop.f32.mrb[0].mxu0
      %v735 = vadd.f32 %v245, %v734
      %v736 = vpop.f32.mrb[0].mxu0
      %v737 = vpop.f32.mrb[0].mxu0
      %v738 = vadd.f32 %v245, %v737
      %v739 = vpop.f32.mrb[0].mxu0
      %740 = vmatprep.mubr.bf16.mxu0 0
      %741 = vmatmul.mubr.bf16.gmra.mrb[0].mxu0 %v484
      %v742 = vpop.f32.mrb[0].mxu0
      %v743 = vadd.f32 %v245, %v742
      %v744 = vpop.f32.mrb[0].mxu0
      %v745 = vpop.f32.mrb[0].mxu0
      %v746 = vadd.f32 %v245, %v745
      %v747 = vpop.f32.mrb[0].mxu0
      %748 = vmatprep.mubr.bf16.mxu0 0
      %749 = vmatmul.mubr.bf16.gmra.mrb[0].mxu0 %v487
      %v750 = vpop.f32.mrb[0].mxu0
      %v751 = vadd.f32 %v245, %v750
      %v752 = vpop.f32.mrb[0].mxu0
      %v753 = vpop.f32.mrb[0].mxu0
      %v754 = vadd.f32 %v245, %v753
      %v755 = vpop.f32.mrb[0].mxu0
      %756 = vmatprep.mubr.bf16.mxu0 0
      %757 = vmatmul.mubr.bf16.gmra.mrb[0].mxu0 %v490
      %v758 = vpop.f32.mrb[0].mxu0
      %v759 = vadd.f32 %v245, %v758
      %v760 = vpop.f32.mrb[0].mxu0
      %v761 = vpop.f32.mrb[0].mxu0
      %v762 = vadd.f32 %v245, %v761
      %v763 = vpop.f32.mrb[0].mxu0
      %764 = vmatprep.mubr.bf16.mxu0 0
      %765 = vmatmul.mubr.bf16.gmra.mrb[0].mxu0 %v493
      %v766 = vpop.f32.mrb[0].mxu0
      %v767 = vadd.f32 %v245, %v766
      %v768 = vpop.f32.mrb[0].mxu0
      %v769 = vpop.f32.mrb[0].mxu0
      %v770 = vadd.f32 %v245, %v769
      %v771 = vpop.f32.mrb[0].mxu0
      %772 = vmatprep.mubr.bf16.mxu0 0
      %773 = vmatmul.mubr.bf16.gmra.mrb[0].mxu0 %v496
      %v774 = vpop.f32.mrb[0].mxu0
      %v775 = vadd.f32 %v245, %v774
      %v776 = vpop.f32.mrb[0].mxu0
      %v777 = vpop.f32.mrb[0].mxu0
      %v778 = vadd.f32 %v245, %v777
      %v779 = vpop.f32.mrb[0].mxu0
      %780 = vmatprep.mubr.bf16.mxu0 0
      %781 = vmatmul.mubr.bf16.gmra.mrb[0].mxu0 %v499
      %v782 = vpop.f32.mrb[0].mxu0
      %v783 = vadd.f32 %v245, %v782
      %v784 = vpop.f32.mrb[0].mxu0
      %v785 = vpop.f32.mrb[0].mxu0
      %v786 = vadd.f32 %v245, %v785
      %v787 = vpop.f32.mrb[0].mxu0
      %788 = vmatprep.mubr.bf16.mxu0 0
      %789 = vmatmul.mubr.bf16.gmra.mrb[0].mxu0 %v502
      %v790 = vpop.f32.mrb[0].mxu0
      %v791 = vadd.f32 %v245, %v790
      %v792 = vpop.f32.mrb[0].mxu0
      %v793 = vpop.f32.mrb[0].mxu0
      %v794 = vadd.f32 %v245, %v793
      %v795 = vpop.f32.mrb[0].mxu0
      %796 = vdwg.mxu0
      %v797 = vpack.c.bf16 %v546, %v543
      %v798 = vpack.c.bf16 %v554, %v551
      %v799 = vpack.c.bf16 %v562, %v559
      %v800 = vpack.c.bf16 %v570, %v567
      %v801 = vpack.c.bf16 %v578, %v575
      %v802 = vpack.c.bf16 %v586, %v583
      %v803 = vpack.c.bf16 %v594, %v591
      %v804 = vpack.c.bf16 %v602, %v599
      %v805 = vpack.c.bf16 %v610, %v607
      %v806 = vpack.c.bf16 %v618, %v615
      %v807 = vpack.c.bf16 %v626, %v623
      %v808 = vpack.c.bf16 %v634, %v631
      %v809 = vpack.c.bf16 %v642, %v639
      %v810 = vpack.c.bf16 %v650, %v647
      %v811 = vpack.c.bf16 %v658, %v655
      %v812 = vpack.c.bf16 %v666, %v663
      %v813 = vpack.c.bf16 %v674, %v671
      %v814 = vpack.c.bf16 %v682, %v679
      %v815 = vpack.c.bf16 %v690, %v687
      %v816 = vpack.c.bf16 %v698, %v695
      %v817 = vpack.c.bf16 %v706, %v703
      %v818 = vpack.c.bf16 %v714, %v711
      %v819 = vpack.c.bf16 %v722, %v719
      %v820 = vpack.c.bf16 %v730, %v727
      %v821 = vpack.c.bf16 %v738, %v735
      %v822 = vpack.c.bf16 %v746, %v743
      %v823 = vpack.c.bf16 %v754, %v751
      %v824 = vpack.c.bf16 %v762, %v759
      %v825 = vpack.c.bf16 %v770, %v767
      %v826 = vpack.c.bf16 %v778, %v775
      %v827 = vpack.c.bf16 %v786, %v783
      %v828 = vpack.c.bf16 %v794, %v791
      %v861 = vunpack.c.l.b16 %v797
      %v862 = vunpack.c.h.b16 %v797
      %v863 = vunpack.c.l.b16 %v798
      %v864 = vunpack.c.h.b16 %v798
      %v865 = vunpack.c.l.b16 %v799
      %v866 = vunpack.c.h.b16 %v799
      %v867 = vunpack.c.l.b16 %v800
      %v868 = vunpack.c.h.b16 %v800
      %v869 = vunpack.c.l.b16 %v801
      %v870 = vunpack.c.h.b16 %v801
      %v871 = vunpack.c.l.b16 %v802
      %v872 = vunpack.c.h.b16 %v802
      %v873 = vunpack.c.l.b16 %v803
      %v874 = vunpack.c.h.b16 %v803
      %v875 = vunpack.c.l.b16 %v804
      %v876 = vunpack.c.h.b16 %v804
      %v877 = vunpack.c.l.b16 %v805
      %v878 = vunpack.c.h.b16 %v805
      %v879 = vunpack.c.l.b16 %v806
      %v880 = vunpack.c.h.b16 %v806
      %v881 = vunpack.c.l.b16 %v807
      %v882 = vunpack.c.h.b16 %v807
      %v883 = vunpack.c.l.b16 %v808
      %v884 = vunpack.c.h.b16 %v808
      %v885 = vunpack.c.l.b16 %v809
      %v886 = vunpack.c.h.b16 %v809
      %v887 = vunpack.c.l.b16 %v810
      %v888 = vunpack.c.h.b16 %v810
      %v889 = vunpack.c.l.b16 %v811
      %v890 = vunpack.c.h.b16 %v811
      %v891 = vunpack.c.l.b16 %v812
      %v892 = vunpack.c.h.b16 %v812
      %v893 = vunpack.c.l.b16 %v813
      %v894 = vunpack.c.h.b16 %v813
      %v895 = vunpack.c.l.b16 %v814
      %v896 = vunpack.c.h.b16 %v814
      %v897 = vunpack.c.l.b16 %v815
      %v898 = vunpack.c.h.b16 %v815
      %v899 = vunpack.c.l.b16 %v816
      %v900 = vunpack.c.h.b16 %v816
      %v901 = vunpack.c.l.b16 %v817
      %v902 = vunpack.c.h.b16 %v817
      %v903 = vunpack.c.l.b16 %v818
      %v904 = vunpack.c.h.b16 %v818
      %v905 = vunpack.c.l.b16 %v819
      %v906 = vunpack.c.h.b16 %v819
      %v907 = vunpack.c.l.b16 %v820
      %v908 = vunpack.c.h.b16 %v820
      %v909 = vunpack.c.l.b16 %v821
      %v910 = vunpack.c.h.b16 %v821
      %v911 = vunpack.c.l.b16 %v822
      %v912 = vunpack.c.h.b16 %v822
      %v913 = vunpack.c.l.b16 %v823
      %v914 = vunpack.c.h.b16 %v823
      %v915 = vunpack.c.l.b16 %v824
      %v916 = vunpack.c.h.b16 %v824
      %v917 = vunpack.c.l.b16 %v825
      %v918 = vunpack.c.h.b16 %v825
      %v919 = vunpack.c.l.b16 %v826
      %v920 = vunpack.c.h.b16 %v826
      %v921 = vunpack.c.l.b16 %v827
      %v922 = vunpack.c.h.b16 %v827
      %v923 = vunpack.c.l.b16 %v828
      %v924 = vunpack.c.h.b16 %v828
      %v925 = vpack.c.b16 %v861, %v861
      %v926 = vpack.c.b16 %v862, %v862
      %v927 = vpack.c.b16 %v863, %v863
      %v928 = vpack.c.b16 %v864, %v864
      %v929 = vpack.c.b16 %v865, %v865
      %v930 = vpack.c.b16 %v866, %v866
      %v931 = vpack.c.b16 %v867, %v867
      %v932 = vpack.c.b16 %v868, %v868
      %v933 = vpack.c.b16 %v869, %v869
      %v934 = vpack.c.b16 %v870, %v870
      %v935 = vpack.c.b16 %v871, %v871
      %v936 = vpack.c.b16 %v872, %v872
      %v937 = vpack.c.b16 %v873, %v873
      %v938 = vpack.c.b16 %v874, %v874
      %v939 = vpack.c.b16 %v875, %v875
      %v940 = vpack.c.b16 %v876, %v876
      %v941 = vpack.c.b16 %v877, %v877
      %v942 = vpack.c.b16 %v878, %v878
      %v943 = vpack.c.b16 %v879, %v879
      %v944 = vpack.c.b16 %v880, %v880
      %v945 = vpack.c.b16 %v881, %v881
      %v946 = vpack.c.b16 %v882, %v882
      %v947 = vpack.c.b16 %v883, %v883
      %v948 = vpack.c.b16 %v884, %v884
      %v949 = vpack.c.b16 %v885, %v885
      %v950 = vpack.c.b16 %v886, %v886
      %v951 = vpack.c.b16 %v887, %v887
      %v952 = vpack.c.b16 %v888, %v888
      %v953 = vpack.c.b16 %v889, %v889
      %v954 = vpack.c.b16 %v890, %v890
      %v955 = vpack.c.b16 %v891, %v891
      %v956 = vpack.c.b16 %v892, %v892
      %v957 = vpack.c.b16 %v893, %v893
      %v958 = vpack.c.b16 %v894, %v894
      %v959 = vpack.c.b16 %v895, %v895
      %v960 = vpack.c.b16 %v896, %v896
      %v961 = vpack.c.b16 %v897, %v897
      %v962 = vpack.c.b16 %v898, %v898
      %v963 = vpack.c.b16 %v899, %v899
      %v964 = vpack.c.b16 %v900, %v900
      %v965 = vpack.c.b16 %v901, %v901
      %v966 = vpack.c.b16 %v902, %v902
      %v967 = vpack.c.b16 %v903, %v903
      %v968 = vpack.c.b16 %v904, %v904
      %v969 = vpack.c.b16 %v905, %v905
      %v970 = vpack.c.b16 %v906, %v906
      %v971 = vpack.c.b16 %v907, %v907
      %v972 = vpack.c.b16 %v908, %v908
      %v973 = vpack.c.b16 %v909, %v909
      %v974 = vpack.c.b16 %v910, %v910
      %v975 = vpack.c.b16 %v911, %v911
      %v976 = vpack.c.b16 %v912, %v912
      %v977 = vpack.c.b16 %v913, %v913
      %v978 = vpack.c.b16 %v914, %v914
      %v979 = vpack.c.b16 %v915, %v915
      %v980 = vpack.c.b16 %v916, %v916
      %v981 = vpack.c.b16 %v917, %v917
      %v982 = vpack.c.b16 %v918, %v918
      %v983 = vpack.c.b16 %v919, %v919
      %v984 = vpack.c.b16 %v920, %v920
      %v985 = vpack.c.b16 %v921, %v921
      %v986 = vpack.c.b16 %v922, %v922
      %v987 = vpack.c.b16 %v923, %v923
      %v988 = vpack.c.b16 %v924, %v924
      %vm1053 = vcmask 60416
      %1054 = vst.msk [vmem:[%s172] sm:$0xf] %vm1053, %v925
      %1055 = vst.msk [vmem:[%s172 + $0x4] sm:$0xf] %vm1053, %v926
      %1056 = vst.msk [vmem:[%s172 + $0x8] sm:$0xf] %vm1053, %v927
      %1057 = vst.msk [vmem:[%s172 + $0xc] sm:$0xf] %vm1053, %v928
      %1058 = vst.msk [vmem:[%s172 + $0x10] sm:$0xf] %vm1053, %v929
      %1059 = vst.msk [vmem:[%s172 + $0x14] sm:$0xf] %vm1053, %v930
      %1060 = vst.msk [vmem:[%s172 + $0x18] sm:$0xf] %vm1053, %v931
      %1061 = vst.msk [vmem:[%s172 + $0x1c] sm:$0xf] %vm1053, %v932
      %1062 = vst.msk [vmem:[%s172 + $0x20] sm:$0xf] %vm1053, %v933
      %1063 = vst.msk [vmem:[%s172 + $0x24] sm:$0xf] %vm1053, %v934
      %1064 = vst.msk [vmem:[%s172 + $0x28] sm:$0xf] %vm1053, %v935
      %1065 = vst.msk [vmem:[%s172 + $0x2c] sm:$0xf] %vm1053, %v936
      %1066 = vst.msk [vmem:[%s172 + $0x30] sm:$0xf] %vm1053, %v937
      %1067 = vst.msk [vmem:[%s172 + $0x34] sm:$0xf] %vm1053, %v938
      %1068 = vst.msk [vmem:[%s172 + $0x38] sm:$0xf] %vm1053, %v939
      %1069 = vst.msk [vmem:[%s172 + $0x3c] sm:$0xf] %vm1053, %v940
      %1070 = vst.msk [vmem:[%s172 + $0x40] sm:$0xf] %vm1053, %v941
      %1071 = vst.msk [vmem:[%s172 + $0x44] sm:$0xf] %vm1053, %v942
      %1072 = vst.msk [vmem:[%s172 + $0x48] sm:$0xf] %vm1053, %v943
      %1073 = vst.msk [vmem:[%s172 + $0x4c] sm:$0xf] %vm1053, %v944
      %1074 = vst.msk [vmem:[%s172 + $0x50] sm:$0xf] %vm1053, %v945
      %1075 = vst.msk [vmem:[%s172 + $0x54] sm:$0xf] %vm1053, %v946
      %1076 = vst.msk [vmem:[%s172 + $0x58] sm:$0xf] %vm1053, %v947
      %1077 = vst.msk [vmem:[%s172 + $0x5c] sm:$0xf] %vm1053, %v948
      %1078 = vst.msk [vmem:[%s172 + $0x60] sm:$0xf] %vm1053, %v949
      %1079 = vst.msk [vmem:[%s172 + $0x64] sm:$0xf] %vm1053, %v950
      %1080 = vst.msk [vmem:[%s172 + $0x68] sm:$0xf] %vm1053, %v951
      %1081 = vst.msk [vmem:[%s172 + $0x6c] sm:$0xf] %vm1053, %v952
      %1082 = vst.msk [vmem:[%s172 + $0x70] sm:$0xf] %vm1053, %v953
      %1083 = vst.msk [vmem:[%s172 + $0x74] sm:$0xf] %vm1053, %v954
      %1084 = vst.msk [vmem:[%s172 + $0x78] sm:$0xf] %vm1053, %v955
      %1085 = vst.msk [vmem:[%s172 + $0x7c] sm:$0xf] %vm1053, %v956
      %1086 = vst.msk [vmem:[%s172 + $0x80] sm:$0xf] %vm1053, %v957
      %1087 = vst.msk [vmem:[%s172 + $0x84] sm:$0xf] %vm1053, %v958
      %1088 = vst.msk [vmem:[%s172 + $0x88] sm:$0xf] %vm1053, %v959
      %1089 = vst.msk [vmem:[%s172 + $0x8c] sm:$0xf] %vm1053, %v960
      %1090 = vst.msk [vmem:[%s172 + $0x90] sm:$0xf] %vm1053, %v961
      %1091 = vst.msk [vmem:[%s172 + $0x94] sm:$0xf] %vm1053, %v962
      %1092 = vst.msk [vmem:[%s172 + $0x98] sm:$0xf] %vm1053, %v963
      %1093 = vst.msk [vmem:[%s172 + $0x9c] sm:$0xf] %vm1053, %v964
      %1094 = vst.msk [vmem:[%s172 + $0xa0] sm:$0xf] %vm1053, %v965
      %1095 = vst.msk [vmem:[%s172 + $0xa4] sm:$0xf] %vm1053, %v966
      %1096 = vst.msk [vmem:[%s172 + $0xa8] sm:$0xf] %vm1053, %v967
      %1097 = vst.msk [vmem:[%s172 + $0xac] sm:$0xf] %vm1053, %v968
      %1098 = vst.msk [vmem:[%s172 + $0xb0] sm:$0xf] %vm1053, %v969
      %1099 = vst.msk [vmem:[%s172 + $0xb4] sm:$0xf] %vm1053, %v970
      %1100 = vst.msk [vmem:[%s172 + $0xb8] sm:$0xf] %vm1053, %v971
      %1101 = vst.msk [vmem:[%s172 + $0xbc] sm:$0xf] %vm1053, %v972
      %1102 = vst.msk [vmem:[%s172 + $0xc0] sm:$0xf] %vm1053, %v973
      %1103 = vst.msk [vmem:[%s172 + $0xc4] sm:$0xf] %vm1053, %v974
      %1104 = vst.msk [vmem:[%s172 + $0xc8] sm:$0xf] %vm1053, %v975
      %1105 = vst.msk [vmem:[%s172 + $0xcc] sm:$0xf] %vm1053, %v976
      %1106 = vst.msk [vmem:[%s172 + $0xd0] sm:$0xf] %vm1053, %v977
      %1107 = vst.msk [vmem:[%s172 + $0xd4] sm:$0xf] %vm1053, %v978
      %1108 = vst.msk [vmem:[%s172 + $0xd8] sm:$0xf] %vm1053, %v979
      %1109 = vst.msk [vmem:[%s172 + $0xdc] sm:$0xf] %vm1053, %v980
      %1110 = vst.msk [vmem:[%s172 + $0xe0] sm:$0xf] %vm1053, %v981
      %1111 = vst.msk [vmem:[%s172 + $0xe4] sm:$0xf] %vm1053, %v982
      %1112 = vst.msk [vmem:[%s172 + $0xe8] sm:$0xf] %vm1053, %v983
      %1113 = vst.msk [vmem:[%s172 + $0xec] sm:$0xf] %vm1053, %v984
      %1114 = vst.msk [vmem:[%s172 + $0xf0] sm:$0xf] %vm1053, %v985
      %1115 = vst.msk [vmem:[%s172 + $0xf4] sm:$0xf] %vm1053, %v986
      %1116 = vst.msk [vmem:[%s172 + $0xf8] sm:$0xf] %vm1053, %v987
      %1117 = vst.msk [vmem:[%s172 + $0xfc] sm:$0xf] %vm1053, %v988
      %s1118 = smul.u32 64, %s14
      %p1119 = scmp.lt.s32.totalorder %s1118, 127
      %s1120 = scalar_select %p1119, %s1118, 127
      %s1121 = smul.addr %s1120, 4
      %s1122 = scalar_lea.vmem %s3, %s1121
      // Predicated region
      $region33: #{sk_block_forward.3} parent=31 // pred_check
        %p1123 = pneg %p100
      $region34: #{sk_block_forward.3} parent=31 // pred_check_branch
        %1125 = sbr.rel (%p1123) target = $region36
      $region35: #{sk_block_forward.3} parent=31 // pred_region
        %s1126 = smul.u32 64, %s14
      $region36: #{sk_block_forward.3} parent=31 // pred_fallthru
        _
    $region32: #{sk_block_forward.3} parent=5 // pred_fallthru
      _
    %p1127 = scmp.le.s32.totalorder 2, %s9
    // Predicated region
    $region37: #{sk_block_forward.3} parent=5 // pred_check
      %p1128 = pneg %p1127
    $region38: #{sk_block_forward.3} parent=5 // pred_check_branch
      %1130 = sbr.rel (%p1128) target = $region40
    $region39: #{sk_block_forward.3} parent=5 // pred_region
      %s1131 = ssub.s32 %s9, 2
      // Predicated region
      $region41: #{sk_block_forward.3} parent=39 // pred_check
        %p1132 = pneg %p106
      $region42: #{sk_block_forward.3} parent=39 // pred_check_branch
        %1134 = sbr.rel (%p1132) target = $region44
      $region43: #{sk_block_forward.3} parent=39 // pred_region
        %s1135 = smul.u32 64, %s15
        %p1136 = scmp.lt.s32.totalorder %s1135, 127
        %s1137 = scalar_select %p1136, %s1135, 127
        %s1138 = smul.addr %s1137, 4
        %s1139 = scalar_lea.vmem %s3, %s1138
      $region44: #{sk_block_forward.3} parent=39 // pred_fallthru
        _
    $region40: #{sk_block_forward.3} parent=5 // pred_fallthru
      _
  $region6: #{sk_block_forward.3} parent=0 // loop_footer
    %s13 = sadd.s32 1, %s9
  $region7: #{sk_block_forward.3} parent=0 // loop_footer_branch
    %8 = sbr.rel target = $region3
  $region8: #{sk_block_forward.3} parent=0 // loop_exit
    _

// kernel: sk_block_forward.5
$region0: #{sk_block_forward.5}
  #allocation0 [shape = 'u32[]', space=smem, size = 0x4, offset = 0x4, fixed_abs, tag = 'smem constant byte address 0x4 - core index']
  #allocation1 [shape = 'u32[144,128]{1,0:T(1,128)}', space=vmem, size = 0x12000, scoped, tag = 'internal scratch']
  %s0 = inlined_call_operand.vmem [shape: bf16[2,8,96,8], index: 0, kind: input, shape index: {}]
  %s1 = inlined_call_operand.vmem [shape: bf16[2,8,96,8], index: 1, kind: input, shape index: {}]
  %s2 = inlined_call_operand.vmem [shape: f32[2,1,8], index: 2, kind: input, shape index: {}]
  %s3 = inlined_call_operand.vmem [shape: f32[2,1,8], index: 3, kind: input, shape index: {}]
  %s4 = inlined_call_operand.vmem [shape: bf16[2,8,96,8], index: 4, kind: input, shape index: {}]
  %s5 = inlined_call_operand.vmem [shape: bf16[8,16], index: 5, kind: input, shape index: {}]
  %s6 = inlined_call_operand.vmem [shape: bf16[8,16], index: 6, kind: input, shape index: {}]
  %s7 = inlined_call_operand.vmem [shape: f32[1,16], index: 7, kind: input, shape index: {}]
  %s8 = inlined_call_operand.vmem [shape: f32[2,8,96,16], index: 8, kind: output, shape index: {}]
  %s9 = sld [smem:[#allocation0]]
  $region65: #{sk_block_forward.5} parent=0
    _
  %s11 = ssub.s32 1, %s9
  %s12 = scalar_select 0, %s11, %s9
  loop: start=0, step=1, limit=18
  $region2: #{sk_block_forward.5} parent=0 // loop_pre_header
    _
  $region3: #{sk_block_forward.5} parent=0 // loop_header
    %s14 = sphi 0, %s18
    %p15 = scmp.ge.s32.totalorder %s14, 18
    %s21 = sphi 0, %s33
    %s22 = sphi 0, %s29
    %s23 = sphi 0, %s21
    %s24 = sphi 0, %s22
    %s25 = sphi 0, %s23
    %s26 = sphi 0, %s24
    %s38 = sphi 0, %s40
    %s41 = sphi 0, %s38
    %s42 = sphi 0, %s41
    %s58 = sphi 0, %s42
    %s66 = sphi 0, %s68
    %s69 = sphi 0, %s66
    %s70 = sphi 0, %s69
    %s86 = sphi 0, %s70
    %s92 = sphi 0, %s94
    %s95 = sphi 0, %s92
    %s96 = sphi 0, %s95
    %s112 = sphi 0, %s96
    %s118 = sphi 0, %s120
    %s121 = sphi 0, %s118
    %s122 = sphi 0, %s121
    %s138 = sphi 0, %s122
    %s146 = sphi 0, %s148
    %s149 = sphi 0, %s146
    %s150 = sphi 0, %s149
    %s166 = sphi 0, %s150
    %s170 = sphi 0, %s170
    %s172 = sphi 0, %s170
    %s173 = sphi 0, %s172
    %s187 = sphi 0, %s173
    %s191 = sphi 0, %s191
    %s193 = sphi 0, %s191
    %s194 = sphi 0, %s193
    %s208 = sphi 0, %s194
    %s212 = sphi 0, %s212
    %s214 = sphi 0, %s212
    %s215 = sphi 0, %s214
    %s229 = sphi 0, %s215
    %s237 = sphi 0, %s239
    %s240 = sphi 0, %s237
    %s241 = sphi 0, %s240
    %s257 = sphi 0, %s241
  $region4: #{sk_block_forward.5} parent=0 // loop_header_branch
    %17 = sbr.rel (%p15) target = $region8
  $region5: #{sk_block_forward.5} parent=0 // loop_body
    %s19 = ssub.s32 %s14, 1
    %s20 = ssub.s32 %s14, 2
    %s27 = sadd.s32 1, %s22
    %p28 = scmp.ge.s32.totalorder %s27, 8
    %s29 = scalar_select %p28, 0, %s27
    %s30 = sadd.s32 1, %s21
    %s31 = scalar_select %p28, %s30, %s21
    %p32 = scmp.ge.s32.totalorder %s31, 2
    %s33 = scalar_select %p32, 0, %s31
    %s34 = ssub.s32 %s21, %s33
    %s35 = ssub.s32 %s22, %s29
    %s36 = sor.u32 %s34, %s35
    %p37 = scmp.eq.s32.totalorder %s36, 0
    %s39 = sadd.s32 %s38, 1
    %s40 = scalar_select %p37, %s38, %s39
    %p43 = pneg %p37
    %p44 = scmp.eq.s32.totalorder %s14, 15
    %p45 = por %p43, %p44
    %p46 = scmp.ne.s32.totalorder %s38, %s41
    %p47 = scmp.eq.s32.totalorder %s14, 0
    %p48 = por %p46, %p47
    %p49 = scmp.ne.s32.totalorder %s38, %s41
    %p50 = scmp.eq.s32.totalorder %s19, 15
    %p51 = por %p49, %p50
    %p52 = scmp.ne.s32.totalorder %s41, %s42
    %p53 = scmp.eq.s32.totalorder %s19, 0
    %p54 = por %p52, %p53
    %p55 = scmp.ne.s32.totalorder %s41, %s42
    %p56 = scmp.eq.s32.totalorder %s20, 15
    %p57 = por %p55, %p56
    %p59 = scmp.ne.s32.totalorder %s42, %s58
    %p60 = scmp.eq.s32.totalorder %s20, 0
    %p61 = por %p59, %p60
    %s62 = ssub.s32 %s21, %s33
    %s63 = ssub.s32 %s22, %s29
    %s64 = sor.u32 %s62, %s63
    %p65 = scmp.eq.s32.totalorder %s64, 0
    %s67 = sadd.s32 %s66, 1
    %s68 = scalar_select %p65, %s66, %s67
    %p71 = pneg %p65
    %p72 = scmp.eq.s32.totalorder %s14, 15
    %p73 = por %p71, %p72
    %p74 = scmp.ne.s32.totalorder %s66, %s69
    %p75 = scmp.eq.s32.totalorder %s14, 0
    %p76 = por %p74, %p75
    %p77 = scmp.ne.s32.totalorder %s66, %s69
    %p78 = scmp.eq.s32.totalorder %s19, 15
    %p79 = por %p77, %p78
    %p80 = scmp.ne.s32.totalorder %s69, %s70
    %p81 = scmp.eq.s32.totalorder %s19, 0
    %p82 = por %p80, %p81
    %p83 = scmp.ne.s32.totalorder %s69, %s70
    %p84 = scmp.eq.s32.totalorder %s20, 15
    %p85 = por %p83, %p84
    %p87 = scmp.ne.s32.totalorder %s70, %s86
    %p88 = scmp.eq.s32.totalorder %s20, 0
    %p89 = por %p87, %p88
    %s90 = ssub.s32 %s21, %s33
    %p91 = scmp.eq.s32.totalorder %s90, 0
    %s93 = sadd.s32 %s92, 1
    %s94 = scalar_select %p91, %s92, %s93
    %p97 = pneg %p91
    %p98 = scmp.eq.s32.totalorder %s14, 15
    %p99 = por %p97, %p98
    %p100 = scmp.ne.s32.totalorder %s92, %s95
    %p101 = scmp.eq.s32.totalorder %s14, 0
    %p102 = por %p100, %p101
    %p103 = scmp.ne.s32.totalorder %s92, %s95
    %p104 = scmp.eq.s32.totalorder %s19, 15
    %p105 = por %p103, %p104
    %p106 = scmp.ne.s32.totalorder %s95, %s96
    %p107 = scmp.eq.s32.totalorder %s19, 0
    %p108 = por %p106, %p107
    %p109 = scmp.ne.s32.totalorder %s95, %s96
    %p110 = scmp.eq.s32.totalorder %s20, 15
    %p111 = por %p109, %p110
    %p113 = scmp.ne.s32.totalorder %s96, %s112
    %p114 = scmp.eq.s32.totalorder %s20, 0
    %p115 = por %p113, %p114
    %s116 = ssub.s32 %s21, %s33
    %p117 = scmp.eq.s32.totalorder %s116, 0
    %s119 = sadd.s32 %s118, 1
    %s120 = scalar_select %p117, %s118, %s119
    %p123 = pneg %p117
    %p124 = scmp.eq.s32.totalorder %s14, 15
    %p125 = por %p123, %p124
    %p126 = scmp.ne.s32.totalorder %s118, %s121
    %p127 = scmp.eq.s32.totalorder %s14, 0
    %p128 = por %p126, %p127
    %p129 = scmp.ne.s32.totalorder %s118, %s121
    %p130 = scmp.eq.s32.totalorder %s19, 15
    %p131 = por %p129, %p130
    %p132 = scmp.ne.s32.totalorder %s121, %s122
    %p133 = scmp.eq.s32.totalorder %s19, 0
    %p134 = por %p132, %p133
    %p135 = scmp.ne.s32.totalorder %s121, %s122
    %p136 = scmp.eq.s32.totalorder %s20, 15
    %p137 = por %p135, %p136
    %p139 = scmp.ne.s32.totalorder %s122, %s138
    %p140 = scmp.eq.s32.totalorder %s20, 0
    %p141 = por %p139, %p140
    %s142 = ssub.s32 %s21, %s33
    %s143 = ssub.s32 %s22, %s29
    %s144 = sor.u32 %s142, %s143
    %p145 = scmp.eq.s32.totalorder %s144, 0
    %s147 = sadd.s32 %s146, 1
    %s148 = scalar_select %p145, %s146, %s147
    %p151 = pneg %p145
    %p152 = scmp.eq.s32.totalorder %s14, 15
    %p153 = por %p151, %p152
    %p154 = scmp.ne.s32.totalorder %s146, %s149
    %p155 = scmp.eq.s32.totalorder %s14, 0
    %p156 = por %p154, %p155
    %p157 = scmp.ne.s32.totalorder %s146, %s149
    %p158 = scmp.eq.s32.totalorder %s19, 15
    %p159 = por %p157, %p158
    %p160 = scmp.ne.s32.totalorder %s149, %s150
    %p161 = scmp.eq.s32.totalorder %s19, 0
    %p162 = por %p160, %p161
    %p163 = scmp.ne.s32.totalorder %s149, %s150
    %p164 = scmp.eq.s32.totalorder %s20, 15
    %p165 = por %p163, %p164
    %p167 = scmp.ne.s32.totalorder %s150, %s166
    %p168 = scmp.eq.s32.totalorder %s20, 0
    %p169 = por %p167, %p168
    %s171 = sadd.s32 %s170, 1
    %p174 = scmp.eq.s32.totalorder %s14, 15
    %p175 = scmp.ne.s32.totalorder %s170, %s172
    %p176 = scmp.eq.s32.totalorder %s14, 0
    %p177 = por %p175, %p176
    %p178 = scmp.ne.s32.totalorder %s170, %s172
    %p179 = scmp.eq.s32.totalorder %s19, 15
    %p180 = por %p178, %p179
    %p181 = scmp.ne.s32.totalorder %s172, %s173
    %p182 = scmp.eq.s32.totalorder %s19, 0
    %p183 = por %p181, %p182
    %p184 = scmp.ne.s32.totalorder %s172, %s173
    %p185 = scmp.eq.s32.totalorder %s20, 15
    %p186 = por %p184, %p185
    %p188 = scmp.ne.s32.totalorder %s173, %s187
    %p189 = scmp.eq.s32.totalorder %s20, 0
    %p190 = por %p188, %p189
    %s192 = sadd.s32 %s191, 1
    %p195 = scmp.eq.s32.totalorder %s14, 15
    %p196 = scmp.ne.s32.totalorder %s191, %s193
    %p197 = scmp.eq.s32.totalorder %s14, 0
    %p198 = por %p196, %p197
    %p199 = scmp.ne.s32.totalorder %s191, %s193
    %p200 = scmp.eq.s32.totalorder %s19, 15
    %p201 = por %p199, %p200
    %p202 = scmp.ne.s32.totalorder %s193, %s194
    %p203 = scmp.eq.s32.totalorder %s19, 0
    %p204 = por %p202, %p203
    %p205 = scmp.ne.s32.totalorder %s193, %s194
    %p206 = scmp.eq.s32.totalorder %s20, 15
    %p207 = por %p205, %p206
    %p209 = scmp.ne.s32.totalorder %s194, %s208
    %p210 = scmp.eq.s32.totalorder %s20, 0
    %p211 = por %p209, %p210
    %s213 = sadd.s32 %s212, 1
    %p216 = scmp.eq.s32.totalorder %s14, 15
    %p217 = scmp.ne.s32.totalorder %s212, %s214
    %p218 = scmp.eq.s32.totalorder %s14, 0
    %p219 = por %p217, %p218
    %p220 = scmp.ne.s32.totalorder %s212, %s214
    %p221 = scmp.eq.s32.totalorder %s19, 15
    %p222 = por %p220, %p221
    %p223 = scmp.ne.s32.totalorder %s214, %s215
    %p224 = scmp.eq.s32.totalorder %s19, 0
    %p225 = por %p223, %p224
    %p226 = scmp.ne.s32.totalorder %s214, %s215
    %p227 = scmp.eq.s32.totalorder %s20, 15
    %p228 = por %p226, %p227
    %p230 = scmp.ne.s32.totalorder %s215, %s229
    %p231 = scmp.eq.s32.totalorder %s20, 0
    %p232 = por %p230, %p231
    %s233 = ssub.s32 %s21, %s33
    %s234 = ssub.s32 %s22, %s29
    %s235 = sor.u32 %s233, %s234
    %p236 = scmp.eq.s32.totalorder %s235, 0
    %s238 = sadd.s32 %s237, 1
    %s239 = scalar_select %p236, %s237, %s238
    %p242 = pneg %p236
    %p243 = scmp.eq.s32.totalorder %s14, 15
    %p244 = por %p242, %p243
    %p245 = scmp.ne.s32.totalorder %s237, %s240
    %p246 = scmp.eq.s32.totalorder %s14, 0
    %p247 = por %p245, %p246
    %p248 = scmp.ne.s32.totalorder %s237, %s240
    %p249 = scmp.eq.s32.totalorder %s19, 15
    %p250 = por %p248, %p249
    %p251 = scmp.ne.s32.totalorder %s240, %s241
    %p252 = scmp.eq.s32.totalorder %s19, 0
    %p253 = por %p251, %p252
    %p254 = scmp.ne.s32.totalorder %s240, %s241
    %p255 = scmp.eq.s32.totalorder %s20, 15
    %p256 = por %p254, %p255
    %p258 = scmp.ne.s32.totalorder %s241, %s257
    %p259 = scmp.eq.s32.totalorder %s20, 0
    %p260 = por %p258, %p259
    %p261 = scmp.le.s32.totalorder 1, %s14
    %p262 = scmp.lt.s32.totalorder %s14, 17
    %p263 = pnand %p261, %p262
    %p264 = pneg %p263
    // Predicated region
    $region9: #{sk_block_forward.5} parent=5 // pred_check
      _
    $region10: #{sk_block_forward.5} parent=5 // pred_check_branch
      %266 = sbr.rel (%p263) target = $region12
    $region11: #{sk_block_forward.5} parent=5 // pred_region
      %s267 = ssub.s32 %s14, 1
      // Predicated region
      $region13: #{sk_block_forward.5} parent=11 // pred_check
        %p268 = pneg %p183
      $region14: #{sk_block_forward.5} parent=11 // pred_check_branch
        %270 = sbr.rel (%p268) target = $region16
      $region15: #{sk_block_forward.5} parent=11 // pred_region
        _
      $region16: #{sk_block_forward.5} parent=11 // pred_fallthru
        _
      // Predicated region
      $region17: #{sk_block_forward.5} parent=11 // pred_check
        %p271 = pneg %p204
      $region18: #{sk_block_forward.5} parent=11 // pred_check_branch
        %273 = sbr.rel (%p271) target = $region20
      $region19: #{sk_block_forward.5} parent=11 // pred_region
        _
      $region20: #{sk_block_forward.5} parent=11 // pred_fallthru
        _
      // Predicated region
      $region21: #{sk_block_forward.5} parent=11 // pred_check
        %p274 = pneg %p225
      $region22: #{sk_block_forward.5} parent=11 // pred_check_branch
        %276 = sbr.rel (%p274) target = $region24
      $region23: #{sk_block_forward.5} parent=11 // pred_region
        _
      $region24: #{sk_block_forward.5} parent=11 // pred_fallthru
        _
    $region12: #{sk_block_forward.5} parent=5 // pred_fallthru
      _
    %p277 = scmp.lt.s32.totalorder %s14, 16
    // Predicated region
    $region25: #{sk_block_forward.5} parent=5 // pred_check
      %p278 = pneg %p277
    $region26: #{sk_block_forward.5} parent=5 // pred_check_branch
      %280 = sbr.rel (%p278) target = $region28
    $region27: #{sk_block_forward.5} parent=5 // pred_region
      // Predicated region
      $region29: #{sk_block_forward.5} parent=27 // pred_check
        %p281 = pneg %p48
      $region30: #{sk_block_forward.5} parent=27 // pred_check_branch
        %283 = sbr.rel (%p281) target = $region32
      $region31: #{sk_block_forward.5} parent=27 // pred_region
        %p284 = scmp.lt.s32.totalorder %s21, 1
        %s285 = scalar_select %p284, %s21, 1
        %p286 = scmp.lt.s32.totalorder %s22, 7
        %s287 = scalar_select %p286, %s22, 7
        %s288 = smul.addr %s287, 12
        %s289 = smul.addr %s285, 96
        %s290 = sadd.s32 %s288, %s289
        %s291 = smul.addr %s290, 4
        %s292 = scalar_lea.vmem %s0, %s291
      $region32: #{sk_block_forward.5} parent=27 // pred_fallthru
        _
      // Predicated region
      $region33: #{sk_block_forward.5} parent=27 // pred_check
        %p293 = pneg %p76
      $region34: #{sk_block_forward.5} parent=27 // pred_check_branch
        %295 = sbr.rel (%p293) target = $region36
      $region35: #{sk_block_forward.5} parent=27 // pred_region
        %p296 = scmp.lt.s32.totalorder %s21, 1
        %s297 = scalar_select %p296, %s21, 1
        %p298 = scmp.lt.s32.totalorder %s22, 7
        %s299 = scalar_select %p298, %s22, 7
        %s300 = smul.addr %s299, 12
        %s301 = smul.addr %s297, 96
        %s302 = sadd.s32 %s300, %s301
        %s303 = smul.addr %s302, 4
        %s304 = scalar_lea.vmem %s1, %s303
      $region36: #{sk_block_forward.5} parent=27 // pred_fallthru
        _
      // Predicated region
      $region37: #{sk_block_forward.5} parent=27 // pred_check
        %p305 = pneg %p102
      $region38: #{sk_block_forward.5} parent=27 // pred_check_branch
        %307 = sbr.rel (%p305) target = $region40
      $region39: #{sk_block_forward.5} parent=27 // pred_region
        %p308 = scmp.lt.s32.totalorder %s21, 1
        %s309 = scalar_select %p308, %s21, 1
        %s310 = scalar_lea.vmem %s2, %s309
      $region40: #{sk_block_forward.5} parent=27 // pred_fallthru
        _
      // Predicated region
      $region41: #{sk_block_forward.5} parent=27 // pred_check
        %p311 = pneg %p128
      $region42: #{sk_block_forward.5} parent=27 // pred_check_branch
        %313 = sbr.rel (%p311) target = $region44
      $region43: #{sk_block_forward.5} parent=27 // pred_region
        %p314 = scmp.lt.s32.totalorder %s21, 1
        %s315 = scalar_select %p314, %s21, 1
        %s316 = scalar_lea.vmem %s3, %s315
      $region44: #{sk_block_forward.5} parent=27 // pred_fallthru
        _
      // Predicated region
      $region45: #{sk_block_forward.5} parent=27 // pred_check
        %p317 = pneg %p156
      $region46: #{sk_block_forward.5} parent=27 // pred_check_branch
        %319 = sbr.rel (%p317) target = $region48
      $region47: #{sk_block_forward.5} parent=27 // pred_region
        %p320 = scmp.lt.s32.totalorder %s21, 1
        %s321 = scalar_select %p320, %s21, 1
        %p322 = scmp.lt.s32.totalorder %s22, 7
        %s323 = scalar_select %p322, %s22, 7
        %s324 = smul.addr %s323, 12
        %s325 = smul.addr %s321, 96
        %s326 = sadd.s32 %s324, %s325
        %s327 = smul.addr %s326, 4
        %s328 = scalar_lea.vmem %s4, %s327
      $region48: #{sk_block_forward.5} parent=27 // pred_fallthru
        _
    $region28: #{sk_block_forward.5} parent=5 // pred_fallthru
      _
    %p329 = scmp.le.s32.totalorder 1, %s14
    %p330 = scmp.lt.s32.totalorder %s14, 17
    %p331 = pnand %p329, %p330
    %p332 = pneg %p331
    // Predicated region
    $region49: #{sk_block_forward.5} parent=5 // pred_check
      _
    $region50: #{sk_block_forward.5} parent=5 // pred_check_branch
      %334 = sbr.rel (%p331) target = $region52
    $region51: #{sk_block_forward.5} parent=5 // pred_region
      %s335 = ssub.s32 %s14, 1
      %p336 = scmp.lt.s32.totalorder %s23, 1
      %s337 = scalar_select %p336, %s23, 1
      %p338 = scmp.lt.s32.totalorder %s24, 7
      %s339 = scalar_select %p338, %s24, 7
      %s340 = smul.addr %s339, 12
      %s341 = smul.addr %s337, 96
      %s342 = sadd.s32 %s340, %s341
      %s343 = smul.addr %s342, 4
      %s344 = scalar_lea.vmem %s0, %s343
      %p345 = pneg %p54
      %p346 = pneg %p51
      %p347 = scmp.lt.s32.totalorder %s23, 1
      %s348 = scalar_select %p347, %s23, 1
      %p349 = scmp.lt.s32.totalorder %s24, 7
      %s350 = scalar_select %p349, %s24, 7
      %s351 = smul.addr %s350, 12
      %s352 = smul.addr %s348, 96
      %s353 = sadd.s32 %s351, %s352
      %s354 = smul.addr %s353, 4
      %s355 = scalar_lea.vmem %s1, %s354
      %p356 = pneg %p82
      %p357 = pneg %p79
      %p358 = scmp.lt.s32.totalorder %s23, 1
      %s359 = scalar_select %p358, %s23, 1
      %s360 = scalar_lea.vmem %s2, %s359
      %p361 = pneg %p108
      %p362 = pneg %p105
      %p363 = scmp.lt.s32.totalorder %s23, 1
      %s364 = scalar_select %p363, %s23, 1
      %s365 = scalar_lea.vmem %s3, %s364
      %p366 = pneg %p134
      %p367 = pneg %p131
      %p368 = scmp.lt.s32.totalorder %s23, 1
      %s369 = scalar_select %p368, %s23, 1
      %p370 = scmp.lt.s32.totalorder %s24, 7
      %s371 = scalar_select %p370, %s24, 7
      %s372 = smul.addr %s371, 12
      %s373 = smul.addr %s369, 96
      %s374 = sadd.s32 %s372, %s373
      %s375 = smul.addr %s374, 4
      %s376 = scalar_lea.vmem %s4, %s375
      %p377 = pneg %p162
      %p378 = pneg %p159
      %p379 = pneg %p183
      %p380 = pneg %p180
      %p381 = pneg %p204
      %p382 = pneg %p201
      %p383 = pneg %p225
      %p384 = pneg %p222
      %p385 = pneg %p253
      %p386 = pneg %p250
      %p387 = scmp.lt.s32.totalorder %s23, 1
      %s388 = scalar_select %p387, %s23, 1
      %p389 = scmp.lt.s32.totalorder %s24, 7
      %s390 = scalar_select %p389, %s24, 7
      %s391 = smul.addr %s390, 12
      %s392 = smul.addr %s388, 96
      %s393 = sadd.s32 %s391, %s392
      %s394 = smul.addr %s393, 8
      %s395 = scalar_lea.vmem %s8, %s394
      %p396 = scmp.lt.s32.totalorder %s23, 1
      %s397 = scalar_select %p396, %s23, 1
      %p398 = scmp.lt.s32.totalorder %s24, 7
      %s399 = scalar_select %p398, %s24, 7
      %s400 = smul.addr %s399, 12
      %s401 = smul.addr %s397, 96
      %s402 = sadd.s32 %s400, %s401
      %s403 = smul.addr %s402, 4
      %s404 = scalar_lea.vmem %s0, %s403
      %p405 = scmp.lt.s32.totalorder %s23, 1
      %s406 = scalar_select %p405, %s23, 1
      %p407 = scmp.lt.s32.totalorder %s24, 7
      %s408 = scalar_select %p407, %s24, 7
      %s409 = smul.addr %s408, 12
      %s410 = smul.addr %s406, 96
      %s411 = sadd.s32 %s409, %s410
      %s412 = smul.addr %s411, 4
      %s413 = scalar_lea.vmem %s1, %s412
      %p414 = scmp.lt.s32.totalorder %s23, 1
      %s415 = scalar_select %p414, %s23, 1
      %s416 = scalar_lea.vmem %s2, %s415
      %p417 = scmp.lt.s32.totalorder %s23, 1
      %s418 = scalar_select %p417, %s23, 1
      %s419 = scalar_lea.vmem %s3, %s418
      %p420 = scmp.lt.s32.totalorder %s23, 1
      %s421 = scalar_select %p420, %s23, 1
      %p422 = scmp.lt.s32.totalorder %s24, 7
      %s423 = scalar_select %p422, %s24, 7
      %s424 = smul.addr %s423, 12
      %s425 = smul.addr %s421, 96
      %s426 = sadd.s32 %s424, %s425
      %s427 = smul.addr %s426, 4
      %s428 = scalar_lea.vmem %s4, %s427
      %p429 = scmp.lt.s32.totalorder %s23, 1
      %s430 = scalar_select %p429, %s23, 1
      %p431 = scmp.lt.s32.totalorder %s24, 7
      %s432 = scalar_select %p431, %s24, 7
      %s433 = smul.addr %s432, 12
      %s434 = smul.addr %s430, 96
      %s435 = sadd.s32 %s433, %s434
      %s436 = smul.addr %s435, 8
      %s437 = scalar_lea.vmem %s8, %s436
      %v439 = vld [vmem:[%s404] sm:$0xf]
      %v440 = vld [vmem:[%s404 + $0x4] sm:$0xf]
      %v441 = vld [vmem:[%s404 + $0x8] sm:$0xf]
      %v442 = vld [vmem:[%s404 + $0xc] sm:$0xf]
      %v443 = vld [vmem:[%s404 + $0x10] sm:$0xf]
      %v444 = vld [vmem:[%s404 + $0x14] sm:$0xf]
      %v445 = vld [vmem:[%s404 + $0x18] sm:$0xf]
      %v446 = vld [vmem:[%s404 + $0x1c] sm:$0xf]
      %v447 = vld [vmem:[%s404 + $0x20] sm:$0xf]
      %v448 = vld [vmem:[%s404 + $0x24] sm:$0xf]
      %v449 = vld [vmem:[%s404 + $0x28] sm:$0xf]
      %v450 = vld [vmem:[%s404 + $0x2c] sm:$0xf]
      %v451 = vunpack.c.l.bf16 %v439
      %v452 = vunpack.c.l.bf16 %v440
      %v453 = vunpack.c.l.bf16 %v441
      %v454 = vunpack.c.l.bf16 %v442
      %v455 = vunpack.c.l.bf16 %v443
      %v456 = vunpack.c.l.bf16 %v444
      %v457 = vunpack.c.l.bf16 %v445
      %v458 = vunpack.c.l.bf16 %v446
      %v459 = vunpack.c.l.bf16 %v447
      %v460 = vunpack.c.l.bf16 %v448
      %v461 = vunpack.c.l.bf16 %v449
      %v462 = vunpack.c.l.bf16 %v450
      %v463 = vld [vmem:[%s413] sm:$0xf]
      %v464 = vld [vmem:[%s413 + $0x4] sm:$0xf]
      %v465 = vld [vmem:[%s413 + $0x8] sm:$0xf]
      %v466 = vld [vmem:[%s413 + $0xc] sm:$0xf]
      %v467 = vld [vmem:[%s413 + $0x10] sm:$0xf]
      %v468 = vld [vmem:[%s413 + $0x14] sm:$0xf]
      %v469 = vld [vmem:[%s413 + $0x18] sm:$0xf]
      %v470 = vld [vmem:[%s413 + $0x1c] sm:$0xf]
      %v471 = vld [vmem:[%s413 + $0x20] sm:$0xf]
      %v472 = vld [vmem:[%s413 + $0x24] sm:$0xf]
      %v473 = vld [vmem:[%s413 + $0x28] sm:$0xf]
      %v474 = vld [vmem:[%s413 + $0x2c] sm:$0xf]
      %v475 = vunpack.c.l.bf16 %v463
      %v476 = vunpack.c.l.bf16 %v464
      %v477 = vunpack.c.l.bf16 %v465
      %v478 = vunpack.c.l.bf16 %v466
      %v479 = vunpack.c.l.bf16 %v467
      %v480 = vunpack.c.l.bf16 %v468
      %v481 = vunpack.c.l.bf16 %v469
      %v482 = vunpack.c.l.bf16 %v470
      %v483 = vunpack.c.l.bf16 %v471
      %v484 = vunpack.c.l.bf16 %v472
      %v485 = vunpack.c.l.bf16 %v473
      %v486 = vunpack.c.l.bf16 %v474
      %v487 = vld [vmem:[%s416] sm:$0x1]
      %v489 = vlaneseq
      %v490 = vshrl.u32 %v489, 7
      %v491 = vsub.s32 0, %v490
      %v492 = vrot.slane %v487, %v491
      %v494 = vmul.f32 %v451, %v492
      %v495 = vmul.f32 %v452, %v492
      %v496 = vmul.f32 %v453, %v492
      %v497 = vmul.f32 %v454, %v492
      %v498 = vmul.f32 %v455, %v492
      %v499 = vmul.f32 %v456, %v492
      %v500 = vmul.f32 %v457, %v492
      %v501 = vmul.f32 %v458, %v492
      %v502 = vmul.f32 %v459, %v492
      %v503 = vmul.f32 %v460, %v492
      %v504 = vmul.f32 %v461, %v492
      %v505 = vmul.f32 %v462, %v492
      %v506 = vld [vmem:[%s419] sm:$0x1]
      %v508 = vlaneseq
      %v509 = vshrl.u32 %v508, 7
      %v510 = vsub.s32 0, %v509
      %v511 = vrot.slane %v506, %v510
      %v513 = vmul.f32 %v475, %v511
      %v514 = vmul.f32 %v476, %v511
      %v515 = vmul.f32 %v477, %v511
      %v516 = vmul.f32 %v478, %v511
      %v517 = vmul.f32 %v479, %v511
      %v518 = vmul.f32 %v480, %v511
      %v519 = vmul.f32 %v481, %v511
      %v520 = vmul.f32 %v482, %v511
      %v521 = vmul.f32 %v483, %v511
      %v522 = vmul.f32 %v484, %v511
      %v523 = vmul.f32 %v485, %v511
      %v524 = vmul.f32 %v486, %v511
      %v525 = vadd.f32 %v494, %v513
      %v526 = vadd.f32 %v495, %v514
      %v527 = vadd.f32 %v496, %v515
      %v528 = vadd.f32 %v497, %v516
      %v529 = vadd.f32 %v498, %v517
      %v530 = vadd.f32 %v499, %v518
      %v531 = vadd.f32 %v500, %v519
      %v532 = vadd.f32 %v501, %v520
      %v533 = vadd.f32 %v502, %v521
      %v534 = vadd.f32 %v503, %v522
      %v535 = vadd.f32 %v504, %v523
      %v536 = vadd.f32 %v505, %v524
      %v537 = vpack.c.bf16 %v526, %v525
      %v538 = vpack.c.bf16 %v528, %v527
      %v539 = vpack.c.bf16 %v530, %v529
      %v540 = vpack.c.bf16 %v532, %v531
      %v541 = vpack.c.bf16 %v534, %v533
      %v542 = vpack.c.bf16 %v536, %v535
      %v543 = vld [vmem:[%s5] sm:$0xf]
      %v544 = vld [vmem:[%s428] sm:$0xf]
      %v545 = vld [vmem:[%s428 + $0x4] sm:$0xf]
      %v546 = vld [vmem:[%s428 + $0x8] sm:$0xf]
      %v547 = vld [vmem:[%s428 + $0xc] sm:$0xf]
      %v548 = vld [vmem:[%s428 + $0x10] sm:$0xf]
      %v549 = vld [vmem:[%s428 + $0x14] sm:$0xf]
      %v550 = vld [vmem:[%s428 + $0x18] sm:$0xf]
      %v551 = vld [vmem:[%s428 + $0x1c] sm:$0xf]
      %v552 = vld [vmem:[%s428 + $0x20] sm:$0xf]
      %v553 = vld [vmem:[%s428 + $0x24] sm:$0xf]
      %v554 = vld [vmem:[%s428 + $0x28] sm:$0xf]
      %v555 = vld [vmem:[%s428 + $0x2c] sm:$0xf]
      %v556 = vld [vmem:[%s6] sm:$0xf]
      %v569 = vunpack.c.l.b16 %v544
      %v570 = vunpack.c.l.b16 %v545
      %v571 = vunpack.c.l.b16 %v546
      %v572 = vunpack.c.l.b16 %v547
      %v573 = vunpack.c.l.b16 %v548
      %v574 = vunpack.c.l.b16 %v549
      %v575 = vunpack.c.l.b16 %v550
      %v576 = vunpack.c.l.b16 %v551
      %v577 = vunpack.c.l.b16 %v552
      %v578 = vunpack.c.l.b16 %v553
      %v579 = vunpack.c.l.b16 %v554
      %v580 = vunpack.c.l.b16 %v555
      %v581 = vpack.c.b16 %v570, %v569
      %v582 = vpack.c.b16 %v572, %v571
      %v583 = vpack.c.b16 %v574, %v573
      %v584 = vpack.c.b16 %v576, %v575
      %v585 = vpack.c.b16 %v578, %v577
      %v586 = vpack.c.b16 %v580, %v579
      %vm587 = vcmask 64512
      %v589 = vsel %vm587, %v581, 0
      %v592 = vsel %vm587, %v582, 0
      %v595 = vsel %vm587, %v583, 0
      %v598 = vsel %vm587, %v584, 0
      %v601 = vsel %vm587, %v585, 0
      %v604 = vsel %vm587, %v586, 0
      %vm606 = vcmask 1043456
      %v608 = vsel %vm606, %v556, 0
      %610 = vmatprep.subr.bf16.mxu0 0
      %611 = vmatpush1.bf16.msra.mxu0 %v608
      %612 = vmatprep.subr.bf16.mxu0 0
      %613 = vmatpush1.bf16.msra.mxu0 0
      %614 = vmatprep.subr.bf16.mxu0 0
      %615 = vmatpush1.bf16.msra.mxu0 0
      %616 = vmatprep.subr.bf16.mxu0 0
      %617 = vmatpush1.bf16.msra.mxu0 0
      %618 = vmatprep.subr.bf16.mxu0 0
      %619 = vmatpush1.bf16.msra.mxu0 0
      %620 = vmatprep.subr.bf16.mxu0 0
      %621 = vmatpush1.bf16.msra.mxu0 0
      %622 = vmatprep.subr.bf16.mxu0 0
      %623 = vmatpush1.bf16.msra.mxu0 0
      %624 = vmatprep.subr.bf16.mxu0 0
      %625 = vmatpush1.bf16.msra.mxu0 0
      %626 = vmatprep.subr.bf16.mxu0 0
      %627 = vmatpush1.bf16.msra.mxu0 0
      %628 = vmatprep.subr.bf16.mxu0 0
      %629 = vmatpush1.bf16.msra.mxu0 0
      %630 = vmatprep.subr.bf16.mxu0 0
      %631 = vmatpush1.bf16.msra.mxu0 0
      %632 = vmatprep.subr.bf16.mxu0 0
      %633 = vmatpush1.bf16.msra.mxu0 0
      %634 = vmatprep.subr.bf16.mxu0 0
      %635 = vmatpush1.bf16.msra.mxu0 0
      %636 = vmatprep.subr.bf16.mxu0 0
      %637 = vmatpush1.bf16.msra.mxu0 0
      %638 = vmatprep.subr.bf16.mxu0 0
      %639 = vmatpush1.bf16.msra.mxu0 0
      %640 = vmatprep.subr.bf16.mxu0 0
      %641 = vmatpush1.bf16.msra.mxu0 0
      %642 = vmatprep.mubr.bf16.mxu0 0
      %643 = vmatmul.mubr.bf16.gmra.mrb[0].mxu0 %v589
      %v644 = vpop.f32.mrb[0].mxu0
      %v645 = vadd.f32 0.0, %v644
      %v646 = vpop.f32.mrb[0].mxu0
      %v647 = vpop.f32.mrb[0].mxu0
      %v648 = vadd.f32 0.0, %v647
      %v649 = vpop.f32.mrb[0].mxu0
      %650 = vmatprep.mubr.bf16.mxu0 0
      %651 = vmatmul.mubr.bf16.gmra.mrb[0].mxu0 %v592
      %v652 = vpop.f32.mrb[0].mxu0
      %v653 = vadd.f32 0.0, %v652
      %v654 = vpop.f32.mrb[0].mxu0
      %v655 = vpop.f32.mrb[0].mxu0
      %v656 = vadd.f32 0.0, %v655
      %v657 = vpop.f32.mrb[0].mxu0
      %658 = vmatprep.mubr.bf16.mxu0 0
      %659 = vmatmul.mubr.bf16.gmra.mrb[0].mxu0 %v595
      %v660 = vpop.f32.mrb[0].mxu0
      %v661 = vadd.f32 0.0, %v660
      %v662 = vpop.f32.mrb[0].mxu0
      %v663 = vpop.f32.mrb[0].mxu0
      %v664 = vadd.f32 0.0, %v663
      %v665 = vpop.f32.mrb[0].mxu0
      %666 = vmatprep.mubr.bf16.mxu0 0
      %667 = vmatmul.mubr.bf16.gmra.mrb[0].mxu0 %v598
      %v668 = vpop.f32.mrb[0].mxu0
      %v669 = vadd.f32 0.0, %v668
      %v670 = vpop.f32.mrb[0].mxu0
      %v671 = vpop.f32.mrb[0].mxu0
      %v672 = vadd.f32 0.0, %v671
      %v673 = vpop.f32.mrb[0].mxu0
      %674 = vmatprep.mubr.bf16.mxu0 0
      %675 = vmatmul.mubr.bf16.gmra.mrb[0].mxu0 %v601
      %v676 = vpop.f32.mrb[0].mxu0
      %v677 = vadd.f32 0.0, %v676
      %v678 = vpop.f32.mrb[0].mxu0
      %v679 = vpop.f32.mrb[0].mxu0
      %v680 = vadd.f32 0.0, %v679
      %v681 = vpop.f32.mrb[0].mxu0
      %682 = vmatprep.mubr.bf16.mxu0 0
      %683 = vmatmul.mubr.bf16.gmra.mrb[0].mxu0 %v604
      %v684 = vpop.f32.mrb[0].mxu0
      %v685 = vadd.f32 0.0, %v684
      %v686 = vpop.f32.mrb[0].mxu0
      %v687 = vpop.f32.mrb[0].mxu0
      %v688 = vadd.f32 0.0, %v687
      %v689 = vpop.f32.mrb[0].mxu0
      %690 = vdwg.mxu0
      %v692 = vsel %vm587, %v537, 0
      %v695 = vsel %vm587, %v538, 0
      %v698 = vsel %vm587, %v539, 0
      %v701 = vsel %vm587, %v540, 0
      %v704 = vsel %vm587, %v541, 0
      %v707 = vsel %vm587, %v542, 0
      %v710 = vsel %vm606, %v543, 0
      %712 = vmatprep.subr.bf16.mxu0 0
      %713 = vmatpush1.bf16.msra.mxu0 %v710
      %714 = vmatprep.subr.bf16.mxu0 0
      %715 = vmatpush1.bf16.msra.mxu0 0
      %716 = vmatprep.subr.bf16.mxu0 0
      %717 = vmatpush1.bf16.msra.mxu0 0
      %718 = vmatprep.subr.bf16.mxu0 0
      %719 = vmatpush1.bf16.msra.mxu0 0
      %720 = vmatprep.subr.bf16.mxu0 0
      %721 = vmatpush1.bf16.msra.mxu0 0
      %722 = vmatprep.subr.bf16.mxu0 0
      %723 = vmatpush1.bf16.msra.mxu0 0
      %724 = vmatprep.subr.bf16.mxu0 0
      %725 = vmatpush1.bf16.msra.mxu0 0
      %726 = vmatprep.subr.bf16.mxu0 0
      %727 = vmatpush1.bf16.msra.mxu0 0
      %728 = vmatprep.subr.bf16.mxu0 0
      %729 = vmatpush1.bf16.msra.mxu0 0
      %730 = vmatprep.subr.bf16.mxu0 0
      %731 = vmatpush1.bf16.msra.mxu0 0
      %732 = vmatprep.subr.bf16.mxu0 0
      %733 = vmatpush1.bf16.msra.mxu0 0
      %734 = vmatprep.subr.bf16.mxu0 0
      %735 = vmatpush1.bf16.msra.mxu0 0
      %736 = vmatprep.subr.bf16.mxu0 0
      %737 = vmatpush1.bf16.msra.mxu0 0
      %738 = vmatprep.subr.bf16.mxu0 0
      %739 = vmatpush1.bf16.msra.mxu0 0
      %740 = vmatprep.subr.bf16.mxu0 0
      %741 = vmatpush1.bf16.msra.mxu0 0
      %742 = vmatprep.subr.bf16.mxu0 0
      %743 = vmatpush1.bf16.msra.mxu0 0
      %744 = vmatprep.mubr.bf16.mxu0 0
      %745 = vmatmul.mubr.bf16.gmra.mrb[0].mxu0 %v692
      %v746 = vpop.f32.mrb[0].mxu0
      %v747 = vadd.f32 %v645, %v746
      %v748 = vpop.f32.mrb[0].mxu0
      %v749 = vpop.f32.mrb[0].mxu0
      %v750 = vadd.f32 %v648, %v749
      %v751 = vpop.f32.mrb[0].mxu0
      %752 = vmatprep.mubr.bf16.mxu0 0
      %753 = vmatmul.mubr.bf16.gmra.mrb[0].mxu0 %v695
      %v754 = vpop.f32.mrb[0].mxu0
      %v755 = vadd.f32 %v653, %v754
      %v756 = vpop.f32.mrb[0].mxu0
      %v757 = vpop.f32.mrb[0].mxu0
      %v758 = vadd.f32 %v656, %v757
      %v759 = vpop.f32.mrb[0].mxu0
      %760 = vmatprep.mubr.bf16.mxu0 0
      %761 = vmatmul.mubr.bf16.gmra.mrb[0].mxu0 %v698
      %v762 = vpop.f32.mrb[0].mxu0
      %v763 = vadd.f32 %v661, %v762
      %v764 = vpop.f32.mrb[0].mxu0
      %v765 = vpop.f32.mrb[0].mxu0
      %v766 = vadd.f32 %v664, %v765
      %v767 = vpop.f32.mrb[0].mxu0
      %768 = vmatprep.mubr.bf16.mxu0 0
      %769 = vmatmul.mubr.bf16.gmra.mrb[0].mxu0 %v701
      %v770 = vpop.f32.mrb[0].mxu0
      %v771 = vadd.f32 %v669, %v770
      %v772 = vpop.f32.mrb[0].mxu0
      %v773 = vpop.f32.mrb[0].mxu0
      %v774 = vadd.f32 %v672, %v773
      %v775 = vpop.f32.mrb[0].mxu0
      %776 = vmatprep.mubr.bf16.mxu0 0
      %777 = vmatmul.mubr.bf16.gmra.mrb[0].mxu0 %v704
      %v778 = vpop.f32.mrb[0].mxu0
      %v779 = vadd.f32 %v677, %v778
      %v780 = vpop.f32.mrb[0].mxu0
      %v781 = vpop.f32.mrb[0].mxu0
      %v782 = vadd.f32 %v680, %v781
      %v783 = vpop.f32.mrb[0].mxu0
      %784 = vmatprep.mubr.bf16.mxu0 0
      %785 = vmatmul.mubr.bf16.gmra.mrb[0].mxu0 %v707
      %v786 = vpop.f32.mrb[0].mxu0
      %v787 = vadd.f32 %v685, %v786
      %v788 = vpop.f32.mrb[0].mxu0
      %v789 = vpop.f32.mrb[0].mxu0
      %v790 = vadd.f32 %v688, %v789
      %v791 = vpop.f32.mrb[0].mxu0
      %792 = vdwg.mxu0
      %v793 = vld [vmem:[%s7] sm:$0x1]
      %v795 = vlaneseq
      %v796 = vshrl.u32 %v795, 7
      %v797 = vsub.s32 0, %v796
      %v798 = vrot.slane %v793, %v797
      %v800 = vadd.f32 %v747, %v798
      %v801 = vadd.f32 %v750, %v798
      %v802 = vadd.f32 %v755, %v798
      %v803 = vadd.f32 %v758, %v798
      %v804 = vadd.f32 %v763, %v798
      %v805 = vadd.f32 %v766, %v798
      %v806 = vadd.f32 %v771, %v798
      %v807 = vadd.f32 %v774, %v798
      %v808 = vadd.f32 %v779, %v798
      %v809 = vadd.f32 %v782, %v798
      %v810 = vadd.f32 %v787, %v798
      %v811 = vadd.f32 %v790, %v798
      %v812 = vmax.f32 %v800, 0.0
      %v813 = vmax.f32 %v801, 0.0
      %v814 = vmax.f32 %v802, 0.0
      %v815 = vmax.f32 %v803, 0.0
      %v816 = vmax.f32 %v804, 0.0
      %v817 = vmax.f32 %v805, 0.0
      %v818 = vmax.f32 %v806, 0.0
      %v819 = vmax.f32 %v807, 0.0
      %v820 = vmax.f32 %v808, 0.0
      %v821 = vmax.f32 %v809, 0.0
      %v822 = vmax.f32 %v810, 0.0
      %v823 = vmax.f32 %v811, 0.0
      %vm824 = vcmask 130048
      %825 = vst.msk [vmem:[%s437] sm:$0xff] %vm824, %v812
      %826 = vst.msk [vmem:[%s437 + $0x8] sm:$0xff] %vm824, %v813
      %827 = vst.msk [vmem:[%s437 + $0x10] sm:$0xff] %vm824, %v814
      %828 = vst.msk [vmem:[%s437 + $0x18] sm:$0xff] %vm824, %v815
      %829 = vst.msk [vmem:[%s437 + $0x20] sm:$0xff] %vm824, %v816
      %830 = vst.msk [vmem:[%s437 + $0x28] sm:$0xff] %vm824, %v817
      %831 = vst.msk [vmem:[%s437 + $0x30] sm:$0xff] %vm824, %v818
      %832 = vst.msk [vmem:[%s437 + $0x38] sm:$0xff] %vm824, %v819
      %833 = vst.msk [vmem:[%s437 + $0x40] sm:$0xff] %vm824, %v820
      %834 = vst.msk [vmem:[%s437 + $0x48] sm:$0xff] %vm824, %v821
      %835 = vst.msk [vmem:[%s437 + $0x50] sm:$0xff] %vm824, %v822
      %836 = vst.msk [vmem:[%s437 + $0x58] sm:$0xff] %vm824, %v823
      %p837 = scmp.lt.s32.totalorder %s23, 1
      %s838 = scalar_select %p837, %s23, 1
      %p839 = scmp.lt.s32.totalorder %s24, 7
      %s840 = scalar_select %p839, %s24, 7
      %s841 = smul.addr %s840, 12
      %s842 = smul.addr %s838, 96
      %s843 = sadd.s32 %s841, %s842
      %s844 = smul.addr %s843, 8
      %s845 = scalar_lea.vmem %s8, %s844
      // Predicated region
      $region53: #{sk_block_forward.5} parent=51 // pred_check
        %p846 = pneg %p250
      $region54: #{sk_block_forward.5} parent=51 // pred_check_branch
        %848 = sbr.rel (%p846) target = $region56
      $region55: #{sk_block_forward.5} parent=51 // pred_region
        _
      $region56: #{sk_block_forward.5} parent=51 // pred_fallthru
        _
    $region52: #{sk_block_forward.5} parent=5 // pred_fallthru
      _
    %p849 = scmp.le.s32.totalorder 2, %s14
    // Predicated region
    $region57: #{sk_block_forward.5} parent=5 // pred_check
      %p850 = pneg %p849
    $region58: #{sk_block_forward.5} parent=5 // pred_check_branch
      %852 = sbr.rel (%p850) target = $region60
    $region59: #{sk_block_forward.5} parent=5 // pred_region
      %s853 = ssub.s32 %s14, 2
      // Predicated region
      $region61: #{sk_block_forward.5} parent=59 // pred_check
        %p854 = pneg %p256
      $region62: #{sk_block_forward.5} parent=59 // pred_check_branch
        %856 = sbr.rel (%p854) target = $region64
      $region63: #{sk_block_forward.5} parent=59 // pred_region
        %p857 = scmp.lt.s32.totalorder %s25, 1
        %s858 = scalar_select %p857, %s25, 1
        %p859 = scmp.lt.s32.totalorder %s26, 7
        %s860 = scalar_select %p859, %s26, 7
        %s861 = smul.addr %s860, 12
        %s862 = smul.addr %s858, 96
        %s863 = sadd.s32 %s861, %s862
        %s864 = smul.addr %s863, 8
        %s865 = scalar_lea.vmem %s8, %s864
      $region64: #{sk_block_forward.5} parent=59 // pred_fallthru
        _
    $region60: #{sk_block_forward.5} parent=5 // pred_fallthru
      _
  $region6: #{sk_block_forward.5} parent=0 // loop_footer
    %s18 = sadd.s32 1, %s14
  $region7: #{sk_block_forward.5} parent=0 // loop_footer_branch
    %13 = sbr.rel target = $region3
  $region8: #{sk_block_forward.5} parent=0 // loop_exit
    _

// kernel: sk_block_forward.4
$region0: #{sk_block_forward.4}
  #allocation0 [shape = 'u32[]', space=smem, size = 0x4, offset = 0x4, fixed_abs, tag = 'smem constant byte address 0x4 - core index']
  #allocation1 [shape = 'u32[144,128]{1,0:T(1,128)}', space=vmem, size = 0x12000, scoped, tag = 'internal scratch']
  #allocation2 [shape = 'f32[96,8]{1,0:T(8,128)}', space=vmem, size = 0xc000, scoped, tag = 'scratch operand']
  #allocation3 [shape = 'f32[96,8]{1,0:T(8,128)}', space=vmem, size = 0xc000, scoped, tag = 'scratch operand']
  #allocation4 [shape = 'f32[1,8]{1,0:T(1,128)}', space=vmem, size = 0x200, scoped, tag = 'scratch operand']
  %s0 = inlined_call_operand.vmem [shape: bf16[2,12,156,8], index: 0, kind: input, shape index: {}]
  %s1 = inlined_call_operand.vmem [shape: bf16[5,272,8], index: 1, kind: input, shape index: {}]
  %s2 = inlined_call_operand.vmem [shape: f32[2,8], index: 2, kind: input, shape index: {}]
  %s3 = inlined_call_operand.vmem [shape: bf16[2,8,96,8], index: 3, kind: output, shape index: {0}]
  %s4 = inlined_call_operand.vmem [shape: bf16[2,8,96,8], index: 4, kind: output, shape index: {1}]
  %s5 = inlined_call_operand.vmem [shape: f32[2,1,8], index: 5, kind: output, shape index: {2}]
  %6 = xla_tuple %s3, %s4, %s5
  %s7 = sld [smem:[#allocation0]]
  $region81: #{sk_block_forward.4} parent=0
    _
  %s9 = ssub.s32 1, %s7
  %s10 = scalar_select 0, %s9, %s7
  loop: start=0, step=1, limit=82
  $region2: #{sk_block_forward.4} parent=0 // loop_pre_header
    _
  $region3: #{sk_block_forward.4} parent=0 // loop_header
    %s12 = sphi 0, %s16
    %p13 = scmp.ge.s32.totalorder %s12, 82
    %s19 = sphi 0, %s38
    %s20 = sphi 0, %s34
    %s21 = sphi 0, %s30
    %s22 = sphi 0, %s19
    %s23 = sphi 0, %s20
    %s24 = sphi 0, %s21
    %s25 = sphi 0, %s22
    %s26 = sphi 0, %s23
    %s27 = sphi 0, %s24
    %s45 = sphi 0, %s47
    %s48 = sphi 0, %s45
    %s49 = sphi 0, %s48
    %s65 = sphi 0, %s49
    %s71 = sphi 0, %s73
    %s74 = sphi 0, %s71
    %s75 = sphi 0, %s74
    %s91 = sphi 0, %s75
    %s95 = sphi 0, %s95
    %s97 = sphi 0, %s95
    %s98 = sphi 0, %s97
    %s112 = sphi 0, %s98
    %s120 = sphi 0, %s122
    %s123 = sphi 0, %s120
    %s124 = sphi 0, %s123
    %s140 = sphi 0, %s124
    %s148 = sphi 0, %s150
    %s151 = sphi 0, %s148
    %s152 = sphi 0, %s151
    %s168 = sphi 0, %s152
    %s174 = sphi 0, %s176
    %s177 = sphi 0, %s174
    %s178 = sphi 0, %s177
    %s194 = sphi 0, %s178
  $region4: #{sk_block_forward.4} parent=0 // loop_header_branch
    %15 = sbr.rel (%p13) target = $region8
  $region5: #{sk_block_forward.4} parent=0 // loop_body
    %s17 = ssub.s32 %s12, 1
    %s18 = ssub.s32 %s12, 2
    %s28 = sadd.s32 1, %s21
    %p29 = scmp.ge.s32.totalorder %s28, 5
    %s30 = scalar_select %p29, 0, %s28
    %s31 = sadd.s32 1, %s20
    %s32 = scalar_select %p29, %s31, %s20
    %p33 = scmp.ge.s32.totalorder %s32, 8
    %s34 = scalar_select %p33, 0, %s32
    %s35 = sadd.s32 1, %s19
    %s36 = scalar_select %p33, %s35, %s19
    %p37 = scmp.ge.s32.totalorder %s36, 2
    %s38 = scalar_select %p37, 0, %s36
    %s39 = sadd.s32 %s20, %s21
    %s40 = sadd.s32 %s34, %s30
    %s41 = ssub.s32 %s19, %s38
    %s42 = ssub.s32 %s39, %s40
    %s43 = sor.u32 %s41, %s42
    %p44 = scmp.eq.s32.totalorder %s43, 0
    %s46 = sadd.s32 %s45, 1
    %s47 = scalar_select %p44, %s45, %s46
    %p50 = pneg %p44
    %p51 = scmp.eq.s32.totalorder %s12, 79
    %p52 = por %p50, %p51
    %p53 = scmp.ne.s32.totalorder %s45, %s48
    %p54 = scmp.eq.s32.totalorder %s12, 0
    %p55 = por %p53, %p54
    %p56 = scmp.ne.s32.totalorder %s45, %s48
    %p57 = scmp.eq.s32.totalorder %s17, 79
    %p58 = por %p56, %p57
    %p59 = scmp.ne.s32.totalorder %s48, %s49
    %p60 = scmp.eq.s32.totalorder %s17, 0
    %p61 = por %p59, %p60
    %p62 = scmp.ne.s32.totalorder %s48, %s49
    %p63 = scmp.eq.s32.totalorder %s18, 79
    %p64 = por %p62, %p63
    %p66 = scmp.ne.s32.totalorder %s49, %s65
    %p67 = scmp.eq.s32.totalorder %s18, 0
    %p68 = por %p66, %p67
    %s69 = ssub.s32 %s21, %s30
    %p70 = scmp.eq.s32.totalorder %s69, 0
    %s72 = sadd.s32 %s71, 1
    %s73 = scalar_select %p70, %s71, %s72
    %p76 = pneg %p70
    %p77 = scmp.eq.s32.totalorder %s12, 79
    %p78 = por %p76, %p77
    %p79 = scmp.ne.s32.totalorder %s71, %s74
    %p80 = scmp.eq.s32.totalorder %s12, 0
    %p81 = por %p79, %p80
    %p82 = scmp.ne.s32.totalorder %s71, %s74
    %p83 = scmp.eq.s32.totalorder %s17, 79
    %p84 = por %p82, %p83
    %p85 = scmp.ne.s32.totalorder %s74, %s75
    %p86 = scmp.eq.s32.totalorder %s17, 0
    %p87 = por %p85, %p86
    %p88 = scmp.ne.s32.totalorder %s74, %s75
    %p89 = scmp.eq.s32.totalorder %s18, 79
    %p90 = por %p88, %p89
    %p92 = scmp.ne.s32.totalorder %s75, %s91
    %p93 = scmp.eq.s32.totalorder %s18, 0
    %p94 = por %p92, %p93
    %s96 = sadd.s32 %s95, 1
    %p99 = scmp.eq.s32.totalorder %s12, 79
    %p100 = scmp.ne.s32.totalorder %s95, %s97
    %p101 = scmp.eq.s32.totalorder %s12, 0
    %p102 = por %p100, %p101
    %p103 = scmp.ne.s32.totalorder %s95, %s97
    %p104 = scmp.eq.s32.totalorder %s17, 79
    %p105 = por %p103, %p104
    %p106 = scmp.ne.s32.totalorder %s97, %s98
    %p107 = scmp.eq.s32.totalorder %s17, 0
    %p108 = por %p106, %p107
    %p109 = scmp.ne.s32.totalorder %s97, %s98
    %p110 = scmp.eq.s32.totalorder %s18, 79
    %p111 = por %p109, %p110
    %p113 = scmp.ne.s32.totalorder %s98, %s112
    %p114 = scmp.eq.s32.totalorder %s18, 0
    %p115 = por %p113, %p114
    %s116 = ssub.s32 %s19, %s38
    %s117 = ssub.s32 %s20, %s34
    %s118 = sor.u32 %s116, %s117
    %p119 = scmp.eq.s32.totalorder %s118, 0
    %s121 = sadd.s32 %s120, 1
    %s122 = scalar_select %p119, %s120, %s121
    %p125 = pneg %p119
    %p126 = scmp.eq.s32.totalorder %s12, 79
    %p127 = por %p125, %p126
    %p128 = scmp.ne.s32.totalorder %s120, %s123
    %p129 = scmp.eq.s32.totalorder %s12, 0
    %p130 = por %p128, %p129
    %p131 = scmp.ne.s32.totalorder %s120, %s123
    %p132 = scmp.eq.s32.totalorder %s17, 79
    %p133 = por %p131, %p132
    %p134 = scmp.ne.s32.totalorder %s123, %s124
    %p135 = scmp.eq.s32.totalorder %s17, 0
    %p136 = por %p134, %p135
    %p137 = scmp.ne.s32.totalorder %s123, %s124
    %p138 = scmp.eq.s32.totalorder %s18, 79
    %p139 = por %p137, %p138
    %p141 = scmp.ne.s32.totalorder %s124, %s140
    %p142 = scmp.eq.s32.totalorder %s18, 0
    %p143 = por %p141, %p142
    %s144 = ssub.s32 %s19, %s38
    %s145 = ssub.s32 %s20, %s34
    %s146 = sor.u32 %s144, %s145
    %p147 = scmp.eq.s32.totalorder %s146, 0
    %s149 = sadd.s32 %s148, 1
    %s150 = scalar_select %p147, %s148, %s149
    %p153 = pneg %p147
    %p154 = scmp.eq.s32.totalorder %s12, 79
    %p155 = por %p153, %p154
    %p156 = scmp.ne.s32.totalorder %s148, %s151
    %p157 = scmp.eq.s32.totalorder %s12, 0
    %p158 = por %p156, %p157
    %p159 = scmp.ne.s32.totalorder %s148, %s151
    %p160 = scmp.eq.s32.totalorder %s17, 79
    %p161 = por %p159, %p160
    %p162 = scmp.ne.s32.totalorder %s151, %s152
    %p163 = scmp.eq.s32.totalorder %s17, 0
    %p164 = por %p162, %p163
    %p165 = scmp.ne.s32.totalorder %s151, %s152
    %p166 = scmp.eq.s32.totalorder %s18, 79
    %p167 = por %p165, %p166
    %p169 = scmp.ne.s32.totalorder %s152, %s168
    %p170 = scmp.eq.s32.totalorder %s18, 0
    %p171 = por %p169, %p170
    %s172 = ssub.s32 %s19, %s38
    %p173 = scmp.eq.s32.totalorder %s172, 0
    %s175 = sadd.s32 %s174, 1
    %s176 = scalar_select %p173, %s174, %s175
    %p179 = pneg %p173
    %p180 = scmp.eq.s32.totalorder %s12, 79
    %p181 = por %p179, %p180
    %p182 = scmp.ne.s32.totalorder %s174, %s177
    %p183 = scmp.eq.s32.totalorder %s12, 0
    %p184 = por %p182, %p183
    %p185 = scmp.ne.s32.totalorder %s174, %s177
    %p186 = scmp.eq.s32.totalorder %s17, 79
    %p187 = por %p185, %p186
    %p188 = scmp.ne.s32.totalorder %s177, %s178
    %p189 = scmp.eq.s32.totalorder %s17, 0
    %p190 = por %p188, %p189
    %p191 = scmp.ne.s32.totalorder %s177, %s178
    %p192 = scmp.eq.s32.totalorder %s18, 79
    %p193 = por %p191, %p192
    %p195 = scmp.ne.s32.totalorder %s178, %s194
    %p196 = scmp.eq.s32.totalorder %s18, 0
    %p197 = por %p195, %p196
    %p198 = scmp.le.s32.totalorder 1, %s12
    %p199 = scmp.lt.s32.totalorder %s12, 81
    %p200 = pnand %p198, %p199
    %p201 = pneg %p200
    // Predicated region
    $region9: #{sk_block_forward.4} parent=5 // pred_check
      _
    $region10: #{sk_block_forward.4} parent=5 // pred_check_branch
      %203 = sbr.rel (%p200) target = $region12
    $region11: #{sk_block_forward.4} parent=5 // pred_region
      %s204 = ssub.s32 %s12, 1
      // Predicated region
      $region13: #{sk_block_forward.4} parent=11 // pred_check
        %p205 = pneg %p108
      $region14: #{sk_block_forward.4} parent=11 // pred_check_branch
        %207 = sbr.rel (%p205) target = $region16
      $region15: #{sk_block_forward.4} parent=11 // pred_region
        _
      $region16: #{sk_block_forward.4} parent=11 // pred_fallthru
        _
    $region12: #{sk_block_forward.4} parent=5 // pred_fallthru
      _
    %p208 = scmp.lt.s32.totalorder %s12, 80
    // Predicated region
    $region17: #{sk_block_forward.4} parent=5 // pred_check
      %p209 = pneg %p208
    $region18: #{sk_block_forward.4} parent=5 // pred_check_branch
      %211 = sbr.rel (%p209) target = $region20
    $region19: #{sk_block_forward.4} parent=5 // pred_region
      // Predicated region
      $region21: #{sk_block_forward.4} parent=19 // pred_check
        %p212 = pneg %p55
      $region22: #{sk_block_forward.4} parent=19 // pred_check_branch
        %214 = sbr.rel (%p212) target = $region24
      $region23: #{sk_block_forward.4} parent=19 // pred_region
        %s215 = sadd.s32 %s20, %s21
        %p216 = scmp.lt.s32.totalorder %s19, 1
        %s217 = scalar_select %p216, %s19, 1
        %p218 = scmp.lt.s32.totalorder %s215, 11
        %s219 = scalar_select %p218, %s215, 11
        %s220 = smul.addr %s219, 20
        %s221 = smul.addr %s217, 240
        %s222 = sadd.s32 %s220, %s221
        %s223 = smul.addr %s222, 4
        %s224 = scalar_lea.vmem %s0, %s223
        %s225 = sadd.s32 %s20, %s21
      $region24: #{sk_block_forward.4} parent=19 // pred_fallthru
        _
      // Predicated region
      $region25: #{sk_block_forward.4} parent=19 // pred_check
        %p226 = pneg %p81
      $region26: #{sk_block_forward.4} parent=19 // pred_check_branch
        %228 = sbr.rel (%p226) target = $region28
      $region27: #{sk_block_forward.4} parent=19 // pred_region
        %p229 = scmp.lt.s32.totalorder %s21, 4
        %s230 = scalar_select %p229, %s21, 4
        %s231 = smul.addr %s230, 34
        %s232 = smul.addr %s231, 4
        %s233 = scalar_lea.vmem %s1, %s232
      $region28: #{sk_block_forward.4} parent=19 // pred_fallthru
        _
    $region20: #{sk_block_forward.4} parent=5 // pred_fallthru
      _
    %p234 = scmp.le.s32.totalorder 1, %s12
    %p235 = scmp.lt.s32.totalorder %s12, 81
    %p236 = pnand %p234, %p235
    %p237 = pneg %p236
    // Predicated region
    $region29: #{sk_block_forward.4} parent=5 // pred_check
      _
    $region30: #{sk_block_forward.4} parent=5 // pred_check_branch
      %239 = sbr.rel (%p236) target = $region32
    $region31: #{sk_block_forward.4} parent=5 // pred_region
      %s240 = ssub.s32 %s12, 1
      %s241 = sadd.s32 %s23, %s24
      %p242 = scmp.lt.s32.totalorder %s22, 1
      %s243 = scalar_select %p242, %s22, 1
      %p244 = scmp.lt.s32.totalorder %s241, 11
      %s245 = scalar_select %p244, %s241, 11
      %s246 = smul.addr %s245, 20
      %s247 = smul.addr %s243, 240
      %s248 = sadd.s32 %s246, %s247
      %s249 = smul.addr %s248, 4
      %s250 = scalar_lea.vmem %s0, %s249
      %p251 = pneg %p61
      %p252 = pneg %p58
      %p253 = scmp.lt.s32.totalorder %s24, 4
      %s254 = scalar_select %p253, %s24, 4
      %s255 = smul.addr %s254, 34
      %s256 = smul.addr %s255, 4
      %s257 = scalar_lea.vmem %s1, %s256
      %p258 = pneg %p87
      %p259 = pneg %p84
      %p260 = pneg %p108
      %p261 = pneg %p105
      %p262 = pneg %p136
      %p263 = pneg %p133
      %p264 = scmp.lt.s32.totalorder %s22, 1
      %s265 = scalar_select %p264, %s22, 1
      %p266 = scmp.lt.s32.totalorder %s23, 7
      %s267 = scalar_select %p266, %s23, 7
      %s268 = smul.addr %s267, 12
      %s269 = smul.addr %s265, 96
      %s270 = sadd.s32 %s268, %s269
      %s271 = smul.addr %s270, 4
      %s272 = scalar_lea.vmem %s3, %s271
      %p273 = pneg %p164
      %p274 = pneg %p161
      %p275 = scmp.lt.s32.totalorder %s22, 1
      %s276 = scalar_select %p275, %s22, 1
      %p277 = scmp.lt.s32.totalorder %s23, 7
      %s278 = scalar_select %p277, %s23, 7
      %s279 = smul.addr %s278, 12
      %s280 = smul.addr %s276, 96
      %s281 = sadd.s32 %s279, %s280
      %s282 = smul.addr %s281, 4
      %s283 = scalar_lea.vmem %s4, %s282
      %p284 = pneg %p190
      %p285 = pneg %p187
      %p286 = scmp.lt.s32.totalorder %s22, 1
      %s287 = scalar_select %p286, %s22, 1
      %s288 = scalar_lea.vmem %s5, %s287
      %s289 = sadd.s32 %s23, %s24
      %p290 = scmp.lt.s32.totalorder %s22, 1
      %s291 = scalar_select %p290, %s22, 1
      %p292 = scmp.lt.s32.totalorder %s289, 11
      %s293 = scalar_select %p292, %s289, 11
      %s294 = smul.addr %s293, 20
      %s295 = smul.addr %s291, 240
      %s296 = sadd.s32 %s294, %s295
      %s297 = smul.addr %s296, 4
      %s298 = scalar_lea.vmem %s0, %s297
      %s299 = sadd.s32 %s23, %s24
      %p300 = scmp.lt.s32.totalorder %s24, 4
      %s301 = scalar_select %p300, %s24, 4
      %s302 = smul.addr %s301, 34
      %s303 = smul.addr %s302, 4
      %s304 = scalar_lea.vmem %s1, %s303
      %p305 = scmp.lt.s32.totalorder %s22, 1
      %s306 = scalar_select %p305, %s22, 1
      %p307 = scmp.lt.s32.totalorder %s23, 7
      %s308 = scalar_select %p307, %s23, 7
      %s309 = smul.addr %s308, 12
      %s310 = smul.addr %s306, 96
      %s311 = sadd.s32 %s309, %s310
      %s312 = smul.addr %s311, 4
      %s313 = scalar_lea.vmem %s3, %s312
      %p314 = scmp.lt.s32.totalorder %s22, 1
      %s315 = scalar_select %p314, %s22, 1
      %p316 = scmp.lt.s32.totalorder %s23, 7
      %s317 = scalar_select %p316, %s23, 7
      %s318 = smul.addr %s317, 12
      %s319 = smul.addr %s315, 96
      %s320 = sadd.s32 %s318, %s319
      %s321 = smul.addr %s320, 4
      %s322 = scalar_lea.vmem %s4, %s321
      %p323 = scmp.lt.s32.totalorder %s22, 1
      %s324 = scalar_select %p323, %s22, 1
      %s325 = scalar_lea.vmem %s5, %s324
      %p327 = scmp.eq.s32.totalorder %s24, 0
      // Predicated region
      $region33: #{sk_block_forward.4} parent=31 // pred_check
        %p328 = pneg %p327
      $region34: #{sk_block_forward.4} parent=31 // pred_check_branch
        %330 = sbr.rel (%p328) target = $region36
      $region35: #{sk_block_forward.4} parent=31 // pred_region
        %vm331 = vcmask 64512
        %332 = vst.msk [vmem:[#allocation2] sm:$0xff] %vm331, 0.0
        %333 = vst.msk [vmem:[#allocation2 + $0x8] sm:$0xff] %vm331, 0.0
        %334 = vst.msk [vmem:[#allocation2 + $0x10] sm:$0xff] %vm331, 0.0
        %335 = vst.msk [vmem:[#allocation2 + $0x18] sm:$0xff] %vm331, 0.0
        %336 = vst.msk [vmem:[#allocation2 + $0x20] sm:$0xff] %vm331, 0.0
        %337 = vst.msk [vmem:[#allocation2 + $0x28] sm:$0xff] %vm331, 0.0
        %338 = vst.msk [vmem:[#allocation2 + $0x30] sm:$0xff] %vm331, 0.0
        %339 = vst.msk [vmem:[#allocation2 + $0x38] sm:$0xff] %vm331, 0.0
        %340 = vst.msk [vmem:[#allocation2 + $0x40] sm:$0xff] %vm331, 0.0
        %341 = vst.msk [vmem:[#allocation2 + $0x48] sm:$0xff] %vm331, 0.0
        %342 = vst.msk [vmem:[#allocation2 + $0x50] sm:$0xff] %vm331, 0.0
        %343 = vst.msk [vmem:[#allocation2 + $0x58] sm:$0xff] %vm331, 0.0
        %344 = vst.msk [vmem:[#allocation3] sm:$0xff] %vm331, 0.0
        %345 = vst.msk [vmem:[#allocation3 + $0x8] sm:$0xff] %vm331, 0.0
        %346 = vst.msk [vmem:[#allocation3 + $0x10] sm:$0xff] %vm331, 0.0
        %347 = vst.msk [vmem:[#allocation3 + $0x18] sm:$0xff] %vm331, 0.0
        %348 = vst.msk [vmem:[#allocation3 + $0x20] sm:$0xff] %vm331, 0.0
        %349 = vst.msk [vmem:[#allocation3 + $0x28] sm:$0xff] %vm331, 0.0
        %350 = vst.msk [vmem:[#allocation3 + $0x30] sm:$0xff] %vm331, 0.0
        %351 = vst.msk [vmem:[#allocation3 + $0x38] sm:$0xff] %vm331, 0.0
        %352 = vst.msk [vmem:[#allocation3 + $0x40] sm:$0xff] %vm331, 0.0
        %353 = vst.msk [vmem:[#allocation3 + $0x48] sm:$0xff] %vm331, 0.0
        %354 = vst.msk [vmem:[#allocation3 + $0x50] sm:$0xff] %vm331, 0.0
        %355 = vst.msk [vmem:[#allocation3 + $0x58] sm:$0xff] %vm331, 0.0
      $region36: #{sk_block_forward.4} parent=31 // pred_fallthru
        _
      %p356 = scmp.eq.s32.totalorder %s23, 0
      %p357 = pnand %p327, %p356
      %p358 = pneg %p357
      // Predicated region
      $region37: #{sk_block_forward.4} parent=31 // pred_check
        _
      $region38: #{sk_block_forward.4} parent=31 // pred_check_branch
        %360 = sbr.rel (%p357) target = $region40
      $region39: #{sk_block_forward.4} parent=31 // pred_region
        %vm361 = vcmask 57344
        %362 = vst.msk [vmem:[#allocation4] sm:$0x1] %vm361, 0.0
      $region40: #{sk_block_forward.4} parent=31 // pred_fallthru
        _
      %v363 = vld [vmem:[%s298] sm:$0xf]
      %v364 = vld [vmem:[%s298 + $0x4] sm:$0xf]
      %v365 = vld [vmem:[%s298 + $0x8] sm:$0xf]
      %v366 = vld [vmem:[%s298 + $0xc] sm:$0xf]
      %v367 = vld [vmem:[%s298 + $0x10] sm:$0xf]
      %v368 = vld [vmem:[%s298 + $0x14] sm:$0xf]
      %v369 = vld [vmem:[%s298 + $0x18] sm:$0xf]
      %v370 = vld [vmem:[%s298 + $0x1c] sm:$0xf]
      %v371 = vld [vmem:[%s298 + $0x20] sm:$0xf]
      %v372 = vld [vmem:[%s298 + $0x24] sm:$0xf]
      %v373 = vld [vmem:[%s298 + $0x28] sm:$0xf]
      %v374 = vld [vmem:[%s298 + $0x2c] sm:$0xf]
      %v375 = vld [vmem:[#allocation3] sm:$0xff]
      %v376 = vld [vmem:[#allocation3 + $0x8] sm:$0xff]
      %v377 = vld [vmem:[#allocation3 + $0x10] sm:$0xff]
      %v378 = vld [vmem:[#allocation3 + $0x18] sm:$0xff]
      %v379 = vld [vmem:[#allocation3 + $0x20] sm:$0xff]
      %v380 = vld [vmem:[#allocation3 + $0x28] sm:$0xff]
      %v381 = vld [vmem:[#allocation3 + $0x30] sm:$0xff]
      %v382 = vld [vmem:[#allocation3 + $0x38] sm:$0xff]
      %v383 = vld [vmem:[#allocation3 + $0x40] sm:$0xff]
      %v384 = vld [vmem:[#allocation3 + $0x48] sm:$0xff]
      %v385 = vld [vmem:[#allocation3 + $0x50] sm:$0xff]
      %v386 = vld [vmem:[#allocation3 + $0x58] sm:$0xff]
      %v387 = vld [vmem:[%s304] sm:$0xf]
      %v400 = vunpack.c.l.b16 %v363
      %v401 = vunpack.c.l.b16 %v364
      %v402 = vunpack.c.l.b16 %v365
      %v403 = vunpack.c.l.b16 %v366
      %v404 = vunpack.c.l.b16 %v367
      %v405 = vunpack.c.l.b16 %v368
      %v406 = vunpack.c.l.b16 %v369
      %v407 = vunpack.c.l.b16 %v370
      %v408 = vunpack.c.l.b16 %v371
      %v409 = vunpack.c.l.b16 %v372
      %v410 = vunpack.c.l.b16 %v373
      %v411 = vunpack.c.l.b16 %v374
      %v412 = vpack.c.b16 %v401, %v400
      %v413 = vpack.c.b16 %v403, %v402
      %v414 = vpack.c.b16 %v405, %v404
      %v415 = vpack.c.b16 %v407, %v406
      %v416 = vpack.c.b16 %v409, %v408
      %v417 = vpack.c.b16 %v411, %v410
      %vm418 = vcmask 64512
      %v420 = vsel %vm418, %v412, 0
      %v423 = vsel %vm418, %v413, 0
      %v426 = vsel %vm418, %v414, 0
      %v429 = vsel %vm418, %v415, 0
      %v432 = vsel %vm418, %v416, 0
      %v435 = vsel %vm418, %v417, 0
      %vm437 = vcmask 1043456
      %v439 = vsel %vm437, %v387, 0
      %441 = vmatprep.subr.bf16.mxu0 0
      %442 = vmatpush1.bf16.msra.mxu0 %v439
      %443 = vmatprep.subr.bf16.mxu0 0
      %444 = vmatpush1.bf16.msra.mxu0 0
      %445 = vmatprep.subr.bf16.mxu0 0
      %446 = vmatpush1.bf16.msra.mxu0 0
      %447 = vmatprep.subr.bf16.mxu0 0
      %448 = vmatpush1.bf16.msra.mxu0 0
      %449 = vmatprep.subr.bf16.mxu0 0
      %450 = vmatpush1.bf16.msra.mxu0 0
      %451 = vmatprep.subr.bf16.mxu0 0
      %452 = vmatpush1.bf16.msra.mxu0 0
      %453 = vmatprep.subr.bf16.mxu0 0
      %454 = vmatpush1.bf16.msra.mxu0 0
      %455 = vmatprep.subr.bf16.mxu0 0
      %456 = vmatpush1.bf16.msra.mxu0 0
      %457 = vmatprep.subr.bf16.mxu0 0
      %458 = vmatpush1.bf16.msra.mxu0 0
      %459 = vmatprep.subr.bf16.mxu0 0
      %460 = vmatpush1.bf16.msra.mxu0 0
      %461 = vmatprep.subr.bf16.mxu0 0
      %462 = vmatpush1.bf16.msra.mxu0 0
      %463 = vmatprep.subr.bf16.mxu0 0
      %464 = vmatpush1.bf16.msra.mxu0 0
      %465 = vmatprep.subr.bf16.mxu0 0
      %466 = vmatpush1.bf16.msra.mxu0 0
      %467 = vmatprep.subr.bf16.mxu0 0
      %468 = vmatpush1.bf16.msra.mxu0 0
      %469 = vmatprep.subr.bf16.mxu0 0
      %470 = vmatpush1.bf16.msra.mxu0 0
      %471 = vmatprep.subr.bf16.mxu0 0
      %472 = vmatpush1.bf16.msra.mxu0 0
      %473 = vmatprep.mubr.bf16.mxu0 0
      %474 = vmatmul.mubr.bf16.gmra.mrb[0].mxu0 %v420
      %v475 = vpop.f32.mrb[0].mxu0
      %v476 = vadd.f32 0.0, %v475
      %v477 = vpop.f32.mrb[0].mxu0
      %v478 = vpop.f32.mrb[0].mxu0
      %v479 = vadd.f32 0.0, %v478
      %v480 = vpop.f32.mrb[0].mxu0
      %481 = vmatprep.mubr.bf16.mxu0 0
      %482 = vmatmul.mubr.bf16.gmra.mrb[0].mxu0 %v423
      %v483 = vpop.f32.mrb[0].mxu0
      %v484 = vadd.f32 0.0, %v483
      %v485 = vpop.f32.mrb[0].mxu0
      %v486 = vpop.f32.mrb[0].mxu0
      %v487 = vadd.f32 0.0, %v486
      %v488 = vpop.f32.mrb[0].mxu0
      %489 = vmatprep.mubr.bf16.mxu0 0
      %490 = vmatmul.mubr.bf16.gmra.mrb[0].mxu0 %v426
      %v491 = vpop.f32.mrb[0].mxu0
      %v492 = vadd.f32 0.0, %v491
      %v493 = vpop.f32.mrb[0].mxu0
      %v494 = vpop.f32.mrb[0].mxu0
      %v495 = vadd.f32 0.0, %v494
      %v496 = vpop.f32.mrb[0].mxu0
      %497 = vmatprep.mubr.bf16.mxu0 0
      %498 = vmatmul.mubr.bf16.gmra.mrb[0].mxu0 %v429
      %v499 = vpop.f32.mrb[0].mxu0
      %v500 = vadd.f32 0.0, %v499
      %v501 = vpop.f32.mrb[0].mxu0
      %v502 = vpop.f32.mrb[0].mxu0
      %v503 = vadd.f32 0.0, %v502
      %v504 = vpop.f32.mrb[0].mxu0
      %505 = vmatprep.mubr.bf16.mxu0 0
      %506 = vmatmul.mubr.bf16.gmra.mrb[0].mxu0 %v432
      %v507 = vpop.f32.mrb[0].mxu0
      %v508 = vadd.f32 0.0, %v507
      %v509 = vpop.f32.mrb[0].mxu0
      %v510 = vpop.f32.mrb[0].mxu0
      %v511 = vadd.f32 0.0, %v510
      %v512 = vpop.f32.mrb[0].mxu0
      %513 = vmatprep.mubr.bf16.mxu0 0
      %514 = vmatmul.mubr.bf16.gmra.mrb[0].mxu0 %v435
      %v515 = vpop.f32.mrb[0].mxu0
      %v516 = vadd.f32 0.0, %v515
      %v517 = vpop.f32.mrb[0].mxu0
      %v518 = vpop.f32.mrb[0].mxu0
      %v519 = vadd.f32 0.0, %v518
      %v520 = vpop.f32.mrb[0].mxu0
      %521 = vdwg.mxu0
      %v522 = vadd.f32 %v375, %v476
      %v523 = vadd.f32 %v376, %v479
      %v524 = vadd.f32 %v377, %v484
      %v525 = vadd.f32 %v378, %v487
      %v526 = vadd.f32 %v379, %v492
      %v527 = vadd.f32 %v380, %v495
      %v528 = vadd.f32 %v381, %v500
      %v529 = vadd.f32 %v382, %v503
      %v530 = vadd.f32 %v383, %v508
      %v531 = vadd.f32 %v384, %v511
      %v532 = vadd.f32 %v385, %v516
      %v533 = vadd.f32 %v386, %v519
      %534 = vst.msk [vmem:[#allocation3] sm:$0xff] %vm418, %v522
      %535 = vst.msk [vmem:[#allocation3 + $0x8] sm:$0xff] %vm418, %v523
      %536 = vst.msk [vmem:[#allocation3 + $0x10] sm:$0xff] %vm418, %v524
      %537 = vst.msk [vmem:[#allocation3 + $0x18] sm:$0xff] %vm418, %v525
      %538 = vst.msk [vmem:[#allocation3 + $0x20] sm:$0xff] %vm418, %v526
      %539 = vst.msk [vmem:[#allocation3 + $0x28] sm:$0xff] %vm418, %v527
      %540 = vst.msk [vmem:[#allocation3 + $0x30] sm:$0xff] %vm418, %v528
      %541 = vst.msk [vmem:[#allocation3 + $0x38] sm:$0xff] %vm418, %v529
      %542 = vst.msk [vmem:[#allocation3 + $0x40] sm:$0xff] %vm418, %v530
      %543 = vst.msk [vmem:[#allocation3 + $0x48] sm:$0xff] %vm418, %v531
      %544 = vst.msk [vmem:[#allocation3 + $0x50] sm:$0xff] %vm418, %v532
      %545 = vst.msk [vmem:[#allocation3 + $0x58] sm:$0xff] %vm418, %v533
      %v546 = vld [vmem:[%s298] sm:$0xf]
      %v547 = vld [vmem:[%s298 + $0x4] sm:$0xf]
      %v548 = vld [vmem:[%s298 + $0x8] sm:$0xf]
      %v549 = vld [vmem:[%s298 + $0xc] sm:$0xf]
      %v550 = vld [vmem:[%s298 + $0x10] sm:$0xf]
      %v551 = vld [vmem:[%s298 + $0x14] sm:$0xf]
      %v552 = vld [vmem:[%s298 + $0x18] sm:$0xf]
      %v553 = vld [vmem:[%s298 + $0x1c] sm:$0xf]
      %v554 = vld [vmem:[%s298 + $0x20] sm:$0xf]
      %v555 = vld [vmem:[%s298 + $0x24] sm:$0xf]
      %v556 = vld [vmem:[%s298 + $0x28] sm:$0xf]
      %v557 = vld [vmem:[%s298 + $0x2c] sm:$0xf]
      %v558 = vld [vmem:[%s298 + $0x30] sm:$0x1]
      %v559 = vld [vmem:[#allocation3] sm:$0xff]
      %v560 = vld [vmem:[#allocation3 + $0x8] sm:$0xff]
      %v561 = vld [vmem:[#allocation3 + $0x10] sm:$0xff]
      %v562 = vld [vmem:[#allocation3 + $0x18] sm:$0xff]
      %v563 = vld [vmem:[#allocation3 + $0x20] sm:$0xff]
      %v564 = vld [vmem:[#allocation3 + $0x28] sm:$0xff]
      %v565 = vld [vmem:[#allocation3 + $0x30] sm:$0xff]
      %v566 = vld [vmem:[#allocation3 + $0x38] sm:$0xff]
      %v567 = vld [vmem:[#allocation3 + $0x40] sm:$0xff]
      %v568 = vld [vmem:[#allocation3 + $0x48] sm:$0xff]
      %v569 = vld [vmem:[#allocation3 + $0x50] sm:$0xff]
      %v570 = vld [vmem:[#allocation3 + $0x58] sm:$0xff]
      %v571 = vld [vmem:[%s304 + $0x4] sm:$0xf]
      %v585 = vunpack.c.l.b16 %v546
      %v586 = vunpack.c.l.b16 %v547
      %v587 = vunpack.c.l.b16 %v548
      %v588 = vunpack.c.l.b16 %v549
      %v589 = vunpack.c.l.b16 %v550
      %v590 = vunpack.c.l.b16 %v551
      %v591 = vunpack.c.l.b16 %v552
      %v592 = vunpack.c.l.b16 %v553
      %v593 = vunpack.c.l.b16 %v554
      %v594 = vunpack.c.l.b16 %v555
      %v595 = vunpack.c.l.b16 %v556
      %v596 = vunpack.c.l.b16 %v557
      %v597 = vunpack.c.l.b16 %v558
      %v598 = vpack.c.b16 %v586, %v585
      %v599 = vpack.c.b16 %v588, %v587
      %v600 = vpack.c.b16 %v590, %v589
      %v601 = vpack.c.b16 %v592, %v591
      %v602 = vpack.c.b16 %v594, %v593
      %v603 = vpack.c.b16 %v596, %v595
      %v604 = vpack.c.b16 %v597, %v597
      %vm605 = vsmask.f32 7424
      %v607 = vshrl.u32 %v598, 16
      %v609 = vshll.u32 %v598, 16
      %v611 = vrot.slane %v609, 1
      %v612 = vor.u32 %v607, %v611
      %v614 = vshll.u32 %v599, 16
      %v616 = vrot.slane %v614, 1
      %v617 = vsel %vm605, %v612, %v616
      %v618 = vshrl.u32 %v599, 16
      %v620 = vor.u32 %v618, %v616
      %v622 = vshll.u32 %v600, 16
      %v624 = vrot.slane %v622, 1
      %v625 = vsel %vm605, %v620, %v624
      %v626 = vshrl.u32 %v600, 16
      %v628 = vor.u32 %v626, %v624
      %v630 = vshll.u32 %v601, 16
      %v632 = vrot.slane %v630, 1
      %v633 = vsel %vm605, %v628, %v632
      %v634 = vshrl.u32 %v601, 16
      %v636 = vor.u32 %v634, %v632
      %v638 = vshll.u32 %v602, 16
      %v640 = vrot.slane %v638, 1
      %v641 = vsel %vm605, %v636, %v640
      %v642 = vshrl.u32 %v602, 16
      %v644 = vor.u32 %v642, %v640
      %v646 = vshll.u32 %v603, 16
      %v648 = vrot.slane %v646, 1
      %v649 = vsel %vm605, %v644, %v648
      %v650 = vshrl.u32 %v603, 16
      %v652 = vor.u32 %v650, %v648
      %v654 = vshll.u32 %v604, 16
      %v656 = vrot.slane %v654, 1
      %v657 = vsel %vm605, %v652, %v656
      %v659 = vsel %vm418, %v617, 0
      %v662 = vsel %vm418, %v625, 0
      %v665 = vsel %vm418, %v633, 0
      %v668 = vsel %vm418, %v641, 0
      %v671 = vsel %vm418, %v649, 0
      %v674 = vsel %vm418, %v657, 0
      %v677 = vsel %vm437, %v571, 0
      %679 = vmatprep.subr.bf16.mxu0 0
      %680 = vmatpush1.bf16.msra.mxu0 %v677
      %681 = vmatprep.subr.bf16.mxu0 0
      %682 = vmatpush1.bf16.msra.mxu0 0
      %683 = vmatprep.subr.bf16.mxu0 0
      %684 = vmatpush1.bf16.msra.mxu0 0
      %685 = vmatprep.subr.bf16.mxu0 0
      %686 = vmatpush1.bf16.msra.mxu0 0
      %687 = vmatprep.subr.bf16.mxu0 0
      %688 = vmatpush1.bf16.msra.mxu0 0
      %689 = vmatprep.subr.bf16.mxu0 0
      %690 = vmatpush1.bf16.msra.mxu0 0
      %691 = vmatprep.subr.bf16.mxu0 0
      %692 = vmatpush1.bf16.msra.mxu0 0
      %693 = vmatprep.subr.bf16.mxu0 0
      %694 = vmatpush1.bf16.msra.mxu0 0
      %695 = vmatprep.subr.bf16.mxu0 0
      %696 = vmatpush1.bf16.msra.mxu0 0
      %697 = vmatprep.subr.bf16.mxu0 0
      %698 = vmatpush1.bf16.msra.mxu0 0
      %699 = vmatprep.subr.bf16.mxu0 0
      %700 = vmatpush1.bf16.msra.mxu0 0
      %701 = vmatprep.subr.bf16.mxu0 0
      %702 = vmatpush1.bf16.msra.mxu0 0
      %703 = vmatprep.subr.bf16.mxu0 0
      %704 = vmatpush1.bf16.msra.mxu0 0
      %705 = vmatprep.subr.bf16.mxu0 0
      %706 = vmatpush1.bf16.msra.mxu0 0
      %707 = vmatprep.subr.bf16.mxu0 0
      %708 = vmatpush1.bf16.msra.mxu0 0
      %709 = vmatprep.subr.bf16.mxu0 0
      %710 = vmatpush1.bf16.msra.mxu0 0
      %711 = vmatprep.mubr.bf16.mxu0 0
      %712 = vmatmul.mubr.bf16.gmra.mrb[0].mxu0 %v659
      %v713 = vpop.f32.mrb[0].mxu0
      %v714 = vadd.f32 0.0, %v713
      %v715 = vpop.f32.mrb[0].mxu0
      %v716 = vpop.f32.mrb[0].mxu0
      %v717 = vadd.f32 0.0, %v716
      %v718 = vpop.f32.mrb[0].mxu0
      %719 = vmatprep.mubr.bf16.mxu0 0
      %720 = vmatmul.mubr.bf16.gmra.mrb[0].mxu0 %v662
      %v721 = vpop.f32.mrb[0].mxu0
      %v722 = vadd.f32 0.0, %v721
      %v723 = vpop.f32.mrb[0].mxu0
      %v724 = vpop.f32.mrb[0].mxu0
      %v725 = vadd.f32 0.0, %v724
      %v726 = vpop.f32.mrb[0].mxu0
      %727 = vmatprep.mubr.bf16.mxu0 0
      %728 = vmatmul.mubr.bf16.gmra.mrb[0].mxu0 %v665
      %v729 = vpop.f32.mrb[0].mxu0
      %v730 = vadd.f32 0.0, %v729
      %v731 = vpop.f32.mrb[0].mxu0
      %v732 = vpop.f32.mrb[0].mxu0
      %v733 = vadd.f32 0.0, %v732
      %v734 = vpop.f32.mrb[0].mxu0
      %735 = vmatprep.mubr.bf16.mxu0 0
      %736 = vmatmul.mubr.bf16.gmra.mrb[0].mxu0 %v668
      %v737 = vpop.f32.mrb[0].mxu0
      %v738 = vadd.f32 0.0, %v737
      %v739 = vpop.f32.mrb[0].mxu0
      %v740 = vpop.f32.mrb[0].mxu0
      %v741 = vadd.f32 0.0, %v740
      %v742 = vpop.f32.mrb[0].mxu0
      %743 = vmatprep.mubr.bf16.mxu0 0
      %744 = vmatmul.mubr.bf16.gmra.mrb[0].mxu0 %v671
      %v745 = vpop.f32.mrb[0].mxu0
      %v746 = vadd.f32 0.0, %v745
      %v747 = vpop.f32.mrb[0].mxu0
      %v748 = vpop.f32.mrb[0].mxu0
      %v749 = vadd.f32 0.0, %v748
      %v750 = vpop.f32.mrb[0].mxu0
      %751 = vmatprep.mubr.bf16.mxu0 0
      %752 = vmatmul.mubr.bf16.gmra.mrb[0].mxu0 %v674
      %v753 = vpop.f32.mrb[0].mxu0
      %v754 = vadd.f32 0.0, %v753
      %v755 = vpop.f32.mrb[0].mxu0
      %v756 = vpop.f32.mrb[0].mxu0
      %v757 = vadd.f32 0.0, %v756
      %v758 = vpop.f32.mrb[0].mxu0
      %759 = vdwg.mxu0
      %v760 = vadd.f32 %v559, %v714
      %v761 = vadd.f32 %v560, %v717
      %v762 = vadd.f32 %v561, %v722
      %v763 = vadd.f32 %v562, %v725
      %v764 = vadd.f32 %v563, %v730
      %v765 = vadd.f32 %v564, %v733
      %v766 = vadd.f32 %v565, %v738
      %v767 = vadd.f32 %v566, %v741
      %v768 = vadd.f32 %v567, %v746
      %v769 = vadd.f32 %v568, %v749
      %v770 = vadd.f32 %v569, %v754
      %v771 = vadd.f32 %v570, %v757
      %772 = vst.msk [vmem:[#allocation3] sm:$0xff] %vm418, %v760
      %773 = vst.msk [vmem:[#allocation3 + $0x8] sm:$0xff] %vm418, %v761
      %774 = vst.msk [vmem:[#allocation3 + $0x10] sm:$0xff] %vm418, %v762
      %775 = vst.msk [vmem:[#allocation3 + $0x18] sm:$0xff] %vm418, %v763
      %776 = vst.msk [vmem:[#allocation3 + $0x20] sm:$0xff] %vm418, %v764
      %777 = vst.msk [vmem:[#allocation3 + $0x28] sm:$0xff] %vm418, %v765
      %778 = vst.msk [vmem:[#allocation3 + $0x30] sm:$0xff] %vm418, %v766
      %779 = vst.msk [vmem:[#allocation3 + $0x38] sm:$0xff] %vm418, %v767
      %780 = vst.msk [vmem:[#allocation3 + $0x40] sm:$0xff] %vm418, %v768
      %781 = vst.msk [vmem:[#allocation3 + $0x48] sm:$0xff] %vm418, %v769
      %782 = vst.msk [vmem:[#allocation3 + $0x50] sm:$0xff] %vm418, %v770
      %783 = vst.msk [vmem:[#allocation3 + $0x58] sm:$0xff] %vm418, %v771
      %v784 = vld [vmem:[%s298] sm:$0xe]
      %v785 = vld [vmem:[%s298 + $0x4] sm:$0xf]
      %v786 = vld [vmem:[%s298 + $0x8] sm:$0xf]
      %v787 = vld [vmem:[%s298 + $0xc] sm:$0xf]
      %v788 = vld [vmem:[%s298 + $0x10] sm:$0xf]
      %v789 = vld [vmem:[%s298 + $0x14] sm:$0xf]
      %v790 = vld [vmem:[%s298 + $0x18] sm:$0xf]
      %v791 = vld [vmem:[%s298 + $0x1c] sm:$0xf]
      %v792 = vld [vmem:[%s298 + $0x20] sm:$0xf]
      %v793 = vld [vmem:[%s298 + $0x24] sm:$0xf]
      %v794 = vld [vmem:[%s298 + $0x28] sm:$0xf]
      %v795 = vld [vmem:[%s298 + $0x2c] sm:$0xf]
      %v796 = vld [vmem:[%s298 + $0x30] sm:$0x1]
      %v797 = vld [vmem:[#allocation3] sm:$0xff]
      %v798 = vld [vmem:[#allocation3 + $0x8] sm:$0xff]
      %v799 = vld [vmem:[#allocation3 + $0x10] sm:$0xff]
      %v800 = vld [vmem:[#allocation3 + $0x18] sm:$0xff]
      %v801 = vld [vmem:[#allocation3 + $0x20] sm:$0xff]
      %v802 = vld [vmem:[#allocation3 + $0x28] sm:$0xff]
      %v803 = vld [vmem:[#allocation3 + $0x30] sm:$0xff]
      %v804 = vld [vmem:[#allocation3 + $0x38] sm:$0xff]
      %v805 = vld [vmem:[#allocation3 + $0x40] sm:$0xff]
      %v806 = vld [vmem:[#allocation3 + $0x48] sm:$0xff]
      %v807 = vld [vmem:[#allocation3 + $0x50] sm:$0xff]
      %v808 = vld [vmem:[#allocation3 + $0x58] sm:$0xff]
      %v809 = vld [vmem:[%s304 + $0x8] sm:$0xf]
      %v823 = vunpack.c.l.b16 %v784
      %v824 = vunpack.c.l.b16 %v785
      %v825 = vunpack.c.l.b16 %v786
      %v826 = vunpack.c.l.b16 %v787
      %v827 = vunpack.c.l.b16 %v788
      %v828 = vunpack.c.l.b16 %v789
      %v829 = vunpack.c.l.b16 %v790
      %v830 = vunpack.c.l.b16 %v791
      %v831 = vunpack.c.l.b16 %v792
      %v832 = vunpack.c.l.b16 %v793
      %v833 = vunpack.c.l.b16 %v794
      %v834 = vunpack.c.l.b16 %v795
      %v835 = vunpack.c.l.b16 %v796
      %v836 = vpack.c.b16 %v824, %v823
      %v837 = vpack.c.b16 %v826, %v825
      %v838 = vpack.c.b16 %v828, %v827
      %v839 = vpack.c.b16 %v830, %v829
      %v840 = vpack.c.b16 %v832, %v831
      %v841 = vpack.c.b16 %v834, %v833
      %v842 = vpack.c.b16 %v835, %v835
      %vm843 = vcmask 1046528
      %v844 = vrot.slane %v836, 1
      %v845 = vrot.slane %v837, 1
      %v846 = vsel %vm843, %v844, %v845
      %v847 = vrot.slane %v838, 1
      %v848 = vsel %vm843, %v845, %v847
      %v849 = vrot.slane %v839, 1
      %v850 = vsel %vm843, %v847, %v849
      %v851 = vrot.slane %v840, 1
      %v852 = vsel %vm843, %v849, %v851
      %v853 = vrot.slane %v841, 1
      %v854 = vsel %vm843, %v851, %v853
      %v855 = vrot.slane %v842, 1
      %v856 = vsel %vm843, %v853, %v855
      %v858 = vsel %vm418, %v846, 0
      %v861 = vsel %vm418, %v848, 0
      %v864 = vsel %vm418, %v850, 0
      %v867 = vsel %vm418, %v852, 0
      %v870 = vsel %vm418, %v854, 0
      %v873 = vsel %vm418, %v856, 0
      %v876 = vsel %vm437, %v809, 0
      %878 = vmatprep.subr.bf16.mxu0 0
      %879 = vmatpush1.bf16.msra.mxu0 %v876
      %880 = vmatprep.subr.bf16.mxu0 0
      %881 = vmatpush1.bf16.msra.mxu0 0
      %882 = vmatprep.subr.bf16.mxu0 0
      %883 = vmatpush1.bf16.msra.mxu0 0
      %884 = vmatprep.subr.bf16.mxu0 0
      %885 = vmatpush1.bf16.msra.mxu0 0
      %886 = vmatprep.subr.bf16.mxu0 0
      %887 = vmatpush1.bf16.msra.mxu0 0
      %888 = vmatprep.subr.bf16.mxu0 0
      %889 = vmatpush1.bf16.msra.mxu0 0
      %890 = vmatprep.subr.bf16.mxu0 0
      %891 = vmatpush1.bf16.msra.mxu0 0
      %892 = vmatprep.subr.bf16.mxu0 0
      %893 = vmatpush1.bf16.msra.mxu0 0
      %894 = vmatprep.subr.bf16.mxu0 0
      %895 = vmatpush1.bf16.msra.mxu0 0
      %896 = vmatprep.subr.bf16.mxu0 0
      %897 = vmatpush1.bf16.msra.mxu0 0
      %898 = vmatprep.subr.bf16.mxu0 0
      %899 = vmatpush1.bf16.msra.mxu0 0
      %900 = vmatprep.subr.bf16.mxu0 0
      %901 = vmatpush1.bf16.msra.mxu0 0
      %902 = vmatprep.subr.bf16.mxu0 0
      %903 = vmatpush1.bf16.msra.mxu0 0
      %904 = vmatprep.subr.bf16.mxu0 0
      %905 = vmatpush1.bf16.msra.mxu0 0
      %906 = vmatprep.subr.bf16.mxu0 0
      %907 = vmatpush1.bf16.msra.mxu0 0
      %908 = vmatprep.subr.bf16.mxu0 0
      %909 = vmatpush1.bf16.msra.mxu0 0
      %910 = vmatprep.mubr.bf16.mxu0 0
      %911 = vmatmul.mubr.bf16.gmra.mrb[0].mxu0 %v858
      %v912 = vpop.f32.mrb[0].mxu0
      %v913 = vadd.f32 0.0, %v912
      %v914 = vpop.f32.mrb[0].mxu0
      %v915 = vpop.f32.mrb[0].mxu0
      %v916 = vadd.f32 0.0, %v915
      %v917 = vpop.f32.mrb[0].mxu0
      %918 = vmatprep.mubr.bf16.mxu0 0
      %919 = vmatmul.mubr.bf16.gmra.mrb[0].mxu0 %v861
      %v920 = vpop.f32.mrb[0].mxu0
      %v921 = vadd.f32 0.0, %v920
      %v922 = vpop.f32.mrb[0].mxu0
      %v923 = vpop.f32.mrb[0].mxu0
      %v924 = vadd.f32 0.0, %v923
      %v925 = vpop.f32.mrb[0].mxu0
      %926 = vmatprep.mubr.bf16.mxu0 0
      %927 = vmatmul.mubr.bf16.gmra.mrb[0].mxu0 %v864
      %v928 = vpop.f32.mrb[0].mxu0
      %v929 = vadd.f32 0.0, %v928
      %v930 = vpop.f32.mrb[0].mxu0
      %v931 = vpop.f32.mrb[0].mxu0
      %v932 = vadd.f32 0.0, %v931
      %v933 = vpop.f32.mrb[0].mxu0
      %934 = vmatprep.mubr.bf16.mxu0 0
      %935 = vmatmul.mubr.bf16.gmra.mrb[0].mxu0 %v867
      %v936 = vpop.f32.mrb[0].mxu0
      %v937 = vadd.f32 0.0, %v936
      %v938 = vpop.f32.mrb[0].mxu0
      %v939 = vpop.f32.mrb[0].mxu0
      %v940 = vadd.f32 0.0, %v939
      %v941 = vpop.f32.mrb[0].mxu0
      %942 = vmatprep.mubr.bf16.mxu0 0
      %943 = vmatmul.mubr.bf16.gmra.mrb[0].mxu0 %v870
      %v944 = vpop.f32.mrb[0].mxu0
      %v945 = vadd.f32 0.0, %v944
      %v946 = vpop.f32.mrb[0].mxu0
      %v947 = vpop.f32.mrb[0].mxu0
      %v948 = vadd.f32 0.0, %v947
      %v949 = vpop.f32.mrb[0].mxu0
      %950 = vmatprep.mubr.bf16.mxu0 0
      %951 = vmatmul.mubr.bf16.gmra.mrb[0].mxu0 %v873
      %v952 = vpop.f32.mrb[0].mxu0
      %v953 = vadd.f32 0.0, %v952
      %v954 = vpop.f32.mrb[0].mxu0
      %v955 = vpop.f32.mrb[0].mxu0
      %v956 = vadd.f32 0.0, %v955
      %v957 = vpop.f32.mrb[0].mxu0
      %958 = vdwg.mxu0
      %v959 = vadd.f32 %v797, %v913
      %v960 = vadd.f32 %v798, %v916
      %v961 = vadd.f32 %v799, %v921
      %v962 = vadd.f32 %v800, %v924
      %v963 = vadd.f32 %v801, %v929
      %v964 = vadd.f32 %v802, %v932
      %v965 = vadd.f32 %v803, %v937
      %v966 = vadd.f32 %v804, %v940
      %v967 = vadd.f32 %v805, %v945
      %v968 = vadd.f32 %v806, %v948
      %v969 = vadd.f32 %v807, %v953
      %v970 = vadd.f32 %v808, %v956
      %971 = vst.msk [vmem:[#allocation3] sm:$0xff] %vm418, %v959
      %972 = vst.msk [vmem:[#allocation3 + $0x8] sm:$0xff] %vm418, %v960
      %973 = vst.msk [vmem:[#allocation3 + $0x10] sm:$0xff] %vm418, %v961
      %974 = vst.msk [vmem:[#allocation3 + $0x18] sm:$0xff] %vm418, %v962
      %975 = vst.msk [vmem:[#allocation3 + $0x20] sm:$0xff] %vm418, %v963
      %976 = vst.msk [vmem:[#allocation3 + $0x28] sm:$0xff] %vm418, %v964
      %977 = vst.msk [vmem:[#allocation3 + $0x30] sm:$0xff] %vm418, %v965
      %978 = vst.msk [vmem:[#allocation3 + $0x38] sm:$0xff] %vm418, %v966
      %979 = vst.msk [vmem:[#allocation3 + $0x40] sm:$0xff] %vm418, %v967
      %980 = vst.msk [vmem:[#allocation3 + $0x48] sm:$0xff] %vm418, %v968
      %981 = vst.msk [vmem:[#allocation3 + $0x50] sm:$0xff] %vm418, %v969
      %982 = vst.msk [vmem:[#allocation3 + $0x58] sm:$0xff] %vm418, %v970
      %v983 = vld [vmem:[%s298] sm:$0xe]
      %v984 = vld [vmem:[%s298 + $0x4] sm:$0xf]
      %v985 = vld [vmem:[%s298 + $0x8] sm:$0xf]
      %v986 = vld [vmem:[%s298 + $0xc] sm:$0xf]
      %v987 = vld [vmem:[%s298 + $0x10] sm:$0xf]
      %v988 = vld [vmem:[%s298 + $0x14] sm:$0xf]
      %v989 = vld [vmem:[%s298 + $0x18] sm:$0xf]
      %v990 = vld [vmem:[%s298 + $0x1c] sm:$0xf]
      %v991 = vld [vmem:[%s298 + $0x20] sm:$0xf]
      %v992 = vld [vmem:[%s298 + $0x24] sm:$0xf]
      %v993 = vld [vmem:[%s298 + $0x28] sm:$0xf]
      %v994 = vld [vmem:[%s298 + $0x2c] sm:$0xf]
      %v995 = vld [vmem:[%s298 + $0x30] sm:$0x3]
      %v996 = vld [vmem:[#allocation3] sm:$0xff]
      %v997 = vld [vmem:[#allocation3 + $0x8] sm:$0xff]
      %v998 = vld [vmem:[#allocation3 + $0x10] sm:$0xff]
      %v999 = vld [vmem:[#allocation3 + $0x18] sm:$0xff]
      %v1000 = vld [vmem:[#allocation3 + $0x20] sm:$0xff]
      %v1001 = vld [vmem:[#allocation3 + $0x28] sm:$0xff]
      %v1002 = vld [vmem:[#allocation3 + $0x30] sm:$0xff]
      %v1003 = vld [vmem:[#allocation3 + $0x38] sm:$0xff]
      %v1004 = vld [vmem:[#allocation3 + $0x40] sm:$0xff]
      %v1005 = vld [vmem:[#allocation3 + $0x48] sm:$0xff]
      %v1006 = vld [vmem:[#allocation3 + $0x50] sm:$0xff]
      %v1007 = vld [vmem:[#allocation3 + $0x58] sm:$0xff]
      %v1008 = vld [vmem:[%s304 + $0xc] sm:$0xf]
      %v1022 = vunpack.c.l.b16 %v983
      %v1023 = vunpack.c.l.b16 %v984
      %v1024 = vunpack.c.l.b16 %v985
      %v1025 = vunpack.c.l.b16 %v986
      %v1026 = vunpack.c.l.b16 %v987
      %v1027 = vunpack.c.l.b16 %v988
      %v1028 = vunpack.c.l.b16 %v989
      %v1029 = vunpack.c.l.b16 %v990
      %v1030 = vunpack.c.l.b16 %v991
      %v1031 = vunpack.c.l.b16 %v992
      %v1032 = vunpack.c.l.b16 %v993
      %v1033 = vunpack.c.l.b16 %v994
      %v1034 = vunpack.c.l.b16 %v995
      %v1035 = vpack.c.b16 %v1023, %v1022
      %v1036 = vpack.c.b16 %v1025, %v1024
      %v1037 = vpack.c.b16 %v1027, %v1026
      %v1038 = vpack.c.b16 %v1029, %v1028
      %v1039 = vpack.c.b16 %v1031, %v1030
      %v1040 = vpack.c.b16 %v1033, %v1032
      %v1041 = vpack.c.b16 %v1034, %v1034
      %vm1042 = vsmask.f32 6400
      %v1044 = vshrl.u32 %v1035, 16
      %v1046 = vrot.slane %v1044, 1
      %v1047 = vshll.u32 %v1035, 16
      %v1049 = vrot.slane %v1047, 2
      %v1050 = vor.u32 %v1046, %v1049
      %v1052 = vshrl.u32 %v1036, 16
      %v1054 = vrot.slane %v1052, 1
      %v1055 = vshll.u32 %v1036, 16
      %v1057 = vrot.slane %v1055, 2
      %v1058 = vor.u32 %v1054, %v1057
      %v1059 = vsel %vm1042, %v1050, %v1058
      %v1061 = vshrl.u32 %v1037, 16
      %v1063 = vrot.slane %v1061, 1
      %v1064 = vshll.u32 %v1037, 16
      %v1066 = vrot.slane %v1064, 2
      %v1067 = vor.u32 %v1063, %v1066
      %v1068 = vsel %vm1042, %v1058, %v1067
      %v1070 = vshrl.u32 %v1038, 16
      %v1072 = vrot.slane %v1070, 1
      %v1073 = vshll.u32 %v1038, 16
      %v1075 = vrot.slane %v1073, 2
      %v1076 = vor.u32 %v1072, %v1075
      %v1077 = vsel %vm1042, %v1067, %v1076
      %v1079 = vshrl.u32 %v1039, 16
      %v1081 = vrot.slane %v1079, 1
      %v1082 = vshll.u32 %v1039, 16
      %v1084 = vrot.slane %v1082, 2
      %v1085 = vor.u32 %v1081, %v1084
      %v1086 = vsel %vm1042, %v1076, %v1085
      %v1088 = vshrl.u32 %v1040, 16
      %v1090 = vrot.slane %v1088, 1
      %v1091 = vshll.u32 %v1040, 16
      %v1093 = vrot.slane %v1091, 2
      %v1094 = vor.u32 %v1090, %v1093
      %v1095 = vsel %vm1042, %v1085, %v1094
      %v1097 = vshrl.u32 %v1041, 16
      %v1099 = vrot.slane %v1097, 1
      %v1100 = vshll.u32 %v1041, 16
      %v1102 = vrot.slane %v1100, 2
      %v1103 = vor.u32 %v1099, %v1102
      %v1104 = vsel %vm1042, %v1094, %v1103
      %v1106 = vsel %vm418, %v1059, 0
      %v1109 = vsel %vm418, %v1068, 0
      %v1112 = vsel %vm418, %v1077, 0
      %v1115 = vsel %vm418, %v1086, 0
      %v1118 = vsel %vm418, %v1095, 0
      %v1121 = vsel %vm418, %v1104, 0
      %v1124 = vsel %vm437, %v1008, 0
      %1126 = vmatprep.subr.bf16.mxu0 0
      %1127 = vmatpush1.bf16.msra.mxu0 %v1124
      %1128 = vmatprep.subr.bf16.mxu0 0
      %1129 = vmatpush1.bf16.msra.mxu0 0
      %1130 = vmatprep.subr.bf16.mxu0 0
      %1131 = vmatpush1.bf16.msra.mxu0 0
      %1132 = vmatprep.subr.bf16.mxu0 0
      %1133 = vmatpush1.bf16.msra.mxu0 0
      %1134 = vmatprep.subr.bf16.mxu0 0
      %1135 = vmatpush1.bf16.msra.mxu0 0
      %1136 = vmatprep.subr.bf16.mxu0 0
      %1137 = vmatpush1.bf16.msra.mxu0 0
      %1138 = vmatprep.subr.bf16.mxu0 0
      %1139 = vmatpush1.bf16.msra.mxu0 0
      %1140 = vmatprep.subr.bf16.mxu0 0
      %1141 = vmatpush1.bf16.msra.mxu0 0
      %1142 = vmatprep.subr.bf16.mxu0 0
      %1143 = vmatpush1.bf16.msra.mxu0 0
      %1144 = vmatprep.subr.bf16.mxu0 0
      %1145 = vmatpush1.bf16.msra.mxu0 0
      %1146 = vmatprep.subr.bf16.mxu0 0
      %1147 = vmatpush1.bf16.msra.mxu0 0
      %1148 = vmatprep.subr.bf16.mxu0 0
      %1149 = vmatpush1.bf16.msra.mxu0 0
      %1150 = vmatprep.subr.bf16.mxu0 0
      %1151 = vmatpush1.bf16.msra.mxu0 0
      %1152 = vmatprep.subr.bf16.mxu0 0
      %1153 = vmatpush1.bf16.msra.mxu0 0
      %1154 = vmatprep.subr.bf16.mxu0 0
      %1155 = vmatpush1.bf16.msra.mxu0 0
      %1156 = vmatprep.subr.bf16.mxu0 0
      %1157 = vmatpush1.bf16.msra.mxu0 0
      %1158 = vmatprep.mubr.bf16.mxu0 0
      %1159 = vmatmul.mubr.bf16.gmra.mrb[0].mxu0 %v1106
      %v1160 = vpop.f32.mrb[0].mxu0
      %v1161 = vadd.f32 0.0, %v1160
      %v1162 = vpop.f32.mrb[0].mxu0
      %v1163 = vpop.f32.mrb[0].mxu0
      %v1164 = vadd.f32 0.0, %v1163
      %v1165 = vpop.f32.mrb[0].mxu0
      %1166 = vmatprep.mubr.bf16.mxu0 0
      %1167 = vmatmul.mubr.bf16.gmra.mrb[0].mxu0 %v1109
      %v1168 = vpop.f32.mrb[0].mxu0
      %v1169 = vadd.f32 0.0, %v1168
      %v1170 = vpop.f32.mrb[0].mxu0
      %v1171 = vpop.f32.mrb[0].mxu0
      %v1172 = vadd.f32 0.0, %v1171
      %v1173 = vpop.f32.mrb[0].mxu0
      %1174 = vmatprep.mubr.bf16.mxu0 0
      %1175 = vmatmul.mubr.bf16.gmra.mrb[0].mxu0 %v1112
      %v1176 = vpop.f32.mrb[0].mxu0
      %v1177 = vadd.f32 0.0, %v1176
      %v1178 = vpop.f32.mrb[0].mxu0
      %v1179 = vpop.f32.mrb[0].mxu0
      %v1180 = vadd.f32 0.0, %v1179
      %v1181 = vpop.f32.mrb[0].mxu0
      %1182 = vmatprep.mubr.bf16.mxu0 0
      %1183 = vmatmul.mubr.bf16.gmra.mrb[0].mxu0 %v1115
      %v1184 = vpop.f32.mrb[0].mxu0
      %v1185 = vadd.f32 0.0, %v1184
      %v1186 = vpop.f32.mrb[0].mxu0
      %v1187 = vpop.f32.mrb[0].mxu0
      %v1188 = vadd.f32 0.0, %v1187
      %v1189 = vpop.f32.mrb[0].mxu0
      %1190 = vmatprep.mubr.bf16.mxu0 0
      %1191 = vmatmul.mubr.bf16.gmra.mrb[0].mxu0 %v1118
      %v1192 = vpop.f32.mrb[0].mxu0
      %v1193 = vadd.f32 0.0, %v1192
      %v1194 = vpop.f32.mrb[0].mxu0
      %v1195 = vpop.f32.mrb[0].mxu0
      %v1196 = vadd.f32 0.0, %v1195
      %v1197 = vpop.f32.mrb[0].mxu0
      %1198 = vmatprep.mubr.bf16.mxu0 0
      %1199 = vmatmul.mubr.bf16.gmra.mrb[0].mxu0 %v1121
      %v1200 = vpop.f32.mrb[0].mxu0
      %v1201 = vadd.f32 0.0, %v1200
      %v1202 = vpop.f32.mrb[0].mxu0
      %v1203 = vpop.f32.mrb[0].mxu0
      %v1204 = vadd.f32 0.0, %v1203
      %v1205 = vpop.f32.mrb[0].mxu0
      %1206 = vdwg.mxu0
      %v1207 = vadd.f32 %v996, %v1161
      %v1208 = vadd.f32 %v997, %v1164
      %v1209 = vadd.f32 %v998, %v1169
      %v1210 = vadd.f32 %v999, %v1172
      %v1211 = vadd.f32 %v1000, %v1177
      %v1212 = vadd.f32 %v1001, %v1180
      %v1213 = vadd.f32 %v1002, %v1185
      %v1214 = vadd.f32 %v1003, %v1188
      %v1215 = vadd.f32 %v1004, %v1193
      %v1216 = vadd.f32 %v1005, %v1196
      %v1217 = vadd.f32 %v1006, %v1201
      %v1218 = vadd.f32 %v1007, %v1204
      %1219 = vst.msk [vmem:[#allocation3] sm:$0xff] %vm418, %v1207
      %1220 = vst.msk [vmem:[#allocation3 + $0x8] sm:$0xff] %vm418, %v1208
      %1221 = vst.msk [vmem:[#allocation3 + $0x10] sm:$0xff] %vm418, %v1209
      %1222 = vst.msk [vmem:[#allocation3 + $0x18] sm:$0xff] %vm418, %v1210
      %1223 = vst.msk [vmem:[#allocation3 + $0x20] sm:$0xff] %vm418, %v1211
      %1224 = vst.msk [vmem:[#allocation3 + $0x28] sm:$0xff] %vm418, %v1212
      %1225 = vst.msk [vmem:[#allocation3 + $0x30] sm:$0xff] %vm418, %v1213
      %1226 = vst.msk [vmem:[#allocation3 + $0x38] sm:$0xff] %vm418, %v1214
      %1227 = vst.msk [vmem:[#allocation3 + $0x40] sm:$0xff] %vm418, %v1215
      %1228 = vst.msk [vmem:[#allocation3 + $0x48] sm:$0xff] %vm418, %v1216
      %1229 = vst.msk [vmem:[#allocation3 + $0x50] sm:$0xff] %vm418, %v1217
      %1230 = vst.msk [vmem:[#allocation3 + $0x58] sm:$0xff] %vm418, %v1218
      %v1231 = vld [vmem:[%s298] sm:$0xc]
      %v1232 = vld [vmem:[%s298 + $0x4] sm:$0xf]
      %v1233 = vld [vmem:[%s298 + $0x8] sm:$0xf]
      %v1234 = vld [vmem:[%s298 + $0xc] sm:$0xf]
      %v1235 = vld [vmem:[%s298 + $0x10] sm:$0xf]
      %v1236 = vld [vmem:[%s298 + $0x14] sm:$0xf]
      %v1237 = vld [vmem:[%s298 + $0x18] sm:$0xf]
      %v1238 = vld [vmem:[%s298 + $0x1c] sm:$0xf]
      %v1239 = vld [vmem:[%s298 + $0x20] sm:$0xf]
      %v1240 = vld [vmem:[%s298 + $0x24] sm:$0xf]
      %v1241 = vld [vmem:[%s298 + $0x28] sm:$0xf]
      %v1242 = vld [vmem:[%s298 + $0x2c] sm:$0xf]
      %v1243 = vld [vmem:[%s298 + $0x30] sm:$0x3]
      %v1244 = vld [vmem:[#allocation3] sm:$0xff]
      %v1245 = vld [vmem:[#allocation3 + $0x8] sm:$0xff]
      %v1246 = vld [vmem:[#allocation3 + $0x10] sm:$0xff]
      %v1247 = vld [vmem:[#allocation3 + $0x18] sm:$0xff]
      %v1248 = vld [vmem:[#allocation3 + $0x20] sm:$0xff]
      %v1249 = vld [vmem:[#allocation3 + $0x28] sm:$0xff]
      %v1250 = vld [vmem:[#allocation3 + $0x30] sm:$0xff]
      %v1251 = vld [vmem:[#allocation3 + $0x38] sm:$0xff]
      %v1252 = vld [vmem:[#allocation3 + $0x40] sm:$0xff]
      %v1253 = vld [vmem:[#allocation3 + $0x48] sm:$0xff]
      %v1254 = vld [vmem:[#allocation3 + $0x50] sm:$0xff]
      %v1255 = vld [vmem:[#allocation3 + $0x58] sm:$0xff]
      %v1256 = vld [vmem:[%s304 + $0x10] sm:$0xf]
      %v1270 = vunpack.c.l.b16 %v1231
      %v1271 = vunpack.c.l.b16 %v1232
      %v1272 = vunpack.c.l.b16 %v1233
      %v1273 = vunpack.c.l.b16 %v1234
      %v1274 = vunpack.c.l.b16 %v1235
      %v1275 = vunpack.c.l.b16 %v1236
      %v1276 = vunpack.c.l.b16 %v1237
      %v1277 = vunpack.c.l.b16 %v1238
      %v1278 = vunpack.c.l.b16 %v1239
      %v1279 = vunpack.c.l.b16 %v1240
      %v1280 = vunpack.c.l.b16 %v1241
      %v1281 = vunpack.c.l.b16 %v1242
      %v1282 = vunpack.c.l.b16 %v1243
      %v1283 = vpack.c.b16 %v1271, %v1270
      %v1284 = vpack.c.b16 %v1273, %v1272
      %v1285 = vpack.c.b16 %v1275, %v1274
      %v1286 = vpack.c.b16 %v1277, %v1276
      %v1287 = vpack.c.b16 %v1279, %v1278
      %v1288 = vpack.c.b16 %v1281, %v1280
      %v1289 = vpack.c.b16 %v1282, %v1282
      %vm1290 = vcmask 1045504
      %v1291 = vrot.slane %v1283, 2
      %v1292 = vrot.slane %v1284, 2
      %v1293 = vsel %vm1290, %v1291, %v1292
      %v1294 = vrot.slane %v1285, 2
      %v1295 = vsel %vm1290, %v1292, %v1294
      %v1296 = vrot.slane %v1286, 2
      %v1297 = vsel %vm1290, %v1294, %v1296
      %v1298 = vrot.slane %v1287, 2
      %v1299 = vsel %vm1290, %v1296, %v1298
      %v1300 = vrot.slane %v1288, 2
      %v1301 = vsel %vm1290, %v1298, %v1300
      %v1302 = vrot.slane %v1289, 2
      %v1303 = vsel %vm1290, %v1300, %v1302
      %v1305 = vsel %vm418, %v1293, 0
      %v1308 = vsel %vm418, %v1295, 0
      %v1311 = vsel %vm418, %v1297, 0
      %v1314 = vsel %vm418, %v1299, 0
      %v1317 = vsel %vm418, %v1301, 0
      %v1320 = vsel %vm418, %v1303, 0
      %v1323 = vsel %vm437, %v1256, 0
      %1325 = vmatprep.subr.bf16.mxu0 0
      %1326 = vmatpush1.bf16.msra.mxu0 %v1323
      %1327 = vmatprep.subr.bf16.mxu0 0
      %1328 = vmatpush1.bf16.msra.mxu0 0
      %1329 = vmatprep.subr.bf16.mxu0 0
      %1330 = vmatpush1.bf16.msra.mxu0 0
      %1331 = vmatprep.subr.bf16.mxu0 0
      %1332 = vmatpush1.bf16.msra.mxu0 0
      %1333 = vmatprep.subr.bf16.mxu0 0
      %1334 = vmatpush1.bf16.msra.mxu0 0
      %1335 = vmatprep.subr.bf16.mxu0 0
      %1336 = vmatpush1.bf16.msra.mxu0 0
      %1337 = vmatprep.subr.bf16.mxu0 0
      %1338 = vmatpush1.bf16.msra.mxu0 0
      %1339 = vmatprep.subr.bf16.mxu0 0
      %1340 = vmatpush1.bf16.msra.mxu0 0
      %1341 = vmatprep.subr.bf16.mxu0 0
      %1342 = vmatpush1.bf16.msra.mxu0 0
      %1343 = vmatprep.subr.bf16.mxu0 0
      %1344 = vmatpush1.bf16.msra.mxu0 0
      %1345 = vmatprep.subr.bf16.mxu0 0
      %1346 = vmatpush1.bf16.msra.mxu0 0
      %1347 = vmatprep.subr.bf16.mxu0 0
      %1348 = vmatpush1.bf16.msra.mxu0 0
      %1349 = vmatprep.subr.bf16.mxu0 0
      %1350 = vmatpush1.bf16.msra.mxu0 0
      %1351 = vmatprep.subr.bf16.mxu0 0
      %1352 = vmatpush1.bf16.msra.mxu0 0
      %1353 = vmatprep.subr.bf16.mxu0 0
      %1354 = vmatpush1.bf16.msra.mxu0 0
      %1355 = vmatprep.subr.bf16.mxu0 0
      %1356 = vmatpush1.bf16.msra.mxu0 0
      %1357 = vmatprep.mubr.bf16.mxu0 0
      %1358 = vmatmul.mubr.bf16.gmra.mrb[0].mxu0 %v1305
      %v1359 = vpop.f32.mrb[0].mxu0
      %v1360 = vadd.f32 0.0, %v1359
      %v1361 = vpop.f32.mrb[0].mxu0
      %v1362 = vpop.f32.mrb[0].mxu0
      %v1363 = vadd.f32 0.0, %v1362
      %v1364 = vpop.f32.mrb[0].mxu0
      %1365 = vmatprep.mubr.bf16.mxu0 0
      %1366 = vmatmul.mubr.bf16.gmra.mrb[0].mxu0 %v1308
      %v1367 = vpop.f32.mrb[0].mxu0
      %v1368 = vadd.f32 0.0, %v1367
      %v1369 = vpop.f32.mrb[0].mxu0
      %v1370 = vpop.f32.mrb[0].mxu0
      %v1371 = vadd.f32 0.0, %v1370
      %v1372 = vpop.f32.mrb[0].mxu0
      %1373 = vmatprep.mubr.bf16.mxu0 0
      %1374 = vmatmul.mubr.bf16.gmra.mrb[0].mxu0 %v1311
      %v1375 = vpop.f32.mrb[0].mxu0
      %v1376 = vadd.f32 0.0, %v1375
      %v1377 = vpop.f32.mrb[0].mxu0
      %v1378 = vpop.f32.mrb[0].mxu0
      %v1379 = vadd.f32 0.0, %v1378
      %v1380 = vpop.f32.mrb[0].mxu0
      %1381 = vmatprep.mubr.bf16.mxu0 0
      %1382 = vmatmul.mubr.bf16.gmra.mrb[0].mxu0 %v1314
      %v1383 = vpop.f32.mrb[0].mxu0
      %v1384 = vadd.f32 0.0, %v1383
      %v1385 = vpop.f32.mrb[0].mxu0
      %v1386 = vpop.f32.mrb[0].mxu0
      %v1387 = vadd.f32 0.0, %v1386
      %v1388 = vpop.f32.mrb[0].mxu0
      %1389 = vmatprep.mubr.bf16.mxu0 0
      %1390 = vmatmul.mubr.bf16.gmra.mrb[0].mxu0 %v1317
      %v1391 = vpop.f32.mrb[0].mxu0
      %v1392 = vadd.f32 0.0, %v1391
      %v1393 = vpop.f32.mrb[0].mxu0
      %v1394 = vpop.f32.mrb[0].mxu0
      %v1395 = vadd.f32 0.0, %v1394
      %v1396 = vpop.f32.mrb[0].mxu0
      %1397 = vmatprep.mubr.bf16.mxu0 0
      %1398 = vmatmul.mubr.bf16.gmra.mrb[0].mxu0 %v1320
      %v1399 = vpop.f32.mrb[0].mxu0
      %v1400 = vadd.f32 0.0, %v1399
      %v1401 = vpop.f32.mrb[0].mxu0
      %v1402 = vpop.f32.mrb[0].mxu0
      %v1403 = vadd.f32 0.0, %v1402
      %v1404 = vpop.f32.mrb[0].mxu0
      %1405 = vdwg.mxu0
      %v1406 = vadd.f32 %v1244, %v1360
      %v1407 = vadd.f32 %v1245, %v1363
      %v1408 = vadd.f32 %v1246, %v1368
      %v1409 = vadd.f32 %v1247, %v1371
      %v1410 = vadd.f32 %v1248, %v1376
      %v1411 = vadd.f32 %v1249, %v1379
      %v1412 = vadd.f32 %v1250, %v1384
      %v1413 = vadd.f32 %v1251, %v1387
      %v1414 = vadd.f32 %v1252, %v1392
      %v1415 = vadd.f32 %v1253, %v1395
      %v1416 = vadd.f32 %v1254, %v1400
      %v1417 = vadd.f32 %v1255, %v1403
      %1418 = vst.msk [vmem:[#allocation3] sm:$0xff] %vm418, %v1406
      %1419 = vst.msk [vmem:[#allocation3 + $0x8] sm:$0xff] %vm418, %v1407
      %1420 = vst.msk [vmem:[#allocation3 + $0x10] sm:$0xff] %vm418, %v1408
      %1421 = vst.msk [vmem:[#allocation3 + $0x18] sm:$0xff] %vm418, %v1409
      %1422 = vst.msk [vmem:[#allocation3 + $0x20] sm:$0xff] %vm418, %v1410
      %1423 = vst.msk [vmem:[#allocation3 + $0x28] sm:$0xff] %vm418, %v1411
      %1424 = vst.msk [vmem:[#allocation3 + $0x30] sm:$0xff] %vm418, %v1412
      %1425 = vst.msk [vmem:[#allocation3 + $0x38] sm:$0xff] %vm418, %v1413
      %1426 = vst.msk [vmem:[#allocation3 + $0x40] sm:$0xff] %vm418, %v1414
      %1427 = vst.msk [vmem:[#allocation3 + $0x48] sm:$0xff] %vm418, %v1415
      %1428 = vst.msk [vmem:[#allocation3 + $0x50] sm:$0xff] %vm418, %v1416
      %1429 = vst.msk [vmem:[#allocation3 + $0x58] sm:$0xff] %vm418, %v1417
      %v1430 = vld [vmem:[%s298 + $0x4] sm:$0xc]
      %v1431 = vld [vmem:[%s298 + $0x8] sm:$0xf]
      %v1432 = vld [vmem:[%s298 + $0xc] sm:$0xf]
      %v1433 = vld [vmem:[%s298 + $0x10] sm:$0xf]
      %v1434 = vld [vmem:[%s298 + $0x14] sm:$0xf]
      %v1435 = vld [vmem:[%s298 + $0x18] sm:$0xf]
      %v1436 = vld [vmem:[%s298 + $0x1c] sm:$0xf]
      %v1437 = vld [vmem:[%s298 + $0x20] sm:$0xf]
      %v1438 = vld [vmem:[%s298 + $0x24] sm:$0xf]
      %v1439 = vld [vmem:[%s298 + $0x28] sm:$0xf]
      %v1440 = vld [vmem:[%s298 + $0x2c] sm:$0xf]
      %v1441 = vld [vmem:[%s298 + $0x30] sm:$0xf]
      %v1442 = vld [vmem:[%s298 + $0x34] sm:$0x3]
      %v1443 = vld [vmem:[#allocation3] sm:$0xff]
      %v1444 = vld [vmem:[#allocation3 + $0x8] sm:$0xff]
      %v1445 = vld [vmem:[#allocation3 + $0x10] sm:$0xff]
      %v1446 = vld [vmem:[#allocation3 + $0x18] sm:$0xff]
      %v1447 = vld [vmem:[#allocation3 + $0x20] sm:$0xff]
      %v1448 = vld [vmem:[#allocation3 + $0x28] sm:$0xff]
      %v1449 = vld [vmem:[#allocation3 + $0x30] sm:$0xff]
      %v1450 = vld [vmem:[#allocation3 + $0x38] sm:$0xff]
      %v1451 = vld [vmem:[#allocation3 + $0x40] sm:$0xff]
      %v1452 = vld [vmem:[#allocation3 + $0x48] sm:$0xff]
      %v1453 = vld [vmem:[#allocation3 + $0x50] sm:$0xff]
      %v1454 = vld [vmem:[#allocation3 + $0x58] sm:$0xff]
      %v1455 = vld [vmem:[%s304 + $0x14] sm:$0xf]
      %v1469 = vunpack.c.l.b16 %v1430
      %v1470 = vunpack.c.l.b16 %v1431
      %v1471 = vunpack.c.l.b16 %v1432
      %v1472 = vunpack.c.l.b16 %v1433
      %v1473 = vunpack.c.l.b16 %v1434
      %v1474 = vunpack.c.l.b16 %v1435
      %v1475 = vunpack.c.l.b16 %v1436
      %v1476 = vunpack.c.l.b16 %v1437
      %v1477 = vunpack.c.l.b16 %v1438
      %v1478 = vunpack.c.l.b16 %v1439
      %v1479 = vunpack.c.l.b16 %v1440
      %v1480 = vunpack.c.l.b16 %v1441
      %v1481 = vunpack.c.l.b16 %v1442
      %v1482 = vpack.c.b16 %v1470, %v1469
      %v1483 = vpack.c.b16 %v1472, %v1471
      %v1484 = vpack.c.b16 %v1474, %v1473
      %v1485 = vpack.c.b16 %v1476, %v1475
      %v1486 = vpack.c.b16 %v1478, %v1477
      %v1487 = vpack.c.b16 %v1480, %v1479
      %v1488 = vpack.c.b16 %v1481, %v1481
      %v1489 = vrot.slane %v1482, 2
      %v1490 = vrot.slane %v1483, 2
      %v1491 = vsel %vm1290, %v1489, %v1490
      %v1492 = vrot.slane %v1484, 2
      %v1493 = vsel %vm1290, %v1490, %v1492
      %v1494 = vrot.slane %v1485, 2
      %v1495 = vsel %vm1290, %v1492, %v1494
      %v1496 = vrot.slane %v1486, 2
      %v1497 = vsel %vm1290, %v1494, %v1496
      %v1498 = vrot.slane %v1487, 2
      %v1499 = vsel %vm1290, %v1496, %v1498
      %v1500 = vrot.slane %v1488, 2
      %v1501 = vsel %vm1290, %v1498, %v1500
      %v1503 = vsel %vm418, %v1491, 0
      %v1506 = vsel %vm418, %v1493, 0
      %v1509 = vsel %vm418, %v1495, 0
      %v1512 = vsel %vm418, %v1497, 0
      %v1515 = vsel %vm418, %v1499, 0
      %v1518 = vsel %vm418, %v1501, 0
      %v1521 = vsel %vm437, %v1455, 0
      %1523 = vmatprep.subr.bf16.mxu0 0
      %1524 = vmatpush1.bf16.msra.mxu0 %v1521
      %1525 = vmatprep.subr.bf16.mxu0 0
      %1526 = vmatpush1.bf16.msra.mxu0 0
      %1527 = vmatprep.subr.bf16.mxu0 0
      %1528 = vmatpush1.bf16.msra.mxu0 0
      %1529 = vmatprep.subr.bf16.mxu0 0
      %1530 = vmatpush1.bf16.msra.mxu0 0
      %1531 = vmatprep.subr.bf16.mxu0 0
      %1532 = vmatpush1.bf16.msra.mxu0 0
      %1533 = vmatprep.subr.bf16.mxu0 0
      %1534 = vmatpush1.bf16.msra.mxu0 0
      %1535 = vmatprep.subr.bf16.mxu0 0
      %1536 = vmatpush1.bf16.msra.mxu0 0
      %1537 = vmatprep.subr.bf16.mxu0 0
      %1538 = vmatpush1.bf16.msra.mxu0 0
      %1539 = vmatprep.subr.bf16.mxu0 0
      %1540 = vmatpush1.bf16.msra.mxu0 0
      %1541 = vmatprep.subr.bf16.mxu0 0
      %1542 = vmatpush1.bf16.msra.mxu0 0
      %1543 = vmatprep.subr.bf16.mxu0 0
      %1544 = vmatpush1.bf16.msra.mxu0 0
      %1545 = vmatprep.subr.bf16.mxu0 0
      %1546 = vmatpush1.bf16.msra.mxu0 0
      %1547 = vmatprep.subr.bf16.mxu0 0
      %1548 = vmatpush1.bf16.msra.mxu0 0
      %1549 = vmatprep.subr.bf16.mxu0 0
      %1550 = vmatpush1.bf16.msra.mxu0 0
      %1551 = vmatprep.subr.bf16.mxu0 0
      %1552 = vmatpush1.bf16.msra.mxu0 0
      %1553 = vmatprep.subr.bf16.mxu0 0
      %1554 = vmatpush1.bf16.msra.mxu0 0
      %1555 = vmatprep.mubr.bf16.mxu0 0
      %1556 = vmatmul.mubr.bf16.gmra.mrb[0].mxu0 %v1503
      %v1557 = vpop.f32.mrb[0].mxu0
      %v1558 = vadd.f32 0.0, %v1557
      %v1559 = vpop.f32.mrb[0].mxu0
      %v1560 = vpop.f32.mrb[0].mxu0
      %v1561 = vadd.f32 0.0, %v1560
      %v1562 = vpop.f32.mrb[0].mxu0
      %1563 = vmatprep.mubr.bf16.mxu0 0
      %1564 = vmatmul.mubr.bf16.gmra.mrb[0].mxu0 %v1506
      %v1565 = vpop.f32.mrb[0].mxu0
      %v1566 = vadd.f32 0.0, %v1565
      %v1567 = vpop.f32.mrb[0].mxu0
      %v1568 = vpop.f32.mrb[0].mxu0
      %v1569 = vadd.f32 0.0, %v1568
      %v1570 = vpop.f32.mrb[0].mxu0
      %1571 = vmatprep.mubr.bf16.mxu0 0
      %1572 = vmatmul.mubr.bf16.gmra.mrb[0].mxu0 %v1509
      %v1573 = vpop.f32.mrb[0].mxu0
      %v1574 = vadd.f32 0.0, %v1573
      %v1575 = vpop.f32.mrb[0].mxu0
      %v1576 = vpop.f32.mrb[0].mxu0
      %v1577 = vadd.f32 0.0, %v1576
      %v1578 = vpop.f32.mrb[0].mxu0
      %1579 = vmatprep.mubr.bf16.mxu0 0
      %1580 = vmatmul.mubr.bf16.gmra.mrb[0].mxu0 %v1512
      %v1581 = vpop.f32.mrb[0].mxu0
      %v1582 = vadd.f32 0.0, %v1581
      %v1583 = vpop.f32.mrb[0].mxu0
      %v1584 = vpop.f32.mrb[0].mxu0
      %v1585 = vadd.f32 0.0, %v1584
      %v1586 = vpop.f32.mrb[0].mxu0
      %1587 = vmatprep.mubr.bf16.mxu0 0
      %1588 = vmatmul.mubr.bf16.gmra.mrb[0].mxu0 %v1515
      %v1589 = vpop.f32.mrb[0].mxu0
      %v1590 = vadd.f32 0.0, %v1589
      %v1591 = vpop.f32.mrb[0].mxu0
      %v1592 = vpop.f32.mrb[0].mxu0
      %v1593 = vadd.f32 0.0, %v1592
      %v1594 = vpop.f32.mrb[0].mxu0
      %1595 = vmatprep.mubr.bf16.mxu0 0
      %1596 = vmatmul.mubr.bf16.gmra.mrb[0].mxu0 %v1518
      %v1597 = vpop.f32.mrb[0].mxu0
      %v1598 = vadd.f32 0.0, %v1597
      %v1599 = vpop.f32.mrb[0].mxu0
      %v1600 = vpop.f32.mrb[0].mxu0
      %v1601 = vadd.f32 0.0, %v1600
      %v1602 = vpop.f32.mrb[0].mxu0
      %1603 = vdwg.mxu0
      %v1604 = vadd.f32 %v1443, %v1558
      %v1605 = vadd.f32 %v1444, %v1561
      %v1606 = vadd.f32 %v1445, %v1566
      %v1607 = vadd.f32 %v1446, %v1569
      %v1608 = vadd.f32 %v1447, %v1574
      %v1609 = vadd.f32 %v1448, %v1577
      %v1610 = vadd.f32 %v1449, %v1582
      %v1611 = vadd.f32 %v1450, %v1585
      %v1612 = vadd.f32 %v1451, %v1590
      %v1613 = vadd.f32 %v1452, %v1593
      %v1614 = vadd.f32 %v1453, %v1598
      %v1615 = vadd.f32 %v1454, %v1601
      %1616 = vst.msk [vmem:[#allocation3] sm:$0xff] %vm418, %v1604
      %1617 = vst.msk [vmem:[#allocation3 + $0x8] sm:$0xff] %vm418, %v1605
      %1618 = vst.msk [vmem:[#allocation3 + $0x10] sm:$0xff] %vm418, %v1606
      %1619 = vst.msk [vmem:[#allocation3 + $0x18] sm:$0xff] %vm418, %v1607
      %1620 = vst.msk [vmem:[#allocation3 + $0x20] sm:$0xff] %vm418, %v1608
      %1621 = vst.msk [vmem:[#allocation3 + $0x28] sm:$0xff] %vm418, %v1609
      %1622 = vst.msk [vmem:[#allocation3 + $0x30] sm:$0xff] %vm418, %v1610
      %1623 = vst.msk [vmem:[#allocation3 + $0x38] sm:$0xff] %vm418, %v1611
      %1624 = vst.msk [vmem:[#allocation3 + $0x40] sm:$0xff] %vm418, %v1612
      %1625 = vst.msk [vmem:[#allocation3 + $0x48] sm:$0xff] %vm418, %v1613
      %1626 = vst.msk [vmem:[#allocation3 + $0x50] sm:$0xff] %vm418, %v1614
      %1627 = vst.msk [vmem:[#allocation3 + $0x58] sm:$0xff] %vm418, %v1615
      %v1628 = vld [vmem:[%s298 + $0x4] sm:$0xc]
      %v1629 = vld [vmem:[%s298 + $0x8] sm:$0xf]
      %v1630 = vld [vmem:[%s298 + $0xc] sm:$0xf]
      %v1631 = vld [vmem:[%s298 + $0x10] sm:$0xf]
      %v1632 = vld [vmem:[%s298 + $0x14] sm:$0xf]
      %v1633 = vld [vmem:[%s298 + $0x18] sm:$0xf]
      %v1634 = vld [vmem:[%s298 + $0x1c] sm:$0xf]
      %v1635 = vld [vmem:[%s298 + $0x20] sm:$0xf]
      %v1636 = vld [vmem:[%s298 + $0x24] sm:$0xf]
      %v1637 = vld [vmem:[%s298 + $0x28] sm:$0xf]
      %v1638 = vld [vmem:[%s298 + $0x2c] sm:$0xf]
      %v1639 = vld [vmem:[%s298 + $0x30] sm:$0xf]
      %v1640 = vld [vmem:[%s298 + $0x34] sm:$0x7]
      %v1641 = vld [vmem:[#allocation3] sm:$0xff]
      %v1642 = vld [vmem:[#allocation3 + $0x8] sm:$0xff]
      %v1643 = vld [vmem:[#allocation3 + $0x10] sm:$0xff]
      %v1644 = vld [vmem:[#allocation3 + $0x18] sm:$0xff]
      %v1645 = vld [vmem:[#allocation3 + $0x20] sm:$0xff]
      %v1646 = vld [vmem:[#allocation3 + $0x28] sm:$0xff]
      %v1647 = vld [vmem:[#allocation3 + $0x30] sm:$0xff]
      %v1648 = vld [vmem:[#allocation3 + $0x38] sm:$0xff]
      %v1649 = vld [vmem:[#allocation3 + $0x40] sm:$0xff]
      %v1650 = vld [vmem:[#allocation3 + $0x48] sm:$0xff]
      %v1651 = vld [vmem:[#allocation3 + $0x50] sm:$0xff]
      %v1652 = vld [vmem:[#allocation3 + $0x58] sm:$0xff]
      %v1653 = vld [vmem:[%s304 + $0x18] sm:$0xf]
      %v1667 = vunpack.c.l.b16 %v1628
      %v1668 = vunpack.c.l.b16 %v1629
      %v1669 = vunpack.c.l.b16 %v1630
      %v1670 = vunpack.c.l.b16 %v1631
      %v1671 = vunpack.c.l.b16 %v1632
      %v1672 = vunpack.c.l.b16 %v1633
      %v1673 = vunpack.c.l.b16 %v1634
      %v1674 = vunpack.c.l.b16 %v1635
      %v1675 = vunpack.c.l.b16 %v1636
      %v1676 = vunpack.c.l.b16 %v1637
      %v1677 = vunpack.c.l.b16 %v1638
      %v1678 = vunpack.c.l.b16 %v1639
      %v1679 = vunpack.c.l.b16 %v1640
      %v1680 = vpack.c.b16 %v1668, %v1667
      %v1681 = vpack.c.b16 %v1670, %v1669
      %v1682 = vpack.c.b16 %v1672, %v1671
      %v1683 = vpack.c.b16 %v1674, %v1673
      %v1684 = vpack.c.b16 %v1676, %v1675
      %v1685 = vpack.c.b16 %v1678, %v1677
      %v1686 = vpack.c.b16 %v1679, %v1679
      %vm1687 = vsmask.f32 5376
      %v1689 = vshrl.u32 %v1680, 16
      %v1691 = vrot.slane %v1689, 2
      %v1692 = vshll.u32 %v1680, 16
      %v1694 = vrot.slane %v1692, 3
      %v1695 = vor.u32 %v1691, %v1694
      %v1697 = vshrl.u32 %v1681, 16
      %v1699 = vrot.slane %v1697, 2
      %v1700 = vshll.u32 %v1681, 16
      %v1702 = vrot.slane %v1700, 3
      %v1703 = vor.u32 %v1699, %v1702
      %v1704 = vsel %vm1687, %v1695, %v1703
      %v1706 = vshrl.u32 %v1682, 16
      %v1708 = vrot.slane %v1706, 2
      %v1709 = vshll.u32 %v1682, 16
      %v1711 = vrot.slane %v1709, 3
      %v1712 = vor.u32 %v1708, %v1711
      %v1713 = vsel %vm1687, %v1703, %v1712
      %v1715 = vshrl.u32 %v1683, 16
      %v1717 = vrot.slane %v1715, 2
      %v1718 = vshll.u32 %v1683, 16
      %v1720 = vrot.slane %v1718, 3
      %v1721 = vor.u32 %v1717, %v1720
      %v1722 = vsel %vm1687, %v1712, %v1721
      %v1724 = vshrl.u32 %v1684, 16
      %v1726 = vrot.slane %v1724, 2
      %v1727 = vshll.u32 %v1684, 16
      %v1729 = vrot.slane %v1727, 3
      %v1730 = vor.u32 %v1726, %v1729
      %v1731 = vsel %vm1687, %v1721, %v1730
      %v1733 = vshrl.u32 %v1685, 16
      %v1735 = vrot.slane %v1733, 2
      %v1736 = vshll.u32 %v1685, 16
      %v1738 = vrot.slane %v1736, 3
      %v1739 = vor.u32 %v1735, %v1738
      %v1740 = vsel %vm1687, %v1730, %v1739
      %v1742 = vshrl.u32 %v1686, 16
      %v1744 = vrot.slane %v1742, 2
      %v1745 = vshll.u32 %v1686, 16
      %v1747 = vrot.slane %v1745, 3
      %v1748 = vor.u32 %v1744, %v1747
      %v1749 = vsel %vm1687, %v1739, %v1748
      %v1751 = vsel %vm418, %v1704, 0
      %v1754 = vsel %vm418, %v1713, 0
      %v1757 = vsel %vm418, %v1722, 0
      %v1760 = vsel %vm418, %v1731, 0
      %v1763 = vsel %vm418, %v1740, 0
      %v1766 = vsel %vm418, %v1749, 0
      %v1769 = vsel %vm437, %v1653, 0
      %1771 = vmatprep.subr.bf16.mxu0 0
      %1772 = vmatpush1.bf16.msra.mxu0 %v1769
      %1773 = vmatprep.subr.bf16.mxu0 0
      %1774 = vmatpush1.bf16.msra.mxu0 0
      %1775 = vmatprep.subr.bf16.mxu0 0
      %1776 = vmatpush1.bf16.msra.mxu0 0
      %1777 = vmatprep.subr.bf16.mxu0 0
      %1778 = vmatpush1.bf16.msra.mxu0 0
      %1779 = vmatprep.subr.bf16.mxu0 0
      %1780 = vmatpush1.bf16.msra.mxu0 0
      %1781 = vmatprep.subr.bf16.mxu0 0
      %1782 = vmatpush1.bf16.msra.mxu0 0
      %1783 = vmatprep.subr.bf16.mxu0 0
      %1784 = vmatpush1.bf16.msra.mxu0 0
      %1785 = vmatprep.subr.bf16.mxu0 0
      %1786 = vmatpush1.bf16.msra.mxu0 0
      %1787 = vmatprep.subr.bf16.mxu0 0
      %1788 = vmatpush1.bf16.msra.mxu0 0
      %1789 = vmatprep.subr.bf16.mxu0 0
      %1790 = vmatpush1.bf16.msra.mxu0 0
      %1791 = vmatprep.subr.bf16.mxu0 0
      %1792 = vmatpush1.bf16.msra.mxu0 0
      %1793 = vmatprep.subr.bf16.mxu0 0
      %1794 = vmatpush1.bf16.msra.mxu0 0
      %1795 = vmatprep.subr.bf16.mxu0 0
      %1796 = vmatpush1.bf16.msra.mxu0 0
      %1797 = vmatprep.subr.bf16.mxu0 0
      %1798 = vmatpush1.bf16.msra.mxu0 0
      %1799 = vmatprep.subr.bf16.mxu0 0
      %1800 = vmatpush1.bf16.msra.mxu0 0
      %1801 = vmatprep.subr.bf16.mxu0 0
      %1802 = vmatpush1.bf16.msra.mxu0 0
      %1803 = vmatprep.mubr.bf16.mxu0 0
      %1804 = vmatmul.mubr.bf16.gmra.mrb[0].mxu0 %v1751
      %v1805 = vpop.f32.mrb[0].mxu0
      %v1806 = vadd.f32 0.0, %v1805
      %v1807 = vpop.f32.mrb[0].mxu0
      %v1808 = vpop.f32.mrb[0].mxu0
      %v1809 = vadd.f32 0.0, %v1808
      %v1810 = vpop.f32.mrb[0].mxu0
      %1811 = vmatprep.mubr.bf16.mxu0 0
      %1812 = vmatmul.mubr.bf16.gmra.mrb[0].mxu0 %v1754
      %v1813 = vpop.f32.mrb[0].mxu0
      %v1814 = vadd.f32 0.0, %v1813
      %v1815 = vpop.f32.mrb[0].mxu0
      %v1816 = vpop.f32.mrb[0].mxu0
      %v1817 = vadd.f32 0.0, %v1816
      %v1818 = vpop.f32.mrb[0].mxu0
      %1819 = vmatprep.mubr.bf16.mxu0 0
      %1820 = vmatmul.mubr.bf16.gmra.mrb[0].mxu0 %v1757
      %v1821 = vpop.f32.mrb[0].mxu0
      %v1822 = vadd.f32 0.0, %v1821
      %v1823 = vpop.f32.mrb[0].mxu0
      %v1824 = vpop.f32.mrb[0].mxu0
      %v1825 = vadd.f32 0.0, %v1824
      %v1826 = vpop.f32.mrb[0].mxu0
      %1827 = vmatprep.mubr.bf16.mxu0 0
      %1828 = vmatmul.mubr.bf16.gmra.mrb[0].mxu0 %v1760
      %v1829 = vpop.f32.mrb[0].mxu0
      %v1830 = vadd.f32 0.0, %v1829
      %v1831 = vpop.f32.mrb[0].mxu0
      %v1832 = vpop.f32.mrb[0].mxu0
      %v1833 = vadd.f32 0.0, %v1832
      %v1834 = vpop.f32.mrb[0].mxu0
      %1835 = vmatprep.mubr.bf16.mxu0 0
      %1836 = vmatmul.mubr.bf16.gmra.mrb[0].mxu0 %v1763
      %v1837 = vpop.f32.mrb[0].mxu0
      %v1838 = vadd.f32 0.0, %v1837
      %v1839 = vpop.f32.mrb[0].mxu0
      %v1840 = vpop.f32.mrb[0].mxu0
      %v1841 = vadd.f32 0.0, %v1840
      %v1842 = vpop.f32.mrb[0].mxu0
      %1843 = vmatprep.mubr.bf16.mxu0 0
      %1844 = vmatmul.mubr.bf16.gmra.mrb[0].mxu0 %v1766
      %v1845 = vpop.f32.mrb[0].mxu0
      %v1846 = vadd.f32 0.0, %v1845
      %v1847 = vpop.f32.mrb[0].mxu0
      %v1848 = vpop.f32.mrb[0].mxu0
      %v1849 = vadd.f32 0.0, %v1848
      %v1850 = vpop.f32.mrb[0].mxu0
      %1851 = vdwg.mxu0
      %v1852 = vadd.f32 %v1641, %v1806
      %v1853 = vadd.f32 %v1642, %v1809
      %v1854 = vadd.f32 %v1643, %v1814
      %v1855 = vadd.f32 %v1644, %v1817
      %v1856 = vadd.f32 %v1645, %v1822
      %v1857 = vadd.f32 %v1646, %v1825
      %v1858 = vadd.f32 %v1647, %v1830
      %v1859 = vadd.f32 %v1648, %v1833
      %v1860 = vadd.f32 %v1649, %v1838
      %v1861 = vadd.f32 %v1650, %v1841
      %v1862 = vadd.f32 %v1651, %v1846
      %v1863 = vadd.f32 %v1652, %v1849
      %1864 = vst.msk [vmem:[#allocation3] sm:$0xff] %vm418, %v1852
      %1865 = vst.msk [vmem:[#allocation3 + $0x8] sm:$0xff] %vm418, %v1853
      %1866 = vst.msk [vmem:[#allocation3 + $0x10] sm:$0xff] %vm418, %v1854
      %1867 = vst.msk [vmem:[#allocation3 + $0x18] sm:$0xff] %vm418, %v1855
      %1868 = vst.msk [vmem:[#allocation3 + $0x20] sm:$0xff] %vm418, %v1856
      %1869 = vst.msk [vmem:[#allocation3 + $0x28] sm:$0xff] %vm418, %v1857
      %1870 = vst.msk [vmem:[#allocation3 + $0x30] sm:$0xff] %vm418, %v1858
      %1871 = vst.msk [vmem:[#allocation3 + $0x38] sm:$0xff] %vm418, %v1859
      %1872 = vst.msk [vmem:[#allocation3 + $0x40] sm:$0xff] %vm418, %v1860
      %1873 = vst.msk [vmem:[#allocation3 + $0x48] sm:$0xff] %vm418, %v1861
      %1874 = vst.msk [vmem:[#allocation3 + $0x50] sm:$0xff] %vm418, %v1862
      %1875 = vst.msk [vmem:[#allocation3 + $0x58] sm:$0xff] %vm418, %v1863
      %v1876 = vld [vmem:[%s298 + $0x4] sm:$0x8]
      %v1877 = vld [vmem:[%s298 + $0x8] sm:$0xf]
      %v1878 = vld [vmem:[%s298 + $0xc] sm:$0xf]
      %v1879 = vld [vmem:[%s298 + $0x10] sm:$0xf]
      %v1880 = vld [vmem:[%s298 + $0x14] sm:$0xf]
      %v1881 = vld [vmem:[%s298 + $0x18] sm:$0xf]
      %v1882 = vld [vmem:[%s298 + $0x1c] sm:$0xf]
      %v1883 = vld [vmem:[%s298 + $0x20] sm:$0xf]
      %v1884 = vld [vmem:[%s298 + $0x24] sm:$0xf]
      %v1885 = vld [vmem:[%s298 + $0x28] sm:$0xf]
      %v1886 = vld [vmem:[%s298 + $0x2c] sm:$0xf]
      %v1887 = vld [vmem:[%s298 + $0x30] sm:$0xf]
      %v1888 = vld [vmem:[%s298 + $0x34] sm:$0x7]
      %v1889 = vld [vmem:[#allocation3] sm:$0xff]
      %v1890 = vld [vmem:[#allocation3 + $0x8] sm:$0xff]
      %v1891 = vld [vmem:[#allocation3 + $0x10] sm:$0xff]
      %v1892 = vld [vmem:[#allocation3 + $0x18] sm:$0xff]
      %v1893 = vld [vmem:[#allocation3 + $0x20] sm:$0xff]
      %v1894 = vld [vmem:[#allocation3 + $0x28] sm:$0xff]
      %v1895 = vld [vmem:[#allocation3 + $0x30] sm:$0xff]
      %v1896 = vld [vmem:[#allocation3 + $0x38] sm:$0xff]
      %v1897 = vld [vmem:[#allocation3 + $0x40] sm:$0xff]
      %v1898 = vld [vmem:[#allocation3 + $0x48] sm:$0xff]
      %v1899 = vld [vmem:[#allocation3 + $0x50] sm:$0xff]
      %v1900 = vld [vmem:[#allocation3 + $0x58] sm:$0xff]
      %v1901 = vld [vmem:[%s304 + $0x1c] sm:$0xf]
      %v1915 = vunpack.c.l.b16 %v1876
      %v1916 = vunpack.c.l.b16 %v1877
      %v1917 = vunpack.c.l.b16 %v1878
      %v1918 = vunpack.c.l.b16 %v1879
      %v1919 = vunpack.c.l.b16 %v1880
      %v1920 = vunpack.c.l.b16 %v1881
      %v1921 = vunpack.c.l.b16 %v1882
      %v1922 = vunpack.c.l.b16 %v1883
      %v1923 = vunpack.c.l.b16 %v1884
      %v1924 = vunpack.c.l.b16 %v1885
      %v1925 = vunpack.c.l.b16 %v1886
      %v1926 = vunpack.c.l.b16 %v1887
      %v1927 = vunpack.c.l.b16 %v1888
      %v1928 = vpack.c.b16 %v1916, %v1915
      %v1929 = vpack.c.b16 %v1918, %v1917
      %v1930 = vpack.c.b16 %v1920, %v1919
      %v1931 = vpack.c.b16 %v1922, %v1921
      %v1932 = vpack.c.b16 %v1924, %v1923
      %v1933 = vpack.c.b16 %v1926, %v1925
      %v1934 = vpack.c.b16 %v1927, %v1927
      %vm1935 = vcmask 1044480
      %v1936 = vrot.slane %v1928, 3
      %v1937 = vrot.slane %v1929, 3
      %v1938 = vsel %vm1935, %v1936, %v1937
      %v1939 = vrot.slane %v1930, 3
      %v1940 = vsel %vm1935, %v1937, %v1939
      %v1941 = vrot.slane %v1931, 3
      %v1942 = vsel %vm1935, %v1939, %v1941
      %v1943 = vrot.slane %v1932, 3
      %v1944 = vsel %vm1935, %v1941, %v1943
      %v1945 = vrot.slane %v1933, 3
      %v1946 = vsel %vm1935, %v1943, %v1945
      %v1947 = vrot.slane %v1934, 3
      %v1948 = vsel %vm1935, %v1945, %v1947
      %v1950 = vsel %vm418, %v1938, 0
      %v1953 = vsel %vm418, %v1940, 0
      %v1956 = vsel %vm418, %v1942, 0
      %v1959 = vsel %vm418, %v1944, 0
      %v1962 = vsel %vm418, %v1946, 0
      %v1965 = vsel %vm418, %v1948, 0
      %v1968 = vsel %vm437, %v1901, 0
      %1970 = vmatprep.subr.bf16.mxu0 0
      %1971 = vmatpush1.bf16.msra.mxu0 %v1968
      %1972 = vmatprep.subr.bf16.mxu0 0
      %1973 = vmatpush1.bf16.msra.mxu0 0
      %1974 = vmatprep.subr.bf16.mxu0 0
      %1975 = vmatpush1.bf16.msra.mxu0 0
      %1976 = vmatprep.subr.bf16.mxu0 0
      %1977 = vmatpush1.bf16.msra.mxu0 0
      %1978 = vmatprep.subr.bf16.mxu0 0
      %1979 = vmatpush1.bf16.msra.mxu0 0
      %1980 = vmatprep.subr.bf16.mxu0 0
      %1981 = vmatpush1.bf16.msra.mxu0 0
      %1982 = vmatprep.subr.bf16.mxu0 0
      %1983 = vmatpush1.bf16.msra.mxu0 0
      %1984 = vmatprep.subr.bf16.mxu0 0
      %1985 = vmatpush1.bf16.msra.mxu0 0
      %1986 = vmatprep.subr.bf16.mxu0 0
      %1987 = vmatpush1.bf16.msra.mxu0 0
      %1988 = vmatprep.subr.bf16.mxu0 0
      %1989 = vmatpush1.bf16.msra.mxu0 0
      %1990 = vmatprep.subr.bf16.mxu0 0
      %1991 = vmatpush1.bf16.msra.mxu0 0
      %1992 = vmatprep.subr.bf16.mxu0 0
      %1993 = vmatpush1.bf16.msra.mxu0 0
      %1994 = vmatprep.subr.bf16.mxu0 0
      %1995 = vmatpush1.bf16.msra.mxu0 0
      %1996 = vmatprep.subr.bf16.mxu0 0
      %1997 = vmatpush1.bf16.msra.mxu0 0
      %1998 = vmatprep.subr.bf16.mxu0 0
      %1999 = vmatpush1.bf16.msra.mxu0 0
      %2000 = vmatprep.subr.bf16.mxu0 0
      %2001 = vmatpush1.bf16.msra.mxu0 0
      %2002 = vmatprep.mubr.bf16.mxu0 0
      %2003 = vmatmul.mubr.bf16.gmra.mrb[0].mxu0 %v1950
      %v2004 = vpop.f32.mrb[0].mxu0
      %v2005 = vadd.f32 0.0, %v2004
      %v2006 = vpop.f32.mrb[0].mxu0
      %v2007 = vpop.f32.mrb[0].mxu0
      %v2008 = vadd.f32 0.0, %v2007
      %v2009 = vpop.f32.mrb[0].mxu0
      %2010 = vmatprep.mubr.bf16.mxu0 0
      %2011 = vmatmul.mubr.bf16.gmra.mrb[0].mxu0 %v1953
      %v2012 = vpop.f32.mrb[0].mxu0
      %v2013 = vadd.f32 0.0, %v2012
      %v2014 = vpop.f32.mrb[0].mxu0
      %v2015 = vpop.f32.mrb[0].mxu0
      %v2016 = vadd.f32 0.0, %v2015
      %v2017 = vpop.f32.mrb[0].mxu0
      %2018 = vmatprep.mubr.bf16.mxu0 0
      %2019 = vmatmul.mubr.bf16.gmra.mrb[0].mxu0 %v1956
      %v2020 = vpop.f32.mrb[0].mxu0
      %v2021 = vadd.f32 0.0, %v2020
      %v2022 = vpop.f32.mrb[0].mxu0
      %v2023 = vpop.f32.mrb[0].mxu0
      %v2024 = vadd.f32 0.0, %v2023
      %v2025 = vpop.f32.mrb[0].mxu0
      %2026 = vmatprep.mubr.bf16.mxu0 0
      %2027 = vmatmul.mubr.bf16.gmra.mrb[0].mxu0 %v1959
      %v2028 = vpop.f32.mrb[0].mxu0
      %v2029 = vadd.f32 0.0, %v2028
      %v2030 = vpop.f32.mrb[0].mxu0
      %v2031 = vpop.f32.mrb[0].mxu0
      %v2032 = vadd.f32 0.0, %v2031
      %v2033 = vpop.f32.mrb[0].mxu0
      %2034 = vmatprep.mubr.bf16.mxu0 0
      %2035 = vmatmul.mubr.bf16.gmra.mrb[0].mxu0 %v1962
      %v2036 = vpop.f32.mrb[0].mxu0
      %v2037 = vadd.f32 0.0, %v2036
      %v2038 = vpop.f32.mrb[0].mxu0
      %v2039 = vpop.f32.mrb[0].mxu0
      %v2040 = vadd.f32 0.0, %v2039
      %v2041 = vpop.f32.mrb[0].mxu0
      %2042 = vmatprep.mubr.bf16.mxu0 0
      %2043 = vmatmul.mubr.bf16.gmra.mrb[0].mxu0 %v1965
      %v2044 = vpop.f32.mrb[0].mxu0
      %v2045 = vadd.f32 0.0, %v2044
      %v2046 = vpop.f32.mrb[0].mxu0
      %v2047 = vpop.f32.mrb[0].mxu0
      %v2048 = vadd.f32 0.0, %v2047
      %v2049 = vpop.f32.mrb[0].mxu0
      %2050 = vdwg.mxu0
      %v2051 = vadd.f32 %v1889, %v2005
      %v2052 = vadd.f32 %v1890, %v2008
      %v2053 = vadd.f32 %v1891, %v2013
      %v2054 = vadd.f32 %v1892, %v2016
      %v2055 = vadd.f32 %v1893, %v2021
      %v2056 = vadd.f32 %v1894, %v2024
      %v2057 = vadd.f32 %v1895, %v2029
      %v2058 = vadd.f32 %v1896, %v2032
      %v2059 = vadd.f32 %v1897, %v2037
      %v2060 = vadd.f32 %v1898, %v2040
      %v2061 = vadd.f32 %v1899, %v2045
      %v2062 = vadd.f32 %v1900, %v2048
      %2063 = vst.msk [vmem:[#allocation3] sm:$0xff] %vm418, %v2051
      %2064 = vst.msk [vmem:[#allocation3 + $0x8] sm:$0xff] %vm418, %v2052
      %2065 = vst.msk [vmem:[#allocation3 + $0x10] sm:$0xff] %vm418, %v2053
      %2066 = vst.msk [vmem:[#allocation3 + $0x18] sm:$0xff] %vm418, %v2054
      %2067 = vst.msk [vmem:[#allocation3 + $0x20] sm:$0xff] %vm418, %v2055
      %2068 = vst.msk [vmem:[#allocation3 + $0x28] sm:$0xff] %vm418, %v2056
      %2069 = vst.msk [vmem:[#allocation3 + $0x30] sm:$0xff] %vm418, %v2057
      %2070 = vst.msk [vmem:[#allocation3 + $0x38] sm:$0xff] %vm418, %v2058
      %2071 = vst.msk [vmem:[#allocation3 + $0x40] sm:$0xff] %vm418, %v2059
      %2072 = vst.msk [vmem:[#allocation3 + $0x48] sm:$0xff] %vm418, %v2060
      %2073 = vst.msk [vmem:[#allocation3 + $0x50] sm:$0xff] %vm418, %v2061
      %2074 = vst.msk [vmem:[#allocation3 + $0x58] sm:$0xff] %vm418, %v2062
      %v2075 = vld [vmem:[%s298 + $0x4] sm:$0x8]
      %v2076 = vld [vmem:[%s298 + $0x8] sm:$0xf]
      %v2077 = vld [vmem:[%s298 + $0xc] sm:$0xf]
      %v2078 = vld [vmem:[%s298 + $0x10] sm:$0xf]
      %v2079 = vld [vmem:[%s298 + $0x14] sm:$0xf]
      %v2080 = vld [vmem:[%s298 + $0x18] sm:$0xf]
      %v2081 = vld [vmem:[%s298 + $0x1c] sm:$0xf]
      %v2082 = vld [vmem:[%s298 + $0x20] sm:$0xf]
      %v2083 = vld [vmem:[%s298 + $0x24] sm:$0xf]
      %v2084 = vld [vmem:[%s298 + $0x28] sm:$0xf]
      %v2085 = vld [vmem:[%s298 + $0x2c] sm:$0xf]
      %v2086 = vld [vmem:[%s298 + $0x30] sm:$0xf]
      %v2087 = vld [vmem:[%s298 + $0x34] sm:$0xf]
      %v2088 = vld [vmem:[#allocation3] sm:$0xff]
      %v2089 = vld [vmem:[#allocation3 + $0x8] sm:$0xff]
      %v2090 = vld [vmem:[#allocation3 + $0x10] sm:$0xff]
      %v2091 = vld [vmem:[#allocation3 + $0x18] sm:$0xff]
      %v2092 = vld [vmem:[#allocation3 + $0x20] sm:$0xff]
      %v2093 = vld [vmem:[#allocation3 + $0x28] sm:$0xff]
      %v2094 = vld [vmem:[#allocation3 + $0x30] sm:$0xff]
      %v2095 = vld [vmem:[#allocation3 + $0x38] sm:$0xff]
      %v2096 = vld [vmem:[#allocation3 + $0x40] sm:$0xff]
      %v2097 = vld [vmem:[#allocation3 + $0x48] sm:$0xff]
      %v2098 = vld [vmem:[#allocation3 + $0x50] sm:$0xff]
      %v2099 = vld [vmem:[#allocation3 + $0x58] sm:$0xff]
      %v2100 = vld [vmem:[%s304 + $0x20] sm:$0xf]
      %v2114 = vunpack.c.l.b16 %v2075
      %v2115 = vunpack.c.l.b16 %v2076
      %v2116 = vunpack.c.l.b16 %v2077
      %v2117 = vunpack.c.l.b16 %v2078
      %v2118 = vunpack.c.l.b16 %v2079
      %v2119 = vunpack.c.l.b16 %v2080
      %v2120 = vunpack.c.l.b16 %v2081
      %v2121 = vunpack.c.l.b16 %v2082
      %v2122 = vunpack.c.l.b16 %v2083
      %v2123 = vunpack.c.l.b16 %v2084
      %v2124 = vunpack.c.l.b16 %v2085
      %v2125 = vunpack.c.l.b16 %v2086
      %v2126 = vunpack.c.l.b16 %v2087
      %v2127 = vpack.c.b16 %v2115, %v2114
      %v2128 = vpack.c.b16 %v2117, %v2116
      %v2129 = vpack.c.b16 %v2119, %v2118
      %v2130 = vpack.c.b16 %v2121, %v2120
      %v2131 = vpack.c.b16 %v2123, %v2122
      %v2132 = vpack.c.b16 %v2125, %v2124
      %v2133 = vpack.c.b16 %v2126, %v2126
      %vm2134 = vsmask.f32 4352
      %v2136 = vshrl.u32 %v2127, 16
      %v2138 = vrot.slane %v2136, 3
      %v2139 = vshll.u32 %v2127, 16
      %v2141 = vrot.slane %v2139, 4
      %v2142 = vor.u32 %v2138, %v2141
      %v2144 = vshrl.u32 %v2128, 16
      %v2146 = vrot.slane %v2144, 3
      %v2147 = vshll.u32 %v2128, 16
      %v2149 = vrot.slane %v2147, 4
      %v2150 = vor.u32 %v2146, %v2149
      %v2151 = vsel %vm2134, %v2142, %v2150
      %v2153 = vshrl.u32 %v2129, 16
      %v2155 = vrot.slane %v2153, 3
      %v2156 = vshll.u32 %v2129, 16
      %v2158 = vrot.slane %v2156, 4
      %v2159 = vor.u32 %v2155, %v2158
      %v2160 = vsel %vm2134, %v2150, %v2159
      %v2162 = vshrl.u32 %v2130, 16
      %v2164 = vrot.slane %v2162, 3
      %v2165 = vshll.u32 %v2130, 16
      %v2167 = vrot.slane %v2165, 4
      %v2168 = vor.u32 %v2164, %v2167
      %v2169 = vsel %vm2134, %v2159, %v2168
      %v2171 = vshrl.u32 %v2131, 16
      %v2173 = vrot.slane %v2171, 3
      %v2174 = vshll.u32 %v2131, 16
      %v2176 = vrot.slane %v2174, 4
      %v2177 = vor.u32 %v2173, %v2176
      %v2178 = vsel %vm2134, %v2168, %v2177
      %v2180 = vshrl.u32 %v2132, 16
      %v2182 = vrot.slane %v2180, 3
      %v2183 = vshll.u32 %v2132, 16
      %v2185 = vrot.slane %v2183, 4
      %v2186 = vor.u32 %v2182, %v2185
      %v2187 = vsel %vm2134, %v2177, %v2186
      %v2189 = vshrl.u32 %v2133, 16
      %v2191 = vrot.slane %v2189, 3
      %v2192 = vshll.u32 %v2133, 16
      %v2194 = vrot.slane %v2192, 4
      %v2195 = vor.u32 %v2191, %v2194
      %v2196 = vsel %vm2134, %v2186, %v2195
      %v2198 = vsel %vm418, %v2151, 0
      %v2201 = vsel %vm418, %v2160, 0
      %v2204 = vsel %vm418, %v2169, 0
      %v2207 = vsel %vm418, %v2178, 0
      %v2210 = vsel %vm418, %v2187, 0
      %v2213 = vsel %vm418, %v2196, 0
      %v2216 = vsel %vm437, %v2100, 0
      %2218 = vmatprep.subr.bf16.mxu0 0
      %2219 = vmatpush1.bf16.msra.mxu0 %v2216
      %2220 = vmatprep.subr.bf16.mxu0 0
      %2221 = vmatpush1.bf16.msra.mxu0 0
      %2222 = vmatprep.subr.bf16.mxu0 0
      %2223 = vmatpush1.bf16.msra.mxu0 0
      %2224 = vmatprep.subr.bf16.mxu0 0
      %2225 = vmatpush1.bf16.msra.mxu0 0
      %2226 = vmatprep.subr.bf16.mxu0 0
      %2227 = vmatpush1.bf16.msra.mxu0 0
      %2228 = vmatprep.subr.bf16.mxu0 0
      %2229 = vmatpush1.bf16.msra.mxu0 0
      %2230 = vmatprep.subr.bf16.mxu0 0
      %2231 = vmatpush1.bf16.msra.mxu0 0
      %2232 = vmatprep.subr.bf16.mxu0 0
      %2233 = vmatpush1.bf16.msra.mxu0 0
      %2234 = vmatprep.subr.bf16.mxu0 0
      %2235 = vmatpush1.bf16.msra.mxu0 0
      %2236 = vmatprep.subr.bf16.mxu0 0
      %2237 = vmatpush1.bf16.msra.mxu0 0
      %2238 = vmatprep.subr.bf16.mxu0 0
      %2239 = vmatpush1.bf16.msra.mxu0 0
      %2240 = vmatprep.subr.bf16.mxu0 0
      %2241 = vmatpush1.bf16.msra.mxu0 0
      %2242 = vmatprep.subr.bf16.mxu0 0
      %2243 = vmatpush1.bf16.msra.mxu0 0
      %2244 = vmatprep.subr.bf16.mxu0 0
      %2245 = vmatpush1.bf16.msra.mxu0 0
      %2246 = vmatprep.subr.bf16.mxu0 0
      %2247 = vmatpush1.bf16.msra.mxu0 0
      %2248 = vmatprep.subr.bf16.mxu0 0
      %2249 = vmatpush1.bf16.msra.mxu0 0
      %2250 = vmatprep.mubr.bf16.mxu0 0
      %2251 = vmatmul.mubr.bf16.gmra.mrb[0].mxu0 %v2198
      %v2252 = vpop.f32.mrb[0].mxu0
      %v2253 = vadd.f32 0.0, %v2252
      %v2254 = vpop.f32.mrb[0].mxu0
      %v2255 = vpop.f32.mrb[0].mxu0
      %v2256 = vadd.f32 0.0, %v2255
      %v2257 = vpop.f32.mrb[0].mxu0
      %2258 = vmatprep.mubr.bf16.mxu0 0
      %2259 = vmatmul.mubr.bf16.gmra.mrb[0].mxu0 %v2201
      %v2260 = vpop.f32.mrb[0].mxu0
      %v2261 = vadd.f32 0.0, %v2260
      %v2262 = vpop.f32.mrb[0].mxu0
      %v2263 = vpop.f32.mrb[0].mxu0
      %v2264 = vadd.f32 0.0, %v2263
      %v2265 = vpop.f32.mrb[0].mxu0
      %2266 = vmatprep.mubr.bf16.mxu0 0
      %2267 = vmatmul.mubr.bf16.gmra.mrb[0].mxu0 %v2204
      %v2268 = vpop.f32.mrb[0].mxu0
      %v2269 = vadd.f32 0.0, %v2268
      %v2270 = vpop.f32.mrb[0].mxu0
      %v2271 = vpop.f32.mrb[0].mxu0
      %v2272 = vadd.f32 0.0, %v2271
      %v2273 = vpop.f32.mrb[0].mxu0
      %2274 = vmatprep.mubr.bf16.mxu0 0
      %2275 = vmatmul.mubr.bf16.gmra.mrb[0].mxu0 %v2207
      %v2276 = vpop.f32.mrb[0].mxu0
      %v2277 = vadd.f32 0.0, %v2276
      %v2278 = vpop.f32.mrb[0].mxu0
      %v2279 = vpop.f32.mrb[0].mxu0
      %v2280 = vadd.f32 0.0, %v2279
      %v2281 = vpop.f32.mrb[0].mxu0
      %2282 = vmatprep.mubr.bf16.mxu0 0
      %2283 = vmatmul.mubr.bf16.gmra.mrb[0].mxu0 %v2210
      %v2284 = vpop.f32.mrb[0].mxu0
      %v2285 = vadd.f32 0.0, %v2284
      %v2286 = vpop.f32.mrb[0].mxu0
      %v2287 = vpop.f32.mrb[0].mxu0
      %v2288 = vadd.f32 0.0, %v2287
      %v2289 = vpop.f32.mrb[0].mxu0
      %2290 = vmatprep.mubr.bf16.mxu0 0
      %2291 = vmatmul.mubr.bf16.gmra.mrb[0].mxu0 %v2213
      %v2292 = vpop.f32.mrb[0].mxu0
      %v2293 = vadd.f32 0.0, %v2292
      %v2294 = vpop.f32.mrb[0].mxu0
      %v2295 = vpop.f32.mrb[0].mxu0
      %v2296 = vadd.f32 0.0, %v2295
      %v2297 = vpop.f32.mrb[0].mxu0
      %2298 = vdwg.mxu0
      %v2299 = vadd.f32 %v2088, %v2253
      %v2300 = vadd.f32 %v2089, %v2256
      %v2301 = vadd.f32 %v2090, %v2261
      %v2302 = vadd.f32 %v2091, %v2264
      %v2303 = vadd.f32 %v2092, %v2269
      %v2304 = vadd.f32 %v2093, %v2272
      %v2305 = vadd.f32 %v2094, %v2277
      %v2306 = vadd.f32 %v2095, %v2280
      %v2307 = vadd.f32 %v2096, %v2285
      %v2308 = vadd.f32 %v2097, %v2288
      %v2309 = vadd.f32 %v2098, %v2293
      %v2310 = vadd.f32 %v2099, %v2296
      %2311 = vst.msk [vmem:[#allocation3] sm:$0xff] %vm418, %v2299
      %2312 = vst.msk [vmem:[#allocation3 + $0x8] sm:$0xff] %vm418, %v2300
      %2313 = vst.msk [vmem:[#allocation3 + $0x10] sm:$0xff] %vm418, %v2301
      %2314 = vst.msk [vmem:[#allocation3 + $0x18] sm:$0xff] %vm418, %v2302
      %2315 = vst.msk [vmem:[#allocation3 + $0x20] sm:$0xff] %vm418, %v2303
      %2316 = vst.msk [vmem:[#allocation3 + $0x28] sm:$0xff] %vm418, %v2304
      %2317 = vst.msk [vmem:[#allocation3 + $0x30] sm:$0xff] %vm418, %v2305
      %2318 = vst.msk [vmem:[#allocation3 + $0x38] sm:$0xff] %vm418, %v2306
      %2319 = vst.msk [vmem:[#allocation3 + $0x40] sm:$0xff] %vm418, %v2307
      %2320 = vst.msk [vmem:[#allocation3 + $0x48] sm:$0xff] %vm418, %v2308
      %2321 = vst.msk [vmem:[#allocation3 + $0x50] sm:$0xff] %vm418, %v2309
      %2322 = vst.msk [vmem:[#allocation3 + $0x58] sm:$0xff] %vm418, %v2310
      %v2323 = vld [vmem:[%s298 + $0x8] sm:$0xf]
      %v2324 = vld [vmem:[%s298 + $0xc] sm:$0xf]
      %v2325 = vld [vmem:[%s298 + $0x10] sm:$0xf]
      %v2326 = vld [vmem:[%s298 + $0x14] sm:$0xf]
      %v2327 = vld [vmem:[%s298 + $0x18] sm:$0xf]
      %v2328 = vld [vmem:[%s298 + $0x1c] sm:$0xf]
      %v2329 = vld [vmem:[%s298 + $0x20] sm:$0xf]
      %v2330 = vld [vmem:[%s298 + $0x24] sm:$0xf]
      %v2331 = vld [vmem:[%s298 + $0x28] sm:$0xf]
      %v2332 = vld [vmem:[%s298 + $0x2c] sm:$0xf]
      %v2333 = vld [vmem:[%s298 + $0x30] sm:$0xf]
      %v2334 = vld [vmem:[%s298 + $0x34] sm:$0xf]
      %v2335 = vld [vmem:[#allocation3] sm:$0xff]
      %v2336 = vld [vmem:[#allocation3 + $0x8] sm:$0xff]
      %v2337 = vld [vmem:[#allocation3 + $0x10] sm:$0xff]
      %v2338 = vld [vmem:[#allocation3 + $0x18] sm:$0xff]
      %v2339 = vld [vmem:[#allocation3 + $0x20] sm:$0xff]
      %v2340 = vld [vmem:[#allocation3 + $0x28] sm:$0xff]
      %v2341 = vld [vmem:[#allocation3 + $0x30] sm:$0xff]
      %v2342 = vld [vmem:[#allocation3 + $0x38] sm:$0xff]
      %v2343 = vld [vmem:[#allocation3 + $0x40] sm:$0xff]
      %v2344 = vld [vmem:[#allocation3 + $0x48] sm:$0xff]
      %v2345 = vld [vmem:[#allocation3 + $0x50] sm:$0xff]
      %v2346 = vld [vmem:[#allocation3 + $0x58] sm:$0xff]
      %v2347 = vld [vmem:[%s304 + $0x24] sm:$0xf]
      %v2360 = vunpack.c.l.b16 %v2323
      %v2361 = vunpack.c.l.b16 %v2324
      %v2362 = vunpack.c.l.b16 %v2325
      %v2363 = vunpack.c.l.b16 %v2326
      %v2364 = vunpack.c.l.b16 %v2327
      %v2365 = vunpack.c.l.b16 %v2328
      %v2366 = vunpack.c.l.b16 %v2329
      %v2367 = vunpack.c.l.b16 %v2330
      %v2368 = vunpack.c.l.b16 %v2331
      %v2369 = vunpack.c.l.b16 %v2332
      %v2370 = vunpack.c.l.b16 %v2333
      %v2371 = vunpack.c.l.b16 %v2334
      %v2372 = vpack.c.b16 %v2361, %v2360
      %v2373 = vpack.c.b16 %v2363, %v2362
      %v2374 = vpack.c.b16 %v2365, %v2364
      %v2375 = vpack.c.b16 %v2367, %v2366
      %v2376 = vpack.c.b16 %v2369, %v2368
      %v2377 = vpack.c.b16 %v2371, %v2370
      %v2379 = vsel %vm418, %v2372, 0
      %v2382 = vsel %vm418, %v2373, 0
      %v2385 = vsel %vm418, %v2374, 0
      %v2388 = vsel %vm418, %v2375, 0
      %v2391 = vsel %vm418, %v2376, 0
      %v2394 = vsel %vm418, %v2377, 0
      %v2397 = vsel %vm437, %v2347, 0
      %2399 = vmatprep.subr.bf16.mxu0 0
      %2400 = vmatpush1.bf16.msra.mxu0 %v2397
      %2401 = vmatprep.subr.bf16.mxu0 0
      %2402 = vmatpush1.bf16.msra.mxu0 0
      %2403 = vmatprep.subr.bf16.mxu0 0
      %2404 = vmatpush1.bf16.msra.mxu0 0
      %2405 = vmatprep.subr.bf16.mxu0 0
      %2406 = vmatpush1.bf16.msra.mxu0 0
      %2407 = vmatprep.subr.bf16.mxu0 0
      %2408 = vmatpush1.bf16.msra.mxu0 0
      %2409 = vmatprep.subr.bf16.mxu0 0
      %2410 = vmatpush1.bf16.msra.mxu0 0
      %2411 = vmatprep.subr.bf16.mxu0 0
      %2412 = vmatpush1.bf16.msra.mxu0 0
      %2413 = vmatprep.subr.bf16.mxu0 0
      %2414 = vmatpush1.bf16.msra.mxu0 0
      %2415 = vmatprep.subr.bf16.mxu0 0
      %2416 = vmatpush1.bf16.msra.mxu0 0
      %2417 = vmatprep.subr.bf16.mxu0 0
      %2418 = vmatpush1.bf16.msra.mxu0 0
      %2419 = vmatprep.subr.bf16.mxu0 0
      %2420 = vmatpush1.bf16.msra.mxu0 0
      %2421 = vmatprep.subr.bf16.mxu0 0
      %2422 = vmatpush1.bf16.msra.mxu0 0
      %2423 = vmatprep.subr.bf16.mxu0 0
      %2424 = vmatpush1.bf16.msra.mxu0 0
      %2425 = vmatprep.subr.bf16.mxu0 0
      %2426 = vmatpush1.bf16.msra.mxu0 0
      %2427 = vmatprep.subr.bf16.mxu0 0
      %2428 = vmatpush1.bf16.msra.mxu0 0
      %2429 = vmatprep.subr.bf16.mxu0 0
      %2430 = vmatpush1.bf16.msra.mxu0 0
      %2431 = vmatprep.mubr.bf16.mxu0 0
      %2432 = vmatmul.mubr.bf16.gmra.mrb[0].mxu0 %v2379
      %v2433 = vpop.f32.mrb[0].mxu0
      %v2434 = vadd.f32 0.0, %v2433
      %v2435 = vpop.f32.mrb[0].mxu0
      %v2436 = vpop.f32.mrb[0].mxu0
      %v2437 = vadd.f32 0.0, %v2436
      %v2438 = vpop.f32.mrb[0].mxu0
      %2439 = vmatprep.mubr.bf16.mxu0 0
      %2440 = vmatmul.mubr.bf16.gmra.mrb[0].mxu0 %v2382
      %v2441 = vpop.f32.mrb[0].mxu0
      %v2442 = vadd.f32 0.0, %v2441
      %v2443 = vpop.f32.mrb[0].mxu0
      %v2444 = vpop.f32.mrb[0].mxu0
      %v2445 = vadd.f32 0.0, %v2444
      %v2446 = vpop.f32.mrb[0].mxu0
      %2447 = vmatprep.mubr.bf16.mxu0 0
      %2448 = vmatmul.mubr.bf16.gmra.mrb[0].mxu0 %v2385
      %v2449 = vpop.f32.mrb[0].mxu0
      %v2450 = vadd.f32 0.0, %v2449
      %v2451 = vpop.f32.mrb[0].mxu0
      %v2452 = vpop.f32.mrb[0].mxu0
      %v2453 = vadd.f32 0.0, %v2452
      %v2454 = vpop.f32.mrb[0].mxu0
      %2455 = vmatprep.mubr.bf16.mxu0 0
      %2456 = vmatmul.mubr.bf16.gmra.mrb[0].mxu0 %v2388
      %v2457 = vpop.f32.mrb[0].mxu0
      %v2458 = vadd.f32 0.0, %v2457
      %v2459 = vpop.f32.mrb[0].mxu0
      %v2460 = vpop.f32.mrb[0].mxu0
      %v2461 = vadd.f32 0.0, %v2460
      %v2462 = vpop.f32.mrb[0].mxu0
      %2463 = vmatprep.mubr.bf16.mxu0 0
      %2464 = vmatmul.mubr.bf16.gmra.mrb[0].mxu0 %v2391
      %v2465 = vpop.f32.mrb[0].mxu0
      %v2466 = vadd.f32 0.0, %v2465
      %v2467 = vpop.f32.mrb[0].mxu0
      %v2468 = vpop.f32.mrb[0].mxu0
      %v2469 = vadd.f32 0.0, %v2468
      %v2470 = vpop.f32.mrb[0].mxu0
      %2471 = vmatprep.mubr.bf16.mxu0 0
      %2472 = vmatmul.mubr.bf16.gmra.mrb[0].mxu0 %v2394
      %v2473 = vpop.f32.mrb[0].mxu0
      %v2474 = vadd.f32 0.0, %v2473
      %v2475 = vpop.f32.mrb[0].mxu0
      %v2476 = vpop.f32.mrb[0].mxu0
      %v2477 = vadd.f32 0.0, %v2476
      %v2478 = vpop.f32.mrb[0].mxu0
      %2479 = vdwg.mxu0
      %v2480 = vadd.f32 %v2335, %v2434
      %v2481 = vadd.f32 %v2336, %v2437
      %v2482 = vadd.f32 %v2337, %v2442
      %v2483 = vadd.f32 %v2338, %v2445
      %v2484 = vadd.f32 %v2339, %v2450
      %v2485 = vadd.f32 %v2340, %v2453
      %v2486 = vadd.f32 %v2341, %v2458
      %v2487 = vadd.f32 %v2342, %v2461
      %v2488 = vadd.f32 %v2343, %v2466
      %v2489 = vadd.f32 %v2344, %v2469
      %v2490 = vadd.f32 %v2345, %v2474
      %v2491 = vadd.f32 %v2346, %v2477
      %2492 = vst.msk [vmem:[#allocation3] sm:$0xff] %vm418, %v2480
      %2493 = vst.msk [vmem:[#allocation3 + $0x8] sm:$0xff] %vm418, %v2481
      %2494 = vst.msk [vmem:[#allocation3 + $0x10] sm:$0xff] %vm418, %v2482
      %2495 = vst.msk [vmem:[#allocation3 + $0x18] sm:$0xff] %vm418, %v2483
      %2496 = vst.msk [vmem:[#allocation3 + $0x20] sm:$0xff] %vm418, %v2484
      %2497 = vst.msk [vmem:[#allocation3 + $0x28] sm:$0xff] %vm418, %v2485
      %2498 = vst.msk [vmem:[#allocation3 + $0x30] sm:$0xff] %vm418, %v2486
      %2499 = vst.msk [vmem:[#allocation3 + $0x38] sm:$0xff] %vm418, %v2487
      %2500 = vst.msk [vmem:[#allocation3 + $0x40] sm:$0xff] %vm418, %v2488
      %2501 = vst.msk [vmem:[#allocation3 + $0x48] sm:$0xff] %vm418, %v2489
      %2502 = vst.msk [vmem:[#allocation3 + $0x50] sm:$0xff] %vm418, %v2490
      %2503 = vst.msk [vmem:[#allocation3 + $0x58] sm:$0xff] %vm418, %v2491
      %v2504 = vld [vmem:[%s298 + $0xc] sm:$0xf]
      %v2505 = vld [vmem:[%s298 + $0x10] sm:$0xf]
      %v2506 = vld [vmem:[%s298 + $0x14] sm:$0xf]
      %v2507 = vld [vmem:[%s298 + $0x18] sm:$0xf]
      %v2508 = vld [vmem:[%s298 + $0x1c] sm:$0xf]
      %v2509 = vld [vmem:[%s298 + $0x20] sm:$0xf]
      %v2510 = vld [vmem:[%s298 + $0x24] sm:$0xf]
      %v2511 = vld [vmem:[%s298 + $0x28] sm:$0xf]
      %v2512 = vld [vmem:[%s298 + $0x2c] sm:$0xf]
      %v2513 = vld [vmem:[%s298 + $0x30] sm:$0xf]
      %v2514 = vld [vmem:[%s298 + $0x34] sm:$0xf]
      %v2515 = vld [vmem:[%s298 + $0x38] sm:$0xf]
      %v2516 = vld [vmem:[#allocation3] sm:$0xff]
      %v2517 = vld [vmem:[#allocation3 + $0x8] sm:$0xff]
      %v2518 = vld [vmem:[#allocation3 + $0x10] sm:$0xff]
      %v2519 = vld [vmem:[#allocation3 + $0x18] sm:$0xff]
      %v2520 = vld [vmem:[#allocation3 + $0x20] sm:$0xff]
      %v2521 = vld [vmem:[#allocation3 + $0x28] sm:$0xff]
      %v2522 = vld [vmem:[#allocation3 + $0x30] sm:$0xff]
      %v2523 = vld [vmem:[#allocation3 + $0x38] sm:$0xff]
      %v2524 = vld [vmem:[#allocation3 + $0x40] sm:$0xff]
      %v2525 = vld [vmem:[#allocation3 + $0x48] sm:$0xff]
      %v2526 = vld [vmem:[#allocation3 + $0x50] sm:$0xff]
      %v2527 = vld [vmem:[#allocation3 + $0x58] sm:$0xff]
      %v2528 = vld [vmem:[%s304 + $0x28] sm:$0xf]
      %v2541 = vunpack.c.l.b16 %v2504
      %v2542 = vunpack.c.l.b16 %v2505
      %v2543 = vunpack.c.l.b16 %v2506
      %v2544 = vunpack.c.l.b16 %v2507
      %v2545 = vunpack.c.l.b16 %v2508
      %v2546 = vunpack.c.l.b16 %v2509
      %v2547 = vunpack.c.l.b16 %v2510
      %v2548 = vunpack.c.l.b16 %v2511
      %v2549 = vunpack.c.l.b16 %v2512
      %v2550 = vunpack.c.l.b16 %v2513
      %v2551 = vunpack.c.l.b16 %v2514
      %v2552 = vunpack.c.l.b16 %v2515
      %v2553 = vpack.c.b16 %v2542, %v2541
      %v2554 = vpack.c.b16 %v2544, %v2543
      %v2555 = vpack.c.b16 %v2546, %v2545
      %v2556 = vpack.c.b16 %v2548, %v2547
      %v2557 = vpack.c.b16 %v2550, %v2549
      %v2558 = vpack.c.b16 %v2552, %v2551
      %v2560 = vsel %vm418, %v2553, 0
      %v2563 = vsel %vm418, %v2554, 0
      %v2566 = vsel %vm418, %v2555, 0
      %v2569 = vsel %vm418, %v2556, 0
      %v2572 = vsel %vm418, %v2557, 0
      %v2575 = vsel %vm418, %v2558, 0
      %v2578 = vsel %vm437, %v2528, 0
      %2580 = vmatprep.subr.bf16.mxu0 0
      %2581 = vmatpush1.bf16.msra.mxu0 %v2578
      %2582 = vmatprep.subr.bf16.mxu0 0
      %2583 = vmatpush1.bf16.msra.mxu0 0
      %2584 = vmatprep.subr.bf16.mxu0 0
      %2585 = vmatpush1.bf16.msra.mxu0 0
      %2586 = vmatprep.subr.bf16.mxu0 0
      %2587 = vmatpush1.bf16.msra.mxu0 0
      %2588 = vmatprep.subr.bf16.mxu0 0
      %2589 = vmatpush1.bf16.msra.mxu0 0
      %2590 = vmatprep.subr.bf16.mxu0 0
      %2591 = vmatpush1.bf16.msra.mxu0 0
      %2592 = vmatprep.subr.bf16.mxu0 0
      %2593 = vmatpush1.bf16.msra.mxu0 0
      %2594 = vmatprep.subr.bf16.mxu0 0
      %2595 = vmatpush1.bf16.msra.mxu0 0
      %2596 = vmatprep.subr.bf16.mxu0 0
      %2597 = vmatpush1.bf16.msra.mxu0 0
      %2598 = vmatprep.subr.bf16.mxu0 0
      %2599 = vmatpush1.bf16.msra.mxu0 0
      %2600 = vmatprep.subr.bf16.mxu0 0
      %2601 = vmatpush1.bf16.msra.mxu0 0
      %2602 = vmatprep.subr.bf16.mxu0 0
      %2603 = vmatpush1.bf16.msra.mxu0 0
      %2604 = vmatprep.subr.bf16.mxu0 0
      %2605 = vmatpush1.bf16.msra.mxu0 0
      %2606 = vmatprep.subr.bf16.mxu0 0
      %2607 = vmatpush1.bf16.msra.mxu0 0
      %2608 = vmatprep.subr.bf16.mxu0 0
      %2609 = vmatpush1.bf16.msra.mxu0 0
      %2610 = vmatprep.subr.bf16.mxu0 0
      %2611 = vmatpush1.bf16.msra.mxu0 0
      %2612 = vmatprep.mubr.bf16.mxu0 0
      %2613 = vmatmul.mubr.bf16.gmra.mrb[0].mxu0 %v2560
      %v2614 = vpop.f32.mrb[0].mxu0
      %v2615 = vadd.f32 0.0, %v2614
      %v2616 = vpop.f32.mrb[0].mxu0
      %v2617 = vpop.f32.mrb[0].mxu0
      %v2618 = vadd.f32 0.0, %v2617
      %v2619 = vpop.f32.mrb[0].mxu0
      %2620 = vmatprep.mubr.bf16.mxu0 0
      %2621 = vmatmul.mubr.bf16.gmra.mrb[0].mxu0 %v2563
      %v2622 = vpop.f32.mrb[0].mxu0
      %v2623 = vadd.f32 0.0, %v2622
      %v2624 = vpop.f32.mrb[0].mxu0
      %v2625 = vpop.f32.mrb[0].mxu0
      %v2626 = vadd.f32 0.0, %v2625
      %v2627 = vpop.f32.mrb[0].mxu0
      %2628 = vmatprep.mubr.bf16.mxu0 0
      %2629 = vmatmul.mubr.bf16.gmra.mrb[0].mxu0 %v2566
      %v2630 = vpop.f32.mrb[0].mxu0
      %v2631 = vadd.f32 0.0, %v2630
      %v2632 = vpop.f32.mrb[0].mxu0
      %v2633 = vpop.f32.mrb[0].mxu0
      %v2634 = vadd.f32 0.0, %v2633
      %v2635 = vpop.f32.mrb[0].mxu0
      %2636 = vmatprep.mubr.bf16.mxu0 0
      %2637 = vmatmul.mubr.bf16.gmra.mrb[0].mxu0 %v2569
      %v2638 = vpop.f32.mrb[0].mxu0
      %v2639 = vadd.f32 0.0, %v2638
      %v2640 = vpop.f32.mrb[0].mxu0
      %v2641 = vpop.f32.mrb[0].mxu0
      %v2642 = vadd.f32 0.0, %v2641
      %v2643 = vpop.f32.mrb[0].mxu0
      %2644 = vmatprep.mubr.bf16.mxu0 0
      %2645 = vmatmul.mubr.bf16.gmra.mrb[0].mxu0 %v2572
      %v2646 = vpop.f32.mrb[0].mxu0
      %v2647 = vadd.f32 0.0, %v2646
      %v2648 = vpop.f32.mrb[0].mxu0
      %v2649 = vpop.f32.mrb[0].mxu0
      %v2650 = vadd.f32 0.0, %v2649
      %v2651 = vpop.f32.mrb[0].mxu0
      %2652 = vmatprep.mubr.bf16.mxu0 0
      %2653 = vmatmul.mubr.bf16.gmra.mrb[0].mxu0 %v2575
      %v2654 = vpop.f32.mrb[0].mxu0
      %v2655 = vadd.f32 0.0, %v2654
      %v2656 = vpop.f32.mrb[0].mxu0
      %v2657 = vpop.f32.mrb[0].mxu0
      %v2658 = vadd.f32 0.0, %v2657
      %v2659 = vpop.f32.mrb[0].mxu0
      %2660 = vdwg.mxu0
      %v2661 = vadd.f32 %v2516, %v2615
      %v2662 = vadd.f32 %v2517, %v2618
      %v2663 = vadd.f32 %v2518, %v2623
      %v2664 = vadd.f32 %v2519, %v2626
      %v2665 = vadd.f32 %v2520, %v2631
      %v2666 = vadd.f32 %v2521, %v2634
      %v2667 = vadd.f32 %v2522, %v2639
      %v2668 = vadd.f32 %v2523, %v2642
      %v2669 = vadd.f32 %v2524, %v2647
      %v2670 = vadd.f32 %v2525, %v2650
      %v2671 = vadd.f32 %v2526, %v2655
      %v2672 = vadd.f32 %v2527, %v2658
      %2673 = vst.msk [vmem:[#allocation3] sm:$0xff] %vm418, %v2661
      %2674 = vst.msk [vmem:[#allocation3 + $0x8] sm:$0xff] %vm418, %v2662
      %2675 = vst.msk [vmem:[#allocation3 + $0x10] sm:$0xff] %vm418, %v2663
      %2676 = vst.msk [vmem:[#allocation3 + $0x18] sm:$0xff] %vm418, %v2664
      %2677 = vst.msk [vmem:[#allocation3 + $0x20] sm:$0xff] %vm418, %v2665
      %2678 = vst.msk [vmem:[#allocation3 + $0x28] sm:$0xff] %vm418, %v2666
      %2679 = vst.msk [vmem:[#allocation3 + $0x30] sm:$0xff] %vm418, %v2667
      %2680 = vst.msk [vmem:[#allocation3 + $0x38] sm:$0xff] %vm418, %v2668
      %2681 = vst.msk [vmem:[#allocation3 + $0x40] sm:$0xff] %vm418, %v2669
      %2682 = vst.msk [vmem:[#allocation3 + $0x48] sm:$0xff] %vm418, %v2670
      %2683 = vst.msk [vmem:[#allocation3 + $0x50] sm:$0xff] %vm418, %v2671
      %2684 = vst.msk [vmem:[#allocation3 + $0x58] sm:$0xff] %vm418, %v2672
      %v2685 = vld [vmem:[%s298 + $0xc] sm:$0xf]
      %v2686 = vld [vmem:[%s298 + $0x10] sm:$0xf]
      %v2687 = vld [vmem:[%s298 + $0x14] sm:$0xf]
      %v2688 = vld [vmem:[%s298 + $0x18] sm:$0xf]
      %v2689 = vld [vmem:[%s298 + $0x1c] sm:$0xf]
      %v2690 = vld [vmem:[%s298 + $0x20] sm:$0xf]
      %v2691 = vld [vmem:[%s298 + $0x24] sm:$0xf]
      %v2692 = vld [vmem:[%s298 + $0x28] sm:$0xf]
      %v2693 = vld [vmem:[%s298 + $0x2c] sm:$0xf]
      %v2694 = vld [vmem:[%s298 + $0x30] sm:$0xf]
      %v2695 = vld [vmem:[%s298 + $0x34] sm:$0xf]
      %v2696 = vld [vmem:[%s298 + $0x38] sm:$0xf]
      %v2697 = vld [vmem:[%s298 + $0x3c] sm:$0x1]
      %v2698 = vld [vmem:[#allocation3] sm:$0xff]
      %v2699 = vld [vmem:[#allocation3 + $0x8] sm:$0xff]
      %v2700 = vld [vmem:[#allocation3 + $0x10] sm:$0xff]
      %v2701 = vld [vmem:[#allocation3 + $0x18] sm:$0xff]
      %v2702 = vld [vmem:[#allocation3 + $0x20] sm:$0xff]
      %v2703 = vld [vmem:[#allocation3 + $0x28] sm:$0xff]
      %v2704 = vld [vmem:[#allocation3 + $0x30] sm:$0xff]
      %v2705 = vld [vmem:[#allocation3 + $0x38] sm:$0xff]
      %v2706 = vld [vmem:[#allocation3 + $0x40] sm:$0xff]
      %v2707 = vld [vmem:[#allocation3 + $0x48] sm:$0xff]
      %v2708 = vld [vmem:[#allocation3 + $0x50] sm:$0xff]
      %v2709 = vld [vmem:[#allocation3 + $0x58] sm:$0xff]
      %v2710 = vld [vmem:[%s304 + $0x2c] sm:$0xf]
      %v2724 = vunpack.c.l.b16 %v2685
      %v2725 = vunpack.c.l.b16 %v2686
      %v2726 = vunpack.c.l.b16 %v2687
      %v2727 = vunpack.c.l.b16 %v2688
      %v2728 = vunpack.c.l.b16 %v2689
      %v2729 = vunpack.c.l.b16 %v2690
      %v2730 = vunpack.c.l.b16 %v2691
      %v2731 = vunpack.c.l.b16 %v2692
      %v2732 = vunpack.c.l.b16 %v2693
      %v2733 = vunpack.c.l.b16 %v2694
      %v2734 = vunpack.c.l.b16 %v2695
      %v2735 = vunpack.c.l.b16 %v2696
      %v2736 = vunpack.c.l.b16 %v2697
      %v2737 = vpack.c.b16 %v2725, %v2724
      %v2738 = vpack.c.b16 %v2727, %v2726
      %v2739 = vpack.c.b16 %v2729, %v2728
      %v2740 = vpack.c.b16 %v2731, %v2730
      %v2741 = vpack.c.b16 %v2733, %v2732
      %v2742 = vpack.c.b16 %v2735, %v2734
      %v2743 = vpack.c.b16 %v2736, %v2736
      %v2745 = vshrl.u32 %v2737, 16
      %v2747 = vshll.u32 %v2737, 16
      %v2749 = vrot.slane %v2747, 1
      %v2750 = vor.u32 %v2745, %v2749
      %v2752 = vshll.u32 %v2738, 16
      %v2754 = vrot.slane %v2752, 1
      %v2755 = vsel %vm605, %v2750, %v2754
      %v2756 = vshrl.u32 %v2738, 16
      %v2758 = vor.u32 %v2756, %v2754
      %v2760 = vshll.u32 %v2739, 16
      %v2762 = vrot.slane %v2760, 1
      %v2763 = vsel %vm605, %v2758, %v2762
      %v2764 = vshrl.u32 %v2739, 16
      %v2766 = vor.u32 %v2764, %v2762
      %v2768 = vshll.u32 %v2740, 16
      %v2770 = vrot.slane %v2768, 1
      %v2771 = vsel %vm605, %v2766, %v2770
      %v2772 = vshrl.u32 %v2740, 16
      %v2774 = vor.u32 %v2772, %v2770
      %v2776 = vshll.u32 %v2741, 16
      %v2778 = vrot.slane %v2776, 1
      %v2779 = vsel %vm605, %v2774, %v2778
      %v2780 = vshrl.u32 %v2741, 16
      %v2782 = vor.u32 %v2780, %v2778
      %v2784 = vshll.u32 %v2742, 16
      %v2786 = vrot.slane %v2784, 1
      %v2787 = vsel %vm605, %v2782, %v2786
      %v2788 = vshrl.u32 %v2742, 16
      %v2790 = vor.u32 %v2788, %v2786
      %v2792 = vshll.u32 %v2743, 16
      %v2794 = vrot.slane %v2792, 1
      %v2795 = vsel %vm605, %v2790, %v2794
      %v2797 = vsel %vm418, %v2755, 0
      %v2800 = vsel %vm418, %v2763, 0
      %v2803 = vsel %vm418, %v2771, 0
      %v2806 = vsel %vm418, %v2779, 0
      %v2809 = vsel %vm418, %v2787, 0
      %v2812 = vsel %vm418, %v2795, 0
      %v2815 = vsel %vm437, %v2710, 0
      %2817 = vmatprep.subr.bf16.mxu0 0
      %2818 = vmatpush1.bf16.msra.mxu0 %v2815
      %2819 = vmatprep.subr.bf16.mxu0 0
      %2820 = vmatpush1.bf16.msra.mxu0 0
      %2821 = vmatprep.subr.bf16.mxu0 0
      %2822 = vmatpush1.bf16.msra.mxu0 0
      %2823 = vmatprep.subr.bf16.mxu0 0
      %2824 = vmatpush1.bf16.msra.mxu0 0
      %2825 = vmatprep.subr.bf16.mxu0 0
      %2826 = vmatpush1.bf16.msra.mxu0 0
      %2827 = vmatprep.subr.bf16.mxu0 0
      %2828 = vmatpush1.bf16.msra.mxu0 0
      %2829 = vmatprep.subr.bf16.mxu0 0
      %2830 = vmatpush1.bf16.msra.mxu0 0
      %2831 = vmatprep.subr.bf16.mxu0 0
      %2832 = vmatpush1.bf16.msra.mxu0 0
      %2833 = vmatprep.subr.bf16.mxu0 0
      %2834 = vmatpush1.bf16.msra.mxu0 0
      %2835 = vmatprep.subr.bf16.mxu0 0
      %2836 = vmatpush1.bf16.msra.mxu0 0
      %2837 = vmatprep.subr.bf16.mxu0 0
      %2838 = vmatpush1.bf16.msra.mxu0 0
      %2839 = vmatprep.subr.bf16.mxu0 0
      %2840 = vmatpush1.bf16.msra.mxu0 0
      %2841 = vmatprep.subr.bf16.mxu0 0
      %2842 = vmatpush1.bf16.msra.mxu0 0
      %2843 = vmatprep.subr.bf16.mxu0 0
      %2844 = vmatpush1.bf16.msra.mxu0 0
      %2845 = vmatprep.subr.bf16.mxu0 0
      %2846 = vmatpush1.bf16.msra.mxu0 0
      %2847 = vmatprep.subr.bf16.mxu0 0
      %2848 = vmatpush1.bf16.msra.mxu0 0
      %2849 = vmatprep.mubr.bf16.mxu0 0
      %2850 = vmatmul.mubr.bf16.gmra.mrb[0].mxu0 %v2797
      %v2851 = vpop.f32.mrb[0].mxu0
      %v2852 = vadd.f32 0.0, %v2851
      %v2853 = vpop.f32.mrb[0].mxu0
      %v2854 = vpop.f32.mrb[0].mxu0
      %v2855 = vadd.f32 0.0, %v2854
      %v2856 = vpop.f32.mrb[0].mxu0
      %2857 = vmatprep.mubr.bf16.mxu0 0
      %2858 = vmatmul.mubr.bf16.gmra.mrb[0].mxu0 %v2800
      %v2859 = vpop.f32.mrb[0].mxu0
      %v2860 = vadd.f32 0.0, %v2859
      %v2861 = vpop.f32.mrb[0].mxu0
      %v2862 = vpop.f32.mrb[0].mxu0
      %v2863 = vadd.f32 0.0, %v2862
      %v2864 = vpop.f32.mrb[0].mxu0
      %2865 = vmatprep.mubr.bf16.mxu0 0
      %2866 = vmatmul.mubr.bf16.gmra.mrb[0].mxu0 %v2803
      %v2867 = vpop.f32.mrb[0].mxu0
      %v2868 = vadd.f32 0.0, %v2867
      %v2869 = vpop.f32.mrb[0].mxu0
      %v2870 = vpop.f32.mrb[0].mxu0
      %v2871 = vadd.f32 0.0, %v2870
      %v2872 = vpop.f32.mrb[0].mxu0
      %2873 = vmatprep.mubr.bf16.mxu0 0
      %2874 = vmatmul.mubr.bf16.gmra.mrb[0].mxu0 %v2806
      %v2875 = vpop.f32.mrb[0].mxu0
      %v2876 = vadd.f32 0.0, %v2875
      %v2877 = vpop.f32.mrb[0].mxu0
      %v2878 = vpop.f32.mrb[0].mxu0
      %v2879 = vadd.f32 0.0, %v2878
      %v2880 = vpop.f32.mrb[0].mxu0
      %2881 = vmatprep.mubr.bf16.mxu0 0
      %2882 = vmatmul.mubr.bf16.gmra.mrb[0].mxu0 %v2809
      %v2883 = vpop.f32.mrb[0].mxu0
      %v2884 = vadd.f32 0.0, %v2883
      %v2885 = vpop.f32.mrb[0].mxu0
      %v2886 = vpop.f32.mrb[0].mxu0
      %v2887 = vadd.f32 0.0, %v2886
      %v2888 = vpop.f32.mrb[0].mxu0
      %2889 = vmatprep.mubr.bf16.mxu0 0
      %2890 = vmatmul.mubr.bf16.gmra.mrb[0].mxu0 %v2812
      %v2891 = vpop.f32.mrb[0].mxu0
      %v2892 = vadd.f32 0.0, %v2891
      %v2893 = vpop.f32.mrb[0].mxu0
      %v2894 = vpop.f32.mrb[0].mxu0
      %v2895 = vadd.f32 0.0, %v2894
      %v2896 = vpop.f32.mrb[0].mxu0
      %2897 = vdwg.mxu0
      %v2898 = vadd.f32 %v2698, %v2852
      %v2899 = vadd.f32 %v2699, %v2855
      %v2900 = vadd.f32 %v2700, %v2860
      %v2901 = vadd.f32 %v2701, %v2863
      %v2902 = vadd.f32 %v2702, %v2868
      %v2903 = vadd.f32 %v2703, %v2871
      %v2904 = vadd.f32 %v2704, %v2876
      %v2905 = vadd.f32 %v2705, %v2879
      %v2906 = vadd.f32 %v2706, %v2884
      %v2907 = vadd.f32 %v2707, %v2887
      %v2908 = vadd.f32 %v2708, %v2892
      %v2909 = vadd.f32 %v2709, %v2895
      %2910 = vst.msk [vmem:[#allocation3] sm:$0xff] %vm418, %v2898
      %2911 = vst.msk [vmem:[#allocation3 + $0x8] sm:$0xff] %vm418, %v2899
      %2912 = vst.msk [vmem:[#allocation3 + $0x10] sm:$0xff] %vm418, %v2900
      %2913 = vst.msk [vmem:[#allocation3 + $0x18] sm:$0xff] %vm418, %v2901
      %2914 = vst.msk [vmem:[#allocation3 + $0x20] sm:$0xff] %vm418, %v2902
      %2915 = vst.msk [vmem:[#allocation3 + $0x28] sm:$0xff] %vm418, %v2903
      %2916 = vst.msk [vmem:[#allocation3 + $0x30] sm:$0xff] %vm418, %v2904
      %2917 = vst.msk [vmem:[#allocation3 + $0x38] sm:$0xff] %vm418, %v2905
      %2918 = vst.msk [vmem:[#allocation3 + $0x40] sm:$0xff] %vm418, %v2906
      %2919 = vst.msk [vmem:[#allocation3 + $0x48] sm:$0xff] %vm418, %v2907
      %2920 = vst.msk [vmem:[#allocation3 + $0x50] sm:$0xff] %vm418, %v2908
      %2921 = vst.msk [vmem:[#allocation3 + $0x58] sm:$0xff] %vm418, %v2909
      %v2922 = vld [vmem:[%s298 + $0xc] sm:$0xe]
      %v2923 = vld [vmem:[%s298 + $0x10] sm:$0xf]
      %v2924 = vld [vmem:[%s298 + $0x14] sm:$0xf]
      %v2925 = vld [vmem:[%s298 + $0x18] sm:$0xf]
      %v2926 = vld [vmem:[%s298 + $0x1c] sm:$0xf]
      %v2927 = vld [vmem:[%s298 + $0x20] sm:$0xf]
      %v2928 = vld [vmem:[%s298 + $0x24] sm:$0xf]
      %v2929 = vld [vmem:[%s298 + $0x28] sm:$0xf]
      %v2930 = vld [vmem:[%s298 + $0x2c] sm:$0xf]
      %v2931 = vld [vmem:[%s298 + $0x30] sm:$0xf]
      %v2932 = vld [vmem:[%s298 + $0x34] sm:$0xf]
      %v2933 = vld [vmem:[%s298 + $0x38] sm:$0xf]
      %v2934 = vld [vmem:[%s298 + $0x3c] sm:$0x1]
      %v2935 = vld [vmem:[#allocation3] sm:$0xff]
      %v2936 = vld [vmem:[#allocation3 + $0x8] sm:$0xff]
      %v2937 = vld [vmem:[#allocation3 + $0x10] sm:$0xff]
      %v2938 = vld [vmem:[#allocation3 + $0x18] sm:$0xff]
      %v2939 = vld [vmem:[#allocation3 + $0x20] sm:$0xff]
      %v2940 = vld [vmem:[#allocation3 + $0x28] sm:$0xff]
      %v2941 = vld [vmem:[#allocation3 + $0x30] sm:$0xff]
      %v2942 = vld [vmem:[#allocation3 + $0x38] sm:$0xff]
      %v2943 = vld [vmem:[#allocation3 + $0x40] sm:$0xff]
      %v2944 = vld [vmem:[#allocation3 + $0x48] sm:$0xff]
      %v2945 = vld [vmem:[#allocation3 + $0x50] sm:$0xff]
      %v2946 = vld [vmem:[#allocation3 + $0x58] sm:$0xff]
      %v2947 = vld [vmem:[%s304 + $0x30] sm:$0xf]
      %v2961 = vunpack.c.l.b16 %v2922
      %v2962 = vunpack.c.l.b16 %v2923
      %v2963 = vunpack.c.l.b16 %v2924
      %v2964 = vunpack.c.l.b16 %v2925
      %v2965 = vunpack.c.l.b16 %v2926
      %v2966 = vunpack.c.l.b16 %v2927
      %v2967 = vunpack.c.l.b16 %v2928
      %v2968 = vunpack.c.l.b16 %v2929
      %v2969 = vunpack.c.l.b16 %v2930
      %v2970 = vunpack.c.l.b16 %v2931
      %v2971 = vunpack.c.l.b16 %v2932
      %v2972 = vunpack.c.l.b16 %v2933
      %v2973 = vunpack.c.l.b16 %v2934
      %v2974 = vpack.c.b16 %v2962, %v2961
      %v2975 = vpack.c.b16 %v2964, %v2963
      %v2976 = vpack.c.b16 %v2966, %v2965
      %v2977 = vpack.c.b16 %v2968, %v2967
      %v2978 = vpack.c.b16 %v2970, %v2969
      %v2979 = vpack.c.b16 %v2972, %v2971
      %v2980 = vpack.c.b16 %v2973, %v2973
      %v2981 = vrot.slane %v2974, 1
      %v2982 = vrot.slane %v2975, 1
      %v2983 = vsel %vm843, %v2981, %v2982
      %v2984 = vrot.slane %v2976, 1
      %v2985 = vsel %vm843, %v2982, %v2984
      %v2986 = vrot.slane %v2977, 1
      %v2987 = vsel %vm843, %v2984, %v2986
      %v2988 = vrot.slane %v2978, 1
      %v2989 = vsel %vm843, %v2986, %v2988
      %v2990 = vrot.slane %v2979, 1
      %v2991 = vsel %vm843, %v2988, %v2990
      %v2992 = vrot.slane %v2980, 1
      %v2993 = vsel %vm843, %v2990, %v2992
      %v2995 = vsel %vm418, %v2983, 0
      %v2998 = vsel %vm418, %v2985, 0
      %v3001 = vsel %vm418, %v2987, 0
      %v3004 = vsel %vm418, %v2989, 0
      %v3007 = vsel %vm418, %v2991, 0
      %v3010 = vsel %vm418, %v2993, 0
      %v3013 = vsel %vm437, %v2947, 0
      %3015 = vmatprep.subr.bf16.mxu0 0
      %3016 = vmatpush1.bf16.msra.mxu0 %v3013
      %3017 = vmatprep.subr.bf16.mxu0 0
      %3018 = vmatpush1.bf16.msra.mxu0 0
      %3019 = vmatprep.subr.bf16.mxu0 0
      %3020 = vmatpush1.bf16.msra.mxu0 0
      %3021 = vmatprep.subr.bf16.mxu0 0
      %3022 = vmatpush1.bf16.msra.mxu0 0
      %3023 = vmatprep.subr.bf16.mxu0 0
      %3024 = vmatpush1.bf16.msra.mxu0 0
      %3025 = vmatprep.subr.bf16.mxu0 0
      %3026 = vmatpush1.bf16.msra.mxu0 0
      %3027 = vmatprep.subr.bf16.mxu0 0
      %3028 = vmatpush1.bf16.msra.mxu0 0
      %3029 = vmatprep.subr.bf16.mxu0 0
      %3030 = vmatpush1.bf16.msra.mxu0 0
      %3031 = vmatprep.subr.bf16.mxu0 0
      %3032 = vmatpush1.bf16.msra.mxu0 0
      %3033 = vmatprep.subr.bf16.mxu0 0
      %3034 = vmatpush1.bf16.msra.mxu0 0
      %3035 = vmatprep.subr.bf16.mxu0 0
      %3036 = vmatpush1.bf16.msra.mxu0 0
      %3037 = vmatprep.subr.bf16.mxu0 0
      %3038 = vmatpush1.bf16.msra.mxu0 0
      %3039 = vmatprep.subr.bf16.mxu0 0
      %3040 = vmatpush1.bf16.msra.mxu0 0
      %3041 = vmatprep.subr.bf16.mxu0 0
      %3042 = vmatpush1.bf16.msra.mxu0 0
      %3043 = vmatprep.subr.bf16.mxu0 0
      %3044 = vmatpush1.bf16.msra.mxu0 0
      %3045 = vmatprep.subr.bf16.mxu0 0
      %3046 = vmatpush1.bf16.msra.mxu0 0
      %3047 = vmatprep.mubr.bf16.mxu0 0
      %3048 = vmatmul.mubr.bf16.gmra.mrb[0].mxu0 %v2995
      %v3049 = vpop.f32.mrb[0].mxu0
      %v3050 = vadd.f32 0.0, %v3049
      %v3051 = vpop.f32.mrb[0].mxu0
      %v3052 = vpop.f32.mrb[0].mxu0
      %v3053 = vadd.f32 0.0, %v3052
      %v3054 = vpop.f32.mrb[0].mxu0
      %3055 = vmatprep.mubr.bf16.mxu0 0
      %3056 = vmatmul.mubr.bf16.gmra.mrb[0].mxu0 %v2998
      %v3057 = vpop.f32.mrb[0].mxu0
      %v3058 = vadd.f32 0.0, %v3057
      %v3059 = vpop.f32.mrb[0].mxu0
      %v3060 = vpop.f32.mrb[0].mxu0
      %v3061 = vadd.f32 0.0, %v3060
      %v3062 = vpop.f32.mrb[0].mxu0
      %3063 = vmatprep.mubr.bf16.mxu0 0
      %3064 = vmatmul.mubr.bf16.gmra.mrb[0].mxu0 %v3001
      %v3065 = vpop.f32.mrb[0].mxu0
      %v3066 = vadd.f32 0.0, %v3065
      %v3067 = vpop.f32.mrb[0].mxu0
      %v3068 = vpop.f32.mrb[0].mxu0
      %v3069 = vadd.f32 0.0, %v3068
      %v3070 = vpop.f32.mrb[0].mxu0
      %3071 = vmatprep.mubr.bf16.mxu0 0
      %3072 = vmatmul.mubr.bf16.gmra.mrb[0].mxu0 %v3004
      %v3073 = vpop.f32.mrb[0].mxu0
      %v3074 = vadd.f32 0.0, %v3073
      %v3075 = vpop.f32.mrb[0].mxu0
      %v3076 = vpop.f32.mrb[0].mxu0
      %v3077 = vadd.f32 0.0, %v3076
      %v3078 = vpop.f32.mrb[0].mxu0
      %3079 = vmatprep.mubr.bf16.mxu0 0
      %3080 = vmatmul.mubr.bf16.gmra.mrb[0].mxu0 %v3007
      %v3081 = vpop.f32.mrb[0].mxu0
      %v3082 = vadd.f32 0.0, %v3081
      %v3083 = vpop.f32.mrb[0].mxu0
      %v3084 = vpop.f32.mrb[0].mxu0
      %v3085 = vadd.f32 0.0, %v3084
      %v3086 = vpop.f32.mrb[0].mxu0
      %3087 = vmatprep.mubr.bf16.mxu0 0
      %3088 = vmatmul.mubr.bf16.gmra.mrb[0].mxu0 %v3010
      %v3089 = vpop.f32.mrb[0].mxu0
      %v3090 = vadd.f32 0.0, %v3089
      %v3091 = vpop.f32.mrb[0].mxu0
      %v3092 = vpop.f32.mrb[0].mxu0
      %v3093 = vadd.f32 0.0, %v3092
      %v3094 = vpop.f32.mrb[0].mxu0
      %3095 = vdwg.mxu0
      %v3096 = vadd.f32 %v2935, %v3050
      %v3097 = vadd.f32 %v2936, %v3053
      %v3098 = vadd.f32 %v2937, %v3058
      %v3099 = vadd.f32 %v2938, %v3061
      %v3100 = vadd.f32 %v2939, %v3066
      %v3101 = vadd.f32 %v2940, %v3069
      %v3102 = vadd.f32 %v2941, %v3074
      %v3103 = vadd.f32 %v2942, %v3077
      %v3104 = vadd.f32 %v2943, %v3082
      %v3105 = vadd.f32 %v2944, %v3085
      %v3106 = vadd.f32 %v2945, %v3090
      %v3107 = vadd.f32 %v2946, %v3093
      %3108 = vst.msk [vmem:[#allocation3] sm:$0xff] %vm418, %v3096
      %3109 = vst.msk [vmem:[#allocation3 + $0x8] sm:$0xff] %vm418, %v3097
      %3110 = vst.msk [vmem:[#allocation3 + $0x10] sm:$0xff] %vm418, %v3098
      %3111 = vst.msk [vmem:[#allocation3 + $0x18] sm:$0xff] %vm418, %v3099
      %3112 = vst.msk [vmem:[#allocation3 + $0x20] sm:$0xff] %vm418, %v3100
      %3113 = vst.msk [vmem:[#allocation3 + $0x28] sm:$0xff] %vm418, %v3101
      %3114 = vst.msk [vmem:[#allocation3 + $0x30] sm:$0xff] %vm418, %v3102
      %3115 = vst.msk [vmem:[#allocation3 + $0x38] sm:$0xff] %vm418, %v3103
      %3116 = vst.msk [vmem:[#allocation3 + $0x40] sm:$0xff] %vm418, %v3104
      %3117 = vst.msk [vmem:[#allocation3 + $0x48] sm:$0xff] %vm418, %v3105
      %3118 = vst.msk [vmem:[#allocation3 + $0x50] sm:$0xff] %vm418, %v3106
      %3119 = vst.msk [vmem:[#allocation3 + $0x58] sm:$0xff] %vm418, %v3107
      %v3120 = vld [vmem:[%s298 + $0xc] sm:$0xe]
      %v3121 = vld [vmem:[%s298 + $0x10] sm:$0xf]
      %v3122 = vld [vmem:[%s298 + $0x14] sm:$0xf]
      %v3123 = vld [vmem:[%s298 + $0x18] sm:$0xf]
      %v3124 = vld [vmem:[%s298 + $0x1c] sm:$0xf]
      %v3125 = vld [vmem:[%s298 + $0x20] sm:$0xf]
      %v3126 = vld [vmem:[%s298 + $0x24] sm:$0xf]
      %v3127 = vld [vmem:[%s298 + $0x28] sm:$0xf]
      %v3128 = vld [vmem:[%s298 + $0x2c] sm:$0xf]
      %v3129 = vld [vmem:[%s298 + $0x30] sm:$0xf]
      %v3130 = vld [vmem:[%s298 + $0x34] sm:$0xf]
      %v3131 = vld [vmem:[%s298 + $0x38] sm:$0xf]
      %v3132 = vld [vmem:[%s298 + $0x3c] sm:$0x3]
      %v3133 = vld [vmem:[#allocation3] sm:$0xff]
      %v3134 = vld [vmem:[#allocation3 + $0x8] sm:$0xff]
      %v3135 = vld [vmem:[#allocation3 + $0x10] sm:$0xff]
      %v3136 = vld [vmem:[#allocation3 + $0x18] sm:$0xff]
      %v3137 = vld [vmem:[#allocation3 + $0x20] sm:$0xff]
      %v3138 = vld [vmem:[#allocation3 + $0x28] sm:$0xff]
      %v3139 = vld [vmem:[#allocation3 + $0x30] sm:$0xff]
      %v3140 = vld [vmem:[#allocation3 + $0x38] sm:$0xff]
      %v3141 = vld [vmem:[#allocation3 + $0x40] sm:$0xff]
      %v3142 = vld [vmem:[#allocation3 + $0x48] sm:$0xff]
      %v3143 = vld [vmem:[#allocation3 + $0x50] sm:$0xff]
      %v3144 = vld [vmem:[#allocation3 + $0x58] sm:$0xff]
      %v3145 = vld [vmem:[%s304 + $0x34] sm:$0xf]
      %v3159 = vunpack.c.l.b16 %v3120
      %v3160 = vunpack.c.l.b16 %v3121
      %v3161 = vunpack.c.l.b16 %v3122
      %v3162 = vunpack.c.l.b16 %v3123
      %v3163 = vunpack.c.l.b16 %v3124
      %v3164 = vunpack.c.l.b16 %v3125
      %v3165 = vunpack.c.l.b16 %v3126
      %v3166 = vunpack.c.l.b16 %v3127
      %v3167 = vunpack.c.l.b16 %v3128
      %v3168 = vunpack.c.l.b16 %v3129
      %v3169 = vunpack.c.l.b16 %v3130
      %v3170 = vunpack.c.l.b16 %v3131
      %v3171 = vunpack.c.l.b16 %v3132
      %v3172 = vpack.c.b16 %v3160, %v3159
      %v3173 = vpack.c.b16 %v3162, %v3161
      %v3174 = vpack.c.b16 %v3164, %v3163
      %v3175 = vpack.c.b16 %v3166, %v3165
      %v3176 = vpack.c.b16 %v3168, %v3167
      %v3177 = vpack.c.b16 %v3170, %v3169
      %v3178 = vpack.c.b16 %v3171, %v3171
      %v3180 = vshrl.u32 %v3172, 16
      %v3182 = vrot.slane %v3180, 1
      %v3183 = vshll.u32 %v3172, 16
      %v3185 = vrot.slane %v3183, 2
      %v3186 = vor.u32 %v3182, %v3185
      %v3188 = vshrl.u32 %v3173, 16
      %v3190 = vrot.slane %v3188, 1
      %v3191 = vshll.u32 %v3173, 16
      %v3193 = vrot.slane %v3191, 2
      %v3194 = vor.u32 %v3190, %v3193
      %v3195 = vsel %vm1042, %v3186, %v3194
      %v3197 = vshrl.u32 %v3174, 16
      %v3199 = vrot.slane %v3197, 1
      %v3200 = vshll.u32 %v3174, 16
      %v3202 = vrot.slane %v3200, 2
      %v3203 = vor.u32 %v3199, %v3202
      %v3204 = vsel %vm1042, %v3194, %v3203
      %v3206 = vshrl.u32 %v3175, 16
      %v3208 = vrot.slane %v3206, 1
      %v3209 = vshll.u32 %v3175, 16
      %v3211 = vrot.slane %v3209, 2
      %v3212 = vor.u32 %v3208, %v3211
      %v3213 = vsel %vm1042, %v3203, %v3212
      %v3215 = vshrl.u32 %v3176, 16
      %v3217 = vrot.slane %v3215, 1
      %v3218 = vshll.u32 %v3176, 16
      %v3220 = vrot.slane %v3218, 2
      %v3221 = vor.u32 %v3217, %v3220
      %v3222 = vsel %vm1042, %v3212, %v3221
      %v3224 = vshrl.u32 %v3177, 16
      %v3226 = vrot.slane %v3224, 1
      %v3227 = vshll.u32 %v3177, 16
      %v3229 = vrot.slane %v3227, 2
      %v3230 = vor.u32 %v3226, %v3229
      %v3231 = vsel %vm1042, %v3221, %v3230
      %v3233 = vshrl.u32 %v3178, 16
      %v3235 = vrot.slane %v3233, 1
      %v3236 = vshll.u32 %v3178, 16
      %v3238 = vrot.slane %v3236, 2
      %v3239 = vor.u32 %v3235, %v3238
      %v3240 = vsel %vm1042, %v3230, %v3239
      %v3242 = vsel %vm418, %v3195, 0
      %v3245 = vsel %vm418, %v3204, 0
      %v3248 = vsel %vm418, %v3213, 0
      %v3251 = vsel %vm418, %v3222, 0
      %v3254 = vsel %vm418, %v3231, 0
      %v3257 = vsel %vm418, %v3240, 0
      %v3260 = vsel %vm437, %v3145, 0
      %3262 = vmatprep.subr.bf16.mxu0 0
      %3263 = vmatpush1.bf16.msra.mxu0 %v3260
      %3264 = vmatprep.subr.bf16.mxu0 0
      %3265 = vmatpush1.bf16.msra.mxu0 0
      %3266 = vmatprep.subr.bf16.mxu0 0
      %3267 = vmatpush1.bf16.msra.mxu0 0
      %3268 = vmatprep.subr.bf16.mxu0 0
      %3269 = vmatpush1.bf16.msra.mxu0 0
      %3270 = vmatprep.subr.bf16.mxu0 0
      %3271 = vmatpush1.bf16.msra.mxu0 0
      %3272 = vmatprep.subr.bf16.mxu0 0
      %3273 = vmatpush1.bf16.msra.mxu0 0
      %3274 = vmatprep.subr.bf16.mxu0 0
      %3275 = vmatpush1.bf16.msra.mxu0 0
      %3276 = vmatprep.subr.bf16.mxu0 0
      %3277 = vmatpush1.bf16.msra.mxu0 0
      %3278 = vmatprep.subr.bf16.mxu0 0
      %3279 = vmatpush1.bf16.msra.mxu0 0
      %3280 = vmatprep.subr.bf16.mxu0 0
      %3281 = vmatpush1.bf16.msra.mxu0 0
      %3282 = vmatprep.subr.bf16.mxu0 0
      %3283 = vmatpush1.bf16.msra.mxu0 0
      %3284 = vmatprep.subr.bf16.mxu0 0
      %3285 = vmatpush1.bf16.msra.mxu0 0
      %3286 = vmatprep.subr.bf16.mxu0 0
      %3287 = vmatpush1.bf16.msra.mxu0 0
      %3288 = vmatprep.subr.bf16.mxu0 0
      %3289 = vmatpush1.bf16.msra.mxu0 0
      %3290 = vmatprep.subr.bf16.mxu0 0
      %3291 = vmatpush1.bf16.msra.mxu0 0
      %3292 = vmatprep.subr.bf16.mxu0 0
      %3293 = vmatpush1.bf16.msra.mxu0 0
      %3294 = vmatprep.mubr.bf16.mxu0 0
      %3295 = vmatmul.mubr.bf16.gmra.mrb[0].mxu0 %v3242
      %v3296 = vpop.f32.mrb[0].mxu0
      %v3297 = vadd.f32 0.0, %v3296
      %v3298 = vpop.f32.mrb[0].mxu0
      %v3299 = vpop.f32.mrb[0].mxu0
      %v3300 = vadd.f32 0.0, %v3299
      %v3301 = vpop.f32.mrb[0].mxu0
      %3302 = vmatprep.mubr.bf16.mxu0 0
      %3303 = vmatmul.mubr.bf16.gmra.mrb[0].mxu0 %v3245
      %v3304 = vpop.f32.mrb[0].mxu0
      %v3305 = vadd.f32 0.0, %v3304
      %v3306 = vpop.f32.mrb[0].mxu0
      %v3307 = vpop.f32.mrb[0].mxu0
      %v3308 = vadd.f32 0.0, %v3307
      %v3309 = vpop.f32.mrb[0].mxu0
      %3310 = vmatprep.mubr.bf16.mxu0 0
      %3311 = vmatmul.mubr.bf16.gmra.mrb[0].mxu0 %v3248
      %v3312 = vpop.f32.mrb[0].mxu0
      %v3313 = vadd.f32 0.0, %v3312
      %v3314 = vpop.f32.mrb[0].mxu0
      %v3315 = vpop.f32.mrb[0].mxu0
      %v3316 = vadd.f32 0.0, %v3315
      %v3317 = vpop.f32.mrb[0].mxu0
      %3318 = vmatprep.mubr.bf16.mxu0 0
      %3319 = vmatmul.mubr.bf16.gmra.mrb[0].mxu0 %v3251
      %v3320 = vpop.f32.mrb[0].mxu0
      %v3321 = vadd.f32 0.0, %v3320
      %v3322 = vpop.f32.mrb[0].mxu0
      %v3323 = vpop.f32.mrb[0].mxu0
      %v3324 = vadd.f32 0.0, %v3323
      %v3325 = vpop.f32.mrb[0].mxu0
      %3326 = vmatprep.mubr.bf16.mxu0 0
      %3327 = vmatmul.mubr.bf16.gmra.mrb[0].mxu0 %v3254
      %v3328 = vpop.f32.mrb[0].mxu0
      %v3329 = vadd.f32 0.0, %v3328
      %v3330 = vpop.f32.mrb[0].mxu0
      %v3331 = vpop.f32.mrb[0].mxu0
      %v3332 = vadd.f32 0.0, %v3331
      %v3333 = vpop.f32.mrb[0].mxu0
      %3334 = vmatprep.mubr.bf16.mxu0 0
      %3335 = vmatmul.mubr.bf16.gmra.mrb[0].mxu0 %v3257
      %v3336 = vpop.f32.mrb[0].mxu0
      %v3337 = vadd.f32 0.0, %v3336
      %v3338 = vpop.f32.mrb[0].mxu0
      %v3339 = vpop.f32.mrb[0].mxu0
      %v3340 = vadd.f32 0.0, %v3339
      %v3341 = vpop.f32.mrb[0].mxu0
      %3342 = vdwg.mxu0
      %v3343 = vadd.f32 %v3133, %v3297
      %v3344 = vadd.f32 %v3134, %v3300
      %v3345 = vadd.f32 %v3135, %v3305
      %v3346 = vadd.f32 %v3136, %v3308
      %v3347 = vadd.f32 %v3137, %v3313
      %v3348 = vadd.f32 %v3138, %v3316
      %v3349 = vadd.f32 %v3139, %v3321
      %v3350 = vadd.f32 %v3140, %v3324
      %v3351 = vadd.f32 %v3141, %v3329
      %v3352 = vadd.f32 %v3142, %v3332
      %v3353 = vadd.f32 %v3143, %v3337
      %v3354 = vadd.f32 %v3144, %v3340
      %3355 = vst.msk [vmem:[#allocation3] sm:$0xff] %vm418, %v3343
      %3356 = vst.msk [vmem:[#allocation3 + $0x8] sm:$0xff] %vm418, %v3344
      %3357 = vst.msk [vmem:[#allocation3 + $0x10] sm:$0xff] %vm418, %v3345
      %3358 = vst.msk [vmem:[#allocation3 + $0x18] sm:$0xff] %vm418, %v3346
      %3359 = vst.msk [vmem:[#allocation3 + $0x20] sm:$0xff] %vm418, %v3347
      %3360 = vst.msk [vmem:[#allocation3 + $0x28] sm:$0xff] %vm418, %v3348
      %3361 = vst.msk [vmem:[#allocation3 + $0x30] sm:$0xff] %vm418, %v3349
      %3362 = vst.msk [vmem:[#allocation3 + $0x38] sm:$0xff] %vm418, %v3350
      %3363 = vst.msk [vmem:[#allocation3 + $0x40] sm:$0xff] %vm418, %v3351
      %3364 = vst.msk [vmem:[#allocation3 + $0x48] sm:$0xff] %vm418, %v3352
      %3365 = vst.msk [vmem:[#allocation3 + $0x50] sm:$0xff] %vm418, %v3353
      %3366 = vst.msk [vmem:[#allocation3 + $0x58] sm:$0xff] %vm418, %v3354
      %v3367 = vld [vmem:[%s298 + $0xc] sm:$0xc]
      %v3368 = vld [vmem:[%s298 + $0x10] sm:$0xf]
      %v3369 = vld [vmem:[%s298 + $0x14] sm:$0xf]
      %v3370 = vld [vmem:[%s298 + $0x18] sm:$0xf]
      %v3371 = vld [vmem:[%s298 + $0x1c] sm:$0xf]
      %v3372 = vld [vmem:[%s298 + $0x20] sm:$0xf]
      %v3373 = vld [vmem:[%s298 + $0x24] sm:$0xf]
      %v3374 = vld [vmem:[%s298 + $0x28] sm:$0xf]
      %v3375 = vld [vmem:[%s298 + $0x2c] sm:$0xf]
      %v3376 = vld [vmem:[%s298 + $0x30] sm:$0xf]
      %v3377 = vld [vmem:[%s298 + $0x34] sm:$0xf]
      %v3378 = vld [vmem:[%s298 + $0x38] sm:$0xf]
      %v3379 = vld [vmem:[%s298 + $0x3c] sm:$0x3]
      %v3380 = vld [vmem:[#allocation3] sm:$0xff]
      %v3381 = vld [vmem:[#allocation3 + $0x8] sm:$0xff]
      %v3382 = vld [vmem:[#allocation3 + $0x10] sm:$0xff]
      %v3383 = vld [vmem:[#allocation3 + $0x18] sm:$0xff]
      %v3384 = vld [vmem:[#allocation3 + $0x20] sm:$0xff]
      %v3385 = vld [vmem:[#allocation3 + $0x28] sm:$0xff]
      %v3386 = vld [vmem:[#allocation3 + $0x30] sm:$0xff]
      %v3387 = vld [vmem:[#allocation3 + $0x38] sm:$0xff]
      %v3388 = vld [vmem:[#allocation3 + $0x40] sm:$0xff]
      %v3389 = vld [vmem:[#allocation3 + $0x48] sm:$0xff]
      %v3390 = vld [vmem:[#allocation3 + $0x50] sm:$0xff]
      %v3391 = vld [vmem:[#allocation3 + $0x58] sm:$0xff]
      %v3392 = vld [vmem:[%s304 + $0x38] sm:$0xf]
      %v3406 = vunpack.c.l.b16 %v3367
      %v3407 = vunpack.c.l.b16 %v3368
      %v3408 = vunpack.c.l.b16 %v3369
      %v3409 = vunpack.c.l.b16 %v3370
      %v3410 = vunpack.c.l.b16 %v3371
      %v3411 = vunpack.c.l.b16 %v3372
      %v3412 = vunpack.c.l.b16 %v3373
      %v3413 = vunpack.c.l.b16 %v3374
      %v3414 = vunpack.c.l.b16 %v3375
      %v3415 = vunpack.c.l.b16 %v3376
      %v3416 = vunpack.c.l.b16 %v3377
      %v3417 = vunpack.c.l.b16 %v3378
      %v3418 = vunpack.c.l.b16 %v3379
      %v3419 = vpack.c.b16 %v3407, %v3406
      %v3420 = vpack.c.b16 %v3409, %v3408
      %v3421 = vpack.c.b16 %v3411, %v3410
      %v3422 = vpack.c.b16 %v3413, %v3412
      %v3423 = vpack.c.b16 %v3415, %v3414
      %v3424 = vpack.c.b16 %v3417, %v3416
      %v3425 = vpack.c.b16 %v3418, %v3418
      %v3426 = vrot.slane %v3419, 2
      %v3427 = vrot.slane %v3420, 2
      %v3428 = vsel %vm1290, %v3426, %v3427
      %v3429 = vrot.slane %v3421, 2
      %v3430 = vsel %vm1290, %v3427, %v3429
      %v3431 = vrot.slane %v3422, 2
      %v3432 = vsel %vm1290, %v3429, %v3431
      %v3433 = vrot.slane %v3423, 2
      %v3434 = vsel %vm1290, %v3431, %v3433
      %v3435 = vrot.slane %v3424, 2
      %v3436 = vsel %vm1290, %v3433, %v3435
      %v3437 = vrot.slane %v3425, 2
      %v3438 = vsel %vm1290, %v3435, %v3437
      %v3440 = vsel %vm418, %v3428, 0
      %v3443 = vsel %vm418, %v3430, 0
      %v3446 = vsel %vm418, %v3432, 0
      %v3449 = vsel %vm418, %v3434, 0
      %v3452 = vsel %vm418, %v3436, 0
      %v3455 = vsel %vm418, %v3438, 0
      %v3458 = vsel %vm437, %v3392, 0
      %3460 = vmatprep.subr.bf16.mxu0 0
      %3461 = vmatpush1.bf16.msra.mxu0 %v3458
      %3462 = vmatprep.subr.bf16.mxu0 0
      %3463 = vmatpush1.bf16.msra.mxu0 0
      %3464 = vmatprep.subr.bf16.mxu0 0
      %3465 = vmatpush1.bf16.msra.mxu0 0
      %3466 = vmatprep.subr.bf16.mxu0 0
      %3467 = vmatpush1.bf16.msra.mxu0 0
      %3468 = vmatprep.subr.bf16.mxu0 0
      %3469 = vmatpush1.bf16.msra.mxu0 0
      %3470 = vmatprep.subr.bf16.mxu0 0
      %3471 = vmatpush1.bf16.msra.mxu0 0
      %3472 = vmatprep.subr.bf16.mxu0 0
      %3473 = vmatpush1.bf16.msra.mxu0 0
      %3474 = vmatprep.subr.bf16.mxu0 0
      %3475 = vmatpush1.bf16.msra.mxu0 0
      %3476 = vmatprep.subr.bf16.mxu0 0
      %3477 = vmatpush1.bf16.msra.mxu0 0
      %3478 = vmatprep.subr.bf16.mxu0 0
      %3479 = vmatpush1.bf16.msra.mxu0 0
      %3480 = vmatprep.subr.bf16.mxu0 0
      %3481 = vmatpush1.bf16.msra.mxu0 0
      %3482 = vmatprep.subr.bf16.mxu0 0
      %3483 = vmatpush1.bf16.msra.mxu0 0
      %3484 = vmatprep.subr.bf16.mxu0 0
      %3485 = vmatpush1.bf16.msra.mxu0 0
      %3486 = vmatprep.subr.bf16.mxu0 0
      %3487 = vmatpush1.bf16.msra.mxu0 0
      %3488 = vmatprep.subr.bf16.mxu0 0
      %3489 = vmatpush1.bf16.msra.mxu0 0
      %3490 = vmatprep.subr.bf16.mxu0 0
      %3491 = vmatpush1.bf16.msra.mxu0 0
      %3492 = vmatprep.mubr.bf16.mxu0 0
      %3493 = vmatmul.mubr.bf16.gmra.mrb[0].mxu0 %v3440
      %v3494 = vpop.f32.mrb[0].mxu0
      %v3495 = vadd.f32 0.0, %v3494
      %v3496 = vpop.f32.mrb[0].mxu0
      %v3497 = vpop.f32.mrb[0].mxu0
      %v3498 = vadd.f32 0.0, %v3497
      %v3499 = vpop.f32.mrb[0].mxu0
      %3500 = vmatprep.mubr.bf16.mxu0 0
      %3501 = vmatmul.mubr.bf16.gmra.mrb[0].mxu0 %v3443
      %v3502 = vpop.f32.mrb[0].mxu0
      %v3503 = vadd.f32 0.0, %v3502
      %v3504 = vpop.f32.mrb[0].mxu0
      %v3505 = vpop.f32.mrb[0].mxu0
      %v3506 = vadd.f32 0.0, %v3505
      %v3507 = vpop.f32.mrb[0].mxu0
      %3508 = vmatprep.mubr.bf16.mxu0 0
      %3509 = vmatmul.mubr.bf16.gmra.mrb[0].mxu0 %v3446
      %v3510 = vpop.f32.mrb[0].mxu0
      %v3511 = vadd.f32 0.0, %v3510
      %v3512 = vpop.f32.mrb[0].mxu0
      %v3513 = vpop.f32.mrb[0].mxu0
      %v3514 = vadd.f32 0.0, %v3513
      %v3515 = vpop.f32.mrb[0].mxu0
      %3516 = vmatprep.mubr.bf16.mxu0 0
      %3517 = vmatmul.mubr.bf16.gmra.mrb[0].mxu0 %v3449
      %v3518 = vpop.f32.mrb[0].mxu0
      %v3519 = vadd.f32 0.0, %v3518
      %v3520 = vpop.f32.mrb[0].mxu0
      %v3521 = vpop.f32.mrb[0].mxu0
      %v3522 = vadd.f32 0.0, %v3521
      %v3523 = vpop.f32.mrb[0].mxu0
      %3524 = vmatprep.mubr.bf16.mxu0 0
      %3525 = vmatmul.mubr.bf16.gmra.mrb[0].mxu0 %v3452
      %v3526 = vpop.f32.mrb[0].mxu0
      %v3527 = vadd.f32 0.0, %v3526
      %v3528 = vpop.f32.mrb[0].mxu0
      %v3529 = vpop.f32.mrb[0].mxu0
      %v3530 = vadd.f32 0.0, %v3529
      %v3531 = vpop.f32.mrb[0].mxu0
      %3532 = vmatprep.mubr.bf16.mxu0 0
      %3533 = vmatmul.mubr.bf16.gmra.mrb[0].mxu0 %v3455
      %v3534 = vpop.f32.mrb[0].mxu0
      %v3535 = vadd.f32 0.0, %v3534
      %v3536 = vpop.f32.mrb[0].mxu0
      %v3537 = vpop.f32.mrb[0].mxu0
      %v3538 = vadd.f32 0.0, %v3537
      %v3539 = vpop.f32.mrb[0].mxu0
      %3540 = vdwg.mxu0
      %v3541 = vadd.f32 %v3380, %v3495
      %v3542 = vadd.f32 %v3381, %v3498
      %v3543 = vadd.f32 %v3382, %v3503
      %v3544 = vadd.f32 %v3383, %v3506
      %v3545 = vadd.f32 %v3384, %v3511
      %v3546 = vadd.f32 %v3385, %v3514
      %v3547 = vadd.f32 %v3386, %v3519
      %v3548 = vadd.f32 %v3387, %v3522
      %v3549 = vadd.f32 %v3388, %v3527
      %v3550 = vadd.f32 %v3389, %v3530
      %v3551 = vadd.f32 %v3390, %v3535
      %v3552 = vadd.f32 %v3391, %v3538
      %3553 = vst.msk [vmem:[#allocation3] sm:$0xff] %vm418, %v3541
      %3554 = vst.msk [vmem:[#allocation3 + $0x8] sm:$0xff] %vm418, %v3542
      %3555 = vst.msk [vmem:[#allocation3 + $0x10] sm:$0xff] %vm418, %v3543
      %3556 = vst.msk [vmem:[#allocation3 + $0x18] sm:$0xff] %vm418, %v3544
      %3557 = vst.msk [vmem:[#allocation3 + $0x20] sm:$0xff] %vm418, %v3545
      %3558 = vst.msk [vmem:[#allocation3 + $0x28] sm:$0xff] %vm418, %v3546
      %3559 = vst.msk [vmem:[#allocation3 + $0x30] sm:$0xff] %vm418, %v3547
      %3560 = vst.msk [vmem:[#allocation3 + $0x38] sm:$0xff] %vm418, %v3548
      %3561 = vst.msk [vmem:[#allocation3 + $0x40] sm:$0xff] %vm418, %v3549
      %3562 = vst.msk [vmem:[#allocation3 + $0x48] sm:$0xff] %vm418, %v3550
      %3563 = vst.msk [vmem:[#allocation3 + $0x50] sm:$0xff] %vm418, %v3551
      %3564 = vst.msk [vmem:[#allocation3 + $0x58] sm:$0xff] %vm418, %v3552
      %v3565 = vld [vmem:[%s298 + $0x10] sm:$0xc]
      %v3566 = vld [vmem:[%s298 + $0x14] sm:$0xf]
      %v3567 = vld [vmem:[%s298 + $0x18] sm:$0xf]
      %v3568 = vld [vmem:[%s298 + $0x1c] sm:$0xf]
      %v3569 = vld [vmem:[%s298 + $0x20] sm:$0xf]
      %v3570 = vld [vmem:[%s298 + $0x24] sm:$0xf]
      %v3571 = vld [vmem:[%s298 + $0x28] sm:$0xf]
      %v3572 = vld [vmem:[%s298 + $0x2c] sm:$0xf]
      %v3573 = vld [vmem:[%s298 + $0x30] sm:$0xf]
      %v3574 = vld [vmem:[%s298 + $0x34] sm:$0xf]
      %v3575 = vld [vmem:[%s298 + $0x38] sm:$0xf]
      %v3576 = vld [vmem:[%s298 + $0x3c] sm:$0xf]
      %v3577 = vld [vmem:[%s298 + $0x40] sm:$0x3]
      %v3578 = vld [vmem:[#allocation3] sm:$0xff]
      %v3579 = vld [vmem:[#allocation3 + $0x8] sm:$0xff]
      %v3580 = vld [vmem:[#allocation3 + $0x10] sm:$0xff]
      %v3581 = vld [vmem:[#allocation3 + $0x18] sm:$0xff]
      %v3582 = vld [vmem:[#allocation3 + $0x20] sm:$0xff]
      %v3583 = vld [vmem:[#allocation3 + $0x28] sm:$0xff]
      %v3584 = vld [vmem:[#allocation3 + $0x30] sm:$0xff]
      %v3585 = vld [vmem:[#allocation3 + $0x38] sm:$0xff]
      %v3586 = vld [vmem:[#allocation3 + $0x40] sm:$0xff]
      %v3587 = vld [vmem:[#allocation3 + $0x48] sm:$0xff]
      %v3588 = vld [vmem:[#allocation3 + $0x50] sm:$0xff]
      %v3589 = vld [vmem:[#allocation3 + $0x58] sm:$0xff]
      %v3590 = vld [vmem:[%s304 + $0x3c] sm:$0xf]
      %v3604 = vunpack.c.l.b16 %v3565
      %v3605 = vunpack.c.l.b16 %v3566
      %v3606 = vunpack.c.l.b16 %v3567
      %v3607 = vunpack.c.l.b16 %v3568
      %v3608 = vunpack.c.l.b16 %v3569
      %v3609 = vunpack.c.l.b16 %v3570
      %v3610 = vunpack.c.l.b16 %v3571
      %v3611 = vunpack.c.l.b16 %v3572
      %v3612 = vunpack.c.l.b16 %v3573
      %v3613 = vunpack.c.l.b16 %v3574
      %v3614 = vunpack.c.l.b16 %v3575
      %v3615 = vunpack.c.l.b16 %v3576
      %v3616 = vunpack.c.l.b16 %v3577
      %v3617 = vpack.c.b16 %v3605, %v3604
      %v3618 = vpack.c.b16 %v3607, %v3606
      %v3619 = vpack.c.b16 %v3609, %v3608
      %v3620 = vpack.c.b16 %v3611, %v3610
      %v3621 = vpack.c.b16 %v3613, %v3612
      %v3622 = vpack.c.b16 %v3615, %v3614
      %v3623 = vpack.c.b16 %v3616, %v3616
      %v3624 = vrot.slane %v3617, 2
      %v3625 = vrot.slane %v3618, 2
      %v3626 = vsel %vm1290, %v3624, %v3625
      %v3627 = vrot.slane %v3619, 2
      %v3628 = vsel %vm1290, %v3625, %v3627
      %v3629 = vrot.slane %v3620, 2
      %v3630 = vsel %vm1290, %v3627, %v3629
      %v3631 = vrot.slane %v3621, 2
      %v3632 = vsel %vm1290, %v3629, %v3631
      %v3633 = vrot.slane %v3622, 2
      %v3634 = vsel %vm1290, %v3631, %v3633
      %v3635 = vrot.slane %v3623, 2
      %v3636 = vsel %vm1290, %v3633, %v3635
      %v3638 = vsel %vm418, %v3626, 0
      %v3641 = vsel %vm418, %v3628, 0
      %v3644 = vsel %vm418, %v3630, 0
      %v3647 = vsel %vm418, %v3632, 0
      %v3650 = vsel %vm418, %v3634, 0
      %v3653 = vsel %vm418, %v3636, 0
      %v3656 = vsel %vm437, %v3590, 0
      %3658 = vmatprep.subr.bf16.mxu0 0
      %3659 = vmatpush1.bf16.msra.mxu0 %v3656
      %3660 = vmatprep.subr.bf16.mxu0 0
      %3661 = vmatpush1.bf16.msra.mxu0 0
      %3662 = vmatprep.subr.bf16.mxu0 0
      %3663 = vmatpush1.bf16.msra.mxu0 0
      %3664 = vmatprep.subr.bf16.mxu0 0
      %3665 = vmatpush1.bf16.msra.mxu0 0
      %3666 = vmatprep.subr.bf16.mxu0 0
      %3667 = vmatpush1.bf16.msra.mxu0 0
      %3668 = vmatprep.subr.bf16.mxu0 0
      %3669 = vmatpush1.bf16.msra.mxu0 0
      %3670 = vmatprep.subr.bf16.mxu0 0
      %3671 = vmatpush1.bf16.msra.mxu0 0
      %3672 = vmatprep.subr.bf16.mxu0 0
      %3673 = vmatpush1.bf16.msra.mxu0 0
      %3674 = vmatprep.subr.bf16.mxu0 0
      %3675 = vmatpush1.bf16.msra.mxu0 0
      %3676 = vmatprep.subr.bf16.mxu0 0
      %3677 = vmatpush1.bf16.msra.mxu0 0
      %3678 = vmatprep.subr.bf16.mxu0 0
      %3679 = vmatpush1.bf16.msra.mxu0 0
      %3680 = vmatprep.subr.bf16.mxu0 0
      %3681 = vmatpush1.bf16.msra.mxu0 0
      %3682 = vmatprep.subr.bf16.mxu0 0
      %3683 = vmatpush1.bf16.msra.mxu0 0
      %3684 = vmatprep.subr.bf16.mxu0 0
      %3685 = vmatpush1.bf16.msra.mxu0 0
      %3686 = vmatprep.subr.bf16.mxu0 0
      %3687 = vmatpush1.bf16.msra.mxu0 0
      %3688 = vmatprep.subr.bf16.mxu0 0
      %3689 = vmatpush1.bf16.msra.mxu0 0
      %3690 = vmatprep.mubr.bf16.mxu0 0
      %3691 = vmatmul.mubr.bf16.gmra.mrb[0].mxu0 %v3638
      %v3692 = vpop.f32.mrb[0].mxu0
      %v3693 = vadd.f32 0.0, %v3692
      %v3694 = vpop.f32.mrb[0].mxu0
      %v3695 = vpop.f32.mrb[0].mxu0
      %v3696 = vadd.f32 0.0, %v3695
      %v3697 = vpop.f32.mrb[0].mxu0
      %3698 = vmatprep.mubr.bf16.mxu0 0
      %3699 = vmatmul.mubr.bf16.gmra.mrb[0].mxu0 %v3641
      %v3700 = vpop.f32.mrb[0].mxu0
      %v3701 = vadd.f32 0.0, %v3700
      %v3702 = vpop.f32.mrb[0].mxu0
      %v3703 = vpop.f32.mrb[0].mxu0
      %v3704 = vadd.f32 0.0, %v3703
      %v3705 = vpop.f32.mrb[0].mxu0
      %3706 = vmatprep.mubr.bf16.mxu0 0
      %3707 = vmatmul.mubr.bf16.gmra.mrb[0].mxu0 %v3644
      %v3708 = vpop.f32.mrb[0].mxu0
      %v3709 = vadd.f32 0.0, %v3708
      %v3710 = vpop.f32.mrb[0].mxu0
      %v3711 = vpop.f32.mrb[0].mxu0
      %v3712 = vadd.f32 0.0, %v3711
      %v3713 = vpop.f32.mrb[0].mxu0
      %3714 = vmatprep.mubr.bf16.mxu0 0
      %3715 = vmatmul.mubr.bf16.gmra.mrb[0].mxu0 %v3647
      %v3716 = vpop.f32.mrb[0].mxu0
      %v3717 = vadd.f32 0.0, %v3716
      %v3718 = vpop.f32.mrb[0].mxu0
      %v3719 = vpop.f32.mrb[0].mxu0
      %v3720 = vadd.f32 0.0, %v3719
      %v3721 = vpop.f32.mrb[0].mxu0
      %3722 = vmatprep.mubr.bf16.mxu0 0
      %3723 = vmatmul.mubr.bf16.gmra.mrb[0].mxu0 %v3650
      %v3724 = vpop.f32.mrb[0].mxu0
      %v3725 = vadd.f32 0.0, %v3724
      %v3726 = vpop.f32.mrb[0].mxu0
      %v3727 = vpop.f32.mrb[0].mxu0
      %v3728 = vadd.f32 0.0, %v3727
      %v3729 = vpop.f32.mrb[0].mxu0
      %3730 = vmatprep.mubr.bf16.mxu0 0
      %3731 = vmatmul.mubr.bf16.gmra.mrb[0].mxu0 %v3653
      %v3732 = vpop.f32.mrb[0].mxu0
      %v3733 = vadd.f32 0.0, %v3732
      %v3734 = vpop.f32.mrb[0].mxu0
      %v3735 = vpop.f32.mrb[0].mxu0
      %v3736 = vadd.f32 0.0, %v3735
      %v3737 = vpop.f32.mrb[0].mxu0
      %3738 = vdwg.mxu0
      %v3739 = vadd.f32 %v3578, %v3693
      %v3740 = vadd.f32 %v3579, %v3696
      %v3741 = vadd.f32 %v3580, %v3701
      %v3742 = vadd.f32 %v3581, %v3704
      %v3743 = vadd.f32 %v3582, %v3709
      %v3744 = vadd.f32 %v3583, %v3712
      %v3745 = vadd.f32 %v3584, %v3717
      %v3746 = vadd.f32 %v3585, %v3720
      %v3747 = vadd.f32 %v3586, %v3725
      %v3748 = vadd.f32 %v3587, %v3728
      %v3749 = vadd.f32 %v3588, %v3733
      %v3750 = vadd.f32 %v3589, %v3736
      %3751 = vst.msk [vmem:[#allocation3] sm:$0xff] %vm418, %v3739
      %3752 = vst.msk [vmem:[#allocation3 + $0x8] sm:$0xff] %vm418, %v3740
      %3753 = vst.msk [vmem:[#allocation3 + $0x10] sm:$0xff] %vm418, %v3741
      %3754 = vst.msk [vmem:[#allocation3 + $0x18] sm:$0xff] %vm418, %v3742
      %3755 = vst.msk [vmem:[#allocation3 + $0x20] sm:$0xff] %vm418, %v3743
      %3756 = vst.msk [vmem:[#allocation3 + $0x28] sm:$0xff] %vm418, %v3744
      %3757 = vst.msk [vmem:[#allocation3 + $0x30] sm:$0xff] %vm418, %v3745
      %3758 = vst.msk [vmem:[#allocation3 + $0x38] sm:$0xff] %vm418, %v3746
      %3759 = vst.msk [vmem:[#allocation3 + $0x40] sm:$0xff] %vm418, %v3747
      %3760 = vst.msk [vmem:[#allocation3 + $0x48] sm:$0xff] %vm418, %v3748
      %3761 = vst.msk [vmem:[#allocation3 + $0x50] sm:$0xff] %vm418, %v3749
      %3762 = vst.msk [vmem:[#allocation3 + $0x58] sm:$0xff] %vm418, %v3750
      %v3763 = vld [vmem:[%s298 + $0x10] sm:$0xc]
      %v3764 = vld [vmem:[%s298 + $0x14] sm:$0xf]
      %v3765 = vld [vmem:[%s298 + $0x18] sm:$0xf]
      %v3766 = vld [vmem:[%s298 + $0x1c] sm:$0xf]
      %v3767 = vld [vmem:[%s298 + $0x20] sm:$0xf]
      %v3768 = vld [vmem:[%s298 + $0x24] sm:$0xf]
      %v3769 = vld [vmem:[%s298 + $0x28] sm:$0xf]
      %v3770 = vld [vmem:[%s298 + $0x2c] sm:$0xf]
      %v3771 = vld [vmem:[%s298 + $0x30] sm:$0xf]
      %v3772 = vld [vmem:[%s298 + $0x34] sm:$0xf]
      %v3773 = vld [vmem:[%s298 + $0x38] sm:$0xf]
      %v3774 = vld [vmem:[%s298 + $0x3c] sm:$0xf]
      %v3775 = vld [vmem:[%s298 + $0x40] sm:$0x7]
      %v3776 = vld [vmem:[#allocation3] sm:$0xff]
      %v3777 = vld [vmem:[#allocation3 + $0x8] sm:$0xff]
      %v3778 = vld [vmem:[#allocation3 + $0x10] sm:$0xff]
      %v3779 = vld [vmem:[#allocation3 + $0x18] sm:$0xff]
      %v3780 = vld [vmem:[#allocation3 + $0x20] sm:$0xff]
      %v3781 = vld [vmem:[#allocation3 + $0x28] sm:$0xff]
      %v3782 = vld [vmem:[#allocation3 + $0x30] sm:$0xff]
      %v3783 = vld [vmem:[#allocation3 + $0x38] sm:$0xff]
      %v3784 = vld [vmem:[#allocation3 + $0x40] sm:$0xff]
      %v3785 = vld [vmem:[#allocation3 + $0x48] sm:$0xff]
      %v3786 = vld [vmem:[#allocation3 + $0x50] sm:$0xff]
      %v3787 = vld [vmem:[#allocation3 + $0x58] sm:$0xff]
      %v3788 = vld [vmem:[%s304 + $0x40] sm:$0xf]
      %v3802 = vunpack.c.l.b16 %v3763
      %v3803 = vunpack.c.l.b16 %v3764
      %v3804 = vunpack.c.l.b16 %v3765
      %v3805 = vunpack.c.l.b16 %v3766
      %v3806 = vunpack.c.l.b16 %v3767
      %v3807 = vunpack.c.l.b16 %v3768
      %v3808 = vunpack.c.l.b16 %v3769
      %v3809 = vunpack.c.l.b16 %v3770
      %v3810 = vunpack.c.l.b16 %v3771
      %v3811 = vunpack.c.l.b16 %v3772
      %v3812 = vunpack.c.l.b16 %v3773
      %v3813 = vunpack.c.l.b16 %v3774
      %v3814 = vunpack.c.l.b16 %v3775
      %v3815 = vpack.c.b16 %v3803, %v3802
      %v3816 = vpack.c.b16 %v3805, %v3804
      %v3817 = vpack.c.b16 %v3807, %v3806
      %v3818 = vpack.c.b16 %v3809, %v3808
      %v3819 = vpack.c.b16 %v3811, %v3810
      %v3820 = vpack.c.b16 %v3813, %v3812
      %v3821 = vpack.c.b16 %v3814, %v3814
      %v3823 = vshrl.u32 %v3815, 16
      %v3825 = vrot.slane %v3823, 2
      %v3826 = vshll.u32 %v3815, 16
      %v3828 = vrot.slane %v3826, 3
      %v3829 = vor.u32 %v3825, %v3828
      %v3831 = vshrl.u32 %v3816, 16
      %v3833 = vrot.slane %v3831, 2
      %v3834 = vshll.u32 %v3816, 16
      %v3836 = vrot.slane %v3834, 3
      %v3837 = vor.u32 %v3833, %v3836
      %v3838 = vsel %vm1687, %v3829, %v3837
      %v3840 = vshrl.u32 %v3817, 16
      %v3842 = vrot.slane %v3840, 2
      %v3843 = vshll.u32 %v3817, 16
      %v3845 = vrot.slane %v3843, 3
      %v3846 = vor.u32 %v3842, %v3845
      %v3847 = vsel %vm1687, %v3837, %v3846
      %v3849 = vshrl.u32 %v3818, 16
      %v3851 = vrot.slane %v3849, 2
      %v3852 = vshll.u32 %v3818, 16
      %v3854 = vrot.slane %v3852, 3
      %v3855 = vor.u32 %v3851, %v3854
      %v3856 = vsel %vm1687, %v3846, %v3855
      %v3858 = vshrl.u32 %v3819, 16
      %v3860 = vrot.slane %v3858, 2
      %v3861 = vshll.u32 %v3819, 16
      %v3863 = vrot.slane %v3861, 3
      %v3864 = vor.u32 %v3860, %v3863
      %v3865 = vsel %vm1687, %v3855, %v3864
      %v3867 = vshrl.u32 %v3820, 16
      %v3869 = vrot.slane %v3867, 2
      %v3870 = vshll.u32 %v3820, 16
      %v3872 = vrot.slane %v3870, 3
      %v3873 = vor.u32 %v3869, %v3872
      %v3874 = vsel %vm1687, %v3864, %v3873
      %v3876 = vshrl.u32 %v3821, 16
      %v3878 = vrot.slane %v3876, 2
      %v3879 = vshll.u32 %v3821, 16
      %v3881 = vrot.slane %v3879, 3
      %v3882 = vor.u32 %v3878, %v3881
      %v3883 = vsel %vm1687, %v3873, %v3882
      %v3885 = vsel %vm418, %v3838, 0
      %v3888 = vsel %vm418, %v3847, 0
      %v3891 = vsel %vm418, %v3856, 0
      %v3894 = vsel %vm418, %v3865, 0
      %v3897 = vsel %vm418, %v3874, 0
      %v3900 = vsel %vm418, %v3883, 0
      %v3903 = vsel %vm437, %v3788, 0
      %3905 = vmatprep.subr.bf16.mxu0 0
      %3906 = vmatpush1.bf16.msra.mxu0 %v3903
      %3907 = vmatprep.subr.bf16.mxu0 0
      %3908 = vmatpush1.bf16.msra.mxu0 0
      %3909 = vmatprep.subr.bf16.mxu0 0
      %3910 = vmatpush1.bf16.msra.mxu0 0
      %3911 = vmatprep.subr.bf16.mxu0 0
      %3912 = vmatpush1.bf16.msra.mxu0 0
      %3913 = vmatprep.subr.bf16.mxu0 0
      %3914 = vmatpush1.bf16.msra.mxu0 0
      %3915 = vmatprep.subr.bf16.mxu0 0
      %3916 = vmatpush1.bf16.msra.mxu0 0
      %3917 = vmatprep.subr.bf16.mxu0 0
      %3918 = vmatpush1.bf16.msra.mxu0 0
      %3919 = vmatprep.subr.bf16.mxu0 0
      %3920 = vmatpush1.bf16.msra.mxu0 0
      %3921 = vmatprep.subr.bf16.mxu0 0
      %3922 = vmatpush1.bf16.msra.mxu0 0
      %3923 = vmatprep.subr.bf16.mxu0 0
      %3924 = vmatpush1.bf16.msra.mxu0 0
      %3925 = vmatprep.subr.bf16.mxu0 0
      %3926 = vmatpush1.bf16.msra.mxu0 0
      %3927 = vmatprep.subr.bf16.mxu0 0
      %3928 = vmatpush1.bf16.msra.mxu0 0
      %3929 = vmatprep.subr.bf16.mxu0 0
      %3930 = vmatpush1.bf16.msra.mxu0 0
      %3931 = vmatprep.subr.bf16.mxu0 0
      %3932 = vmatpush1.bf16.msra.mxu0 0
      %3933 = vmatprep.subr.bf16.mxu0 0
      %3934 = vmatpush1.bf16.msra.mxu0 0
      %3935 = vmatprep.subr.bf16.mxu0 0
      %3936 = vmatpush1.bf16.msra.mxu0 0
      %3937 = vmatprep.mubr.bf16.mxu0 0
      %3938 = vmatmul.mubr.bf16.gmra.mrb[0].mxu0 %v3885
      %v3939 = vpop.f32.mrb[0].mxu0
      %v3940 = vadd.f32 0.0, %v3939
      %v3941 = vpop.f32.mrb[0].mxu0
      %v3942 = vpop.f32.mrb[0].mxu0
      %v3943 = vadd.f32 0.0, %v3942
      %v3944 = vpop.f32.mrb[0].mxu0
      %3945 = vmatprep.mubr.bf16.mxu0 0
      %3946 = vmatmul.mubr.bf16.gmra.mrb[0].mxu0 %v3888
      %v3947 = vpop.f32.mrb[0].mxu0
      %v3948 = vadd.f32 0.0, %v3947
      %v3949 = vpop.f32.mrb[0].mxu0
      %v3950 = vpop.f32.mrb[0].mxu0
      %v3951 = vadd.f32 0.0, %v3950
      %v3952 = vpop.f32.mrb[0].mxu0
      %3953 = vmatprep.mubr.bf16.mxu0 0
      %3954 = vmatmul.mubr.bf16.gmra.mrb[0].mxu0 %v3891
      %v3955 = vpop.f32.mrb[0].mxu0
      %v3956 = vadd.f32 0.0, %v3955
      %v3957 = vpop.f32.mrb[0].mxu0
      %v3958 = vpop.f32.mrb[0].mxu0
      %v3959 = vadd.f32 0.0, %v3958
      %v3960 = vpop.f32.mrb[0].mxu0
      %3961 = vmatprep.mubr.bf16.mxu0 0
      %3962 = vmatmul.mubr.bf16.gmra.mrb[0].mxu0 %v3894
      %v3963 = vpop.f32.mrb[0].mxu0
      %v3964 = vadd.f32 0.0, %v3963
      %v3965 = vpop.f32.mrb[0].mxu0
      %v3966 = vpop.f32.mrb[0].mxu0
      %v3967 = vadd.f32 0.0, %v3966
      %v3968 = vpop.f32.mrb[0].mxu0
      %3969 = vmatprep.mubr.bf16.mxu0 0
      %3970 = vmatmul.mubr.bf16.gmra.mrb[0].mxu0 %v3897
      %v3971 = vpop.f32.mrb[0].mxu0
      %v3972 = vadd.f32 0.0, %v3971
      %v3973 = vpop.f32.mrb[0].mxu0
      %v3974 = vpop.f32.mrb[0].mxu0
      %v3975 = vadd.f32 0.0, %v3974
      %v3976 = vpop.f32.mrb[0].mxu0
      %3977 = vmatprep.mubr.bf16.mxu0 0
      %3978 = vmatmul.mubr.bf16.gmra.mrb[0].mxu0 %v3900
      %v3979 = vpop.f32.mrb[0].mxu0
      %v3980 = vadd.f32 0.0, %v3979
      %v3981 = vpop.f32.mrb[0].mxu0
      %v3982 = vpop.f32.mrb[0].mxu0
      %v3983 = vadd.f32 0.0, %v3982
      %v3984 = vpop.f32.mrb[0].mxu0
      %3985 = vdwg.mxu0
      %v3986 = vadd.f32 %v3776, %v3940
      %v3987 = vadd.f32 %v3777, %v3943
      %v3988 = vadd.f32 %v3778, %v3948
      %v3989 = vadd.f32 %v3779, %v3951
      %v3990 = vadd.f32 %v3780, %v3956
      %v3991 = vadd.f32 %v3781, %v3959
      %v3992 = vadd.f32 %v3782, %v3964
      %v3993 = vadd.f32 %v3783, %v3967
      %v3994 = vadd.f32 %v3784, %v3972
      %v3995 = vadd.f32 %v3785, %v3975
      %v3996 = vadd.f32 %v3786, %v3980
      %v3997 = vadd.f32 %v3787, %v3983
      %3998 = vst.msk [vmem:[#allocation3] sm:$0xff] %vm418, %v3986
      %3999 = vst.msk [vmem:[#allocation3 + $0x8] sm:$0xff] %vm418, %v3987
      %4000 = vst.msk [vmem:[#allocation3 + $0x10] sm:$0xff] %vm418, %v3988
      %4001 = vst.msk [vmem:[#allocation3 + $0x18] sm:$0xff] %vm418, %v3989
      %4002 = vst.msk [vmem:[#allocation3 + $0x20] sm:$0xff] %vm418, %v3990
      %4003 = vst.msk [vmem:[#allocation3 + $0x28] sm:$0xff] %vm418, %v3991
      %4004 = vst.msk [vmem:[#allocation3 + $0x30] sm:$0xff] %vm418, %v3992
      %4005 = vst.msk [vmem:[#allocation3 + $0x38] sm:$0xff] %vm418, %v3993
      %4006 = vst.msk [vmem:[#allocation3 + $0x40] sm:$0xff] %vm418, %v3994
      %4007 = vst.msk [vmem:[#allocation3 + $0x48] sm:$0xff] %vm418, %v3995
      %4008 = vst.msk [vmem:[#allocation3 + $0x50] sm:$0xff] %vm418, %v3996
      %4009 = vst.msk [vmem:[#allocation3 + $0x58] sm:$0xff] %vm418, %v3997
      %v4010 = vld [vmem:[%s298 + $0x10] sm:$0x8]
      %v4011 = vld [vmem:[%s298 + $0x14] sm:$0xf]
      %v4012 = vld [vmem:[%s298 + $0x18] sm:$0xf]
      %v4013 = vld [vmem:[%s298 + $0x1c] sm:$0xf]
      %v4014 = vld [vmem:[%s298 + $0x20] sm:$0xf]
      %v4015 = vld [vmem:[%s298 + $0x24] sm:$0xf]
      %v4016 = vld [vmem:[%s298 + $0x28] sm:$0xf]
      %v4017 = vld [vmem:[%s298 + $0x2c] sm:$0xf]
      %v4018 = vld [vmem:[%s298 + $0x30] sm:$0xf]
      %v4019 = vld [vmem:[%s298 + $0x34] sm:$0xf]
      %v4020 = vld [vmem:[%s298 + $0x38] sm:$0xf]
      %v4021 = vld [vmem:[%s298 + $0x3c] sm:$0xf]
      %v4022 = vld [vmem:[%s298 + $0x40] sm:$0x7]
      %v4023 = vld [vmem:[#allocation3] sm:$0xff]
      %v4024 = vld [vmem:[#allocation3 + $0x8] sm:$0xff]
      %v4025 = vld [vmem:[#allocation3 + $0x10] sm:$0xff]
      %v4026 = vld [vmem:[#allocation3 + $0x18] sm:$0xff]
      %v4027 = vld [vmem:[#allocation3 + $0x20] sm:$0xff]
      %v4028 = vld [vmem:[#allocation3 + $0x28] sm:$0xff]
      %v4029 = vld [vmem:[#allocation3 + $0x30] sm:$0xff]
      %v4030 = vld [vmem:[#allocation3 + $0x38] sm:$0xff]
      %v4031 = vld [vmem:[#allocation3 + $0x40] sm:$0xff]
      %v4032 = vld [vmem:[#allocation3 + $0x48] sm:$0xff]
      %v4033 = vld [vmem:[#allocation3 + $0x50] sm:$0xff]
      %v4034 = vld [vmem:[#allocation3 + $0x58] sm:$0xff]
      %v4035 = vld [vmem:[%s304 + $0x44] sm:$0xf]
      %v4049 = vunpack.c.l.b16 %v4010
      %v4050 = vunpack.c.l.b16 %v4011
      %v4051 = vunpack.c.l.b16 %v4012
      %v4052 = vunpack.c.l.b16 %v4013
      %v4053 = vunpack.c.l.b16 %v4014
      %v4054 = vunpack.c.l.b16 %v4015
      %v4055 = vunpack.c.l.b16 %v4016
      %v4056 = vunpack.c.l.b16 %v4017
      %v4057 = vunpack.c.l.b16 %v4018
      %v4058 = vunpack.c.l.b16 %v4019
      %v4059 = vunpack.c.l.b16 %v4020
      %v4060 = vunpack.c.l.b16 %v4021
      %v4061 = vunpack.c.l.b16 %v4022
      %v4062 = vpack.c.b16 %v4050, %v4049
      %v4063 = vpack.c.b16 %v4052, %v4051
      %v4064 = vpack.c.b16 %v4054, %v4053
      %v4065 = vpack.c.b16 %v4056, %v4055
      %v4066 = vpack.c.b16 %v4058, %v4057
      %v4067 = vpack.c.b16 %v4060, %v4059
      %v4068 = vpack.c.b16 %v4061, %v4061
      %v4069 = vrot.slane %v4062, 3
      %v4070 = vrot.slane %v4063, 3
      %v4071 = vsel %vm1935, %v4069, %v4070
      %v4072 = vrot.slane %v4064, 3
      %v4073 = vsel %vm1935, %v4070, %v4072
      %v4074 = vrot.slane %v4065, 3
      %v4075 = vsel %vm1935, %v4072, %v4074
      %v4076 = vrot.slane %v4066, 3
      %v4077 = vsel %vm1935, %v4074, %v4076
      %v4078 = vrot.slane %v4067, 3
      %v4079 = vsel %vm1935, %v4076, %v4078
      %v4080 = vrot.slane %v4068, 3
      %v4081 = vsel %vm1935, %v4078, %v4080
      %v4083 = vsel %vm418, %v4071, 0
      %v4086 = vsel %vm418, %v4073, 0
      %v4089 = vsel %vm418, %v4075, 0
      %v4092 = vsel %vm418, %v4077, 0
      %v4095 = vsel %vm418, %v4079, 0
      %v4098 = vsel %vm418, %v4081, 0
      %v4101 = vsel %vm437, %v4035, 0
      %4103 = vmatprep.subr.bf16.mxu0 0
      %4104 = vmatpush1.bf16.msra.mxu0 %v4101
      %4105 = vmatprep.subr.bf16.mxu0 0
      %4106 = vmatpush1.bf16.msra.mxu0 0
      %4107 = vmatprep.subr.bf16.mxu0 0
      %4108 = vmatpush1.bf16.msra.mxu0 0
      %4109 = vmatprep.subr.bf16.mxu0 0
      %4110 = vmatpush1.bf16.msra.mxu0 0
      %4111 = vmatprep.subr.bf16.mxu0 0
      %4112 = vmatpush1.bf16.msra.mxu0 0
      %4113 = vmatprep.subr.bf16.mxu0 0
      %4114 = vmatpush1.bf16.msra.mxu0 0
      %4115 = vmatprep.subr.bf16.mxu0 0
      %4116 = vmatpush1.bf16.msra.mxu0 0
      %4117 = vmatprep.subr.bf16.mxu0 0
      %4118 = vmatpush1.bf16.msra.mxu0 0
      %4119 = vmatprep.subr.bf16.mxu0 0
      %4120 = vmatpush1.bf16.msra.mxu0 0
      %4121 = vmatprep.subr.bf16.mxu0 0
      %4122 = vmatpush1.bf16.msra.mxu0 0
      %4123 = vmatprep.subr.bf16.mxu0 0
      %4124 = vmatpush1.bf16.msra.mxu0 0
      %4125 = vmatprep.subr.bf16.mxu0 0
      %4126 = vmatpush1.bf16.msra.mxu0 0
      %4127 = vmatprep.subr.bf16.mxu0 0
      %4128 = vmatpush1.bf16.msra.mxu0 0
      %4129 = vmatprep.subr.bf16.mxu0 0
      %4130 = vmatpush1.bf16.msra.mxu0 0
      %4131 = vmatprep.subr.bf16.mxu0 0
      %4132 = vmatpush1.bf16.msra.mxu0 0
      %4133 = vmatprep.subr.bf16.mxu0 0
      %4134 = vmatpush1.bf16.msra.mxu0 0
      %4135 = vmatprep.mubr.bf16.mxu0 0
      %4136 = vmatmul.mubr.bf16.gmra.mrb[0].mxu0 %v4083
      %v4137 = vpop.f32.mrb[0].mxu0
      %v4138 = vadd.f32 0.0, %v4137
      %v4139 = vpop.f32.mrb[0].mxu0
      %v4140 = vpop.f32.mrb[0].mxu0
      %v4141 = vadd.f32 0.0, %v4140
      %v4142 = vpop.f32.mrb[0].mxu0
      %4143 = vmatprep.mubr.bf16.mxu0 0
      %4144 = vmatmul.mubr.bf16.gmra.mrb[0].mxu0 %v4086
      %v4145 = vpop.f32.mrb[0].mxu0
      %v4146 = vadd.f32 0.0, %v4145
      %v4147 = vpop.f32.mrb[0].mxu0
      %v4148 = vpop.f32.mrb[0].mxu0
      %v4149 = vadd.f32 0.0, %v4148
      %v4150 = vpop.f32.mrb[0].mxu0
      %4151 = vmatprep.mubr.bf16.mxu0 0
      %4152 = vmatmul.mubr.bf16.gmra.mrb[0].mxu0 %v4089
      %v4153 = vpop.f32.mrb[0].mxu0
      %v4154 = vadd.f32 0.0, %v4153
      %v4155 = vpop.f32.mrb[0].mxu0
      %v4156 = vpop.f32.mrb[0].mxu0
      %v4157 = vadd.f32 0.0, %v4156
      %v4158 = vpop.f32.mrb[0].mxu0
      %4159 = vmatprep.mubr.bf16.mxu0 0
      %4160 = vmatmul.mubr.bf16.gmra.mrb[0].mxu0 %v4092
      %v4161 = vpop.f32.mrb[0].mxu0
      %v4162 = vadd.f32 0.0, %v4161
      %v4163 = vpop.f32.mrb[0].mxu0
      %v4164 = vpop.f32.mrb[0].mxu0
      %v4165 = vadd.f32 0.0, %v4164
      %v4166 = vpop.f32.mrb[0].mxu0
      %4167 = vmatprep.mubr.bf16.mxu0 0
      %4168 = vmatmul.mubr.bf16.gmra.mrb[0].mxu0 %v4095
      %v4169 = vpop.f32.mrb[0].mxu0
      %v4170 = vadd.f32 0.0, %v4169
      %v4171 = vpop.f32.mrb[0].mxu0
      %v4172 = vpop.f32.mrb[0].mxu0
      %v4173 = vadd.f32 0.0, %v4172
      %v4174 = vpop.f32.mrb[0].mxu0
      %4175 = vmatprep.mubr.bf16.mxu0 0
      %4176 = vmatmul.mubr.bf16.gmra.mrb[0].mxu0 %v4098
      %v4177 = vpop.f32.mrb[0].mxu0
      %v4178 = vadd.f32 0.0, %v4177
      %v4179 = vpop.f32.mrb[0].mxu0
      %v4180 = vpop.f32.mrb[0].mxu0
      %v4181 = vadd.f32 0.0, %v4180
      %v4182 = vpop.f32.mrb[0].mxu0
      %4183 = vdwg.mxu0
      %v4184 = vadd.f32 %v4023, %v4138
      %v4185 = vadd.f32 %v4024, %v4141
      %v4186 = vadd.f32 %v4025, %v4146
      %v4187 = vadd.f32 %v4026, %v4149
      %v4188 = vadd.f32 %v4027, %v4154
      %v4189 = vadd.f32 %v4028, %v4157
      %v4190 = vadd.f32 %v4029, %v4162
      %v4191 = vadd.f32 %v4030, %v4165
      %v4192 = vadd.f32 %v4031, %v4170
      %v4193 = vadd.f32 %v4032, %v4173
      %v4194 = vadd.f32 %v4033, %v4178
      %v4195 = vadd.f32 %v4034, %v4181
      %4196 = vst.msk [vmem:[#allocation3] sm:$0xff] %vm418, %v4184
      %4197 = vst.msk [vmem:[#allocation3 + $0x8] sm:$0xff] %vm418, %v4185
      %4198 = vst.msk [vmem:[#allocation3 + $0x10] sm:$0xff] %vm418, %v4186
      %4199 = vst.msk [vmem:[#allocation3 + $0x18] sm:$0xff] %vm418, %v4187
      %4200 = vst.msk [vmem:[#allocation3 + $0x20] sm:$0xff] %vm418, %v4188
      %4201 = vst.msk [vmem:[#allocation3 + $0x28] sm:$0xff] %vm418, %v4189
      %4202 = vst.msk [vmem:[#allocation3 + $0x30] sm:$0xff] %vm418, %v4190
      %4203 = vst.msk [vmem:[#allocation3 + $0x38] sm:$0xff] %vm418, %v4191
      %4204 = vst.msk [vmem:[#allocation3 + $0x40] sm:$0xff] %vm418, %v4192
      %4205 = vst.msk [vmem:[#allocation3 + $0x48] sm:$0xff] %vm418, %v4193
      %4206 = vst.msk [vmem:[#allocation3 + $0x50] sm:$0xff] %vm418, %v4194
      %4207 = vst.msk [vmem:[#allocation3 + $0x58] sm:$0xff] %vm418, %v4195
      %v4208 = vld [vmem:[%s298 + $0x10] sm:$0x8]
      %v4209 = vld [vmem:[%s298 + $0x14] sm:$0xf]
      %v4210 = vld [vmem:[%s298 + $0x18] sm:$0xf]
      %v4211 = vld [vmem:[%s298 + $0x1c] sm:$0xf]
      %v4212 = vld [vmem:[%s298 + $0x20] sm:$0xf]
      %v4213 = vld [vmem:[%s298 + $0x24] sm:$0xf]
      %v4214 = vld [vmem:[%s298 + $0x28] sm:$0xf]
      %v4215 = vld [vmem:[%s298 + $0x2c] sm:$0xf]
      %v4216 = vld [vmem:[%s298 + $0x30] sm:$0xf]
      %v4217 = vld [vmem:[%s298 + $0x34] sm:$0xf]
      %v4218 = vld [vmem:[%s298 + $0x38] sm:$0xf]
      %v4219 = vld [vmem:[%s298 + $0x3c] sm:$0xf]
      %v4220 = vld [vmem:[%s298 + $0x40] sm:$0xf]
      %v4221 = vld [vmem:[#allocation3] sm:$0xff]
      %v4222 = vld [vmem:[#allocation3 + $0x8] sm:$0xff]
      %v4223 = vld [vmem:[#allocation3 + $0x10] sm:$0xff]
      %v4224 = vld [vmem:[#allocation3 + $0x18] sm:$0xff]
      %v4225 = vld [vmem:[#allocation3 + $0x20] sm:$0xff]
      %v4226 = vld [vmem:[#allocation3 + $0x28] sm:$0xff]
      %v4227 = vld [vmem:[#allocation3 + $0x30] sm:$0xff]
      %v4228 = vld [vmem:[#allocation3 + $0x38] sm:$0xff]
      %v4229 = vld [vmem:[#allocation3 + $0x40] sm:$0xff]
      %v4230 = vld [vmem:[#allocation3 + $0x48] sm:$0xff]
      %v4231 = vld [vmem:[#allocation3 + $0x50] sm:$0xff]
      %v4232 = vld [vmem:[#allocation3 + $0x58] sm:$0xff]
      %v4233 = vld [vmem:[%s304 + $0x48] sm:$0xf]
      %v4247 = vunpack.c.l.b16 %v4208
      %v4248 = vunpack.c.l.b16 %v4209
      %v4249 = vunpack.c.l.b16 %v4210
      %v4250 = vunpack.c.l.b16 %v4211
      %v4251 = vunpack.c.l.b16 %v4212
      %v4252 = vunpack.c.l.b16 %v4213
      %v4253 = vunpack.c.l.b16 %v4214
      %v4254 = vunpack.c.l.b16 %v4215
      %v4255 = vunpack.c.l.b16 %v4216
      %v4256 = vunpack.c.l.b16 %v4217
      %v4257 = vunpack.c.l.b16 %v4218
      %v4258 = vunpack.c.l.b16 %v4219
      %v4259 = vunpack.c.l.b16 %v4220
      %v4260 = vpack.c.b16 %v4248, %v4247
      %v4261 = vpack.c.b16 %v4250, %v4249
      %v4262 = vpack.c.b16 %v4252, %v4251
      %v4263 = vpack.c.b16 %v4254, %v4253
      %v4264 = vpack.c.b16 %v4256, %v4255
      %v4265 = vpack.c.b16 %v4258, %v4257
      %v4266 = vpack.c.b16 %v4259, %v4259
      %v4268 = vshrl.u32 %v4260, 16
      %v4270 = vrot.slane %v4268, 3
      %v4271 = vshll.u32 %v4260, 16
      %v4273 = vrot.slane %v4271, 4
      %v4274 = vor.u32 %v4270, %v4273
      %v4276 = vshrl.u32 %v4261, 16
      %v4278 = vrot.slane %v4276, 3
      %v4279 = vshll.u32 %v4261, 16
      %v4281 = vrot.slane %v4279, 4
      %v4282 = vor.u32 %v4278, %v4281
      %v4283 = vsel %vm2134, %v4274, %v4282
      %v4285 = vshrl.u32 %v4262, 16
      %v4287 = vrot.slane %v4285, 3
      %v4288 = vshll.u32 %v4262, 16
      %v4290 = vrot.slane %v4288, 4
      %v4291 = vor.u32 %v4287, %v4290
      %v4292 = vsel %vm2134, %v4282, %v4291
      %v4294 = vshrl.u32 %v4263, 16
      %v4296 = vrot.slane %v4294, 3
      %v4297 = vshll.u32 %v4263, 16
      %v4299 = vrot.slane %v4297, 4
      %v4300 = vor.u32 %v4296, %v4299
      %v4301 = vsel %vm2134, %v4291, %v4300
      %v4303 = vshrl.u32 %v4264, 16
      %v4305 = vrot.slane %v4303, 3
      %v4306 = vshll.u32 %v4264, 16
      %v4308 = vrot.slane %v4306, 4
      %v4309 = vor.u32 %v4305, %v4308
      %v4310 = vsel %vm2134, %v4300, %v4309
      %v4312 = vshrl.u32 %v4265, 16
      %v4314 = vrot.slane %v4312, 3
      %v4315 = vshll.u32 %v4265, 16
      %v4317 = vrot.slane %v4315, 4
      %v4318 = vor.u32 %v4314, %v4317
      %v4319 = vsel %vm2134, %v4309, %v4318
      %v4321 = vshrl.u32 %v4266, 16
      %v4323 = vrot.slane %v4321, 3
      %v4324 = vshll.u32 %v4266, 16
      %v4326 = vrot.slane %v4324, 4
      %v4327 = vor.u32 %v4323, %v4326
      %v4328 = vsel %vm2134, %v4318, %v4327
      %v4330 = vsel %vm418, %v4283, 0
      %v4333 = vsel %vm418, %v4292, 0
      %v4336 = vsel %vm418, %v4301, 0
      %v4339 = vsel %vm418, %v4310, 0
      %v4342 = vsel %vm418, %v4319, 0
      %v4345 = vsel %vm418, %v4328, 0
      %v4348 = vsel %vm437, %v4233, 0
      %4350 = vmatprep.subr.bf16.mxu0 0
      %4351 = vmatpush1.bf16.msra.mxu0 %v4348
      %4352 = vmatprep.subr.bf16.mxu0 0
      %4353 = vmatpush1.bf16.msra.mxu0 0
      %4354 = vmatprep.subr.bf16.mxu0 0
      %4355 = vmatpush1.bf16.msra.mxu0 0
      %4356 = vmatprep.subr.bf16.mxu0 0
      %4357 = vmatpush1.bf16.msra.mxu0 0
      %4358 = vmatprep.subr.bf16.mxu0 0
      %4359 = vmatpush1.bf16.msra.mxu0 0
      %4360 = vmatprep.subr.bf16.mxu0 0
      %4361 = vmatpush1.bf16.msra.mxu0 0
      %4362 = vmatprep.subr.bf16.mxu0 0
      %4363 = vmatpush1.bf16.msra.mxu0 0
      %4364 = vmatprep.subr.bf16.mxu0 0
      %4365 = vmatpush1.bf16.msra.mxu0 0
      %4366 = vmatprep.subr.bf16.mxu0 0
      %4367 = vmatpush1.bf16.msra.mxu0 0
      %4368 = vmatprep.subr.bf16.mxu0 0
      %4369 = vmatpush1.bf16.msra.mxu0 0
      %4370 = vmatprep.subr.bf16.mxu0 0
      %4371 = vmatpush1.bf16.msra.mxu0 0
      %4372 = vmatprep.subr.bf16.mxu0 0
      %4373 = vmatpush1.bf16.msra.mxu0 0
      %4374 = vmatprep.subr.bf16.mxu0 0
      %4375 = vmatpush1.bf16.msra.mxu0 0
      %4376 = vmatprep.subr.bf16.mxu0 0
      %4377 = vmatpush1.bf16.msra.mxu0 0
      %4378 = vmatprep.subr.bf16.mxu0 0
      %4379 = vmatpush1.bf16.msra.mxu0 0
      %4380 = vmatprep.subr.bf16.mxu0 0
      %4381 = vmatpush1.bf16.msra.mxu0 0
      %4382 = vmatprep.mubr.bf16.mxu0 0
      %4383 = vmatmul.mubr.bf16.gmra.mrb[0].mxu0 %v4330
      %v4384 = vpop.f32.mrb[0].mxu0
      %v4385 = vadd.f32 0.0, %v4384
      %v4386 = vpop.f32.mrb[0].mxu0
      %v4387 = vpop.f32.mrb[0].mxu0
      %v4388 = vadd.f32 0.0, %v4387
      %v4389 = vpop.f32.mrb[0].mxu0
      %4390 = vmatprep.mubr.bf16.mxu0 0
      %4391 = vmatmul.mubr.bf16.gmra.mrb[0].mxu0 %v4333
      %v4392 = vpop.f32.mrb[0].mxu0
      %v4393 = vadd.f32 0.0, %v4392
      %v4394 = vpop.f32.mrb[0].mxu0
      %v4395 = vpop.f32.mrb[0].mxu0
      %v4396 = vadd.f32 0.0, %v4395
      %v4397 = vpop.f32.mrb[0].mxu0
      %4398 = vmatprep.mubr.bf16.mxu0 0
      %4399 = vmatmul.mubr.bf16.gmra.mrb[0].mxu0 %v4336
      %v4400 = vpop.f32.mrb[0].mxu0
      %v4401 = vadd.f32 0.0, %v4400
      %v4402 = vpop.f32.mrb[0].mxu0
      %v4403 = vpop.f32.mrb[0].mxu0
      %v4404 = vadd.f32 0.0, %v4403
      %v4405 = vpop.f32.mrb[0].mxu0
      %4406 = vmatprep.mubr.bf16.mxu0 0
      %4407 = vmatmul.mubr.bf16.gmra.mrb[0].mxu0 %v4339
      %v4408 = vpop.f32.mrb[0].mxu0
      %v4409 = vadd.f32 0.0, %v4408
      %v4410 = vpop.f32.mrb[0].mxu0
      %v4411 = vpop.f32.mrb[0].mxu0
      %v4412 = vadd.f32 0.0, %v4411
      %v4413 = vpop.f32.mrb[0].mxu0
      %4414 = vmatprep.mubr.bf16.mxu0 0
      %4415 = vmatmul.mubr.bf16.gmra.mrb[0].mxu0 %v4342
      %v4416 = vpop.f32.mrb[0].mxu0
      %v4417 = vadd.f32 0.0, %v4416
      %v4418 = vpop.f32.mrb[0].mxu0
      %v4419 = vpop.f32.mrb[0].mxu0
      %v4420 = vadd.f32 0.0, %v4419
      %v4421 = vpop.f32.mrb[0].mxu0
      %4422 = vmatprep.mubr.bf16.mxu0 0
      %4423 = vmatmul.mubr.bf16.gmra.mrb[0].mxu0 %v4345
      %v4424 = vpop.f32.mrb[0].mxu0
      %v4425 = vadd.f32 0.0, %v4424
      %v4426 = vpop.f32.mrb[0].mxu0
      %v4427 = vpop.f32.mrb[0].mxu0
      %v4428 = vadd.f32 0.0, %v4427
      %v4429 = vpop.f32.mrb[0].mxu0
      %4430 = vdwg.mxu0
      %v4431 = vadd.f32 %v4221, %v4385
      %v4432 = vadd.f32 %v4222, %v4388
      %v4433 = vadd.f32 %v4223, %v4393
      %v4434 = vadd.f32 %v4224, %v4396
      %v4435 = vadd.f32 %v4225, %v4401
      %v4436 = vadd.f32 %v4226, %v4404
      %v4437 = vadd.f32 %v4227, %v4409
      %v4438 = vadd.f32 %v4228, %v4412
      %v4439 = vadd.f32 %v4229, %v4417
      %v4440 = vadd.f32 %v4230, %v4420
      %v4441 = vadd.f32 %v4231, %v4425
      %v4442 = vadd.f32 %v4232, %v4428
      %4443 = vst.msk [vmem:[#allocation3] sm:$0xff] %vm418, %v4431
      %4444 = vst.msk [vmem:[#allocation3 + $0x8] sm:$0xff] %vm418, %v4432
      %4445 = vst.msk [vmem:[#allocation3 + $0x10] sm:$0xff] %vm418, %v4433
      %4446 = vst.msk [vmem:[#allocation3 + $0x18] sm:$0xff] %vm418, %v4434
      %4447 = vst.msk [vmem:[#allocation3 + $0x20] sm:$0xff] %vm418, %v4435
      %4448 = vst.msk [vmem:[#allocation3 + $0x28] sm:$0xff] %vm418, %v4436
      %4449 = vst.msk [vmem:[#allocation3 + $0x30] sm:$0xff] %vm418, %v4437
      %4450 = vst.msk [vmem:[#allocation3 + $0x38] sm:$0xff] %vm418, %v4438
      %4451 = vst.msk [vmem:[#allocation3 + $0x40] sm:$0xff] %vm418, %v4439
      %4452 = vst.msk [vmem:[#allocation3 + $0x48] sm:$0xff] %vm418, %v4440
      %4453 = vst.msk [vmem:[#allocation3 + $0x50] sm:$0xff] %vm418, %v4441
      %4454 = vst.msk [vmem:[#allocation3 + $0x58] sm:$0xff] %vm418, %v4442
      %v4455 = vld [vmem:[%s298 + $0x14] sm:$0xf]
      %v4456 = vld [vmem:[%s298 + $0x18] sm:$0xf]
      %v4457 = vld [vmem:[%s298 + $0x1c] sm:$0xf]
      %v4458 = vld [vmem:[%s298 + $0x20] sm:$0xf]
      %v4459 = vld [vmem:[%s298 + $0x24] sm:$0xf]
      %v4460 = vld [vmem:[%s298 + $0x28] sm:$0xf]
      %v4461 = vld [vmem:[%s298 + $0x2c] sm:$0xf]
      %v4462 = vld [vmem:[%s298 + $0x30] sm:$0xf]
      %v4463 = vld [vmem:[%s298 + $0x34] sm:$0xf]
      %v4464 = vld [vmem:[%s298 + $0x38] sm:$0xf]
      %v4465 = vld [vmem:[%s298 + $0x3c] sm:$0xf]
      %v4466 = vld [vmem:[%s298 + $0x40] sm:$0xf]
      %v4467 = vld [vmem:[#allocation3] sm:$0xff]
      %v4468 = vld [vmem:[#allocation3 + $0x8] sm:$0xff]
      %v4469 = vld [vmem:[#allocation3 + $0x10] sm:$0xff]
      %v4470 = vld [vmem:[#allocation3 + $0x18] sm:$0xff]
      %v4471 = vld [vmem:[#allocation3 + $0x20] sm:$0xff]
      %v4472 = vld [vmem:[#allocation3 + $0x28] sm:$0xff]
      %v4473 = vld [vmem:[#allocation3 + $0x30] sm:$0xff]
      %v4474 = vld [vmem:[#allocation3 + $0x38] sm:$0xff]
      %v4475 = vld [vmem:[#allocation3 + $0x40] sm:$0xff]
      %v4476 = vld [vmem:[#allocation3 + $0x48] sm:$0xff]
      %v4477 = vld [vmem:[#allocation3 + $0x50] sm:$0xff]
      %v4478 = vld [vmem:[#allocation3 + $0x58] sm:$0xff]
      %v4479 = vld [vmem:[%s304 + $0x4c] sm:$0xf]
      %v4492 = vunpack.c.l.b16 %v4455
      %v4493 = vunpack.c.l.b16 %v4456
      %v4494 = vunpack.c.l.b16 %v4457
      %v4495 = vunpack.c.l.b16 %v4458
      %v4496 = vunpack.c.l.b16 %v4459
      %v4497 = vunpack.c.l.b16 %v4460
      %v4498 = vunpack.c.l.b16 %v4461
      %v4499 = vunpack.c.l.b16 %v4462
      %v4500 = vunpack.c.l.b16 %v4463
      %v4501 = vunpack.c.l.b16 %v4464
      %v4502 = vunpack.c.l.b16 %v4465
      %v4503 = vunpack.c.l.b16 %v4466
      %v4504 = vpack.c.b16 %v4493, %v4492
      %v4505 = vpack.c.b16 %v4495, %v4494
      %v4506 = vpack.c.b16 %v4497, %v4496
      %v4507 = vpack.c.b16 %v4499, %v4498
      %v4508 = vpack.c.b16 %v4501, %v4500
      %v4509 = vpack.c.b16 %v4503, %v4502
      %v4511 = vsel %vm418, %v4504, 0
      %v4514 = vsel %vm418, %v4505, 0
      %v4517 = vsel %vm418, %v4506, 0
      %v4520 = vsel %vm418, %v4507, 0
      %v4523 = vsel %vm418, %v4508, 0
      %v4526 = vsel %vm418, %v4509, 0
      %v4529 = vsel %vm437, %v4479, 0
      %4531 = vmatprep.subr.bf16.mxu0 0
      %4532 = vmatpush1.bf16.msra.mxu0 %v4529
      %4533 = vmatprep.subr.bf16.mxu0 0
      %4534 = vmatpush1.bf16.msra.mxu0 0
      %4535 = vmatprep.subr.bf16.mxu0 0
      %4536 = vmatpush1.bf16.msra.mxu0 0
      %4537 = vmatprep.subr.bf16.mxu0 0
      %4538 = vmatpush1.bf16.msra.mxu0 0
      %4539 = vmatprep.subr.bf16.mxu0 0
      %4540 = vmatpush1.bf16.msra.mxu0 0
      %4541 = vmatprep.subr.bf16.mxu0 0
      %4542 = vmatpush1.bf16.msra.mxu0 0
      %4543 = vmatprep.subr.bf16.mxu0 0
      %4544 = vmatpush1.bf16.msra.mxu0 0
      %4545 = vmatprep.subr.bf16.mxu0 0
      %4546 = vmatpush1.bf16.msra.mxu0 0
      %4547 = vmatprep.subr.bf16.mxu0 0
      %4548 = vmatpush1.bf16.msra.mxu0 0
      %4549 = vmatprep.subr.bf16.mxu0 0
      %4550 = vmatpush1.bf16.msra.mxu0 0
      %4551 = vmatprep.subr.bf16.mxu0 0
      %4552 = vmatpush1.bf16.msra.mxu0 0
      %4553 = vmatprep.subr.bf16.mxu0 0
      %4554 = vmatpush1.bf16.msra.mxu0 0
      %4555 = vmatprep.subr.bf16.mxu0 0
      %4556 = vmatpush1.bf16.msra.mxu0 0
      %4557 = vmatprep.subr.bf16.mxu0 0
      %4558 = vmatpush1.bf16.msra.mxu0 0
      %4559 = vmatprep.subr.bf16.mxu0 0
      %4560 = vmatpush1.bf16.msra.mxu0 0
      %4561 = vmatprep.subr.bf16.mxu0 0
      %4562 = vmatpush1.bf16.msra.mxu0 0
      %4563 = vmatprep.mubr.bf16.mxu0 0
      %4564 = vmatmul.mubr.bf16.gmra.mrb[0].mxu0 %v4511
      %v4565 = vpop.f32.mrb[0].mxu0
      %v4566 = vadd.f32 0.0, %v4565
      %v4567 = vpop.f32.mrb[0].mxu0
      %v4568 = vpop.f32.mrb[0].mxu0
      %v4569 = vadd.f32 0.0, %v4568
      %v4570 = vpop.f32.mrb[0].mxu0
      %4571 = vmatprep.mubr.bf16.mxu0 0
      %4572 = vmatmul.mubr.bf16.gmra.mrb[0].mxu0 %v4514
      %v4573 = vpop.f32.mrb[0].mxu0
      %v4574 = vadd.f32 0.0, %v4573
      %v4575 = vpop.f32.mrb[0].mxu0
      %v4576 = vpop.f32.mrb[0].mxu0
      %v4577 = vadd.f32 0.0, %v4576
      %v4578 = vpop.f32.mrb[0].mxu0
      %4579 = vmatprep.mubr.bf16.mxu0 0
      %4580 = vmatmul.mubr.bf16.gmra.mrb[0].mxu0 %v4517
      %v4581 = vpop.f32.mrb[0].mxu0
      %v4582 = vadd.f32 0.0, %v4581
      %v4583 = vpop.f32.mrb[0].mxu0
      %v4584 = vpop.f32.mrb[0].mxu0
      %v4585 = vadd.f32 0.0, %v4584
      %v4586 = vpop.f32.mrb[0].mxu0
      %4587 = vmatprep.mubr.bf16.mxu0 0
      %4588 = vmatmul.mubr.bf16.gmra.mrb[0].mxu0 %v4520
      %v4589 = vpop.f32.mrb[0].mxu0
      %v4590 = vadd.f32 0.0, %v4589
      %v4591 = vpop.f32.mrb[0].mxu0
      %v4592 = vpop.f32.mrb[0].mxu0
      %v4593 = vadd.f32 0.0, %v4592
      %v4594 = vpop.f32.mrb[0].mxu0
      %4595 = vmatprep.mubr.bf16.mxu0 0
      %4596 = vmatmul.mubr.bf16.gmra.mrb[0].mxu0 %v4523
      %v4597 = vpop.f32.mrb[0].mxu0
      %v4598 = vadd.f32 0.0, %v4597
      %v4599 = vpop.f32.mrb[0].mxu0
      %v4600 = vpop.f32.mrb[0].mxu0
      %v4601 = vadd.f32 0.0, %v4600
      %v4602 = vpop.f32.mrb[0].mxu0
      %4603 = vmatprep.mubr.bf16.mxu0 0
      %4604 = vmatmul.mubr.bf16.gmra.mrb[0].mxu0 %v4526
      %v4605 = vpop.f32.mrb[0].mxu0
      %v4606 = vadd.f32 0.0, %v4605
      %v4607 = vpop.f32.mrb[0].mxu0
      %v4608 = vpop.f32.mrb[0].mxu0
      %v4609 = vadd.f32 0.0, %v4608
      %v4610 = vpop.f32.mrb[0].mxu0
      %4611 = vdwg.mxu0
      %v4612 = vadd.f32 %v4467, %v4566
      %v4613 = vadd.f32 %v4468, %v4569
      %v4614 = vadd.f32 %v4469, %v4574
      %v4615 = vadd.f32 %v4470, %v4577
      %v4616 = vadd.f32 %v4471, %v4582
      %v4617 = vadd.f32 %v4472, %v4585
      %v4618 = vadd.f32 %v4473, %v4590
      %v4619 = vadd.f32 %v4474, %v4593
      %v4620 = vadd.f32 %v4475, %v4598
      %v4621 = vadd.f32 %v4476, %v4601
      %v4622 = vadd.f32 %v4477, %v4606
      %v4623 = vadd.f32 %v4478, %v4609
      %4624 = vst.msk [vmem:[#allocation3] sm:$0xff] %vm418, %v4612
      %4625 = vst.msk [vmem:[#allocation3 + $0x8] sm:$0xff] %vm418, %v4613
      %4626 = vst.msk [vmem:[#allocation3 + $0x10] sm:$0xff] %vm418, %v4614
      %4627 = vst.msk [vmem:[#allocation3 + $0x18] sm:$0xff] %vm418, %v4615
      %4628 = vst.msk [vmem:[#allocation3 + $0x20] sm:$0xff] %vm418, %v4616
      %4629 = vst.msk [vmem:[#allocation3 + $0x28] sm:$0xff] %vm418, %v4617
      %4630 = vst.msk [vmem:[#allocation3 + $0x30] sm:$0xff] %vm418, %v4618
      %4631 = vst.msk [vmem:[#allocation3 + $0x38] sm:$0xff] %vm418, %v4619
      %4632 = vst.msk [vmem:[#allocation3 + $0x40] sm:$0xff] %vm418, %v4620
      %4633 = vst.msk [vmem:[#allocation3 + $0x48] sm:$0xff] %vm418, %v4621
      %4634 = vst.msk [vmem:[#allocation3 + $0x50] sm:$0xff] %vm418, %v4622
      %4635 = vst.msk [vmem:[#allocation3 + $0x58] sm:$0xff] %vm418, %v4623
      %v4636 = vld [vmem:[%s298 + $0x18] sm:$0xf]
      %v4637 = vld [vmem:[%s298 + $0x1c] sm:$0xf]
      %v4638 = vld [vmem:[%s298 + $0x20] sm:$0xf]
      %v4639 = vld [vmem:[%s298 + $0x24] sm:$0xf]
      %v4640 = vld [vmem:[%s298 + $0x28] sm:$0xf]
      %v4641 = vld [vmem:[%s298 + $0x2c] sm:$0xf]
      %v4642 = vld [vmem:[%s298 + $0x30] sm:$0xf]
      %v4643 = vld [vmem:[%s298 + $0x34] sm:$0xf]
      %v4644 = vld [vmem:[%s298 + $0x38] sm:$0xf]
      %v4645 = vld [vmem:[%s298 + $0x3c] sm:$0xf]
      %v4646 = vld [vmem:[%s298 + $0x40] sm:$0xf]
      %v4647 = vld [vmem:[%s298 + $0x44] sm:$0xf]
      %v4648 = vld [vmem:[#allocation3] sm:$0xff]
      %v4649 = vld [vmem:[#allocation3 + $0x8] sm:$0xff]
      %v4650 = vld [vmem:[#allocation3 + $0x10] sm:$0xff]
      %v4651 = vld [vmem:[#allocation3 + $0x18] sm:$0xff]
      %v4652 = vld [vmem:[#allocation3 + $0x20] sm:$0xff]
      %v4653 = vld [vmem:[#allocation3 + $0x28] sm:$0xff]
      %v4654 = vld [vmem:[#allocation3 + $0x30] sm:$0xff]
      %v4655 = vld [vmem:[#allocation3 + $0x38] sm:$0xff]
      %v4656 = vld [vmem:[#allocation3 + $0x40] sm:$0xff]
      %v4657 = vld [vmem:[#allocation3 + $0x48] sm:$0xff]
      %v4658 = vld [vmem:[#allocation3 + $0x50] sm:$0xff]
      %v4659 = vld [vmem:[#allocation3 + $0x58] sm:$0xff]
      %v4660 = vld [vmem:[%s304 + $0x50] sm:$0xf]
      %v4673 = vunpack.c.l.b16 %v4636
      %v4674 = vunpack.c.l.b16 %v4637
      %v4675 = vunpack.c.l.b16 %v4638
      %v4676 = vunpack.c.l.b16 %v4639
      %v4677 = vunpack.c.l.b16 %v4640
      %v4678 = vunpack.c.l.b16 %v4641
      %v4679 = vunpack.c.l.b16 %v4642
      %v4680 = vunpack.c.l.b16 %v4643
      %v4681 = vunpack.c.l.b16 %v4644
      %v4682 = vunpack.c.l.b16 %v4645
      %v4683 = vunpack.c.l.b16 %v4646
      %v4684 = vunpack.c.l.b16 %v4647
      %v4685 = vpack.c.b16 %v4674, %v4673
      %v4686 = vpack.c.b16 %v4676, %v4675
      %v4687 = vpack.c.b16 %v4678, %v4677
      %v4688 = vpack.c.b16 %v4680, %v4679
      %v4689 = vpack.c.b16 %v4682, %v4681
      %v4690 = vpack.c.b16 %v4684, %v4683
      %v4692 = vsel %vm418, %v4685, 0
      %v4695 = vsel %vm418, %v4686, 0
      %v4698 = vsel %vm418, %v4687, 0
      %v4701 = vsel %vm418, %v4688, 0
      %v4704 = vsel %vm418, %v4689, 0
      %v4707 = vsel %vm418, %v4690, 0
      %v4710 = vsel %vm437, %v4660, 0
      %4712 = vmatprep.subr.bf16.mxu0 0
      %4713 = vmatpush1.bf16.msra.mxu0 %v4710
      %4714 = vmatprep.subr.bf16.mxu0 0
      %4715 = vmatpush1.bf16.msra.mxu0 0
      %4716 = vmatprep.subr.bf16.mxu0 0
      %4717 = vmatpush1.bf16.msra.mxu0 0
      %4718 = vmatprep.subr.bf16.mxu0 0
      %4719 = vmatpush1.bf16.msra.mxu0 0
      %4720 = vmatprep.subr.bf16.mxu0 0
      %4721 = vmatpush1.bf16.msra.mxu0 0
      %4722 = vmatprep.subr.bf16.mxu0 0
      %4723 = vmatpush1.bf16.msra.mxu0 0
      %4724 = vmatprep.subr.bf16.mxu0 0
      %4725 = vmatpush1.bf16.msra.mxu0 0
      %4726 = vmatprep.subr.bf16.mxu0 0
      %4727 = vmatpush1.bf16.msra.mxu0 0
      %4728 = vmatprep.subr.bf16.mxu0 0
      %4729 = vmatpush1.bf16.msra.mxu0 0
      %4730 = vmatprep.subr.bf16.mxu0 0
      %4731 = vmatpush1.bf16.msra.mxu0 0
      %4732 = vmatprep.subr.bf16.mxu0 0
      %4733 = vmatpush1.bf16.msra.mxu0 0
      %4734 = vmatprep.subr.bf16.mxu0 0
      %4735 = vmatpush1.bf16.msra.mxu0 0
      %4736 = vmatprep.subr.bf16.mxu0 0
      %4737 = vmatpush1.bf16.msra.mxu0 0
      %4738 = vmatprep.subr.bf16.mxu0 0
      %4739 = vmatpush1.bf16.msra.mxu0 0
      %4740 = vmatprep.subr.bf16.mxu0 0
      %4741 = vmatpush1.bf16.msra.mxu0 0
      %4742 = vmatprep.subr.bf16.mxu0 0
      %4743 = vmatpush1.bf16.msra.mxu0 0
      %4744 = vmatprep.mubr.bf16.mxu0 0
      %4745 = vmatmul.mubr.bf16.gmra.mrb[0].mxu0 %v4692
      %v4746 = vpop.f32.mrb[0].mxu0
      %v4747 = vadd.f32 0.0, %v4746
      %v4748 = vpop.f32.mrb[0].mxu0
      %v4749 = vpop.f32.mrb[0].mxu0
      %v4750 = vadd.f32 0.0, %v4749
      %v4751 = vpop.f32.mrb[0].mxu0
      %4752 = vmatprep.mubr.bf16.mxu0 0
      %4753 = vmatmul.mubr.bf16.gmra.mrb[0].mxu0 %v4695
      %v4754 = vpop.f32.mrb[0].mxu0
      %v4755 = vadd.f32 0.0, %v4754
      %v4756 = vpop.f32.mrb[0].mxu0
      %v4757 = vpop.f32.mrb[0].mxu0
      %v4758 = vadd.f32 0.0, %v4757
      %v4759 = vpop.f32.mrb[0].mxu0
      %4760 = vmatprep.mubr.bf16.mxu0 0
      %4761 = vmatmul.mubr.bf16.gmra.mrb[0].mxu0 %v4698
      %v4762 = vpop.f32.mrb[0].mxu0
      %v4763 = vadd.f32 0.0, %v4762
      %v4764 = vpop.f32.mrb[0].mxu0
      %v4765 = vpop.f32.mrb[0].mxu0
      %v4766 = vadd.f32 0.0, %v4765
      %v4767 = vpop.f32.mrb[0].mxu0
      %4768 = vmatprep.mubr.bf16.mxu0 0
      %4769 = vmatmul.mubr.bf16.gmra.mrb[0].mxu0 %v4701
      %v4770 = vpop.f32.mrb[0].mxu0
      %v4771 = vadd.f32 0.0, %v4770
      %v4772 = vpop.f32.mrb[0].mxu0
      %v4773 = vpop.f32.mrb[0].mxu0
      %v4774 = vadd.f32 0.0, %v4773
      %v4775 = vpop.f32.mrb[0].mxu0
      %4776 = vmatprep.mubr.bf16.mxu0 0
      %4777 = vmatmul.mubr.bf16.gmra.mrb[0].mxu0 %v4704
      %v4778 = vpop.f32.mrb[0].mxu0
      %v4779 = vadd.f32 0.0, %v4778
      %v4780 = vpop.f32.mrb[0].mxu0
      %v4781 = vpop.f32.mrb[0].mxu0
      %v4782 = vadd.f32 0.0, %v4781
      %v4783 = vpop.f32.mrb[0].mxu0
      %4784 = vmatprep.mubr.bf16.mxu0 0
      %4785 = vmatmul.mubr.bf16.gmra.mrb[0].mxu0 %v4707
      %v4786 = vpop.f32.mrb[0].mxu0
      %v4787 = vadd.f32 0.0, %v4786
      %v4788 = vpop.f32.mrb[0].mxu0
      %v4789 = vpop.f32.mrb[0].mxu0
      %v4790 = vadd.f32 0.0, %v4789
      %v4791 = vpop.f32.mrb[0].mxu0
      %4792 = vdwg.mxu0
      %v4793 = vadd.f32 %v4648, %v4747
      %v4794 = vadd.f32 %v4649, %v4750
      %v4795 = vadd.f32 %v4650, %v4755
      %v4796 = vadd.f32 %v4651, %v4758
      %v4797 = vadd.f32 %v4652, %v4763
      %v4798 = vadd.f32 %v4653, %v4766
      %v4799 = vadd.f32 %v4654, %v4771
      %v4800 = vadd.f32 %v4655, %v4774
      %v4801 = vadd.f32 %v4656, %v4779
      %v4802 = vadd.f32 %v4657, %v4782
      %v4803 = vadd.f32 %v4658, %v4787
      %v4804 = vadd.f32 %v4659, %v4790
      %4805 = vst.msk [vmem:[#allocation3] sm:$0xff] %vm418, %v4793
      %4806 = vst.msk [vmem:[#allocation3 + $0x8] sm:$0xff] %vm418, %v4794
      %4807 = vst.msk [vmem:[#allocation3 + $0x10] sm:$0xff] %vm418, %v4795
      %4808 = vst.msk [vmem:[#allocation3 + $0x18] sm:$0xff] %vm418, %v4796
      %4809 = vst.msk [vmem:[#allocation3 + $0x20] sm:$0xff] %vm418, %v4797
      %4810 = vst.msk [vmem:[#allocation3 + $0x28] sm:$0xff] %vm418, %v4798
      %4811 = vst.msk [vmem:[#allocation3 + $0x30] sm:$0xff] %vm418, %v4799
      %4812 = vst.msk [vmem:[#allocation3 + $0x38] sm:$0xff] %vm418, %v4800
      %4813 = vst.msk [vmem:[#allocation3 + $0x40] sm:$0xff] %vm418, %v4801
      %4814 = vst.msk [vmem:[#allocation3 + $0x48] sm:$0xff] %vm418, %v4802
      %4815 = vst.msk [vmem:[#allocation3 + $0x50] sm:$0xff] %vm418, %v4803
      %4816 = vst.msk [vmem:[#allocation3 + $0x58] sm:$0xff] %vm418, %v4804
      %v4817 = vld [vmem:[%s298 + $0x18] sm:$0xf]
      %v4818 = vld [vmem:[%s298 + $0x1c] sm:$0xf]
      %v4819 = vld [vmem:[%s298 + $0x20] sm:$0xf]
      %v4820 = vld [vmem:[%s298 + $0x24] sm:$0xf]
      %v4821 = vld [vmem:[%s298 + $0x28] sm:$0xf]
      %v4822 = vld [vmem:[%s298 + $0x2c] sm:$0xf]
      %v4823 = vld [vmem:[%s298 + $0x30] sm:$0xf]
      %v4824 = vld [vmem:[%s298 + $0x34] sm:$0xf]
      %v4825 = vld [vmem:[%s298 + $0x38] sm:$0xf]
      %v4826 = vld [vmem:[%s298 + $0x3c] sm:$0xf]
      %v4827 = vld [vmem:[%s298 + $0x40] sm:$0xf]
      %v4828 = vld [vmem:[%s298 + $0x44] sm:$0xf]
      %v4829 = vld [vmem:[%s298 + $0x48] sm:$0x1]
      %v4830 = vld [vmem:[#allocation3] sm:$0xff]
      %v4831 = vld [vmem:[#allocation3 + $0x8] sm:$0xff]
      %v4832 = vld [vmem:[#allocation3 + $0x10] sm:$0xff]
      %v4833 = vld [vmem:[#allocation3 + $0x18] sm:$0xff]
      %v4834 = vld [vmem:[#allocation3 + $0x20] sm:$0xff]
      %v4835 = vld [vmem:[#allocation3 + $0x28] sm:$0xff]
      %v4836 = vld [vmem:[#allocation3 + $0x30] sm:$0xff]
      %v4837 = vld [vmem:[#allocation3 + $0x38] sm:$0xff]
      %v4838 = vld [vmem:[#allocation3 + $0x40] sm:$0xff]
      %v4839 = vld [vmem:[#allocation3 + $0x48] sm:$0xff]
      %v4840 = vld [vmem:[#allocation3 + $0x50] sm:$0xff]
      %v4841 = vld [vmem:[#allocation3 + $0x58] sm:$0xff]
      %v4842 = vld [vmem:[%s304 + $0x54] sm:$0xf]
      %v4856 = vunpack.c.l.b16 %v4817
      %v4857 = vunpack.c.l.b16 %v4818
      %v4858 = vunpack.c.l.b16 %v4819
      %v4859 = vunpack.c.l.b16 %v4820
      %v4860 = vunpack.c.l.b16 %v4821
      %v4861 = vunpack.c.l.b16 %v4822
      %v4862 = vunpack.c.l.b16 %v4823
      %v4863 = vunpack.c.l.b16 %v4824
      %v4864 = vunpack.c.l.b16 %v4825
      %v4865 = vunpack.c.l.b16 %v4826
      %v4866 = vunpack.c.l.b16 %v4827
      %v4867 = vunpack.c.l.b16 %v4828
      %v4868 = vunpack.c.l.b16 %v4829
      %v4869 = vpack.c.b16 %v4857, %v4856
      %v4870 = vpack.c.b16 %v4859, %v4858
      %v4871 = vpack.c.b16 %v4861, %v4860
      %v4872 = vpack.c.b16 %v4863, %v4862
      %v4873 = vpack.c.b16 %v4865, %v4864
      %v4874 = vpack.c.b16 %v4867, %v4866
      %v4875 = vpack.c.b16 %v4868, %v4868
      %v4877 = vshrl.u32 %v4869, 16
      %v4879 = vshll.u32 %v4869, 16
      %v4881 = vrot.slane %v4879, 1
      %v4882 = vor.u32 %v4877, %v4881
      %v4884 = vshll.u32 %v4870, 16
      %v4886 = vrot.slane %v4884, 1
      %v4887 = vsel %vm605, %v4882, %v4886
      %v4888 = vshrl.u32 %v4870, 16
      %v4890 = vor.u32 %v4888, %v4886
      %v4892 = vshll.u32 %v4871, 16
      %v4894 = vrot.slane %v4892, 1
      %v4895 = vsel %vm605, %v4890, %v4894
      %v4896 = vshrl.u32 %v4871, 16
      %v4898 = vor.u32 %v4896, %v4894
      %v4900 = vshll.u32 %v4872, 16
      %v4902 = vrot.slane %v4900, 1
      %v4903 = vsel %vm605, %v4898, %v4902
      %v4904 = vshrl.u32 %v4872, 16
      %v4906 = vor.u32 %v4904, %v4902
      %v4908 = vshll.u32 %v4873, 16
      %v4910 = vrot.slane %v4908, 1
      %v4911 = vsel %vm605, %v4906, %v4910
      %v4912 = vshrl.u32 %v4873, 16
      %v4914 = vor.u32 %v4912, %v4910
      %v4916 = vshll.u32 %v4874, 16
      %v4918 = vrot.slane %v4916, 1
      %v4919 = vsel %vm605, %v4914, %v4918
      %v4920 = vshrl.u32 %v4874, 16
      %v4922 = vor.u32 %v4920, %v4918
      %v4924 = vshll.u32 %v4875, 16
      %v4926 = vrot.slane %v4924, 1
      %v4927 = vsel %vm605, %v4922, %v4926
      %v4929 = vsel %vm418, %v4887, 0
      %v4932 = vsel %vm418, %v4895, 0
      %v4935 = vsel %vm418, %v4903, 0
      %v4938 = vsel %vm418, %v4911, 0
      %v4941 = vsel %vm418, %v4919, 0
      %v4944 = vsel %vm418, %v4927, 0
      %v4947 = vsel %vm437, %v4842, 0
      %4949 = vmatprep.subr.bf16.mxu0 0
      %4950 = vmatpush1.bf16.msra.mxu0 %v4947
      %4951 = vmatprep.subr.bf16.mxu0 0
      %4952 = vmatpush1.bf16.msra.mxu0 0
      %4953 = vmatprep.subr.bf16.mxu0 0
      %4954 = vmatpush1.bf16.msra.mxu0 0
      %4955 = vmatprep.subr.bf16.mxu0 0
      %4956 = vmatpush1.bf16.msra.mxu0 0
      %4957 = vmatprep.subr.bf16.mxu0 0
      %4958 = vmatpush1.bf16.msra.mxu0 0
      %4959 = vmatprep.subr.bf16.mxu0 0
      %4960 = vmatpush1.bf16.msra.mxu0 0
      %4961 = vmatprep.subr.bf16.mxu0 0
      %4962 = vmatpush1.bf16.msra.mxu0 0
      %4963 = vmatprep.subr.bf16.mxu0 0
      %4964 = vmatpush1.bf16.msra.mxu0 0
      %4965 = vmatprep.subr.bf16.mxu0 0
      %4966 = vmatpush1.bf16.msra.mxu0 0
      %4967 = vmatprep.subr.bf16.mxu0 0
      %4968 = vmatpush1.bf16.msra.mxu0 0
      %4969 = vmatprep.subr.bf16.mxu0 0
      %4970 = vmatpush1.bf16.msra.mxu0 0
      %4971 = vmatprep.subr.bf16.mxu0 0
      %4972 = vmatpush1.bf16.msra.mxu0 0
      %4973 = vmatprep.subr.bf16.mxu0 0
      %4974 = vmatpush1.bf16.msra.mxu0 0
      %4975 = vmatprep.subr.bf16.mxu0 0
      %4976 = vmatpush1.bf16.msra.mxu0 0
      %4977 = vmatprep.subr.bf16.mxu0 0
      %4978 = vmatpush1.bf16.msra.mxu0 0
      %4979 = vmatprep.subr.bf16.mxu0 0
      %4980 = vmatpush1.bf16.msra.mxu0 0
      %4981 = vmatprep.mubr.bf16.mxu0 0
      %4982 = vmatmul.mubr.bf16.gmra.mrb[0].mxu0 %v4929
      %v4983 = vpop.f32.mrb[0].mxu0
      %v4984 = vadd.f32 0.0, %v4983
      %v4985 = vpop.f32.mrb[0].mxu0
      %v4986 = vpop.f32.mrb[0].mxu0
      %v4987 = vadd.f32 0.0, %v4986
      %v4988 = vpop.f32.mrb[0].mxu0
      %4989 = vmatprep.mubr.bf16.mxu0 0
      %4990 = vmatmul.mubr.bf16.gmra.mrb[0].mxu0 %v4932
      %v4991 = vpop.f32.mrb[0].mxu0
      %v4992 = vadd.f32 0.0, %v4991
      %v4993 = vpop.f32.mrb[0].mxu0
      %v4994 = vpop.f32.mrb[0].mxu0
      %v4995 = vadd.f32 0.0, %v4994
      %v4996 = vpop.f32.mrb[0].mxu0
      %4997 = vmatprep.mubr.bf16.mxu0 0
      %4998 = vmatmul.mubr.bf16.gmra.mrb[0].mxu0 %v4935
      %v4999 = vpop.f32.mrb[0].mxu0
      %v5000 = vadd.f32 0.0, %v4999
      %v5001 = vpop.f32.mrb[0].mxu0
      %v5002 = vpop.f32.mrb[0].mxu0
      %v5003 = vadd.f32 0.0, %v5002
      %v5004 = vpop.f32.mrb[0].mxu0
      %5005 = vmatprep.mubr.bf16.mxu0 0
      %5006 = vmatmul.mubr.bf16.gmra.mrb[0].mxu0 %v4938
      %v5007 = vpop.f32.mrb[0].mxu0
      %v5008 = vadd.f32 0.0, %v5007
      %v5009 = vpop.f32.mrb[0].mxu0
      %v5010 = vpop.f32.mrb[0].mxu0
      %v5011 = vadd.f32 0.0, %v5010
      %v5012 = vpop.f32.mrb[0].mxu0
      %5013 = vmatprep.mubr.bf16.mxu0 0
      %5014 = vmatmul.mubr.bf16.gmra.mrb[0].mxu0 %v4941
      %v5015 = vpop.f32.mrb[0].mxu0
      %v5016 = vadd.f32 0.0, %v5015
      %v5017 = vpop.f32.mrb[0].mxu0
      %v5018 = vpop.f32.mrb[0].mxu0
      %v5019 = vadd.f32 0.0, %v5018
      %v5020 = vpop.f32.mrb[0].mxu0
      %5021 = vmatprep.mubr.bf16.mxu0 0
      %5022 = vmatmul.mubr.bf16.gmra.mrb[0].mxu0 %v4944
      %v5023 = vpop.f32.mrb[0].mxu0
      %v5024 = vadd.f32 0.0, %v5023
      %v5025 = vpop.f32.mrb[0].mxu0
      %v5026 = vpop.f32.mrb[0].mxu0
      %v5027 = vadd.f32 0.0, %v5026
      %v5028 = vpop.f32.mrb[0].mxu0
      %5029 = vdwg.mxu0
      %v5030 = vadd.f32 %v4830, %v4984
      %v5031 = vadd.f32 %v4831, %v4987
      %v5032 = vadd.f32 %v4832, %v4992
      %v5033 = vadd.f32 %v4833, %v4995
      %v5034 = vadd.f32 %v4834, %v5000
      %v5035 = vadd.f32 %v4835, %v5003
      %v5036 = vadd.f32 %v4836, %v5008
      %v5037 = vadd.f32 %v4837, %v5011
      %v5038 = vadd.f32 %v4838, %v5016
      %v5039 = vadd.f32 %v4839, %v5019
      %v5040 = vadd.f32 %v4840, %v5024
      %v5041 = vadd.f32 %v4841, %v5027
      %5042 = vst.msk [vmem:[#allocation3] sm:$0xff] %vm418, %v5030
      %5043 = vst.msk [vmem:[#allocation3 + $0x8] sm:$0xff] %vm418, %v5031
      %5044 = vst.msk [vmem:[#allocation3 + $0x10] sm:$0xff] %vm418, %v5032
      %5045 = vst.msk [vmem:[#allocation3 + $0x18] sm:$0xff] %vm418, %v5033
      %5046 = vst.msk [vmem:[#allocation3 + $0x20] sm:$0xff] %vm418, %v5034
      %5047 = vst.msk [vmem:[#allocation3 + $0x28] sm:$0xff] %vm418, %v5035
      %5048 = vst.msk [vmem:[#allocation3 + $0x30] sm:$0xff] %vm418, %v5036
      %5049 = vst.msk [vmem:[#allocation3 + $0x38] sm:$0xff] %vm418, %v5037
      %5050 = vst.msk [vmem:[#allocation3 + $0x40] sm:$0xff] %vm418, %v5038
      %5051 = vst.msk [vmem:[#allocation3 + $0x48] sm:$0xff] %vm418, %v5039
      %5052 = vst.msk [vmem:[#allocation3 + $0x50] sm:$0xff] %vm418, %v5040
      %5053 = vst.msk [vmem:[#allocation3 + $0x58] sm:$0xff] %vm418, %v5041
      %v5054 = vld [vmem:[%s298 + $0x18] sm:$0xe]
      %v5055 = vld [vmem:[%s298 + $0x1c] sm:$0xf]
      %v5056 = vld [vmem:[%s298 + $0x20] sm:$0xf]
      %v5057 = vld [vmem:[%s298 + $0x24] sm:$0xf]
      %v5058 = vld [vmem:[%s298 + $0x28] sm:$0xf]
      %v5059 = vld [vmem:[%s298 + $0x2c] sm:$0xf]
      %v5060 = vld [vmem:[%s298 + $0x30] sm:$0xf]
      %v5061 = vld [vmem:[%s298 + $0x34] sm:$0xf]
      %v5062 = vld [vmem:[%s298 + $0x38] sm:$0xf]
      %v5063 = vld [vmem:[%s298 + $0x3c] sm:$0xf]
      %v5064 = vld [vmem:[%s298 + $0x40] sm:$0xf]
      %v5065 = vld [vmem:[%s298 + $0x44] sm:$0xf]
      %v5066 = vld [vmem:[%s298 + $0x48] sm:$0x1]
      %v5067 = vld [vmem:[#allocation3] sm:$0xff]
      %v5068 = vld [vmem:[#allocation3 + $0x8] sm:$0xff]
      %v5069 = vld [vmem:[#allocation3 + $0x10] sm:$0xff]
      %v5070 = vld [vmem:[#allocation3 + $0x18] sm:$0xff]
      %v5071 = vld [vmem:[#allocation3 + $0x20] sm:$0xff]
      %v5072 = vld [vmem:[#allocation3 + $0x28] sm:$0xff]
      %v5073 = vld [vmem:[#allocation3 + $0x30] sm:$0xff]
      %v5074 = vld [vmem:[#allocation3 + $0x38] sm:$0xff]
      %v5075 = vld [vmem:[#allocation3 + $0x40] sm:$0xff]
      %v5076 = vld [vmem:[#allocation3 + $0x48] sm:$0xff]
      %v5077 = vld [vmem:[#allocation3 + $0x50] sm:$0xff]
      %v5078 = vld [vmem:[#allocation3 + $0x58] sm:$0xff]
      %v5079 = vld [vmem:[%s304 + $0x58] sm:$0xf]
      %v5093 = vunpack.c.l.b16 %v5054
      %v5094 = vunpack.c.l.b16 %v5055
      %v5095 = vunpack.c.l.b16 %v5056
      %v5096 = vunpack.c.l.b16 %v5057
      %v5097 = vunpack.c.l.b16 %v5058
      %v5098 = vunpack.c.l.b16 %v5059
      %v5099 = vunpack.c.l.b16 %v5060
      %v5100 = vunpack.c.l.b16 %v5061
      %v5101 = vunpack.c.l.b16 %v5062
      %v5102 = vunpack.c.l.b16 %v5063
      %v5103 = vunpack.c.l.b16 %v5064
      %v5104 = vunpack.c.l.b16 %v5065
      %v5105 = vunpack.c.l.b16 %v5066
      %v5106 = vpack.c.b16 %v5094, %v5093
      %v5107 = vpack.c.b16 %v5096, %v5095
      %v5108 = vpack.c.b16 %v5098, %v5097
      %v5109 = vpack.c.b16 %v5100, %v5099
      %v5110 = vpack.c.b16 %v5102, %v5101
      %v5111 = vpack.c.b16 %v5104, %v5103
      %v5112 = vpack.c.b16 %v5105, %v5105
      %v5113 = vrot.slane %v5106, 1
      %v5114 = vrot.slane %v5107, 1
      %v5115 = vsel %vm843, %v5113, %v5114
      %v5116 = vrot.slane %v5108, 1
      %v5117 = vsel %vm843, %v5114, %v5116
      %v5118 = vrot.slane %v5109, 1
      %v5119 = vsel %vm843, %v5116, %v5118
      %v5120 = vrot.slane %v5110, 1
      %v5121 = vsel %vm843, %v5118, %v5120
      %v5122 = vrot.slane %v5111, 1
      %v5123 = vsel %vm843, %v5120, %v5122
      %v5124 = vrot.slane %v5112, 1
      %v5125 = vsel %vm843, %v5122, %v5124
      %v5127 = vsel %vm418, %v5115, 0
      %v5130 = vsel %vm418, %v5117, 0
      %v5133 = vsel %vm418, %v5119, 0
      %v5136 = vsel %vm418, %v5121, 0
      %v5139 = vsel %vm418, %v5123, 0
      %v5142 = vsel %vm418, %v5125, 0
      %v5145 = vsel %vm437, %v5079, 0
      %5147 = vmatprep.subr.bf16.mxu0 0
      %5148 = vmatpush1.bf16.msra.mxu0 %v5145
      %5149 = vmatprep.subr.bf16.mxu0 0
      %5150 = vmatpush1.bf16.msra.mxu0 0
      %5151 = vmatprep.subr.bf16.mxu0 0
      %5152 = vmatpush1.bf16.msra.mxu0 0
      %5153 = vmatprep.subr.bf16.mxu0 0
      %5154 = vmatpush1.bf16.msra.mxu0 0
      %5155 = vmatprep.subr.bf16.mxu0 0
      %5156 = vmatpush1.bf16.msra.mxu0 0
      %5157 = vmatprep.subr.bf16.mxu0 0
      %5158 = vmatpush1.bf16.msra.mxu0 0
      %5159 = vmatprep.subr.bf16.mxu0 0
      %5160 = vmatpush1.bf16.msra.mxu0 0
      %5161 = vmatprep.subr.bf16.mxu0 0
      %5162 = vmatpush1.bf16.msra.mxu0 0
      %5163 = vmatprep.subr.bf16.mxu0 0
      %5164 = vmatpush1.bf16.msra.mxu0 0
      %5165 = vmatprep.subr.bf16.mxu0 0
      %5166 = vmatpush1.bf16.msra.mxu0 0
      %5167 = vmatprep.subr.bf16.mxu0 0
      %5168 = vmatpush1.bf16.msra.mxu0 0
      %5169 = vmatprep.subr.bf16.mxu0 0
      %5170 = vmatpush1.bf16.msra.mxu0 0
      %5171 = vmatprep.subr.bf16.mxu0 0
      %5172 = vmatpush1.bf16.msra.mxu0 0
      %5173 = vmatprep.subr.bf16.mxu0 0
      %5174 = vmatpush1.bf16.msra.mxu0 0
      %5175 = vmatprep.subr.bf16.mxu0 0
      %5176 = vmatpush1.bf16.msra.mxu0 0
      %5177 = vmatprep.subr.bf16.mxu0 0
      %5178 = vmatpush1.bf16.msra.mxu0 0
      %5179 = vmatprep.mubr.bf16.mxu0 0
      %5180 = vmatmul.mubr.bf16.gmra.mrb[0].mxu0 %v5127
      %v5181 = vpop.f32.mrb[0].mxu0
      %v5182 = vadd.f32 0.0, %v5181
      %v5183 = vpop.f32.mrb[0].mxu0
      %v5184 = vpop.f32.mrb[0].mxu0
      %v5185 = vadd.f32 0.0, %v5184
      %v5186 = vpop.f32.mrb[0].mxu0
      %5187 = vmatprep.mubr.bf16.mxu0 0
      %5188 = vmatmul.mubr.bf16.gmra.mrb[0].mxu0 %v5130
      %v5189 = vpop.f32.mrb[0].mxu0
      %v5190 = vadd.f32 0.0, %v5189
      %v5191 = vpop.f32.mrb[0].mxu0
      %v5192 = vpop.f32.mrb[0].mxu0
      %v5193 = vadd.f32 0.0, %v5192
      %v5194 = vpop.f32.mrb[0].mxu0
      %5195 = vmatprep.mubr.bf16.mxu0 0
      %5196 = vmatmul.mubr.bf16.gmra.mrb[0].mxu0 %v5133
      %v5197 = vpop.f32.mrb[0].mxu0
      %v5198 = vadd.f32 0.0, %v5197
      %v5199 = vpop.f32.mrb[0].mxu0
      %v5200 = vpop.f32.mrb[0].mxu0
      %v5201 = vadd.f32 0.0, %v5200
      %v5202 = vpop.f32.mrb[0].mxu0
      %5203 = vmatprep.mubr.bf16.mxu0 0
      %5204 = vmatmul.mubr.bf16.gmra.mrb[0].mxu0 %v5136
      %v5205 = vpop.f32.mrb[0].mxu0
      %v5206 = vadd.f32 0.0, %v5205
      %v5207 = vpop.f32.mrb[0].mxu0
      %v5208 = vpop.f32.mrb[0].mxu0
      %v5209 = vadd.f32 0.0, %v5208
      %v5210 = vpop.f32.mrb[0].mxu0
      %5211 = vmatprep.mubr.bf16.mxu0 0
      %5212 = vmatmul.mubr.bf16.gmra.mrb[0].mxu0 %v5139
      %v5213 = vpop.f32.mrb[0].mxu0
      %v5214 = vadd.f32 0.0, %v5213
      %v5215 = vpop.f32.mrb[0].mxu0
      %v5216 = vpop.f32.mrb[0].mxu0
      %v5217 = vadd.f32 0.0, %v5216
      %v5218 = vpop.f32.mrb[0].mxu0
      %5219 = vmatprep.mubr.bf16.mxu0 0
      %5220 = vmatmul.mubr.bf16.gmra.mrb[0].mxu0 %v5142
      %v5221 = vpop.f32.mrb[0].mxu0
      %v5222 = vadd.f32 0.0, %v5221
      %v5223 = vpop.f32.mrb[0].mxu0
      %v5224 = vpop.f32.mrb[0].mxu0
      %v5225 = vadd.f32 0.0, %v5224
      %v5226 = vpop.f32.mrb[0].mxu0
      %5227 = vdwg.mxu0
      %v5228 = vadd.f32 %v5067, %v5182
      %v5229 = vadd.f32 %v5068, %v5185
      %v5230 = vadd.f32 %v5069, %v5190
      %v5231 = vadd.f32 %v5070, %v5193
      %v5232 = vadd.f32 %v5071, %v5198
      %v5233 = vadd.f32 %v5072, %v5201
      %v5234 = vadd.f32 %v5073, %v5206
      %v5235 = vadd.f32 %v5074, %v5209
      %v5236 = vadd.f32 %v5075, %v5214
      %v5237 = vadd.f32 %v5076, %v5217
      %v5238 = vadd.f32 %v5077, %v5222
      %v5239 = vadd.f32 %v5078, %v5225
      %5240 = vst.msk [vmem:[#allocation3] sm:$0xff] %vm418, %v5228
      %5241 = vst.msk [vmem:[#allocation3 + $0x8] sm:$0xff] %vm418, %v5229
      %5242 = vst.msk [vmem:[#allocation3 + $0x10] sm:$0xff] %vm418, %v5230
      %5243 = vst.msk [vmem:[#allocation3 + $0x18] sm:$0xff] %vm418, %v5231
      %5244 = vst.msk [vmem:[#allocation3 + $0x20] sm:$0xff] %vm418, %v5232
      %5245 = vst.msk [vmem:[#allocation3 + $0x28] sm:$0xff] %vm418, %v5233
      %5246 = vst.msk [vmem:[#allocation3 + $0x30] sm:$0xff] %vm418, %v5234
      %5247 = vst.msk [vmem:[#allocation3 + $0x38] sm:$0xff] %vm418, %v5235
      %5248 = vst.msk [vmem:[#allocation3 + $0x40] sm:$0xff] %vm418, %v5236
      %5249 = vst.msk [vmem:[#allocation3 + $0x48] sm:$0xff] %vm418, %v5237
      %5250 = vst.msk [vmem:[#allocation3 + $0x50] sm:$0xff] %vm418, %v5238
      %5251 = vst.msk [vmem:[#allocation3 + $0x58] sm:$0xff] %vm418, %v5239
      %v5252 = vld [vmem:[%s298 + $0x18] sm:$0xe]
      %v5253 = vld [vmem:[%s298 + $0x1c] sm:$0xf]
      %v5254 = vld [vmem:[%s298 + $0x20] sm:$0xf]
      %v5255 = vld [vmem:[%s298 + $0x24] sm:$0xf]
      %v5256 = vld [vmem:[%s298 + $0x28] sm:$0xf]
      %v5257 = vld [vmem:[%s298 + $0x2c] sm:$0xf]
      %v5258 = vld [vmem:[%s298 + $0x30] sm:$0xf]
      %v5259 = vld [vmem:[%s298 + $0x34] sm:$0xf]
      %v5260 = vld [vmem:[%s298 + $0x38] sm:$0xf]
      %v5261 = vld [vmem:[%s298 + $0x3c] sm:$0xf]
      %v5262 = vld [vmem:[%s298 + $0x40] sm:$0xf]
      %v5263 = vld [vmem:[%s298 + $0x44] sm:$0xf]
      %v5264 = vld [vmem:[%s298 + $0x48] sm:$0x3]
      %v5265 = vld [vmem:[#allocation3] sm:$0xff]
      %v5266 = vld [vmem:[#allocation3 + $0x8] sm:$0xff]
      %v5267 = vld [vmem:[#allocation3 + $0x10] sm:$0xff]
      %v5268 = vld [vmem:[#allocation3 + $0x18] sm:$0xff]
      %v5269 = vld [vmem:[#allocation3 + $0x20] sm:$0xff]
      %v5270 = vld [vmem:[#allocation3 + $0x28] sm:$0xff]
      %v5271 = vld [vmem:[#allocation3 + $0x30] sm:$0xff]
      %v5272 = vld [vmem:[#allocation3 + $0x38] sm:$0xff]
      %v5273 = vld [vmem:[#allocation3 + $0x40] sm:$0xff]
      %v5274 = vld [vmem:[#allocation3 + $0x48] sm:$0xff]
      %v5275 = vld [vmem:[#allocation3 + $0x50] sm:$0xff]
      %v5276 = vld [vmem:[#allocation3 + $0x58] sm:$0xff]
      %v5277 = vld [vmem:[%s304 + $0x5c] sm:$0xf]
      %v5291 = vunpack.c.l.b16 %v5252
      %v5292 = vunpack.c.l.b16 %v5253
      %v5293 = vunpack.c.l.b16 %v5254
      %v5294 = vunpack.c.l.b16 %v5255
      %v5295 = vunpack.c.l.b16 %v5256
      %v5296 = vunpack.c.l.b16 %v5257
      %v5297 = vunpack.c.l.b16 %v5258
      %v5298 = vunpack.c.l.b16 %v5259
      %v5299 = vunpack.c.l.b16 %v5260
      %v5300 = vunpack.c.l.b16 %v5261
      %v5301 = vunpack.c.l.b16 %v5262
      %v5302 = vunpack.c.l.b16 %v5263
      %v5303 = vunpack.c.l.b16 %v5264
      %v5304 = vpack.c.b16 %v5292, %v5291
      %v5305 = vpack.c.b16 %v5294, %v5293
      %v5306 = vpack.c.b16 %v5296, %v5295
      %v5307 = vpack.c.b16 %v5298, %v5297
      %v5308 = vpack.c.b16 %v5300, %v5299
      %v5309 = vpack.c.b16 %v5302, %v5301
      %v5310 = vpack.c.b16 %v5303, %v5303
      %v5312 = vshrl.u32 %v5304, 16
      %v5314 = vrot.slane %v5312, 1
      %v5315 = vshll.u32 %v5304, 16
      %v5317 = vrot.slane %v5315, 2
      %v5318 = vor.u32 %v5314, %v5317
      %v5320 = vshrl.u32 %v5305, 16
      %v5322 = vrot.slane %v5320, 1
      %v5323 = vshll.u32 %v5305, 16
      %v5325 = vrot.slane %v5323, 2
      %v5326 = vor.u32 %v5322, %v5325
      %v5327 = vsel %vm1042, %v5318, %v5326
      %v5329 = vshrl.u32 %v5306, 16
      %v5331 = vrot.slane %v5329, 1
      %v5332 = vshll.u32 %v5306, 16
      %v5334 = vrot.slane %v5332, 2
      %v5335 = vor.u32 %v5331, %v5334
      %v5336 = vsel %vm1042, %v5326, %v5335
      %v5338 = vshrl.u32 %v5307, 16
      %v5340 = vrot.slane %v5338, 1
      %v5341 = vshll.u32 %v5307, 16
      %v5343 = vrot.slane %v5341, 2
      %v5344 = vor.u32 %v5340, %v5343
      %v5345 = vsel %vm1042, %v5335, %v5344
      %v5347 = vshrl.u32 %v5308, 16
      %v5349 = vrot.slane %v5347, 1
      %v5350 = vshll.u32 %v5308, 16
      %v5352 = vrot.slane %v5350, 2
      %v5353 = vor.u32 %v5349, %v5352
      %v5354 = vsel %vm1042, %v5344, %v5353
      %v5356 = vshrl.u32 %v5309, 16
      %v5358 = vrot.slane %v5356, 1
      %v5359 = vshll.u32 %v5309, 16
      %v5361 = vrot.slane %v5359, 2
      %v5362 = vor.u32 %v5358, %v5361
      %v5363 = vsel %vm1042, %v5353, %v5362
      %v5365 = vshrl.u32 %v5310, 16
      %v5367 = vrot.slane %v5365, 1
      %v5368 = vshll.u32 %v5310, 16
      %v5370 = vrot.slane %v5368, 2
      %v5371 = vor.u32 %v5367, %v5370
      %v5372 = vsel %vm1042, %v5362, %v5371
      %v5374 = vsel %vm418, %v5327, 0
      %v5377 = vsel %vm418, %v5336, 0
      %v5380 = vsel %vm418, %v5345, 0
      %v5383 = vsel %vm418, %v5354, 0
      %v5386 = vsel %vm418, %v5363, 0
      %v5389 = vsel %vm418, %v5372, 0
      %v5392 = vsel %vm437, %v5277, 0
      %5394 = vmatprep.subr.bf16.mxu0 0
      %5395 = vmatpush1.bf16.msra.mxu0 %v5392
      %5396 = vmatprep.subr.bf16.mxu0 0
      %5397 = vmatpush1.bf16.msra.mxu0 0
      %5398 = vmatprep.subr.bf16.mxu0 0
      %5399 = vmatpush1.bf16.msra.mxu0 0
      %5400 = vmatprep.subr.bf16.mxu0 0
      %5401 = vmatpush1.bf16.msra.mxu0 0
      %5402 = vmatprep.subr.bf16.mxu0 0
      %5403 = vmatpush1.bf16.msra.mxu0 0
      %5404 = vmatprep.subr.bf16.mxu0 0
      %5405 = vmatpush1.bf16.msra.mxu0 0
      %5406 = vmatprep.subr.bf16.mxu0 0
      %5407 = vmatpush1.bf16.msra.mxu0 0
      %5408 = vmatprep.subr.bf16.mxu0 0
      %5409 = vmatpush1.bf16.msra.mxu0 0
      %5410 = vmatprep.subr.bf16.mxu0 0
      %5411 = vmatpush1.bf16.msra.mxu0 0
      %5412 = vmatprep.subr.bf16.mxu0 0
      %5413 = vmatpush1.bf16.msra.mxu0 0
      %5414 = vmatprep.subr.bf16.mxu0 0
      %5415 = vmatpush1.bf16.msra.mxu0 0
      %5416 = vmatprep.subr.bf16.mxu0 0
      %5417 = vmatpush1.bf16.msra.mxu0 0
      %5418 = vmatprep.subr.bf16.mxu0 0
      %5419 = vmatpush1.bf16.msra.mxu0 0
      %5420 = vmatprep.subr.bf16.mxu0 0
      %5421 = vmatpush1.bf16.msra.mxu0 0
      %5422 = vmatprep.subr.bf16.mxu0 0
      %5423 = vmatpush1.bf16.msra.mxu0 0
      %5424 = vmatprep.subr.bf16.mxu0 0
      %5425 = vmatpush1.bf16.msra.mxu0 0
      %5426 = vmatprep.mubr.bf16.mxu0 0
      %5427 = vmatmul.mubr.bf16.gmra.mrb[0].mxu0 %v5374
      %v5428 = vpop.f32.mrb[0].mxu0
      %v5429 = vadd.f32 0.0, %v5428
      %v5430 = vpop.f32.mrb[0].mxu0
      %v5431 = vpop.f32.mrb[0].mxu0
      %v5432 = vadd.f32 0.0, %v5431
      %v5433 = vpop.f32.mrb[0].mxu0
      %5434 = vmatprep.mubr.bf16.mxu0 0
      %5435 = vmatmul.mubr.bf16.gmra.mrb[0].mxu0 %v5377
      %v5436 = vpop.f32.mrb[0].mxu0
      %v5437 = vadd.f32 0.0, %v5436
      %v5438 = vpop.f32.mrb[0].mxu0
      %v5439 = vpop.f32.mrb[0].mxu0
      %v5440 = vadd.f32 0.0, %v5439
      %v5441 = vpop.f32.mrb[0].mxu0
      %5442 = vmatprep.mubr.bf16.mxu0 0
      %5443 = vmatmul.mubr.bf16.gmra.mrb[0].mxu0 %v5380
      %v5444 = vpop.f32.mrb[0].mxu0
      %v5445 = vadd.f32 0.0, %v5444
      %v5446 = vpop.f32.mrb[0].mxu0
      %v5447 = vpop.f32.mrb[0].mxu0
      %v5448 = vadd.f32 0.0, %v5447
      %v5449 = vpop.f32.mrb[0].mxu0
      %5450 = vmatprep.mubr.bf16.mxu0 0
      %5451 = vmatmul.mubr.bf16.gmra.mrb[0].mxu0 %v5383
      %v5452 = vpop.f32.mrb[0].mxu0
      %v5453 = vadd.f32 0.0, %v5452
      %v5454 = vpop.f32.mrb[0].mxu0
      %v5455 = vpop.f32.mrb[0].mxu0
      %v5456 = vadd.f32 0.0, %v5455
      %v5457 = vpop.f32.mrb[0].mxu0
      %5458 = vmatprep.mubr.bf16.mxu0 0
      %5459 = vmatmul.mubr.bf16.gmra.mrb[0].mxu0 %v5386
      %v5460 = vpop.f32.mrb[0].mxu0
      %v5461 = vadd.f32 0.0, %v5460
      %v5462 = vpop.f32.mrb[0].mxu0
      %v5463 = vpop.f32.mrb[0].mxu0
      %v5464 = vadd.f32 0.0, %v5463
      %v5465 = vpop.f32.mrb[0].mxu0
      %5466 = vmatprep.mubr.bf16.mxu0 0
      %5467 = vmatmul.mubr.bf16.gmra.mrb[0].mxu0 %v5389
      %v5468 = vpop.f32.mrb[0].mxu0
      %v5469 = vadd.f32 0.0, %v5468
      %v5470 = vpop.f32.mrb[0].mxu0
      %v5471 = vpop.f32.mrb[0].mxu0
      %v5472 = vadd.f32 0.0, %v5471
      %v5473 = vpop.f32.mrb[0].mxu0
      %5474 = vdwg.mxu0
      %v5475 = vadd.f32 %v5265, %v5429
      %v5476 = vadd.f32 %v5266, %v5432
      %v5477 = vadd.f32 %v5267, %v5437
      %v5478 = vadd.f32 %v5268, %v5440
      %v5479 = vadd.f32 %v5269, %v5445
      %v5480 = vadd.f32 %v5270, %v5448
      %v5481 = vadd.f32 %v5271, %v5453
      %v5482 = vadd.f32 %v5272, %v5456
      %v5483 = vadd.f32 %v5273, %v5461
      %v5484 = vadd.f32 %v5274, %v5464
      %v5485 = vadd.f32 %v5275, %v5469
      %v5486 = vadd.f32 %v5276, %v5472
      %5487 = vst.msk [vmem:[#allocation3] sm:$0xff] %vm418, %v5475
      %5488 = vst.msk [vmem:[#allocation3 + $0x8] sm:$0xff] %vm418, %v5476
      %5489 = vst.msk [vmem:[#allocation3 + $0x10] sm:$0xff] %vm418, %v5477
      %5490 = vst.msk [vmem:[#allocation3 + $0x18] sm:$0xff] %vm418, %v5478
      %5491 = vst.msk [vmem:[#allocation3 + $0x20] sm:$0xff] %vm418, %v5479
      %5492 = vst.msk [vmem:[#allocation3 + $0x28] sm:$0xff] %vm418, %v5480
      %5493 = vst.msk [vmem:[#allocation3 + $0x30] sm:$0xff] %vm418, %v5481
      %5494 = vst.msk [vmem:[#allocation3 + $0x38] sm:$0xff] %vm418, %v5482
      %5495 = vst.msk [vmem:[#allocation3 + $0x40] sm:$0xff] %vm418, %v5483
      %5496 = vst.msk [vmem:[#allocation3 + $0x48] sm:$0xff] %vm418, %v5484
      %5497 = vst.msk [vmem:[#allocation3 + $0x50] sm:$0xff] %vm418, %v5485
      %5498 = vst.msk [vmem:[#allocation3 + $0x58] sm:$0xff] %vm418, %v5486
      %v5499 = vld [vmem:[%s298 + $0x18] sm:$0xc]
      %v5500 = vld [vmem:[%s298 + $0x1c] sm:$0xf]
      %v5501 = vld [vmem:[%s298 + $0x20] sm:$0xf]
      %v5502 = vld [vmem:[%s298 + $0x24] sm:$0xf]
      %v5503 = vld [vmem:[%s298 + $0x28] sm:$0xf]
      %v5504 = vld [vmem:[%s298 + $0x2c] sm:$0xf]
      %v5505 = vld [vmem:[%s298 + $0x30] sm:$0xf]
      %v5506 = vld [vmem:[%s298 + $0x34] sm:$0xf]
      %v5507 = vld [vmem:[%s298 + $0x38] sm:$0xf]
      %v5508 = vld [vmem:[%s298 + $0x3c] sm:$0xf]
      %v5509 = vld [vmem:[%s298 + $0x40] sm:$0xf]
      %v5510 = vld [vmem:[%s298 + $0x44] sm:$0xf]
      %v5511 = vld [vmem:[%s298 + $0x48] sm:$0x3]
      %v5512 = vld [vmem:[#allocation3] sm:$0xff]
      %v5513 = vld [vmem:[#allocation3 + $0x8] sm:$0xff]
      %v5514 = vld [vmem:[#allocation3 + $0x10] sm:$0xff]
      %v5515 = vld [vmem:[#allocation3 + $0x18] sm:$0xff]
      %v5516 = vld [vmem:[#allocation3 + $0x20] sm:$0xff]
      %v5517 = vld [vmem:[#allocation3 + $0x28] sm:$0xff]
      %v5518 = vld [vmem:[#allocation3 + $0x30] sm:$0xff]
      %v5519 = vld [vmem:[#allocation3 + $0x38] sm:$0xff]
      %v5520 = vld [vmem:[#allocation3 + $0x40] sm:$0xff]
      %v5521 = vld [vmem:[#allocation3 + $0x48] sm:$0xff]
      %v5522 = vld [vmem:[#allocation3 + $0x50] sm:$0xff]
      %v5523 = vld [vmem:[#allocation3 + $0x58] sm:$0xff]
      %v5524 = vld [vmem:[%s304 + $0x60] sm:$0xf]
      %v5538 = vunpack.c.l.b16 %v5499
      %v5539 = vunpack.c.l.b16 %v5500
      %v5540 = vunpack.c.l.b16 %v5501
      %v5541 = vunpack.c.l.b16 %v5502
      %v5542 = vunpack.c.l.b16 %v5503
      %v5543 = vunpack.c.l.b16 %v5504
      %v5544 = vunpack.c.l.b16 %v5505
      %v5545 = vunpack.c.l.b16 %v5506
      %v5546 = vunpack.c.l.b16 %v5507
      %v5547 = vunpack.c.l.b16 %v5508
      %v5548 = vunpack.c.l.b16 %v5509
      %v5549 = vunpack.c.l.b16 %v5510
      %v5550 = vunpack.c.l.b16 %v5511
      %v5551 = vpack.c.b16 %v5539, %v5538
      %v5552 = vpack.c.b16 %v5541, %v5540
      %v5553 = vpack.c.b16 %v5543, %v5542
      %v5554 = vpack.c.b16 %v5545, %v5544
      %v5555 = vpack.c.b16 %v5547, %v5546
      %v5556 = vpack.c.b16 %v5549, %v5548
      %v5557 = vpack.c.b16 %v5550, %v5550
      %v5558 = vrot.slane %v5551, 2
      %v5559 = vrot.slane %v5552, 2
      %v5560 = vsel %vm1290, %v5558, %v5559
      %v5561 = vrot.slane %v5553, 2
      %v5562 = vsel %vm1290, %v5559, %v5561
      %v5563 = vrot.slane %v5554, 2
      %v5564 = vsel %vm1290, %v5561, %v5563
      %v5565 = vrot.slane %v5555, 2
      %v5566 = vsel %vm1290, %v5563, %v5565
      %v5567 = vrot.slane %v5556, 2
      %v5568 = vsel %vm1290, %v5565, %v5567
      %v5569 = vrot.slane %v5557, 2
      %v5570 = vsel %vm1290, %v5567, %v5569
      %v5572 = vsel %vm418, %v5560, 0
      %v5575 = vsel %vm418, %v5562, 0
      %v5578 = vsel %vm418, %v5564, 0
      %v5581 = vsel %vm418, %v5566, 0
      %v5584 = vsel %vm418, %v5568, 0
      %v5587 = vsel %vm418, %v5570, 0
      %v5590 = vsel %vm437, %v5524, 0
      %5592 = vmatprep.subr.bf16.mxu0 0
      %5593 = vmatpush1.bf16.msra.mxu0 %v5590
      %5594 = vmatprep.subr.bf16.mxu0 0
      %5595 = vmatpush1.bf16.msra.mxu0 0
      %5596 = vmatprep.subr.bf16.mxu0 0
      %5597 = vmatpush1.bf16.msra.mxu0 0
      %5598 = vmatprep.subr.bf16.mxu0 0
      %5599 = vmatpush1.bf16.msra.mxu0 0
      %5600 = vmatprep.subr.bf16.mxu0 0
      %5601 = vmatpush1.bf16.msra.mxu0 0
      %5602 = vmatprep.subr.bf16.mxu0 0
      %5603 = vmatpush1.bf16.msra.mxu0 0
      %5604 = vmatprep.subr.bf16.mxu0 0
      %5605 = vmatpush1.bf16.msra.mxu0 0
      %5606 = vmatprep.subr.bf16.mxu0 0
      %5607 = vmatpush1.bf16.msra.mxu0 0
      %5608 = vmatprep.subr.bf16.mxu0 0
      %5609 = vmatpush1.bf16.msra.mxu0 0
      %5610 = vmatprep.subr.bf16.mxu0 0
      %5611 = vmatpush1.bf16.msra.mxu0 0
      %5612 = vmatprep.subr.bf16.mxu0 0
      %5613 = vmatpush1.bf16.msra.mxu0 0
      %5614 = vmatprep.subr.bf16.mxu0 0
      %5615 = vmatpush1.bf16.msra.mxu0 0
      %5616 = vmatprep.subr.bf16.mxu0 0
      %5617 = vmatpush1.bf16.msra.mxu0 0
      %5618 = vmatprep.subr.bf16.mxu0 0
      %5619 = vmatpush1.bf16.msra.mxu0 0
      %5620 = vmatprep.subr.bf16.mxu0 0
      %5621 = vmatpush1.bf16.msra.mxu0 0
      %5622 = vmatprep.subr.bf16.mxu0 0
      %5623 = vmatpush1.bf16.msra.mxu0 0
      %5624 = vmatprep.mubr.bf16.mxu0 0
      %5625 = vmatmul.mubr.bf16.gmra.mrb[0].mxu0 %v5572
      %v5626 = vpop.f32.mrb[0].mxu0
      %v5627 = vadd.f32 0.0, %v5626
      %v5628 = vpop.f32.mrb[0].mxu0
      %v5629 = vpop.f32.mrb[0].mxu0
      %v5630 = vadd.f32 0.0, %v5629
      %v5631 = vpop.f32.mrb[0].mxu0
      %5632 = vmatprep.mubr.bf16.mxu0 0
      %5633 = vmatmul.mubr.bf16.gmra.mrb[0].mxu0 %v5575
      %v5634 = vpop.f32.mrb[0].mxu0
      %v5635 = vadd.f32 0.0, %v5634
      %v5636 = vpop.f32.mrb[0].mxu0
      %v5637 = vpop.f32.mrb[0].mxu0
      %v5638 = vadd.f32 0.0, %v5637
      %v5639 = vpop.f32.mrb[0].mxu0
      %5640 = vmatprep.mubr.bf16.mxu0 0
      %5641 = vmatmul.mubr.bf16.gmra.mrb[0].mxu0 %v5578
      %v5642 = vpop.f32.mrb[0].mxu0
      %v5643 = vadd.f32 0.0, %v5642
      %v5644 = vpop.f32.mrb[0].mxu0
      %v5645 = vpop.f32.mrb[0].mxu0
      %v5646 = vadd.f32 0.0, %v5645
      %v5647 = vpop.f32.mrb[0].mxu0
      %5648 = vmatprep.mubr.bf16.mxu0 0
      %5649 = vmatmul.mubr.bf16.gmra.mrb[0].mxu0 %v5581
      %v5650 = vpop.f32.mrb[0].mxu0
      %v5651 = vadd.f32 0.0, %v5650
      %v5652 = vpop.f32.mrb[0].mxu0
      %v5653 = vpop.f32.mrb[0].mxu0
      %v5654 = vadd.f32 0.0, %v5653
      %v5655 = vpop.f32.mrb[0].mxu0
      %5656 = vmatprep.mubr.bf16.mxu0 0
      %5657 = vmatmul.mubr.bf16.gmra.mrb[0].mxu0 %v5584
      %v5658 = vpop.f32.mrb[0].mxu0
      %v5659 = vadd.f32 0.0, %v5658
      %v5660 = vpop.f32.mrb[0].mxu0
      %v5661 = vpop.f32.mrb[0].mxu0
      %v5662 = vadd.f32 0.0, %v5661
      %v5663 = vpop.f32.mrb[0].mxu0
      %5664 = vmatprep.mubr.bf16.mxu0 0
      %5665 = vmatmul.mubr.bf16.gmra.mrb[0].mxu0 %v5587
      %v5666 = vpop.f32.mrb[0].mxu0
      %v5667 = vadd.f32 0.0, %v5666
      %v5668 = vpop.f32.mrb[0].mxu0
      %v5669 = vpop.f32.mrb[0].mxu0
      %v5670 = vadd.f32 0.0, %v5669
      %v5671 = vpop.f32.mrb[0].mxu0
      %5672 = vdwg.mxu0
      %v5673 = vadd.f32 %v5512, %v5627
      %v5674 = vadd.f32 %v5513, %v5630
      %v5675 = vadd.f32 %v5514, %v5635
      %v5676 = vadd.f32 %v5515, %v5638
      %v5677 = vadd.f32 %v5516, %v5643
      %v5678 = vadd.f32 %v5517, %v5646
      %v5679 = vadd.f32 %v5518, %v5651
      %v5680 = vadd.f32 %v5519, %v5654
      %v5681 = vadd.f32 %v5520, %v5659
      %v5682 = vadd.f32 %v5521, %v5662
      %v5683 = vadd.f32 %v5522, %v5667
      %v5684 = vadd.f32 %v5523, %v5670
      %5685 = vst.msk [vmem:[#allocation3] sm:$0xff] %vm418, %v5673
      %5686 = vst.msk [vmem:[#allocation3 + $0x8] sm:$0xff] %vm418, %v5674
      %5687 = vst.msk [vmem:[#allocation3 + $0x10] sm:$0xff] %vm418, %v5675
      %5688 = vst.msk [vmem:[#allocation3 + $0x18] sm:$0xff] %vm418, %v5676
      %5689 = vst.msk [vmem:[#allocation3 + $0x20] sm:$0xff] %vm418, %v5677
      %5690 = vst.msk [vmem:[#allocation3 + $0x28] sm:$0xff] %vm418, %v5678
      %5691 = vst.msk [vmem:[#allocation3 + $0x30] sm:$0xff] %vm418, %v5679
      %5692 = vst.msk [vmem:[#allocation3 + $0x38] sm:$0xff] %vm418, %v5680
      %5693 = vst.msk [vmem:[#allocation3 + $0x40] sm:$0xff] %vm418, %v5681
      %5694 = vst.msk [vmem:[#allocation3 + $0x48] sm:$0xff] %vm418, %v5682
      %5695 = vst.msk [vmem:[#allocation3 + $0x50] sm:$0xff] %vm418, %v5683
      %5696 = vst.msk [vmem:[#allocation3 + $0x58] sm:$0xff] %vm418, %v5684
      %p5697 = scmp.ge.s32.totalorder %s24, 1
      %p5698 = scmp.le.s32.totalorder %s24, 3
      %p5699 = pnand %p5697, %p5698
      %p5700 = pneg %p5699
      // Predicated region
      $region41: #{sk_block_forward.4} parent=31 // pred_check
        _
      $region42: #{sk_block_forward.4} parent=31 // pred_check_branch
        %5702 = sbr.rel (%p5699) target = $region44
      $region43: #{sk_block_forward.4} parent=31 // pred_region
        %v5703 = vld [vmem:[%s298 + $0x4] sm:$0xc]
        %v5704 = vld [vmem:[%s298 + $0x8] sm:$0xf]
        %v5705 = vld [vmem:[%s298 + $0xc] sm:$0xf]
        %v5706 = vld [vmem:[%s298 + $0x10] sm:$0xf]
        %v5707 = vld [vmem:[%s298 + $0x14] sm:$0xf]
        %v5708 = vld [vmem:[%s298 + $0x18] sm:$0xf]
        %v5709 = vld [vmem:[%s298 + $0x1c] sm:$0xf]
        %v5710 = vld [vmem:[%s298 + $0x20] sm:$0xf]
        %v5711 = vld [vmem:[%s298 + $0x24] sm:$0xf]
        %v5712 = vld [vmem:[%s298 + $0x28] sm:$0xf]
        %v5713 = vld [vmem:[%s298 + $0x2c] sm:$0xf]
        %v5714 = vld [vmem:[%s298 + $0x30] sm:$0xf]
        %v5715 = vld [vmem:[%s298 + $0x34] sm:$0x7]
        %v5716 = vld [vmem:[#allocation2] sm:$0xff]
        %v5717 = vld [vmem:[#allocation2 + $0x8] sm:$0xff]
        %v5718 = vld [vmem:[#allocation2 + $0x10] sm:$0xff]
        %v5719 = vld [vmem:[#allocation2 + $0x18] sm:$0xff]
        %v5720 = vld [vmem:[#allocation2 + $0x20] sm:$0xff]
        %v5721 = vld [vmem:[#allocation2 + $0x28] sm:$0xff]
        %v5722 = vld [vmem:[#allocation2 + $0x30] sm:$0xff]
        %v5723 = vld [vmem:[#allocation2 + $0x38] sm:$0xff]
        %v5724 = vld [vmem:[#allocation2 + $0x40] sm:$0xff]
        %v5725 = vld [vmem:[#allocation2 + $0x48] sm:$0xff]
        %v5726 = vld [vmem:[#allocation2 + $0x50] sm:$0xff]
        %v5727 = vld [vmem:[#allocation2 + $0x58] sm:$0xff]
        %v5728 = vld [vmem:[%s304 + $0x64] sm:$0xf]
        %v5742 = vunpack.c.l.b16 %v5703
        %v5743 = vunpack.c.l.b16 %v5704
        %v5744 = vunpack.c.l.b16 %v5705
        %v5745 = vunpack.c.l.b16 %v5706
        %v5746 = vunpack.c.l.b16 %v5707
        %v5747 = vunpack.c.l.b16 %v5708
        %v5748 = vunpack.c.l.b16 %v5709
        %v5749 = vunpack.c.l.b16 %v5710
        %v5750 = vunpack.c.l.b16 %v5711
        %v5751 = vunpack.c.l.b16 %v5712
        %v5752 = vunpack.c.l.b16 %v5713
        %v5753 = vunpack.c.l.b16 %v5714
        %v5754 = vunpack.c.l.b16 %v5715
        %v5755 = vpack.c.b16 %v5743, %v5742
        %v5756 = vpack.c.b16 %v5745, %v5744
        %v5757 = vpack.c.b16 %v5747, %v5746
        %v5758 = vpack.c.b16 %v5749, %v5748
        %v5759 = vpack.c.b16 %v5751, %v5750
        %v5760 = vpack.c.b16 %v5753, %v5752
        %v5761 = vpack.c.b16 %v5754, %v5754
        %v5763 = vshrl.u32 %v5755, 16
        %v5765 = vrot.slane %v5763, 2
        %v5766 = vshll.u32 %v5755, 16
        %v5768 = vrot.slane %v5766, 3
        %v5769 = vor.u32 %v5765, %v5768
        %v5771 = vshrl.u32 %v5756, 16
        %v5773 = vrot.slane %v5771, 2
        %v5774 = vshll.u32 %v5756, 16
        %v5776 = vrot.slane %v5774, 3
        %v5777 = vor.u32 %v5773, %v5776
        %v5778 = vsel %vm1687, %v5769, %v5777
        %v5780 = vshrl.u32 %v5757, 16
        %v5782 = vrot.slane %v5780, 2
        %v5783 = vshll.u32 %v5757, 16
        %v5785 = vrot.slane %v5783, 3
        %v5786 = vor.u32 %v5782, %v5785
        %v5787 = vsel %vm1687, %v5777, %v5786
        %v5789 = vshrl.u32 %v5758, 16
        %v5791 = vrot.slane %v5789, 2
        %v5792 = vshll.u32 %v5758, 16
        %v5794 = vrot.slane %v5792, 3
        %v5795 = vor.u32 %v5791, %v5794
        %v5796 = vsel %vm1687, %v5786, %v5795
        %v5798 = vshrl.u32 %v5759, 16
        %v5800 = vrot.slane %v5798, 2
        %v5801 = vshll.u32 %v5759, 16
        %v5803 = vrot.slane %v5801, 3
        %v5804 = vor.u32 %v5800, %v5803
        %v5805 = vsel %vm1687, %v5795, %v5804
        %v5807 = vshrl.u32 %v5760, 16
        %v5809 = vrot.slane %v5807, 2
        %v5810 = vshll.u32 %v5760, 16
        %v5812 = vrot.slane %v5810, 3
        %v5813 = vor.u32 %v5809, %v5812
        %v5814 = vsel %vm1687, %v5804, %v5813
        %v5816 = vshrl.u32 %v5761, 16
        %v5818 = vrot.slane %v5816, 2
        %v5819 = vshll.u32 %v5761, 16
        %v5821 = vrot.slane %v5819, 3
        %v5822 = vor.u32 %v5818, %v5821
        %v5823 = vsel %vm1687, %v5813, %v5822
        %v5825 = vsel %vm418, %v5778, 0
        %v5828 = vsel %vm418, %v5787, 0
        %v5831 = vsel %vm418, %v5796, 0
        %v5834 = vsel %vm418, %v5805, 0
        %v5837 = vsel %vm418, %v5814, 0
        %v5840 = vsel %vm418, %v5823, 0
        %v5843 = vsel %vm437, %v5728, 0
        %5845 = vmatprep.subr.bf16.mxu0 0
        %5846 = vmatpush1.bf16.msra.mxu0 %v5843
        %5847 = vmatprep.subr.bf16.mxu0 0
        %5848 = vmatpush1.bf16.msra.mxu0 0
        %5849 = vmatprep.subr.bf16.mxu0 0
        %5850 = vmatpush1.bf16.msra.mxu0 0
        %5851 = vmatprep.subr.bf16.mxu0 0
        %5852 = vmatpush1.bf16.msra.mxu0 0
        %5853 = vmatprep.subr.bf16.mxu0 0
        %5854 = vmatpush1.bf16.msra.mxu0 0
        %5855 = vmatprep.subr.bf16.mxu0 0
        %5856 = vmatpush1.bf16.msra.mxu0 0
        %5857 = vmatprep.subr.bf16.mxu0 0
        %5858 = vmatpush1.bf16.msra.mxu0 0
        %5859 = vmatprep.subr.bf16.mxu0 0
        %5860 = vmatpush1.bf16.msra.mxu0 0
        %5861 = vmatprep.subr.bf16.mxu0 0
        %5862 = vmatpush1.bf16.msra.mxu0 0
        %5863 = vmatprep.subr.bf16.mxu0 0
        %5864 = vmatpush1.bf16.msra.mxu0 0
        %5865 = vmatprep.subr.bf16.mxu0 0
        %5866 = vmatpush1.bf16.msra.mxu0 0
        %5867 = vmatprep.subr.bf16.mxu0 0
        %5868 = vmatpush1.bf16.msra.mxu0 0
        %5869 = vmatprep.subr.bf16.mxu0 0
        %5870 = vmatpush1.bf16.msra.mxu0 0
        %5871 = vmatprep.subr.bf16.mxu0 0
        %5872 = vmatpush1.bf16.msra.mxu0 0
        %5873 = vmatprep.subr.bf16.mxu0 0
        %5874 = vmatpush1.bf16.msra.mxu0 0
        %5875 = vmatprep.subr.bf16.mxu0 0
        %5876 = vmatpush1.bf16.msra.mxu0 0
        %5877 = vmatprep.mubr.bf16.mxu0 0
        %5878 = vmatmul.mubr.bf16.gmra.mrb[0].mxu0 %v5825
        %v5879 = vpop.f32.mrb[0].mxu0
        %v5880 = vadd.f32 0.0, %v5879
        %v5881 = vpop.f32.mrb[0].mxu0
        %v5882 = vpop.f32.mrb[0].mxu0
        %v5883 = vadd.f32 0.0, %v5882
        %v5884 = vpop.f32.mrb[0].mxu0
        %5885 = vmatprep.mubr.bf16.mxu0 0
        %5886 = vmatmul.mubr.bf16.gmra.mrb[0].mxu0 %v5828
        %v5887 = vpop.f32.mrb[0].mxu0
        %v5888 = vadd.f32 0.0, %v5887
        %v5889 = vpop.f32.mrb[0].mxu0
        %v5890 = vpop.f32.mrb[0].mxu0
        %v5891 = vadd.f32 0.0, %v5890
        %v5892 = vpop.f32.mrb[0].mxu0
        %5893 = vmatprep.mubr.bf16.mxu0 0
        %5894 = vmatmul.mubr.bf16.gmra.mrb[0].mxu0 %v5831
        %v5895 = vpop.f32.mrb[0].mxu0
        %v5896 = vadd.f32 0.0, %v5895
        %v5897 = vpop.f32.mrb[0].mxu0
        %v5898 = vpop.f32.mrb[0].mxu0
        %v5899 = vadd.f32 0.0, %v5898
        %v5900 = vpop.f32.mrb[0].mxu0
        %5901 = vmatprep.mubr.bf16.mxu0 0
        %5902 = vmatmul.mubr.bf16.gmra.mrb[0].mxu0 %v5834
        %v5903 = vpop.f32.mrb[0].mxu0
        %v5904 = vadd.f32 0.0, %v5903
        %v5905 = vpop.f32.mrb[0].mxu0
        %v5906 = vpop.f32.mrb[0].mxu0
        %v5907 = vadd.f32 0.0, %v5906
        %v5908 = vpop.f32.mrb[0].mxu0
        %5909 = vmatprep.mubr.bf16.mxu0 0
        %5910 = vmatmul.mubr.bf16.gmra.mrb[0].mxu0 %v5837
        %v5911 = vpop.f32.mrb[0].mxu0
        %v5912 = vadd.f32 0.0, %v5911
        %v5913 = vpop.f32.mrb[0].mxu0
        %v5914 = vpop.f32.mrb[0].mxu0
        %v5915 = vadd.f32 0.0, %v5914
        %v5916 = vpop.f32.mrb[0].mxu0
        %5917 = vmatprep.mubr.bf16.mxu0 0
        %5918 = vmatmul.mubr.bf16.gmra.mrb[0].mxu0 %v5840
        %v5919 = vpop.f32.mrb[0].mxu0
        %v5920 = vadd.f32 0.0, %v5919
        %v5921 = vpop.f32.mrb[0].mxu0
        %v5922 = vpop.f32.mrb[0].mxu0
        %v5923 = vadd.f32 0.0, %v5922
        %v5924 = vpop.f32.mrb[0].mxu0
        %5925 = vdwg.mxu0
        %v5926 = vadd.f32 %v5716, %v5880
        %v5927 = vadd.f32 %v5717, %v5883
        %v5928 = vadd.f32 %v5718, %v5888
        %v5929 = vadd.f32 %v5719, %v5891
        %v5930 = vadd.f32 %v5720, %v5896
        %v5931 = vadd.f32 %v5721, %v5899
        %v5932 = vadd.f32 %v5722, %v5904
        %v5933 = vadd.f32 %v5723, %v5907
        %v5934 = vadd.f32 %v5724, %v5912
        %v5935 = vadd.f32 %v5725, %v5915
        %v5936 = vadd.f32 %v5726, %v5920
        %v5937 = vadd.f32 %v5727, %v5923
        %5938 = vst.msk [vmem:[#allocation2] sm:$0xff] %vm418, %v5926
        %5939 = vst.msk [vmem:[#allocation2 + $0x8] sm:$0xff] %vm418, %v5927
        %5940 = vst.msk [vmem:[#allocation2 + $0x10] sm:$0xff] %vm418, %v5928
        %5941 = vst.msk [vmem:[#allocation2 + $0x18] sm:$0xff] %vm418, %v5929
        %5942 = vst.msk [vmem:[#allocation2 + $0x20] sm:$0xff] %vm418, %v5930
        %5943 = vst.msk [vmem:[#allocation2 + $0x28] sm:$0xff] %vm418, %v5931
        %5944 = vst.msk [vmem:[#allocation2 + $0x30] sm:$0xff] %vm418, %v5932
        %5945 = vst.msk [vmem:[#allocation2 + $0x38] sm:$0xff] %vm418, %v5933
        %5946 = vst.msk [vmem:[#allocation2 + $0x40] sm:$0xff] %vm418, %v5934
        %5947 = vst.msk [vmem:[#allocation2 + $0x48] sm:$0xff] %vm418, %v5935
        %5948 = vst.msk [vmem:[#allocation2 + $0x50] sm:$0xff] %vm418, %v5936
        %5949 = vst.msk [vmem:[#allocation2 + $0x58] sm:$0xff] %vm418, %v5937
        %v5950 = vld [vmem:[%s298 + $0x4] sm:$0x8]
        %v5951 = vld [vmem:[%s298 + $0x8] sm:$0xf]
        %v5952 = vld [vmem:[%s298 + $0xc] sm:$0xf]
        %v5953 = vld [vmem:[%s298 + $0x10] sm:$0xf]
        %v5954 = vld [vmem:[%s298 + $0x14] sm:$0xf]
        %v5955 = vld [vmem:[%s298 + $0x18] sm:$0xf]
        %v5956 = vld [vmem:[%s298 + $0x1c] sm:$0xf]
        %v5957 = vld [vmem:[%s298 + $0x20] sm:$0xf]
        %v5958 = vld [vmem:[%s298 + $0x24] sm:$0xf]
        %v5959 = vld [vmem:[%s298 + $0x28] sm:$0xf]
        %v5960 = vld [vmem:[%s298 + $0x2c] sm:$0xf]
        %v5961 = vld [vmem:[%s298 + $0x30] sm:$0xf]
        %v5962 = vld [vmem:[%s298 + $0x34] sm:$0x7]
        %v5963 = vld [vmem:[#allocation2] sm:$0xff]
        %v5964 = vld [vmem:[#allocation2 + $0x8] sm:$0xff]
        %v5965 = vld [vmem:[#allocation2 + $0x10] sm:$0xff]
        %v5966 = vld [vmem:[#allocation2 + $0x18] sm:$0xff]
        %v5967 = vld [vmem:[#allocation2 + $0x20] sm:$0xff]
        %v5968 = vld [vmem:[#allocation2 + $0x28] sm:$0xff]
        %v5969 = vld [vmem:[#allocation2 + $0x30] sm:$0xff]
        %v5970 = vld [vmem:[#allocation2 + $0x38] sm:$0xff]
        %v5971 = vld [vmem:[#allocation2 + $0x40] sm:$0xff]
        %v5972 = vld [vmem:[#allocation2 + $0x48] sm:$0xff]
        %v5973 = vld [vmem:[#allocation2 + $0x50] sm:$0xff]
        %v5974 = vld [vmem:[#allocation2 + $0x58] sm:$0xff]
        %v5975 = vld [vmem:[%s304 + $0x68] sm:$0xf]
        %v5989 = vunpack.c.l.b16 %v5950
        %v5990 = vunpack.c.l.b16 %v5951
        %v5991 = vunpack.c.l.b16 %v5952
        %v5992 = vunpack.c.l.b16 %v5953
        %v5993 = vunpack.c.l.b16 %v5954
        %v5994 = vunpack.c.l.b16 %v5955
        %v5995 = vunpack.c.l.b16 %v5956
        %v5996 = vunpack.c.l.b16 %v5957
        %v5997 = vunpack.c.l.b16 %v5958
        %v5998 = vunpack.c.l.b16 %v5959
        %v5999 = vunpack.c.l.b16 %v5960
        %v6000 = vunpack.c.l.b16 %v5961
        %v6001 = vunpack.c.l.b16 %v5962
        %v6002 = vpack.c.b16 %v5990, %v5989
        %v6003 = vpack.c.b16 %v5992, %v5991
        %v6004 = vpack.c.b16 %v5994, %v5993
        %v6005 = vpack.c.b16 %v5996, %v5995
        %v6006 = vpack.c.b16 %v5998, %v5997
        %v6007 = vpack.c.b16 %v6000, %v5999
        %v6008 = vpack.c.b16 %v6001, %v6001
        %v6009 = vrot.slane %v6002, 3
        %v6010 = vrot.slane %v6003, 3
        %v6011 = vsel %vm1935, %v6009, %v6010
        %v6012 = vrot.slane %v6004, 3
        %v6013 = vsel %vm1935, %v6010, %v6012
        %v6014 = vrot.slane %v6005, 3
        %v6015 = vsel %vm1935, %v6012, %v6014
        %v6016 = vrot.slane %v6006, 3
        %v6017 = vsel %vm1935, %v6014, %v6016
        %v6018 = vrot.slane %v6007, 3
        %v6019 = vsel %vm1935, %v6016, %v6018
        %v6020 = vrot.slane %v6008, 3
        %v6021 = vsel %vm1935, %v6018, %v6020
        %v6023 = vsel %vm418, %v6011, 0
        %v6026 = vsel %vm418, %v6013, 0
        %v6029 = vsel %vm418, %v6015, 0
        %v6032 = vsel %vm418, %v6017, 0
        %v6035 = vsel %vm418, %v6019, 0
        %v6038 = vsel %vm418, %v6021, 0
        %v6041 = vsel %vm437, %v5975, 0
        %6043 = vmatprep.subr.bf16.mxu0 0
        %6044 = vmatpush1.bf16.msra.mxu0 %v6041
        %6045 = vmatprep.subr.bf16.mxu0 0
        %6046 = vmatpush1.bf16.msra.mxu0 0
        %6047 = vmatprep.subr.bf16.mxu0 0
        %6048 = vmatpush1.bf16.msra.mxu0 0
        %6049 = vmatprep.subr.bf16.mxu0 0
        %6050 = vmatpush1.bf16.msra.mxu0 0
        %6051 = vmatprep.subr.bf16.mxu0 0
        %6052 = vmatpush1.bf16.msra.mxu0 0
        %6053 = vmatprep.subr.bf16.mxu0 0
        %6054 = vmatpush1.bf16.msra.mxu0 0
        %6055 = vmatprep.subr.bf16.mxu0 0
        %6056 = vmatpush1.bf16.msra.mxu0 0
        %6057 = vmatprep.subr.bf16.mxu0 0
        %6058 = vmatpush1.bf16.msra.mxu0 0
        %6059 = vmatprep.subr.bf16.mxu0 0
        %6060 = vmatpush1.bf16.msra.mxu0 0
        %6061 = vmatprep.subr.bf16.mxu0 0
        %6062 = vmatpush1.bf16.msra.mxu0 0
        %6063 = vmatprep.subr.bf16.mxu0 0
        %6064 = vmatpush1.bf16.msra.mxu0 0
        %6065 = vmatprep.subr.bf16.mxu0 0
        %6066 = vmatpush1.bf16.msra.mxu0 0
        %6067 = vmatprep.subr.bf16.mxu0 0
        %6068 = vmatpush1.bf16.msra.mxu0 0
        %6069 = vmatprep.subr.bf16.mxu0 0
        %6070 = vmatpush1.bf16.msra.mxu0 0
        %6071 = vmatprep.subr.bf16.mxu0 0
        %6072 = vmatpush1.bf16.msra.mxu0 0
        %6073 = vmatprep.subr.bf16.mxu0 0
        %6074 = vmatpush1.bf16.msra.mxu0 0
        %6075 = vmatprep.mubr.bf16.mxu0 0
        %6076 = vmatmul.mubr.bf16.gmra.mrb[0].mxu0 %v6023
        %v6077 = vpop.f32.mrb[0].mxu0
        %v6078 = vadd.f32 0.0, %v6077
        %v6079 = vpop.f32.mrb[0].mxu0
        %v6080 = vpop.f32.mrb[0].mxu0
        %v6081 = vadd.f32 0.0, %v6080
        %v6082 = vpop.f32.mrb[0].mxu0
        %6083 = vmatprep.mubr.bf16.mxu0 0
        %6084 = vmatmul.mubr.bf16.gmra.mrb[0].mxu0 %v6026
        %v6085 = vpop.f32.mrb[0].mxu0
        %v6086 = vadd.f32 0.0, %v6085
        %v6087 = vpop.f32.mrb[0].mxu0
        %v6088 = vpop.f32.mrb[0].mxu0
        %v6089 = vadd.f32 0.0, %v6088
        %v6090 = vpop.f32.mrb[0].mxu0
        %6091 = vmatprep.mubr.bf16.mxu0 0
        %6092 = vmatmul.mubr.bf16.gmra.mrb[0].mxu0 %v6029
        %v6093 = vpop.f32.mrb[0].mxu0
        %v6094 = vadd.f32 0.0, %v6093
        %v6095 = vpop.f32.mrb[0].mxu0
        %v6096 = vpop.f32.mrb[0].mxu0
        %v6097 = vadd.f32 0.0, %v6096
        %v6098 = vpop.f32.mrb[0].mxu0
        %6099 = vmatprep.mubr.bf16.mxu0 0
        %6100 = vmatmul.mubr.bf16.gmra.mrb[0].mxu0 %v6032
        %v6101 = vpop.f32.mrb[0].mxu0
        %v6102 = vadd.f32 0.0, %v6101
        %v6103 = vpop.f32.mrb[0].mxu0
        %v6104 = vpop.f32.mrb[0].mxu0
        %v6105 = vadd.f32 0.0, %v6104
        %v6106 = vpop.f32.mrb[0].mxu0
        %6107 = vmatprep.mubr.bf16.mxu0 0
        %6108 = vmatmul.mubr.bf16.gmra.mrb[0].mxu0 %v6035
        %v6109 = vpop.f32.mrb[0].mxu0
        %v6110 = vadd.f32 0.0, %v6109
        %v6111 = vpop.f32.mrb[0].mxu0
        %v6112 = vpop.f32.mrb[0].mxu0
        %v6113 = vadd.f32 0.0, %v6112
        %v6114 = vpop.f32.mrb[0].mxu0
        %6115 = vmatprep.mubr.bf16.mxu0 0
        %6116 = vmatmul.mubr.bf16.gmra.mrb[0].mxu0 %v6038
        %v6117 = vpop.f32.mrb[0].mxu0
        %v6118 = vadd.f32 0.0, %v6117
        %v6119 = vpop.f32.mrb[0].mxu0
        %v6120 = vpop.f32.mrb[0].mxu0
        %v6121 = vadd.f32 0.0, %v6120
        %v6122 = vpop.f32.mrb[0].mxu0
        %6123 = vdwg.mxu0
        %v6124 = vadd.f32 %v5963, %v6078
        %v6125 = vadd.f32 %v5964, %v6081
        %v6126 = vadd.f32 %v5965, %v6086
        %v6127 = vadd.f32 %v5966, %v6089
        %v6128 = vadd.f32 %v5967, %v6094
        %v6129 = vadd.f32 %v5968, %v6097
        %v6130 = vadd.f32 %v5969, %v6102
        %v6131 = vadd.f32 %v5970, %v6105
        %v6132 = vadd.f32 %v5971, %v6110
        %v6133 = vadd.f32 %v5972, %v6113
        %v6134 = vadd.f32 %v5973, %v6118
        %v6135 = vadd.f32 %v5974, %v6121
        %6136 = vst.msk [vmem:[#allocation2] sm:$0xff] %vm418, %v6124
        %6137 = vst.msk [vmem:[#allocation2 + $0x8] sm:$0xff] %vm418, %v6125
        %6138 = vst.msk [vmem:[#allocation2 + $0x10] sm:$0xff] %vm418, %v6126
        %6139 = vst.msk [vmem:[#allocation2 + $0x18] sm:$0xff] %vm418, %v6127
        %6140 = vst.msk [vmem:[#allocation2 + $0x20] sm:$0xff] %vm418, %v6128
        %6141 = vst.msk [vmem:[#allocation2 + $0x28] sm:$0xff] %vm418, %v6129
        %6142 = vst.msk [vmem:[#allocation2 + $0x30] sm:$0xff] %vm418, %v6130
        %6143 = vst.msk [vmem:[#allocation2 + $0x38] sm:$0xff] %vm418, %v6131
        %6144 = vst.msk [vmem:[#allocation2 + $0x40] sm:$0xff] %vm418, %v6132
        %6145 = vst.msk [vmem:[#allocation2 + $0x48] sm:$0xff] %vm418, %v6133
        %6146 = vst.msk [vmem:[#allocation2 + $0x50] sm:$0xff] %vm418, %v6134
        %6147 = vst.msk [vmem:[#allocation2 + $0x58] sm:$0xff] %vm418, %v6135
        %v6148 = vld [vmem:[%s298 + $0x4] sm:$0x8]
        %v6149 = vld [vmem:[%s298 + $0x8] sm:$0xf]
        %v6150 = vld [vmem:[%s298 + $0xc] sm:$0xf]
        %v6151 = vld [vmem:[%s298 + $0x10] sm:$0xf]
        %v6152 = vld [vmem:[%s298 + $0x14] sm:$0xf]
        %v6153 = vld [vmem:[%s298 + $0x18] sm:$0xf]
        %v6154 = vld [vmem:[%s298 + $0x1c] sm:$0xf]
        %v6155 = vld [vmem:[%s298 + $0x20] sm:$0xf]
        %v6156 = vld [vmem:[%s298 + $0x24] sm:$0xf]
        %v6157 = vld [vmem:[%s298 + $0x28] sm:$0xf]
        %v6158 = vld [vmem:[%s298 + $0x2c] sm:$0xf]
        %v6159 = vld [vmem:[%s298 + $0x30] sm:$0xf]
        %v6160 = vld [vmem:[%s298 + $0x34] sm:$0xf]
        %v6161 = vld [vmem:[#allocation2] sm:$0xff]
        %v6162 = vld [vmem:[#allocation2 + $0x8] sm:$0xff]
        %v6163 = vld [vmem:[#allocation2 + $0x10] sm:$0xff]
        %v6164 = vld [vmem:[#allocation2 + $0x18] sm:$0xff]
        %v6165 = vld [vmem:[#allocation2 + $0x20] sm:$0xff]
        %v6166 = vld [vmem:[#allocation2 + $0x28] sm:$0xff]
        %v6167 = vld [vmem:[#allocation2 + $0x30] sm:$0xff]
        %v6168 = vld [vmem:[#allocation2 + $0x38] sm:$0xff]
        %v6169 = vld [vmem:[#allocation2 + $0x40] sm:$0xff]
        %v6170 = vld [vmem:[#allocation2 + $0x48] sm:$0xff]
        %v6171 = vld [vmem:[#allocation2 + $0x50] sm:$0xff]
        %v6172 = vld [vmem:[#allocation2 + $0x58] sm:$0xff]
        %v6173 = vld [vmem:[%s304 + $0x6c] sm:$0xf]
        %v6187 = vunpack.c.l.b16 %v6148
        %v6188 = vunpack.c.l.b16 %v6149
        %v6189 = vunpack.c.l.b16 %v6150
        %v6190 = vunpack.c.l.b16 %v6151
        %v6191 = vunpack.c.l.b16 %v6152
        %v6192 = vunpack.c.l.b16 %v6153
        %v6193 = vunpack.c.l.b16 %v6154
        %v6194 = vunpack.c.l.b16 %v6155
        %v6195 = vunpack.c.l.b16 %v6156
        %v6196 = vunpack.c.l.b16 %v6157
        %v6197 = vunpack.c.l.b16 %v6158
        %v6198 = vunpack.c.l.b16 %v6159
        %v6199 = vunpack.c.l.b16 %v6160
        %v6200 = vpack.c.b16 %v6188, %v6187
        %v6201 = vpack.c.b16 %v6190, %v6189
        %v6202 = vpack.c.b16 %v6192, %v6191
        %v6203 = vpack.c.b16 %v6194, %v6193
        %v6204 = vpack.c.b16 %v6196, %v6195
        %v6205 = vpack.c.b16 %v6198, %v6197
        %v6206 = vpack.c.b16 %v6199, %v6199
        %v6208 = vshrl.u32 %v6200, 16
        %v6210 = vrot.slane %v6208, 3
        %v6211 = vshll.u32 %v6200, 16
        %v6213 = vrot.slane %v6211, 4
        %v6214 = vor.u32 %v6210, %v6213
        %v6216 = vshrl.u32 %v6201, 16
        %v6218 = vrot.slane %v6216, 3
        %v6219 = vshll.u32 %v6201, 16
        %v6221 = vrot.slane %v6219, 4
        %v6222 = vor.u32 %v6218, %v6221
        %v6223 = vsel %vm2134, %v6214, %v6222
        %v6225 = vshrl.u32 %v6202, 16
        %v6227 = vrot.slane %v6225, 3
        %v6228 = vshll.u32 %v6202, 16
        %v6230 = vrot.slane %v6228, 4
        %v6231 = vor.u32 %v6227, %v6230
        %v6232 = vsel %vm2134, %v6222, %v6231
        %v6234 = vshrl.u32 %v6203, 16
        %v6236 = vrot.slane %v6234, 3
        %v6237 = vshll.u32 %v6203, 16
        %v6239 = vrot.slane %v6237, 4
        %v6240 = vor.u32 %v6236, %v6239
        %v6241 = vsel %vm2134, %v6231, %v6240
        %v6243 = vshrl.u32 %v6204, 16
        %v6245 = vrot.slane %v6243, 3
        %v6246 = vshll.u32 %v6204, 16
        %v6248 = vrot.slane %v6246, 4
        %v6249 = vor.u32 %v6245, %v6248
        %v6250 = vsel %vm2134, %v6240, %v6249
        %v6252 = vshrl.u32 %v6205, 16
        %v6254 = vrot.slane %v6252, 3
        %v6255 = vshll.u32 %v6205, 16
        %v6257 = vrot.slane %v6255, 4
        %v6258 = vor.u32 %v6254, %v6257
        %v6259 = vsel %vm2134, %v6249, %v6258
        %v6261 = vshrl.u32 %v6206, 16
        %v6263 = vrot.slane %v6261, 3
        %v6264 = vshll.u32 %v6206, 16
        %v6266 = vrot.slane %v6264, 4
        %v6267 = vor.u32 %v6263, %v6266
        %v6268 = vsel %vm2134, %v6258, %v6267
        %v6270 = vsel %vm418, %v6223, 0
        %v6273 = vsel %vm418, %v6232, 0
        %v6276 = vsel %vm418, %v6241, 0
        %v6279 = vsel %vm418, %v6250, 0
        %v6282 = vsel %vm418, %v6259, 0
        %v6285 = vsel %vm418, %v6268, 0
        %v6288 = vsel %vm437, %v6173, 0
        %6290 = vmatprep.subr.bf16.mxu0 0
        %6291 = vmatpush1.bf16.msra.mxu0 %v6288
        %6292 = vmatprep.subr.bf16.mxu0 0
        %6293 = vmatpush1.bf16.msra.mxu0 0
        %6294 = vmatprep.subr.bf16.mxu0 0
        %6295 = vmatpush1.bf16.msra.mxu0 0
        %6296 = vmatprep.subr.bf16.mxu0 0
        %6297 = vmatpush1.bf16.msra.mxu0 0
        %6298 = vmatprep.subr.bf16.mxu0 0
        %6299 = vmatpush1.bf16.msra.mxu0 0
        %6300 = vmatprep.subr.bf16.mxu0 0
        %6301 = vmatpush1.bf16.msra.mxu0 0
        %6302 = vmatprep.subr.bf16.mxu0 0
        %6303 = vmatpush1.bf16.msra.mxu0 0
        %6304 = vmatprep.subr.bf16.mxu0 0
        %6305 = vmatpush1.bf16.msra.mxu0 0
        %6306 = vmatprep.subr.bf16.mxu0 0
        %6307 = vmatpush1.bf16.msra.mxu0 0
        %6308 = vmatprep.subr.bf16.mxu0 0
        %6309 = vmatpush1.bf16.msra.mxu0 0
        %6310 = vmatprep.subr.bf16.mxu0 0
        %6311 = vmatpush1.bf16.msra.mxu0 0
        %6312 = vmatprep.subr.bf16.mxu0 0
        %6313 = vmatpush1.bf16.msra.mxu0 0
        %6314 = vmatprep.subr.bf16.mxu0 0
        %6315 = vmatpush1.bf16.msra.mxu0 0
        %6316 = vmatprep.subr.bf16.mxu0 0
        %6317 = vmatpush1.bf16.msra.mxu0 0
        %6318 = vmatprep.subr.bf16.mxu0 0
        %6319 = vmatpush1.bf16.msra.mxu0 0
        %6320 = vmatprep.subr.bf16.mxu0 0
        %6321 = vmatpush1.bf16.msra.mxu0 0
        %6322 = vmatprep.mubr.bf16.mxu0 0
        %6323 = vmatmul.mubr.bf16.gmra.mrb[0].mxu0 %v6270
        %v6324 = vpop.f32.mrb[0].mxu0
        %v6325 = vadd.f32 0.0, %v6324
        %v6326 = vpop.f32.mrb[0].mxu0
        %v6327 = vpop.f32.mrb[0].mxu0
        %v6328 = vadd.f32 0.0, %v6327
        %v6329 = vpop.f32.mrb[0].mxu0
        %6330 = vmatprep.mubr.bf16.mxu0 0
        %6331 = vmatmul.mubr.bf16.gmra.mrb[0].mxu0 %v6273
        %v6332 = vpop.f32.mrb[0].mxu0
        %v6333 = vadd.f32 0.0, %v6332
        %v6334 = vpop.f32.mrb[0].mxu0
        %v6335 = vpop.f32.mrb[0].mxu0
        %v6336 = vadd.f32 0.0, %v6335
        %v6337 = vpop.f32.mrb[0].mxu0
        %6338 = vmatprep.mubr.bf16.mxu0 0
        %6339 = vmatmul.mubr.bf16.gmra.mrb[0].mxu0 %v6276
        %v6340 = vpop.f32.mrb[0].mxu0
        %v6341 = vadd.f32 0.0, %v6340
        %v6342 = vpop.f32.mrb[0].mxu0
        %v6343 = vpop.f32.mrb[0].mxu0
        %v6344 = vadd.f32 0.0, %v6343
        %v6345 = vpop.f32.mrb[0].mxu0
        %6346 = vmatprep.mubr.bf16.mxu0 0
        %6347 = vmatmul.mubr.bf16.gmra.mrb[0].mxu0 %v6279
        %v6348 = vpop.f32.mrb[0].mxu0
        %v6349 = vadd.f32 0.0, %v6348
        %v6350 = vpop.f32.mrb[0].mxu0
        %v6351 = vpop.f32.mrb[0].mxu0
        %v6352 = vadd.f32 0.0, %v6351
        %v6353 = vpop.f32.mrb[0].mxu0
        %6354 = vmatprep.mubr.bf16.mxu0 0
        %6355 = vmatmul.mubr.bf16.gmra.mrb[0].mxu0 %v6282
        %v6356 = vpop.f32.mrb[0].mxu0
        %v6357 = vadd.f32 0.0, %v6356
        %v6358 = vpop.f32.mrb[0].mxu0
        %v6359 = vpop.f32.mrb[0].mxu0
        %v6360 = vadd.f32 0.0, %v6359
        %v6361 = vpop.f32.mrb[0].mxu0
        %6362 = vmatprep.mubr.bf16.mxu0 0
        %6363 = vmatmul.mubr.bf16.gmra.mrb[0].mxu0 %v6285
        %v6364 = vpop.f32.mrb[0].mxu0
        %v6365 = vadd.f32 0.0, %v6364
        %v6366 = vpop.f32.mrb[0].mxu0
        %v6367 = vpop.f32.mrb[0].mxu0
        %v6368 = vadd.f32 0.0, %v6367
        %v6369 = vpop.f32.mrb[0].mxu0
        %6370 = vdwg.mxu0
        %v6371 = vadd.f32 %v6161, %v6325
        %v6372 = vadd.f32 %v6162, %v6328
        %v6373 = vadd.f32 %v6163, %v6333
        %v6374 = vadd.f32 %v6164, %v6336
        %v6375 = vadd.f32 %v6165, %v6341
        %v6376 = vadd.f32 %v6166, %v6344
        %v6377 = vadd.f32 %v6167, %v6349
        %v6378 = vadd.f32 %v6168, %v6352
        %v6379 = vadd.f32 %v6169, %v6357
        %v6380 = vadd.f32 %v6170, %v6360
        %v6381 = vadd.f32 %v6171, %v6365
        %v6382 = vadd.f32 %v6172, %v6368
        %6383 = vst.msk [vmem:[#allocation2] sm:$0xff] %vm418, %v6371
        %6384 = vst.msk [vmem:[#allocation2 + $0x8] sm:$0xff] %vm418, %v6372
        %6385 = vst.msk [vmem:[#allocation2 + $0x10] sm:$0xff] %vm418, %v6373
        %6386 = vst.msk [vmem:[#allocation2 + $0x18] sm:$0xff] %vm418, %v6374
        %6387 = vst.msk [vmem:[#allocation2 + $0x20] sm:$0xff] %vm418, %v6375
        %6388 = vst.msk [vmem:[#allocation2 + $0x28] sm:$0xff] %vm418, %v6376
        %6389 = vst.msk [vmem:[#allocation2 + $0x30] sm:$0xff] %vm418, %v6377
        %6390 = vst.msk [vmem:[#allocation2 + $0x38] sm:$0xff] %vm418, %v6378
        %6391 = vst.msk [vmem:[#allocation2 + $0x40] sm:$0xff] %vm418, %v6379
        %6392 = vst.msk [vmem:[#allocation2 + $0x48] sm:$0xff] %vm418, %v6380
        %6393 = vst.msk [vmem:[#allocation2 + $0x50] sm:$0xff] %vm418, %v6381
        %6394 = vst.msk [vmem:[#allocation2 + $0x58] sm:$0xff] %vm418, %v6382
        %v6395 = vld [vmem:[%s298 + $0xc] sm:$0xf]
        %v6396 = vld [vmem:[%s298 + $0x10] sm:$0xf]
        %v6397 = vld [vmem:[%s298 + $0x14] sm:$0xf]
        %v6398 = vld [vmem:[%s298 + $0x18] sm:$0xf]
        %v6399 = vld [vmem:[%s298 + $0x1c] sm:$0xf]
        %v6400 = vld [vmem:[%s298 + $0x20] sm:$0xf]
        %v6401 = vld [vmem:[%s298 + $0x24] sm:$0xf]
        %v6402 = vld [vmem:[%s298 + $0x28] sm:$0xf]
        %v6403 = vld [vmem:[%s298 + $0x2c] sm:$0xf]
        %v6404 = vld [vmem:[%s298 + $0x30] sm:$0xf]
        %v6405 = vld [vmem:[%s298 + $0x34] sm:$0xf]
        %v6406 = vld [vmem:[%s298 + $0x38] sm:$0xf]
        %v6407 = vld [vmem:[%s298 + $0x3c] sm:$0x1]
        %v6408 = vld [vmem:[#allocation2] sm:$0xff]
        %v6409 = vld [vmem:[#allocation2 + $0x8] sm:$0xff]
        %v6410 = vld [vmem:[#allocation2 + $0x10] sm:$0xff]
        %v6411 = vld [vmem:[#allocation2 + $0x18] sm:$0xff]
        %v6412 = vld [vmem:[#allocation2 + $0x20] sm:$0xff]
        %v6413 = vld [vmem:[#allocation2 + $0x28] sm:$0xff]
        %v6414 = vld [vmem:[#allocation2 + $0x30] sm:$0xff]
        %v6415 = vld [vmem:[#allocation2 + $0x38] sm:$0xff]
        %v6416 = vld [vmem:[#allocation2 + $0x40] sm:$0xff]
        %v6417 = vld [vmem:[#allocation2 + $0x48] sm:$0xff]
        %v6418 = vld [vmem:[#allocation2 + $0x50] sm:$0xff]
        %v6419 = vld [vmem:[#allocation2 + $0x58] sm:$0xff]
        %v6420 = vld [vmem:[%s304 + $0x70] sm:$0xf]
        %v6434 = vunpack.c.l.b16 %v6395
        %v6435 = vunpack.c.l.b16 %v6396
        %v6436 = vunpack.c.l.b16 %v6397
        %v6437 = vunpack.c.l.b16 %v6398
        %v6438 = vunpack.c.l.b16 %v6399
        %v6439 = vunpack.c.l.b16 %v6400
        %v6440 = vunpack.c.l.b16 %v6401
        %v6441 = vunpack.c.l.b16 %v6402
        %v6442 = vunpack.c.l.b16 %v6403
        %v6443 = vunpack.c.l.b16 %v6404
        %v6444 = vunpack.c.l.b16 %v6405
        %v6445 = vunpack.c.l.b16 %v6406
        %v6446 = vunpack.c.l.b16 %v6407
        %v6447 = vpack.c.b16 %v6435, %v6434
        %v6448 = vpack.c.b16 %v6437, %v6436
        %v6449 = vpack.c.b16 %v6439, %v6438
        %v6450 = vpack.c.b16 %v6441, %v6440
        %v6451 = vpack.c.b16 %v6443, %v6442
        %v6452 = vpack.c.b16 %v6445, %v6444
        %v6453 = vpack.c.b16 %v6446, %v6446
        %v6455 = vshrl.u32 %v6447, 16
        %v6457 = vshll.u32 %v6447, 16
        %v6459 = vrot.slane %v6457, 1
        %v6460 = vor.u32 %v6455, %v6459
        %v6462 = vshll.u32 %v6448, 16
        %v6464 = vrot.slane %v6462, 1
        %v6465 = vsel %vm605, %v6460, %v6464
        %v6466 = vshrl.u32 %v6448, 16
        %v6468 = vor.u32 %v6466, %v6464
        %v6470 = vshll.u32 %v6449, 16
        %v6472 = vrot.slane %v6470, 1
        %v6473 = vsel %vm605, %v6468, %v6472
        %v6474 = vshrl.u32 %v6449, 16
        %v6476 = vor.u32 %v6474, %v6472
        %v6478 = vshll.u32 %v6450, 16
        %v6480 = vrot.slane %v6478, 1
        %v6481 = vsel %vm605, %v6476, %v6480
        %v6482 = vshrl.u32 %v6450, 16
        %v6484 = vor.u32 %v6482, %v6480
        %v6486 = vshll.u32 %v6451, 16
        %v6488 = vrot.slane %v6486, 1
        %v6489 = vsel %vm605, %v6484, %v6488
        %v6490 = vshrl.u32 %v6451, 16
        %v6492 = vor.u32 %v6490, %v6488
        %v6494 = vshll.u32 %v6452, 16
        %v6496 = vrot.slane %v6494, 1
        %v6497 = vsel %vm605, %v6492, %v6496
        %v6498 = vshrl.u32 %v6452, 16
        %v6500 = vor.u32 %v6498, %v6496
        %v6502 = vshll.u32 %v6453, 16
        %v6504 = vrot.slane %v6502, 1
        %v6505 = vsel %vm605, %v6500, %v6504
        %v6507 = vsel %vm418, %v6465, 0
        %v6510 = vsel %vm418, %v6473, 0
        %v6513 = vsel %vm418, %v6481, 0
        %v6516 = vsel %vm418, %v6489, 0
        %v6519 = vsel %vm418, %v6497, 0
        %v6522 = vsel %vm418, %v6505, 0
        %v6525 = vsel %vm437, %v6420, 0
        %6527 = vmatprep.subr.bf16.mxu0 0
        %6528 = vmatpush1.bf16.msra.mxu0 %v6525
        %6529 = vmatprep.subr.bf16.mxu0 0
        %6530 = vmatpush1.bf16.msra.mxu0 0
        %6531 = vmatprep.subr.bf16.mxu0 0
        %6532 = vmatpush1.bf16.msra.mxu0 0
        %6533 = vmatprep.subr.bf16.mxu0 0
        %6534 = vmatpush1.bf16.msra.mxu0 0
        %6535 = vmatprep.subr.bf16.mxu0 0
        %6536 = vmatpush1.bf16.msra.mxu0 0
        %6537 = vmatprep.subr.bf16.mxu0 0
        %6538 = vmatpush1.bf16.msra.mxu0 0
        %6539 = vmatprep.subr.bf16.mxu0 0
        %6540 = vmatpush1.bf16.msra.mxu0 0
        %6541 = vmatprep.subr.bf16.mxu0 0
        %6542 = vmatpush1.bf16.msra.mxu0 0
        %6543 = vmatprep.subr.bf16.mxu0 0
        %6544 = vmatpush1.bf16.msra.mxu0 0
        %6545 = vmatprep.subr.bf16.mxu0 0
        %6546 = vmatpush1.bf16.msra.mxu0 0
        %6547 = vmatprep.subr.bf16.mxu0 0
        %6548 = vmatpush1.bf16.msra.mxu0 0
        %6549 = vmatprep.subr.bf16.mxu0 0
        %6550 = vmatpush1.bf16.msra.mxu0 0
        %6551 = vmatprep.subr.bf16.mxu0 0
        %6552 = vmatpush1.bf16.msra.mxu0 0
        %6553 = vmatprep.subr.bf16.mxu0 0
        %6554 = vmatpush1.bf16.msra.mxu0 0
        %6555 = vmatprep.subr.bf16.mxu0 0
        %6556 = vmatpush1.bf16.msra.mxu0 0
        %6557 = vmatprep.subr.bf16.mxu0 0
        %6558 = vmatpush1.bf16.msra.mxu0 0
        %6559 = vmatprep.mubr.bf16.mxu0 0
        %6560 = vmatmul.mubr.bf16.gmra.mrb[0].mxu0 %v6507
        %v6561 = vpop.f32.mrb[0].mxu0
        %v6562 = vadd.f32 0.0, %v6561
        %v6563 = vpop.f32.mrb[0].mxu0
        %v6564 = vpop.f32.mrb[0].mxu0
        %v6565 = vadd.f32 0.0, %v6564
        %v6566 = vpop.f32.mrb[0].mxu0
        %6567 = vmatprep.mubr.bf16.mxu0 0
        %6568 = vmatmul.mubr.bf16.gmra.mrb[0].mxu0 %v6510
        %v6569 = vpop.f32.mrb[0].mxu0
        %v6570 = vadd.f32 0.0, %v6569
        %v6571 = vpop.f32.mrb[0].mxu0
        %v6572 = vpop.f32.mrb[0].mxu0
        %v6573 = vadd.f32 0.0, %v6572
        %v6574 = vpop.f32.mrb[0].mxu0
        %6575 = vmatprep.mubr.bf16.mxu0 0
        %6576 = vmatmul.mubr.bf16.gmra.mrb[0].mxu0 %v6513
        %v6577 = vpop.f32.mrb[0].mxu0
        %v6578 = vadd.f32 0.0, %v6577
        %v6579 = vpop.f32.mrb[0].mxu0
        %v6580 = vpop.f32.mrb[0].mxu0
        %v6581 = vadd.f32 0.0, %v6580
        %v6582 = vpop.f32.mrb[0].mxu0
        %6583 = vmatprep.mubr.bf16.mxu0 0
        %6584 = vmatmul.mubr.bf16.gmra.mrb[0].mxu0 %v6516
        %v6585 = vpop.f32.mrb[0].mxu0
        %v6586 = vadd.f32 0.0, %v6585
        %v6587 = vpop.f32.mrb[0].mxu0
        %v6588 = vpop.f32.mrb[0].mxu0
        %v6589 = vadd.f32 0.0, %v6588
        %v6590 = vpop.f32.mrb[0].mxu0
        %6591 = vmatprep.mubr.bf16.mxu0 0
        %6592 = vmatmul.mubr.bf16.gmra.mrb[0].mxu0 %v6519
        %v6593 = vpop.f32.mrb[0].mxu0
        %v6594 = vadd.f32 0.0, %v6593
        %v6595 = vpop.f32.mrb[0].mxu0
        %v6596 = vpop.f32.mrb[0].mxu0
        %v6597 = vadd.f32 0.0, %v6596
        %v6598 = vpop.f32.mrb[0].mxu0
        %6599 = vmatprep.mubr.bf16.mxu0 0
        %6600 = vmatmul.mubr.bf16.gmra.mrb[0].mxu0 %v6522
        %v6601 = vpop.f32.mrb[0].mxu0
        %v6602 = vadd.f32 0.0, %v6601
        %v6603 = vpop.f32.mrb[0].mxu0
        %v6604 = vpop.f32.mrb[0].mxu0
        %v6605 = vadd.f32 0.0, %v6604
        %v6606 = vpop.f32.mrb[0].mxu0
        %6607 = vdwg.mxu0
        %v6608 = vadd.f32 %v6408, %v6562
        %v6609 = vadd.f32 %v6409, %v6565
        %v6610 = vadd.f32 %v6410, %v6570
        %v6611 = vadd.f32 %v6411, %v6573
        %v6612 = vadd.f32 %v6412, %v6578
        %v6613 = vadd.f32 %v6413, %v6581
        %v6614 = vadd.f32 %v6414, %v6586
        %v6615 = vadd.f32 %v6415, %v6589
        %v6616 = vadd.f32 %v6416, %v6594
        %v6617 = vadd.f32 %v6417, %v6597
        %v6618 = vadd.f32 %v6418, %v6602
        %v6619 = vadd.f32 %v6419, %v6605
        %6620 = vst.msk [vmem:[#allocation2] sm:$0xff] %vm418, %v6608
        %6621 = vst.msk [vmem:[#allocation2 + $0x8] sm:$0xff] %vm418, %v6609
        %6622 = vst.msk [vmem:[#allocation2 + $0x10] sm:$0xff] %vm418, %v6610
        %6623 = vst.msk [vmem:[#allocation2 + $0x18] sm:$0xff] %vm418, %v6611
        %6624 = vst.msk [vmem:[#allocation2 + $0x20] sm:$0xff] %vm418, %v6612
        %6625 = vst.msk [vmem:[#allocation2 + $0x28] sm:$0xff] %vm418, %v6613
        %6626 = vst.msk [vmem:[#allocation2 + $0x30] sm:$0xff] %vm418, %v6614
        %6627 = vst.msk [vmem:[#allocation2 + $0x38] sm:$0xff] %vm418, %v6615
        %6628 = vst.msk [vmem:[#allocation2 + $0x40] sm:$0xff] %vm418, %v6616
        %6629 = vst.msk [vmem:[#allocation2 + $0x48] sm:$0xff] %vm418, %v6617
        %6630 = vst.msk [vmem:[#allocation2 + $0x50] sm:$0xff] %vm418, %v6618
        %6631 = vst.msk [vmem:[#allocation2 + $0x58] sm:$0xff] %vm418, %v6619
        %v6632 = vld [vmem:[%s298 + $0xc] sm:$0xe]
        %v6633 = vld [vmem:[%s298 + $0x10] sm:$0xf]
        %v6634 = vld [vmem:[%s298 + $0x14] sm:$0xf]
        %v6635 = vld [vmem:[%s298 + $0x18] sm:$0xf]
        %v6636 = vld [vmem:[%s298 + $0x1c] sm:$0xf]
        %v6637 = vld [vmem:[%s298 + $0x20] sm:$0xf]
        %v6638 = vld [vmem:[%s298 + $0x24] sm:$0xf]
        %v6639 = vld [vmem:[%s298 + $0x28] sm:$0xf]
        %v6640 = vld [vmem:[%s298 + $0x2c] sm:$0xf]
        %v6641 = vld [vmem:[%s298 + $0x30] sm:$0xf]
        %v6642 = vld [vmem:[%s298 + $0x34] sm:$0xf]
        %v6643 = vld [vmem:[%s298 + $0x38] sm:$0xf]
        %v6644 = vld [vmem:[%s298 + $0x3c] sm:$0x1]
        %v6645 = vld [vmem:[#allocation2] sm:$0xff]
        %v6646 = vld [vmem:[#allocation2 + $0x8] sm:$0xff]
        %v6647 = vld [vmem:[#allocation2 + $0x10] sm:$0xff]
        %v6648 = vld [vmem:[#allocation2 + $0x18] sm:$0xff]
        %v6649 = vld [vmem:[#allocation2 + $0x20] sm:$0xff]
        %v6650 = vld [vmem:[#allocation2 + $0x28] sm:$0xff]
        %v6651 = vld [vmem:[#allocation2 + $0x30] sm:$0xff]
        %v6652 = vld [vmem:[#allocation2 + $0x38] sm:$0xff]
        %v6653 = vld [vmem:[#allocation2 + $0x40] sm:$0xff]
        %v6654 = vld [vmem:[#allocation2 + $0x48] sm:$0xff]
        %v6655 = vld [vmem:[#allocation2 + $0x50] sm:$0xff]
        %v6656 = vld [vmem:[#allocation2 + $0x58] sm:$0xff]
        %v6657 = vld [vmem:[%s304 + $0x74] sm:$0xf]
        %v6671 = vunpack.c.l.b16 %v6632
        %v6672 = vunpack.c.l.b16 %v6633
        %v6673 = vunpack.c.l.b16 %v6634
        %v6674 = vunpack.c.l.b16 %v6635
        %v6675 = vunpack.c.l.b16 %v6636
        %v6676 = vunpack.c.l.b16 %v6637
        %v6677 = vunpack.c.l.b16 %v6638
        %v6678 = vunpack.c.l.b16 %v6639
        %v6679 = vunpack.c.l.b16 %v6640
        %v6680 = vunpack.c.l.b16 %v6641
        %v6681 = vunpack.c.l.b16 %v6642
        %v6682 = vunpack.c.l.b16 %v6643
        %v6683 = vunpack.c.l.b16 %v6644
        %v6684 = vpack.c.b16 %v6672, %v6671
        %v6685 = vpack.c.b16 %v6674, %v6673
        %v6686 = vpack.c.b16 %v6676, %v6675
        %v6687 = vpack.c.b16 %v6678, %v6677
        %v6688 = vpack.c.b16 %v6680, %v6679
        %v6689 = vpack.c.b16 %v6682, %v6681
        %v6690 = vpack.c.b16 %v6683, %v6683
        %v6691 = vrot.slane %v6684, 1
        %v6692 = vrot.slane %v6685, 1
        %v6693 = vsel %vm843, %v6691, %v6692
        %v6694 = vrot.slane %v6686, 1
        %v6695 = vsel %vm843, %v6692, %v6694
        %v6696 = vrot.slane %v6687, 1
        %v6697 = vsel %vm843, %v6694, %v6696
        %v6698 = vrot.slane %v6688, 1
        %v6699 = vsel %vm843, %v6696, %v6698
        %v6700 = vrot.slane %v6689, 1
        %v6701 = vsel %vm843, %v6698, %v6700
        %v6702 = vrot.slane %v6690, 1
        %v6703 = vsel %vm843, %v6700, %v6702
        %v6705 = vsel %vm418, %v6693, 0
        %v6708 = vsel %vm418, %v6695, 0
        %v6711 = vsel %vm418, %v6697, 0
        %v6714 = vsel %vm418, %v6699, 0
        %v6717 = vsel %vm418, %v6701, 0
        %v6720 = vsel %vm418, %v6703, 0
        %v6723 = vsel %vm437, %v6657, 0
        %6725 = vmatprep.subr.bf16.mxu0 0
        %6726 = vmatpush1.bf16.msra.mxu0 %v6723
        %6727 = vmatprep.subr.bf16.mxu0 0
        %6728 = vmatpush1.bf16.msra.mxu0 0
        %6729 = vmatprep.subr.bf16.mxu0 0
        %6730 = vmatpush1.bf16.msra.mxu0 0
        %6731 = vmatprep.subr.bf16.mxu0 0
        %6732 = vmatpush1.bf16.msra.mxu0 0
        %6733 = vmatprep.subr.bf16.mxu0 0
        %6734 = vmatpush1.bf16.msra.mxu0 0
        %6735 = vmatprep.subr.bf16.mxu0 0
        %6736 = vmatpush1.bf16.msra.mxu0 0
        %6737 = vmatprep.subr.bf16.mxu0 0
        %6738 = vmatpush1.bf16.msra.mxu0 0
        %6739 = vmatprep.subr.bf16.mxu0 0
        %6740 = vmatpush1.bf16.msra.mxu0 0
        %6741 = vmatprep.subr.bf16.mxu0 0
        %6742 = vmatpush1.bf16.msra.mxu0 0
        %6743 = vmatprep.subr.bf16.mxu0 0
        %6744 = vmatpush1.bf16.msra.mxu0 0
        %6745 = vmatprep.subr.bf16.mxu0 0
        %6746 = vmatpush1.bf16.msra.mxu0 0
        %6747 = vmatprep.subr.bf16.mxu0 0
        %6748 = vmatpush1.bf16.msra.mxu0 0
        %6749 = vmatprep.subr.bf16.mxu0 0
        %6750 = vmatpush1.bf16.msra.mxu0 0
        %6751 = vmatprep.subr.bf16.mxu0 0
        %6752 = vmatpush1.bf16.msra.mxu0 0
        %6753 = vmatprep.subr.bf16.mxu0 0
        %6754 = vmatpush1.bf16.msra.mxu0 0
        %6755 = vmatprep.subr.bf16.mxu0 0
        %6756 = vmatpush1.bf16.msra.mxu0 0
        %6757 = vmatprep.mubr.bf16.mxu0 0
        %6758 = vmatmul.mubr.bf16.gmra.mrb[0].mxu0 %v6705
        %v6759 = vpop.f32.mrb[0].mxu0
        %v6760 = vadd.f32 0.0, %v6759
        %v6761 = vpop.f32.mrb[0].mxu0
        %v6762 = vpop.f32.mrb[0].mxu0
        %v6763 = vadd.f32 0.0, %v6762
        %v6764 = vpop.f32.mrb[0].mxu0
        %6765 = vmatprep.mubr.bf16.mxu0 0
        %6766 = vmatmul.mubr.bf16.gmra.mrb[0].mxu0 %v6708
        %v6767 = vpop.f32.mrb[0].mxu0
        %v6768 = vadd.f32 0.0, %v6767
        %v6769 = vpop.f32.mrb[0].mxu0
        %v6770 = vpop.f32.mrb[0].mxu0
        %v6771 = vadd.f32 0.0, %v6770
        %v6772 = vpop.f32.mrb[0].mxu0
        %6773 = vmatprep.mubr.bf16.mxu0 0
        %6774 = vmatmul.mubr.bf16.gmra.mrb[0].mxu0 %v6711
        %v6775 = vpop.f32.mrb[0].mxu0
        %v6776 = vadd.f32 0.0, %v6775
        %v6777 = vpop.f32.mrb[0].mxu0
        %v6778 = vpop.f32.mrb[0].mxu0
        %v6779 = vadd.f32 0.0, %v6778
        %v6780 = vpop.f32.mrb[0].mxu0
        %6781 = vmatprep.mubr.bf16.mxu0 0
        %6782 = vmatmul.mubr.bf16.gmra.mrb[0].mxu0 %v6714
        %v6783 = vpop.f32.mrb[0].mxu0
        %v6784 = vadd.f32 0.0, %v6783
        %v6785 = vpop.f32.mrb[0].mxu0
        %v6786 = vpop.f32.mrb[0].mxu0
        %v6787 = vadd.f32 0.0, %v6786
        %v6788 = vpop.f32.mrb[0].mxu0
        %6789 = vmatprep.mubr.bf16.mxu0 0
        %6790 = vmatmul.mubr.bf16.gmra.mrb[0].mxu0 %v6717
        %v6791 = vpop.f32.mrb[0].mxu0
        %v6792 = vadd.f32 0.0, %v6791
        %v6793 = vpop.f32.mrb[0].mxu0
        %v6794 = vpop.f32.mrb[0].mxu0
        %v6795 = vadd.f32 0.0, %v6794
        %v6796 = vpop.f32.mrb[0].mxu0
        %6797 = vmatprep.mubr.bf16.mxu0 0
        %6798 = vmatmul.mubr.bf16.gmra.mrb[0].mxu0 %v6720
        %v6799 = vpop.f32.mrb[0].mxu0
        %v6800 = vadd.f32 0.0, %v6799
        %v6801 = vpop.f32.mrb[0].mxu0
        %v6802 = vpop.f32.mrb[0].mxu0
        %v6803 = vadd.f32 0.0, %v6802
        %v6804 = vpop.f32.mrb[0].mxu0
        %6805 = vdwg.mxu0
        %v6806 = vadd.f32 %v6645, %v6760
        %v6807 = vadd.f32 %v6646, %v6763
        %v6808 = vadd.f32 %v6647, %v6768
        %v6809 = vadd.f32 %v6648, %v6771
        %v6810 = vadd.f32 %v6649, %v6776
        %v6811 = vadd.f32 %v6650, %v6779
        %v6812 = vadd.f32 %v6651, %v6784
        %v6813 = vadd.f32 %v6652, %v6787
        %v6814 = vadd.f32 %v6653, %v6792
        %v6815 = vadd.f32 %v6654, %v6795
        %v6816 = vadd.f32 %v6655, %v6800
        %v6817 = vadd.f32 %v6656, %v6803
        %6818 = vst.msk [vmem:[#allocation2] sm:$0xff] %vm418, %v6806
        %6819 = vst.msk [vmem:[#allocation2 + $0x8] sm:$0xff] %vm418, %v6807
        %6820 = vst.msk [vmem:[#allocation2 + $0x10] sm:$0xff] %vm418, %v6808
        %6821 = vst.msk [vmem:[#allocation2 + $0x18] sm:$0xff] %vm418, %v6809
        %6822 = vst.msk [vmem:[#allocation2 + $0x20] sm:$0xff] %vm418, %v6810
        %6823 = vst.msk [vmem:[#allocation2 + $0x28] sm:$0xff] %vm418, %v6811
        %6824 = vst.msk [vmem:[#allocation2 + $0x30] sm:$0xff] %vm418, %v6812
        %6825 = vst.msk [vmem:[#allocation2 + $0x38] sm:$0xff] %vm418, %v6813
        %6826 = vst.msk [vmem:[#allocation2 + $0x40] sm:$0xff] %vm418, %v6814
        %6827 = vst.msk [vmem:[#allocation2 + $0x48] sm:$0xff] %vm418, %v6815
        %6828 = vst.msk [vmem:[#allocation2 + $0x50] sm:$0xff] %vm418, %v6816
        %6829 = vst.msk [vmem:[#allocation2 + $0x58] sm:$0xff] %vm418, %v6817
        %v6830 = vld [vmem:[%s298 + $0xc] sm:$0xe]
        %v6831 = vld [vmem:[%s298 + $0x10] sm:$0xf]
        %v6832 = vld [vmem:[%s298 + $0x14] sm:$0xf]
        %v6833 = vld [vmem:[%s298 + $0x18] sm:$0xf]
        %v6834 = vld [vmem:[%s298 + $0x1c] sm:$0xf]
        %v6835 = vld [vmem:[%s298 + $0x20] sm:$0xf]
        %v6836 = vld [vmem:[%s298 + $0x24] sm:$0xf]
        %v6837 = vld [vmem:[%s298 + $0x28] sm:$0xf]
        %v6838 = vld [vmem:[%s298 + $0x2c] sm:$0xf]
        %v6839 = vld [vmem:[%s298 + $0x30] sm:$0xf]
        %v6840 = vld [vmem:[%s298 + $0x34] sm:$0xf]
        %v6841 = vld [vmem:[%s298 + $0x38] sm:$0xf]
        %v6842 = vld [vmem:[%s298 + $0x3c] sm:$0x3]
        %v6843 = vld [vmem:[#allocation2] sm:$0xff]
        %v6844 = vld [vmem:[#allocation2 + $0x8] sm:$0xff]
        %v6845 = vld [vmem:[#allocation2 + $0x10] sm:$0xff]
        %v6846 = vld [vmem:[#allocation2 + $0x18] sm:$0xff]
        %v6847 = vld [vmem:[#allocation2 + $0x20] sm:$0xff]
        %v6848 = vld [vmem:[#allocation2 + $0x28] sm:$0xff]
        %v6849 = vld [vmem:[#allocation2 + $0x30] sm:$0xff]
        %v6850 = vld [vmem:[#allocation2 + $0x38] sm:$0xff]
        %v6851 = vld [vmem:[#allocation2 + $0x40] sm:$0xff]
        %v6852 = vld [vmem:[#allocation2 + $0x48] sm:$0xff]
        %v6853 = vld [vmem:[#allocation2 + $0x50] sm:$0xff]
        %v6854 = vld [vmem:[#allocation2 + $0x58] sm:$0xff]
        %v6855 = vld [vmem:[%s304 + $0x78] sm:$0xf]
        %v6869 = vunpack.c.l.b16 %v6830
        %v6870 = vunpack.c.l.b16 %v6831
        %v6871 = vunpack.c.l.b16 %v6832
        %v6872 = vunpack.c.l.b16 %v6833
        %v6873 = vunpack.c.l.b16 %v6834
        %v6874 = vunpack.c.l.b16 %v6835
        %v6875 = vunpack.c.l.b16 %v6836
        %v6876 = vunpack.c.l.b16 %v6837
        %v6877 = vunpack.c.l.b16 %v6838
        %v6878 = vunpack.c.l.b16 %v6839
        %v6879 = vunpack.c.l.b16 %v6840
        %v6880 = vunpack.c.l.b16 %v6841
        %v6881 = vunpack.c.l.b16 %v6842
        %v6882 = vpack.c.b16 %v6870, %v6869
        %v6883 = vpack.c.b16 %v6872, %v6871
        %v6884 = vpack.c.b16 %v6874, %v6873
        %v6885 = vpack.c.b16 %v6876, %v6875
        %v6886 = vpack.c.b16 %v6878, %v6877
        %v6887 = vpack.c.b16 %v6880, %v6879
        %v6888 = vpack.c.b16 %v6881, %v6881
        %v6890 = vshrl.u32 %v6882, 16
        %v6892 = vrot.slane %v6890, 1
        %v6893 = vshll.u32 %v6882, 16
        %v6895 = vrot.slane %v6893, 2
        %v6896 = vor.u32 %v6892, %v6895
        %v6898 = vshrl.u32 %v6883, 16
        %v6900 = vrot.slane %v6898, 1
        %v6901 = vshll.u32 %v6883, 16
        %v6903 = vrot.slane %v6901, 2
        %v6904 = vor.u32 %v6900, %v6903
        %v6905 = vsel %vm1042, %v6896, %v6904
        %v6907 = vshrl.u32 %v6884, 16
        %v6909 = vrot.slane %v6907, 1
        %v6910 = vshll.u32 %v6884, 16
        %v6912 = vrot.slane %v6910, 2
        %v6913 = vor.u32 %v6909, %v6912
        %v6914 = vsel %vm1042, %v6904, %v6913
        %v6916 = vshrl.u32 %v6885, 16
        %v6918 = vrot.slane %v6916, 1
        %v6919 = vshll.u32 %v6885, 16
        %v6921 = vrot.slane %v6919, 2
        %v6922 = vor.u32 %v6918, %v6921
        %v6923 = vsel %vm1042, %v6913, %v6922
        %v6925 = vshrl.u32 %v6886, 16
        %v6927 = vrot.slane %v6925, 1
        %v6928 = vshll.u32 %v6886, 16
        %v6930 = vrot.slane %v6928, 2
        %v6931 = vor.u32 %v6927, %v6930
        %v6932 = vsel %vm1042, %v6922, %v6931
        %v6934 = vshrl.u32 %v6887, 16
        %v6936 = vrot.slane %v6934, 1
        %v6937 = vshll.u32 %v6887, 16
        %v6939 = vrot.slane %v6937, 2
        %v6940 = vor.u32 %v6936, %v6939
        %v6941 = vsel %vm1042, %v6931, %v6940
        %v6943 = vshrl.u32 %v6888, 16
        %v6945 = vrot.slane %v6943, 1
        %v6946 = vshll.u32 %v6888, 16
        %v6948 = vrot.slane %v6946, 2
        %v6949 = vor.u32 %v6945, %v6948
        %v6950 = vsel %vm1042, %v6940, %v6949
        %v6952 = vsel %vm418, %v6905, 0
        %v6955 = vsel %vm418, %v6914, 0
        %v6958 = vsel %vm418, %v6923, 0
        %v6961 = vsel %vm418, %v6932, 0
        %v6964 = vsel %vm418, %v6941, 0
        %v6967 = vsel %vm418, %v6950, 0
        %v6970 = vsel %vm437, %v6855, 0
        %6972 = vmatprep.subr.bf16.mxu0 0
        %6973 = vmatpush1.bf16.msra.mxu0 %v6970
        %6974 = vmatprep.subr.bf16.mxu0 0
        %6975 = vmatpush1.bf16.msra.mxu0 0
        %6976 = vmatprep.subr.bf16.mxu0 0
        %6977 = vmatpush1.bf16.msra.mxu0 0
        %6978 = vmatprep.subr.bf16.mxu0 0
        %6979 = vmatpush1.bf16.msra.mxu0 0
        %6980 = vmatprep.subr.bf16.mxu0 0
        %6981 = vmatpush1.bf16.msra.mxu0 0
        %6982 = vmatprep.subr.bf16.mxu0 0
        %6983 = vmatpush1.bf16.msra.mxu0 0
        %6984 = vmatprep.subr.bf16.mxu0 0
        %6985 = vmatpush1.bf16.msra.mxu0 0
        %6986 = vmatprep.subr.bf16.mxu0 0
        %6987 = vmatpush1.bf16.msra.mxu0 0
        %6988 = vmatprep.subr.bf16.mxu0 0
        %6989 = vmatpush1.bf16.msra.mxu0 0
        %6990 = vmatprep.subr.bf16.mxu0 0
        %6991 = vmatpush1.bf16.msra.mxu0 0
        %6992 = vmatprep.subr.bf16.mxu0 0
        %6993 = vmatpush1.bf16.msra.mxu0 0
        %6994 = vmatprep.subr.bf16.mxu0 0
        %6995 = vmatpush1.bf16.msra.mxu0 0
        %6996 = vmatprep.subr.bf16.mxu0 0
        %6997 = vmatpush1.bf16.msra.mxu0 0
        %6998 = vmatprep.subr.bf16.mxu0 0
        %6999 = vmatpush1.bf16.msra.mxu0 0
        %7000 = vmatprep.subr.bf16.mxu0 0
        %7001 = vmatpush1.bf16.msra.mxu0 0
        %7002 = vmatprep.subr.bf16.mxu0 0
        %7003 = vmatpush1.bf16.msra.mxu0 0
        %7004 = vmatprep.mubr.bf16.mxu0 0
        %7005 = vmatmul.mubr.bf16.gmra.mrb[0].mxu0 %v6952
        %v7006 = vpop.f32.mrb[0].mxu0
        %v7007 = vadd.f32 0.0, %v7006
        %v7008 = vpop.f32.mrb[0].mxu0
        %v7009 = vpop.f32.mrb[0].mxu0
        %v7010 = vadd.f32 0.0, %v7009
        %v7011 = vpop.f32.mrb[0].mxu0
        %7012 = vmatprep.mubr.bf16.mxu0 0
        %7013 = vmatmul.mubr.bf16.gmra.mrb[0].mxu0 %v6955
        %v7014 = vpop.f32.mrb[0].mxu0
        %v7015 = vadd.f32 0.0, %v7014
        %v7016 = vpop.f32.mrb[0].mxu0
        %v7017 = vpop.f32.mrb[0].mxu0
        %v7018 = vadd.f32 0.0, %v7017
        %v7019 = vpop.f32.mrb[0].mxu0
        %7020 = vmatprep.mubr.bf16.mxu0 0
        %7021 = vmatmul.mubr.bf16.gmra.mrb[0].mxu0 %v6958
        %v7022 = vpop.f32.mrb[0].mxu0
        %v7023 = vadd.f32 0.0, %v7022
        %v7024 = vpop.f32.mrb[0].mxu0
        %v7025 = vpop.f32.mrb[0].mxu0
        %v7026 = vadd.f32 0.0, %v7025
        %v7027 = vpop.f32.mrb[0].mxu0
        %7028 = vmatprep.mubr.bf16.mxu0 0
        %7029 = vmatmul.mubr.bf16.gmra.mrb[0].mxu0 %v6961
        %v7030 = vpop.f32.mrb[0].mxu0
        %v7031 = vadd.f32 0.0, %v7030
        %v7032 = vpop.f32.mrb[0].mxu0
        %v7033 = vpop.f32.mrb[0].mxu0
        %v7034 = vadd.f32 0.0, %v7033
        %v7035 = vpop.f32.mrb[0].mxu0
        %7036 = vmatprep.mubr.bf16.mxu0 0
        %7037 = vmatmul.mubr.bf16.gmra.mrb[0].mxu0 %v6964
        %v7038 = vpop.f32.mrb[0].mxu0
        %v7039 = vadd.f32 0.0, %v7038
        %v7040 = vpop.f32.mrb[0].mxu0
        %v7041 = vpop.f32.mrb[0].mxu0
        %v7042 = vadd.f32 0.0, %v7041
        %v7043 = vpop.f32.mrb[0].mxu0
        %7044 = vmatprep.mubr.bf16.mxu0 0
        %7045 = vmatmul.mubr.bf16.gmra.mrb[0].mxu0 %v6967
        %v7046 = vpop.f32.mrb[0].mxu0
        %v7047 = vadd.f32 0.0, %v7046
        %v7048 = vpop.f32.mrb[0].mxu0
        %v7049 = vpop.f32.mrb[0].mxu0
        %v7050 = vadd.f32 0.0, %v7049
        %v7051 = vpop.f32.mrb[0].mxu0
        %7052 = vdwg.mxu0
        %v7053 = vadd.f32 %v6843, %v7007
        %v7054 = vadd.f32 %v6844, %v7010
        %v7055 = vadd.f32 %v6845, %v7015
        %v7056 = vadd.f32 %v6846, %v7018
        %v7057 = vadd.f32 %v6847, %v7023
        %v7058 = vadd.f32 %v6848, %v7026
        %v7059 = vadd.f32 %v6849, %v7031
        %v7060 = vadd.f32 %v6850, %v7034
        %v7061 = vadd.f32 %v6851, %v7039
        %v7062 = vadd.f32 %v6852, %v7042
        %v7063 = vadd.f32 %v6853, %v7047
        %v7064 = vadd.f32 %v6854, %v7050
        %7065 = vst.msk [vmem:[#allocation2] sm:$0xff] %vm418, %v7053
        %7066 = vst.msk [vmem:[#allocation2 + $0x8] sm:$0xff] %vm418, %v7054
        %7067 = vst.msk [vmem:[#allocation2 + $0x10] sm:$0xff] %vm418, %v7055
        %7068 = vst.msk [vmem:[#allocation2 + $0x18] sm:$0xff] %vm418, %v7056
        %7069 = vst.msk [vmem:[#allocation2 + $0x20] sm:$0xff] %vm418, %v7057
        %7070 = vst.msk [vmem:[#allocation2 + $0x28] sm:$0xff] %vm418, %v7058
        %7071 = vst.msk [vmem:[#allocation2 + $0x30] sm:$0xff] %vm418, %v7059
        %7072 = vst.msk [vmem:[#allocation2 + $0x38] sm:$0xff] %vm418, %v7060
        %7073 = vst.msk [vmem:[#allocation2 + $0x40] sm:$0xff] %vm418, %v7061
        %7074 = vst.msk [vmem:[#allocation2 + $0x48] sm:$0xff] %vm418, %v7062
        %7075 = vst.msk [vmem:[#allocation2 + $0x50] sm:$0xff] %vm418, %v7063
        %7076 = vst.msk [vmem:[#allocation2 + $0x58] sm:$0xff] %vm418, %v7064
        %v7077 = vld [vmem:[%s298 + $0x10] sm:$0xc]
        %v7078 = vld [vmem:[%s298 + $0x14] sm:$0xf]
        %v7079 = vld [vmem:[%s298 + $0x18] sm:$0xf]
        %v7080 = vld [vmem:[%s298 + $0x1c] sm:$0xf]
        %v7081 = vld [vmem:[%s298 + $0x20] sm:$0xf]
        %v7082 = vld [vmem:[%s298 + $0x24] sm:$0xf]
        %v7083 = vld [vmem:[%s298 + $0x28] sm:$0xf]
        %v7084 = vld [vmem:[%s298 + $0x2c] sm:$0xf]
        %v7085 = vld [vmem:[%s298 + $0x30] sm:$0xf]
        %v7086 = vld [vmem:[%s298 + $0x34] sm:$0xf]
        %v7087 = vld [vmem:[%s298 + $0x38] sm:$0xf]
        %v7088 = vld [vmem:[%s298 + $0x3c] sm:$0xf]
        %v7089 = vld [vmem:[%s298 + $0x40] sm:$0x7]
        %v7090 = vld [vmem:[#allocation2] sm:$0xff]
        %v7091 = vld [vmem:[#allocation2 + $0x8] sm:$0xff]
        %v7092 = vld [vmem:[#allocation2 + $0x10] sm:$0xff]
        %v7093 = vld [vmem:[#allocation2 + $0x18] sm:$0xff]
        %v7094 = vld [vmem:[#allocation2 + $0x20] sm:$0xff]
        %v7095 = vld [vmem:[#allocation2 + $0x28] sm:$0xff]
        %v7096 = vld [vmem:[#allocation2 + $0x30] sm:$0xff]
        %v7097 = vld [vmem:[#allocation2 + $0x38] sm:$0xff]
        %v7098 = vld [vmem:[#allocation2 + $0x40] sm:$0xff]
        %v7099 = vld [vmem:[#allocation2 + $0x48] sm:$0xff]
        %v7100 = vld [vmem:[#allocation2 + $0x50] sm:$0xff]
        %v7101 = vld [vmem:[#allocation2 + $0x58] sm:$0xff]
        %v7102 = vld [vmem:[%s304 + $0x7c] sm:$0xf]
        %v7116 = vunpack.c.l.b16 %v7077
        %v7117 = vunpack.c.l.b16 %v7078
        %v7118 = vunpack.c.l.b16 %v7079
        %v7119 = vunpack.c.l.b16 %v7080
        %v7120 = vunpack.c.l.b16 %v7081
        %v7121 = vunpack.c.l.b16 %v7082
        %v7122 = vunpack.c.l.b16 %v7083
        %v7123 = vunpack.c.l.b16 %v7084
        %v7124 = vunpack.c.l.b16 %v7085
        %v7125 = vunpack.c.l.b16 %v7086
        %v7126 = vunpack.c.l.b16 %v7087
        %v7127 = vunpack.c.l.b16 %v7088
        %v7128 = vunpack.c.l.b16 %v7089
        %v7129 = vpack.c.b16 %v7117, %v7116
        %v7130 = vpack.c.b16 %v7119, %v7118
        %v7131 = vpack.c.b16 %v7121, %v7120
        %v7132 = vpack.c.b16 %v7123, %v7122
        %v7133 = vpack.c.b16 %v7125, %v7124
        %v7134 = vpack.c.b16 %v7127, %v7126
        %v7135 = vpack.c.b16 %v7128, %v7128
        %v7137 = vshrl.u32 %v7129, 16
        %v7139 = vrot.slane %v7137, 2
        %v7140 = vshll.u32 %v7129, 16
        %v7142 = vrot.slane %v7140, 3
        %v7143 = vor.u32 %v7139, %v7142
        %v7145 = vshrl.u32 %v7130, 16
        %v7147 = vrot.slane %v7145, 2
        %v7148 = vshll.u32 %v7130, 16
        %v7150 = vrot.slane %v7148, 3
        %v7151 = vor.u32 %v7147, %v7150
        %v7152 = vsel %vm1687, %v7143, %v7151
        %v7154 = vshrl.u32 %v7131, 16
        %v7156 = vrot.slane %v7154, 2
        %v7157 = vshll.u32 %v7131, 16
        %v7159 = vrot.slane %v7157, 3
        %v7160 = vor.u32 %v7156, %v7159
        %v7161 = vsel %vm1687, %v7151, %v7160
        %v7163 = vshrl.u32 %v7132, 16
        %v7165 = vrot.slane %v7163, 2
        %v7166 = vshll.u32 %v7132, 16
        %v7168 = vrot.slane %v7166, 3
        %v7169 = vor.u32 %v7165, %v7168
        %v7170 = vsel %vm1687, %v7160, %v7169
        %v7172 = vshrl.u32 %v7133, 16
        %v7174 = vrot.slane %v7172, 2
        %v7175 = vshll.u32 %v7133, 16
        %v7177 = vrot.slane %v7175, 3
        %v7178 = vor.u32 %v7174, %v7177
        %v7179 = vsel %vm1687, %v7169, %v7178
        %v7181 = vshrl.u32 %v7134, 16
        %v7183 = vrot.slane %v7181, 2
        %v7184 = vshll.u32 %v7134, 16
        %v7186 = vrot.slane %v7184, 3
        %v7187 = vor.u32 %v7183, %v7186
        %v7188 = vsel %vm1687, %v7178, %v7187
        %v7190 = vshrl.u32 %v7135, 16
        %v7192 = vrot.slane %v7190, 2
        %v7193 = vshll.u32 %v7135, 16
        %v7195 = vrot.slane %v7193, 3
        %v7196 = vor.u32 %v7192, %v7195
        %v7197 = vsel %vm1687, %v7187, %v7196
        %v7199 = vsel %vm418, %v7152, 0
        %v7202 = vsel %vm418, %v7161, 0
        %v7205 = vsel %vm418, %v7170, 0
        %v7208 = vsel %vm418, %v7179, 0
        %v7211 = vsel %vm418, %v7188, 0
        %v7214 = vsel %vm418, %v7197, 0
        %v7217 = vsel %vm437, %v7102, 0
        %7219 = vmatprep.subr.bf16.mxu0 0
        %7220 = vmatpush1.bf16.msra.mxu0 %v7217
        %7221 = vmatprep.subr.bf16.mxu0 0
        %7222 = vmatpush1.bf16.msra.mxu0 0
        %7223 = vmatprep.subr.bf16.mxu0 0
        %7224 = vmatpush1.bf16.msra.mxu0 0
        %7225 = vmatprep.subr.bf16.mxu0 0
        %7226 = vmatpush1.bf16.msra.mxu0 0
        %7227 = vmatprep.subr.bf16.mxu0 0
        %7228 = vmatpush1.bf16.msra.mxu0 0
        %7229 = vmatprep.subr.bf16.mxu0 0
        %7230 = vmatpush1.bf16.msra.mxu0 0
        %7231 = vmatprep.subr.bf16.mxu0 0
        %7232 = vmatpush1.bf16.msra.mxu0 0
        %7233 = vmatprep.subr.bf16.mxu0 0
        %7234 = vmatpush1.bf16.msra.mxu0 0
        %7235 = vmatprep.subr.bf16.mxu0 0
        %7236 = vmatpush1.bf16.msra.mxu0 0
        %7237 = vmatprep.subr.bf16.mxu0 0
        %7238 = vmatpush1.bf16.msra.mxu0 0
        %7239 = vmatprep.subr.bf16.mxu0 0
        %7240 = vmatpush1.bf16.msra.mxu0 0
        %7241 = vmatprep.subr.bf16.mxu0 0
        %7242 = vmatpush1.bf16.msra.mxu0 0
        %7243 = vmatprep.subr.bf16.mxu0 0
        %7244 = vmatpush1.bf16.msra.mxu0 0
        %7245 = vmatprep.subr.bf16.mxu0 0
        %7246 = vmatpush1.bf16.msra.mxu0 0
        %7247 = vmatprep.subr.bf16.mxu0 0
        %7248 = vmatpush1.bf16.msra.mxu0 0
        %7249 = vmatprep.subr.bf16.mxu0 0
        %7250 = vmatpush1.bf16.msra.mxu0 0
        %7251 = vmatprep.mubr.bf16.mxu0 0
        %7252 = vmatmul.mubr.bf16.gmra.mrb[0].mxu0 %v7199
        %v7253 = vpop.f32.mrb[0].mxu0
        %v7254 = vadd.f32 0.0, %v7253
        %v7255 = vpop.f32.mrb[0].mxu0
        %v7256 = vpop.f32.mrb[0].mxu0
        %v7257 = vadd.f32 0.0, %v7256
        %v7258 = vpop.f32.mrb[0].mxu0
        %7259 = vmatprep.mubr.bf16.mxu0 0
        %7260 = vmatmul.mubr.bf16.gmra.mrb[0].mxu0 %v7202
        %v7261 = vpop.f32.mrb[0].mxu0
        %v7262 = vadd.f32 0.0, %v7261
        %v7263 = vpop.f32.mrb[0].mxu0
        %v7264 = vpop.f32.mrb[0].mxu0
        %v7265 = vadd.f32 0.0, %v7264
        %v7266 = vpop.f32.mrb[0].mxu0
        %7267 = vmatprep.mubr.bf16.mxu0 0
        %7268 = vmatmul.mubr.bf16.gmra.mrb[0].mxu0 %v7205
        %v7269 = vpop.f32.mrb[0].mxu0
        %v7270 = vadd.f32 0.0, %v7269
        %v7271 = vpop.f32.mrb[0].mxu0
        %v7272 = vpop.f32.mrb[0].mxu0
        %v7273 = vadd.f32 0.0, %v7272
        %v7274 = vpop.f32.mrb[0].mxu0
        %7275 = vmatprep.mubr.bf16.mxu0 0
        %7276 = vmatmul.mubr.bf16.gmra.mrb[0].mxu0 %v7208
        %v7277 = vpop.f32.mrb[0].mxu0
        %v7278 = vadd.f32 0.0, %v7277
        %v7279 = vpop.f32.mrb[0].mxu0
        %v7280 = vpop.f32.mrb[0].mxu0
        %v7281 = vadd.f32 0.0, %v7280
        %v7282 = vpop.f32.mrb[0].mxu0
        %7283 = vmatprep.mubr.bf16.mxu0 0
        %7284 = vmatmul.mubr.bf16.gmra.mrb[0].mxu0 %v7211
        %v7285 = vpop.f32.mrb[0].mxu0
        %v7286 = vadd.f32 0.0, %v7285
        %v7287 = vpop.f32.mrb[0].mxu0
        %v7288 = vpop.f32.mrb[0].mxu0
        %v7289 = vadd.f32 0.0, %v7288
        %v7290 = vpop.f32.mrb[0].mxu0
        %7291 = vmatprep.mubr.bf16.mxu0 0
        %7292 = vmatmul.mubr.bf16.gmra.mrb[0].mxu0 %v7214
        %v7293 = vpop.f32.mrb[0].mxu0
        %v7294 = vadd.f32 0.0, %v7293
        %v7295 = vpop.f32.mrb[0].mxu0
        %v7296 = vpop.f32.mrb[0].mxu0
        %v7297 = vadd.f32 0.0, %v7296
        %v7298 = vpop.f32.mrb[0].mxu0
        %7299 = vdwg.mxu0
        %v7300 = vadd.f32 %v7090, %v7254
        %v7301 = vadd.f32 %v7091, %v7257
        %v7302 = vadd.f32 %v7092, %v7262
        %v7303 = vadd.f32 %v7093, %v7265
        %v7304 = vadd.f32 %v7094, %v7270
        %v7305 = vadd.f32 %v7095, %v7273
        %v7306 = vadd.f32 %v7096, %v7278
        %v7307 = vadd.f32 %v7097, %v7281
        %v7308 = vadd.f32 %v7098, %v7286
        %v7309 = vadd.f32 %v7099, %v7289
        %v7310 = vadd.f32 %v7100, %v7294
        %v7311 = vadd.f32 %v7101, %v7297
        %7312 = vst.msk [vmem:[#allocation2] sm:$0xff] %vm418, %v7300
        %7313 = vst.msk [vmem:[#allocation2 + $0x8] sm:$0xff] %vm418, %v7301
        %7314 = vst.msk [vmem:[#allocation2 + $0x10] sm:$0xff] %vm418, %v7302
        %7315 = vst.msk [vmem:[#allocation2 + $0x18] sm:$0xff] %vm418, %v7303
        %7316 = vst.msk [vmem:[#allocation2 + $0x20] sm:$0xff] %vm418, %v7304
        %7317 = vst.msk [vmem:[#allocation2 + $0x28] sm:$0xff] %vm418, %v7305
        %7318 = vst.msk [vmem:[#allocation2 + $0x30] sm:$0xff] %vm418, %v7306
        %7319 = vst.msk [vmem:[#allocation2 + $0x38] sm:$0xff] %vm418, %v7307
        %7320 = vst.msk [vmem:[#allocation2 + $0x40] sm:$0xff] %vm418, %v7308
        %7321 = vst.msk [vmem:[#allocation2 + $0x48] sm:$0xff] %vm418, %v7309
        %7322 = vst.msk [vmem:[#allocation2 + $0x50] sm:$0xff] %vm418, %v7310
        %7323 = vst.msk [vmem:[#allocation2 + $0x58] sm:$0xff] %vm418, %v7311
        %v7324 = vld [vmem:[%s298 + $0x10] sm:$0x8]
        %v7325 = vld [vmem:[%s298 + $0x14] sm:$0xf]
        %v7326 = vld [vmem:[%s298 + $0x18] sm:$0xf]
        %v7327 = vld [vmem:[%s298 + $0x1c] sm:$0xf]
        %v7328 = vld [vmem:[%s298 + $0x20] sm:$0xf]
        %v7329 = vld [vmem:[%s298 + $0x24] sm:$0xf]
        %v7330 = vld [vmem:[%s298 + $0x28] sm:$0xf]
        %v7331 = vld [vmem:[%s298 + $0x2c] sm:$0xf]
        %v7332 = vld [vmem:[%s298 + $0x30] sm:$0xf]
        %v7333 = vld [vmem:[%s298 + $0x34] sm:$0xf]
        %v7334 = vld [vmem:[%s298 + $0x38] sm:$0xf]
        %v7335 = vld [vmem:[%s298 + $0x3c] sm:$0xf]
        %v7336 = vld [vmem:[%s298 + $0x40] sm:$0x7]
        %v7337 = vld [vmem:[#allocation2] sm:$0xff]
        %v7338 = vld [vmem:[#allocation2 + $0x8] sm:$0xff]
        %v7339 = vld [vmem:[#allocation2 + $0x10] sm:$0xff]
        %v7340 = vld [vmem:[#allocation2 + $0x18] sm:$0xff]
        %v7341 = vld [vmem:[#allocation2 + $0x20] sm:$0xff]
        %v7342 = vld [vmem:[#allocation2 + $0x28] sm:$0xff]
        %v7343 = vld [vmem:[#allocation2 + $0x30] sm:$0xff]
        %v7344 = vld [vmem:[#allocation2 + $0x38] sm:$0xff]
        %v7345 = vld [vmem:[#allocation2 + $0x40] sm:$0xff]
        %v7346 = vld [vmem:[#allocation2 + $0x48] sm:$0xff]
        %v7347 = vld [vmem:[#allocation2 + $0x50] sm:$0xff]
        %v7348 = vld [vmem:[#allocation2 + $0x58] sm:$0xff]
        %v7349 = vld [vmem:[%s304 + $0x80] sm:$0xf]
        %v7363 = vunpack.c.l.b16 %v7324
        %v7364 = vunpack.c.l.b16 %v7325
        %v7365 = vunpack.c.l.b16 %v7326
        %v7366 = vunpack.c.l.b16 %v7327
        %v7367 = vunpack.c.l.b16 %v7328
        %v7368 = vunpack.c.l.b16 %v7329
        %v7369 = vunpack.c.l.b16 %v7330
        %v7370 = vunpack.c.l.b16 %v7331
        %v7371 = vunpack.c.l.b16 %v7332
        %v7372 = vunpack.c.l.b16 %v7333
        %v7373 = vunpack.c.l.b16 %v7334
        %v7374 = vunpack.c.l.b16 %v7335
        %v7375 = vunpack.c.l.b16 %v7336
        %v7376 = vpack.c.b16 %v7364, %v7363
        %v7377 = vpack.c.b16 %v7366, %v7365
        %v7378 = vpack.c.b16 %v7368, %v7367
        %v7379 = vpack.c.b16 %v7370, %v7369
        %v7380 = vpack.c.b16 %v7372, %v7371
        %v7381 = vpack.c.b16 %v7374, %v7373
        %v7382 = vpack.c.b16 %v7375, %v7375
        %v7383 = vrot.slane %v7376, 3
        %v7384 = vrot.slane %v7377, 3
        %v7385 = vsel %vm1935, %v7383, %v7384
        %v7386 = vrot.slane %v7378, 3
        %v7387 = vsel %vm1935, %v7384, %v7386
        %v7388 = vrot.slane %v7379, 3
        %v7389 = vsel %vm1935, %v7386, %v7388
        %v7390 = vrot.slane %v7380, 3
        %v7391 = vsel %vm1935, %v7388, %v7390
        %v7392 = vrot.slane %v7381, 3
        %v7393 = vsel %vm1935, %v7390, %v7392
        %v7394 = vrot.slane %v7382, 3
        %v7395 = vsel %vm1935, %v7392, %v7394
        %v7397 = vsel %vm418, %v7385, 0
        %v7400 = vsel %vm418, %v7387, 0
        %v7403 = vsel %vm418, %v7389, 0
        %v7406 = vsel %vm418, %v7391, 0
        %v7409 = vsel %vm418, %v7393, 0
        %v7412 = vsel %vm418, %v7395, 0
        %v7415 = vsel %vm437, %v7349, 0
        %7417 = vmatprep.subr.bf16.mxu0 0
        %7418 = vmatpush1.bf16.msra.mxu0 %v7415
        %7419 = vmatprep.subr.bf16.mxu0 0
        %7420 = vmatpush1.bf16.msra.mxu0 0
        %7421 = vmatprep.subr.bf16.mxu0 0
        %7422 = vmatpush1.bf16.msra.mxu0 0
        %7423 = vmatprep.subr.bf16.mxu0 0
        %7424 = vmatpush1.bf16.msra.mxu0 0
        %7425 = vmatprep.subr.bf16.mxu0 0
        %7426 = vmatpush1.bf16.msra.mxu0 0
        %7427 = vmatprep.subr.bf16.mxu0 0
        %7428 = vmatpush1.bf16.msra.mxu0 0
        %7429 = vmatprep.subr.bf16.mxu0 0
        %7430 = vmatpush1.bf16.msra.mxu0 0
        %7431 = vmatprep.subr.bf16.mxu0 0
        %7432 = vmatpush1.bf16.msra.mxu0 0
        %7433 = vmatprep.subr.bf16.mxu0 0
        %7434 = vmatpush1.bf16.msra.mxu0 0
        %7435 = vmatprep.subr.bf16.mxu0 0
        %7436 = vmatpush1.bf16.msra.mxu0 0
        %7437 = vmatprep.subr.bf16.mxu0 0
        %7438 = vmatpush1.bf16.msra.mxu0 0
        %7439 = vmatprep.subr.bf16.mxu0 0
        %7440 = vmatpush1.bf16.msra.mxu0 0
        %7441 = vmatprep.subr.bf16.mxu0 0
        %7442 = vmatpush1.bf16.msra.mxu0 0
        %7443 = vmatprep.subr.bf16.mxu0 0
        %7444 = vmatpush1.bf16.msra.mxu0 0
        %7445 = vmatprep.subr.bf16.mxu0 0
        %7446 = vmatpush1.bf16.msra.mxu0 0
        %7447 = vmatprep.subr.bf16.mxu0 0
        %7448 = vmatpush1.bf16.msra.mxu0 0
        %7449 = vmatprep.mubr.bf16.mxu0 0
        %7450 = vmatmul.mubr.bf16.gmra.mrb[0].mxu0 %v7397
        %v7451 = vpop.f32.mrb[0].mxu0
        %v7452 = vadd.f32 0.0, %v7451
        %v7453 = vpop.f32.mrb[0].mxu0
        %v7454 = vpop.f32.mrb[0].mxu0
        %v7455 = vadd.f32 0.0, %v7454
        %v7456 = vpop.f32.mrb[0].mxu0
        %7457 = vmatprep.mubr.bf16.mxu0 0
        %7458 = vmatmul.mubr.bf16.gmra.mrb[0].mxu0 %v7400
        %v7459 = vpop.f32.mrb[0].mxu0
        %v7460 = vadd.f32 0.0, %v7459
        %v7461 = vpop.f32.mrb[0].mxu0
        %v7462 = vpop.f32.mrb[0].mxu0
        %v7463 = vadd.f32 0.0, %v7462
        %v7464 = vpop.f32.mrb[0].mxu0
        %7465 = vmatprep.mubr.bf16.mxu0 0
        %7466 = vmatmul.mubr.bf16.gmra.mrb[0].mxu0 %v7403
        %v7467 = vpop.f32.mrb[0].mxu0
        %v7468 = vadd.f32 0.0, %v7467
        %v7469 = vpop.f32.mrb[0].mxu0
        %v7470 = vpop.f32.mrb[0].mxu0
        %v7471 = vadd.f32 0.0, %v7470
        %v7472 = vpop.f32.mrb[0].mxu0
        %7473 = vmatprep.mubr.bf16.mxu0 0
        %7474 = vmatmul.mubr.bf16.gmra.mrb[0].mxu0 %v7406
        %v7475 = vpop.f32.mrb[0].mxu0
        %v7476 = vadd.f32 0.0, %v7475
        %v7477 = vpop.f32.mrb[0].mxu0
        %v7478 = vpop.f32.mrb[0].mxu0
        %v7479 = vadd.f32 0.0, %v7478
        %v7480 = vpop.f32.mrb[0].mxu0
        %7481 = vmatprep.mubr.bf16.mxu0 0
        %7482 = vmatmul.mubr.bf16.gmra.mrb[0].mxu0 %v7409
        %v7483 = vpop.f32.mrb[0].mxu0
        %v7484 = vadd.f32 0.0, %v7483
        %v7485 = vpop.f32.mrb[0].mxu0
        %v7486 = vpop.f32.mrb[0].mxu0
        %v7487 = vadd.f32 0.0, %v7486
        %v7488 = vpop.f32.mrb[0].mxu0
        %7489 = vmatprep.mubr.bf16.mxu0 0
        %7490 = vmatmul.mubr.bf16.gmra.mrb[0].mxu0 %v7412
        %v7491 = vpop.f32.mrb[0].mxu0
        %v7492 = vadd.f32 0.0, %v7491
        %v7493 = vpop.f32.mrb[0].mxu0
        %v7494 = vpop.f32.mrb[0].mxu0
        %v7495 = vadd.f32 0.0, %v7494
        %v7496 = vpop.f32.mrb[0].mxu0
        %7497 = vdwg.mxu0
        %v7498 = vadd.f32 %v7337, %v7452
        %v7499 = vadd.f32 %v7338, %v7455
        %v7500 = vadd.f32 %v7339, %v7460
        %v7501 = vadd.f32 %v7340, %v7463
        %v7502 = vadd.f32 %v7341, %v7468
        %v7503 = vadd.f32 %v7342, %v7471
        %v7504 = vadd.f32 %v7343, %v7476
        %v7505 = vadd.f32 %v7344, %v7479
        %v7506 = vadd.f32 %v7345, %v7484
        %v7507 = vadd.f32 %v7346, %v7487
        %v7508 = vadd.f32 %v7347, %v7492
        %v7509 = vadd.f32 %v7348, %v7495
        %7510 = vst.msk [vmem:[#allocation2] sm:$0xff] %vm418, %v7498
        %7511 = vst.msk [vmem:[#allocation2 + $0x8] sm:$0xff] %vm418, %v7499
        %7512 = vst.msk [vmem:[#allocation2 + $0x10] sm:$0xff] %vm418, %v7500
        %7513 = vst.msk [vmem:[#allocation2 + $0x18] sm:$0xff] %vm418, %v7501
        %7514 = vst.msk [vmem:[#allocation2 + $0x20] sm:$0xff] %vm418, %v7502
        %7515 = vst.msk [vmem:[#allocation2 + $0x28] sm:$0xff] %vm418, %v7503
        %7516 = vst.msk [vmem:[#allocation2 + $0x30] sm:$0xff] %vm418, %v7504
        %7517 = vst.msk [vmem:[#allocation2 + $0x38] sm:$0xff] %vm418, %v7505
        %7518 = vst.msk [vmem:[#allocation2 + $0x40] sm:$0xff] %vm418, %v7506
        %7519 = vst.msk [vmem:[#allocation2 + $0x48] sm:$0xff] %vm418, %v7507
        %7520 = vst.msk [vmem:[#allocation2 + $0x50] sm:$0xff] %vm418, %v7508
        %7521 = vst.msk [vmem:[#allocation2 + $0x58] sm:$0xff] %vm418, %v7509
        %v7522 = vld [vmem:[%s298 + $0x10] sm:$0x8]
        %v7523 = vld [vmem:[%s298 + $0x14] sm:$0xf]
        %v7524 = vld [vmem:[%s298 + $0x18] sm:$0xf]
        %v7525 = vld [vmem:[%s298 + $0x1c] sm:$0xf]
        %v7526 = vld [vmem:[%s298 + $0x20] sm:$0xf]
        %v7527 = vld [vmem:[%s298 + $0x24] sm:$0xf]
        %v7528 = vld [vmem:[%s298 + $0x28] sm:$0xf]
        %v7529 = vld [vmem:[%s298 + $0x2c] sm:$0xf]
        %v7530 = vld [vmem:[%s298 + $0x30] sm:$0xf]
        %v7531 = vld [vmem:[%s298 + $0x34] sm:$0xf]
        %v7532 = vld [vmem:[%s298 + $0x38] sm:$0xf]
        %v7533 = vld [vmem:[%s298 + $0x3c] sm:$0xf]
        %v7534 = vld [vmem:[%s298 + $0x40] sm:$0xf]
        %v7535 = vld [vmem:[#allocation2] sm:$0xff]
        %v7536 = vld [vmem:[#allocation2 + $0x8] sm:$0xff]
        %v7537 = vld [vmem:[#allocation2 + $0x10] sm:$0xff]
        %v7538 = vld [vmem:[#allocation2 + $0x18] sm:$0xff]
        %v7539 = vld [vmem:[#allocation2 + $0x20] sm:$0xff]
        %v7540 = vld [vmem:[#allocation2 + $0x28] sm:$0xff]
        %v7541 = vld [vmem:[#allocation2 + $0x30] sm:$0xff]
        %v7542 = vld [vmem:[#allocation2 + $0x38] sm:$0xff]
        %v7543 = vld [vmem:[#allocation2 + $0x40] sm:$0xff]
        %v7544 = vld [vmem:[#allocation2 + $0x48] sm:$0xff]
        %v7545 = vld [vmem:[#allocation2 + $0x50] sm:$0xff]
        %v7546 = vld [vmem:[#allocation2 + $0x58] sm:$0xff]
        %v7547 = vld [vmem:[%s304 + $0x84] sm:$0xf]
        %v7561 = vunpack.c.l.b16 %v7522
        %v7562 = vunpack.c.l.b16 %v7523
        %v7563 = vunpack.c.l.b16 %v7524
        %v7564 = vunpack.c.l.b16 %v7525
        %v7565 = vunpack.c.l.b16 %v7526
        %v7566 = vunpack.c.l.b16 %v7527
        %v7567 = vunpack.c.l.b16 %v7528
        %v7568 = vunpack.c.l.b16 %v7529
        %v7569 = vunpack.c.l.b16 %v7530
        %v7570 = vunpack.c.l.b16 %v7531
        %v7571 = vunpack.c.l.b16 %v7532
        %v7572 = vunpack.c.l.b16 %v7533
        %v7573 = vunpack.c.l.b16 %v7534
        %v7574 = vpack.c.b16 %v7562, %v7561
        %v7575 = vpack.c.b16 %v7564, %v7563
        %v7576 = vpack.c.b16 %v7566, %v7565
        %v7577 = vpack.c.b16 %v7568, %v7567
        %v7578 = vpack.c.b16 %v7570, %v7569
        %v7579 = vpack.c.b16 %v7572, %v7571
        %v7580 = vpack.c.b16 %v7573, %v7573
        %v7582 = vshrl.u32 %v7574, 16
        %v7584 = vrot.slane %v7582, 3
        %v7585 = vshll.u32 %v7574, 16
        %v7587 = vrot.slane %v7585, 4
        %v7588 = vor.u32 %v7584, %v7587
        %v7590 = vshrl.u32 %v7575, 16
        %v7592 = vrot.slane %v7590, 3
        %v7593 = vshll.u32 %v7575, 16
        %v7595 = vrot.slane %v7593, 4
        %v7596 = vor.u32 %v7592, %v7595
        %v7597 = vsel %vm2134, %v7588, %v7596
        %v7599 = vshrl.u32 %v7576, 16
        %v7601 = vrot.slane %v7599, 3
        %v7602 = vshll.u32 %v7576, 16
        %v7604 = vrot.slane %v7602, 4
        %v7605 = vor.u32 %v7601, %v7604
        %v7606 = vsel %vm2134, %v7596, %v7605
        %v7608 = vshrl.u32 %v7577, 16
        %v7610 = vrot.slane %v7608, 3
        %v7611 = vshll.u32 %v7577, 16
        %v7613 = vrot.slane %v7611, 4
        %v7614 = vor.u32 %v7610, %v7613
        %v7615 = vsel %vm2134, %v7605, %v7614
        %v7617 = vshrl.u32 %v7578, 16
        %v7619 = vrot.slane %v7617, 3
        %v7620 = vshll.u32 %v7578, 16
        %v7622 = vrot.slane %v7620, 4
        %v7623 = vor.u32 %v7619, %v7622
        %v7624 = vsel %vm2134, %v7614, %v7623
        %v7626 = vshrl.u32 %v7579, 16
        %v7628 = vrot.slane %v7626, 3
        %v7629 = vshll.u32 %v7579, 16
        %v7631 = vrot.slane %v7629, 4
        %v7632 = vor.u32 %v7628, %v7631
        %v7633 = vsel %vm2134, %v7623, %v7632
        %v7635 = vshrl.u32 %v7580, 16
        %v7637 = vrot.slane %v7635, 3
        %v7638 = vshll.u32 %v7580, 16
        %v7640 = vrot.slane %v7638, 4
        %v7641 = vor.u32 %v7637, %v7640
        %v7642 = vsel %vm2134, %v7632, %v7641
        %v7644 = vsel %vm418, %v7597, 0
        %v7647 = vsel %vm418, %v7606, 0
        %v7650 = vsel %vm418, %v7615, 0
        %v7653 = vsel %vm418, %v7624, 0
        %v7656 = vsel %vm418, %v7633, 0
        %v7659 = vsel %vm418, %v7642, 0
        %v7662 = vsel %vm437, %v7547, 0
        %7664 = vmatprep.subr.bf16.mxu0 0
        %7665 = vmatpush1.bf16.msra.mxu0 %v7662
        %7666 = vmatprep.subr.bf16.mxu0 0
        %7667 = vmatpush1.bf16.msra.mxu0 0
        %7668 = vmatprep.subr.bf16.mxu0 0
        %7669 = vmatpush1.bf16.msra.mxu0 0
        %7670 = vmatprep.subr.bf16.mxu0 0
        %7671 = vmatpush1.bf16.msra.mxu0 0
        %7672 = vmatprep.subr.bf16.mxu0 0
        %7673 = vmatpush1.bf16.msra.mxu0 0
        %7674 = vmatprep.subr.bf16.mxu0 0
        %7675 = vmatpush1.bf16.msra.mxu0 0
        %7676 = vmatprep.subr.bf16.mxu0 0
        %7677 = vmatpush1.bf16.msra.mxu0 0
        %7678 = vmatprep.subr.bf16.mxu0 0
        %7679 = vmatpush1.bf16.msra.mxu0 0
        %7680 = vmatprep.subr.bf16.mxu0 0
        %7681 = vmatpush1.bf16.msra.mxu0 0
        %7682 = vmatprep.subr.bf16.mxu0 0
        %7683 = vmatpush1.bf16.msra.mxu0 0
        %7684 = vmatprep.subr.bf16.mxu0 0
        %7685 = vmatpush1.bf16.msra.mxu0 0
        %7686 = vmatprep.subr.bf16.mxu0 0
        %7687 = vmatpush1.bf16.msra.mxu0 0
        %7688 = vmatprep.subr.bf16.mxu0 0
        %7689 = vmatpush1.bf16.msra.mxu0 0
        %7690 = vmatprep.subr.bf16.mxu0 0
        %7691 = vmatpush1.bf16.msra.mxu0 0
        %7692 = vmatprep.subr.bf16.mxu0 0
        %7693 = vmatpush1.bf16.msra.mxu0 0
        %7694 = vmatprep.subr.bf16.mxu0 0
        %7695 = vmatpush1.bf16.msra.mxu0 0
        %7696 = vmatprep.mubr.bf16.mxu0 0
        %7697 = vmatmul.mubr.bf16.gmra.mrb[0].mxu0 %v7644
        %v7698 = vpop.f32.mrb[0].mxu0
        %v7699 = vadd.f32 0.0, %v7698
        %v7700 = vpop.f32.mrb[0].mxu0
        %v7701 = vpop.f32.mrb[0].mxu0
        %v7702 = vadd.f32 0.0, %v7701
        %v7703 = vpop.f32.mrb[0].mxu0
        %7704 = vmatprep.mubr.bf16.mxu0 0
        %7705 = vmatmul.mubr.bf16.gmra.mrb[0].mxu0 %v7647
        %v7706 = vpop.f32.mrb[0].mxu0
        %v7707 = vadd.f32 0.0, %v7706
        %v7708 = vpop.f32.mrb[0].mxu0
        %v7709 = vpop.f32.mrb[0].mxu0
        %v7710 = vadd.f32 0.0, %v7709
        %v7711 = vpop.f32.mrb[0].mxu0
        %7712 = vmatprep.mubr.bf16.mxu0 0
        %7713 = vmatmul.mubr.bf16.gmra.mrb[0].mxu0 %v7650
        %v7714 = vpop.f32.mrb[0].mxu0
        %v7715 = vadd.f32 0.0, %v7714
        %v7716 = vpop.f32.mrb[0].mxu0
        %v7717 = vpop.f32.mrb[0].mxu0
        %v7718 = vadd.f32 0.0, %v7717
        %v7719 = vpop.f32.mrb[0].mxu0
        %7720 = vmatprep.mubr.bf16.mxu0 0
        %7721 = vmatmul.mubr.bf16.gmra.mrb[0].mxu0 %v7653
        %v7722 = vpop.f32.mrb[0].mxu0
        %v7723 = vadd.f32 0.0, %v7722
        %v7724 = vpop.f32.mrb[0].mxu0
        %v7725 = vpop.f32.mrb[0].mxu0
        %v7726 = vadd.f32 0.0, %v7725
        %v7727 = vpop.f32.mrb[0].mxu0
        %7728 = vmatprep.mubr.bf16.mxu0 0
        %7729 = vmatmul.mubr.bf16.gmra.mrb[0].mxu0 %v7656
        %v7730 = vpop.f32.mrb[0].mxu0
        %v7731 = vadd.f32 0.0, %v7730
        %v7732 = vpop.f32.mrb[0].mxu0
        %v7733 = vpop.f32.mrb[0].mxu0
        %v7734 = vadd.f32 0.0, %v7733
        %v7735 = vpop.f32.mrb[0].mxu0
        %7736 = vmatprep.mubr.bf16.mxu0 0
        %7737 = vmatmul.mubr.bf16.gmra.mrb[0].mxu0 %v7659
        %v7738 = vpop.f32.mrb[0].mxu0
        %v7739 = vadd.f32 0.0, %v7738
        %v7740 = vpop.f32.mrb[0].mxu0
        %v7741 = vpop.f32.mrb[0].mxu0
        %v7742 = vadd.f32 0.0, %v7741
        %v7743 = vpop.f32.mrb[0].mxu0
        %7744 = vdwg.mxu0
        %v7745 = vadd.f32 %v7535, %v7699
        %v7746 = vadd.f32 %v7536, %v7702
        %v7747 = vadd.f32 %v7537, %v7707
        %v7748 = vadd.f32 %v7538, %v7710
        %v7749 = vadd.f32 %v7539, %v7715
        %v7750 = vadd.f32 %v7540, %v7718
        %v7751 = vadd.f32 %v7541, %v7723
        %v7752 = vadd.f32 %v7542, %v7726
        %v7753 = vadd.f32 %v7543, %v7731
        %v7754 = vadd.f32 %v7544, %v7734
        %v7755 = vadd.f32 %v7545, %v7739
        %v7756 = vadd.f32 %v7546, %v7742
        %7757 = vst.msk [vmem:[#allocation2] sm:$0xff] %vm418, %v7745
        %7758 = vst.msk [vmem:[#allocation2 + $0x8] sm:$0xff] %vm418, %v7746
        %7759 = vst.msk [vmem:[#allocation2 + $0x10] sm:$0xff] %vm418, %v7747
        %7760 = vst.msk [vmem:[#allocation2 + $0x18] sm:$0xff] %vm418, %v7748
        %7761 = vst.msk [vmem:[#allocation2 + $0x20] sm:$0xff] %vm418, %v7749
        %7762 = vst.msk [vmem:[#allocation2 + $0x28] sm:$0xff] %vm418, %v7750
        %7763 = vst.msk [vmem:[#allocation2 + $0x30] sm:$0xff] %vm418, %v7751
        %7764 = vst.msk [vmem:[#allocation2 + $0x38] sm:$0xff] %vm418, %v7752
        %7765 = vst.msk [vmem:[#allocation2 + $0x40] sm:$0xff] %vm418, %v7753
        %7766 = vst.msk [vmem:[#allocation2 + $0x48] sm:$0xff] %vm418, %v7754
        %7767 = vst.msk [vmem:[#allocation2 + $0x50] sm:$0xff] %vm418, %v7755
        %7768 = vst.msk [vmem:[#allocation2 + $0x58] sm:$0xff] %vm418, %v7756
      $region44: #{sk_block_forward.4} parent=31 // pred_fallthru
        _
      %p7769 = scmp.eq.s32.totalorder %s24, 4
      // Predicated region
      $region45: #{sk_block_forward.4} parent=31 // pred_check
        %p7770 = pneg %p7769
      $region46: #{sk_block_forward.4} parent=31 // pred_check_branch
        %7772 = sbr.rel (%p7770) target = $region48
      $region47: #{sk_block_forward.4} parent=31 // pred_region
        %v7773 = vld [vmem:[#allocation2] sm:$0xff]
        %v7774 = vld [vmem:[#allocation2 + $0x8] sm:$0xff]
        %v7775 = vld [vmem:[#allocation2 + $0x10] sm:$0xff]
        %v7776 = vld [vmem:[#allocation2 + $0x18] sm:$0xff]
        %v7777 = vld [vmem:[#allocation2 + $0x20] sm:$0xff]
        %v7778 = vld [vmem:[#allocation2 + $0x28] sm:$0xff]
        %v7779 = vld [vmem:[#allocation2 + $0x30] sm:$0xff]
        %v7780 = vld [vmem:[#allocation2 + $0x38] sm:$0xff]
        %v7781 = vld [vmem:[#allocation2 + $0x40] sm:$0xff]
        %v7782 = vld [vmem:[#allocation2 + $0x48] sm:$0xff]
        %v7783 = vld [vmem:[#allocation2 + $0x50] sm:$0xff]
        %v7784 = vld [vmem:[#allocation2 + $0x58] sm:$0xff]
        %v7785 = vld [vmem:[%s2] sm:$0x1]
        %v7786 = vlaneseq
        %v7787 = vshrl.u32 %v7786, 7
        %v7788 = vsub.s32 0, %v7787
        %v7789 = vrot.slane %v7785, %v7788
        %v7790 = vadd.f32 %v7773, %v7789
        %v7791 = vadd.f32 %v7774, %v7789
        %v7792 = vadd.f32 %v7775, %v7789
        %v7793 = vadd.f32 %v7776, %v7789
        %v7794 = vadd.f32 %v7777, %v7789
        %v7795 = vadd.f32 %v7778, %v7789
        %v7796 = vadd.f32 %v7779, %v7789
        %v7797 = vadd.f32 %v7780, %v7789
        %v7798 = vadd.f32 %v7781, %v7789
        %v7799 = vadd.f32 %v7782, %v7789
        %v7800 = vadd.f32 %v7783, %v7789
        %v7801 = vadd.f32 %v7784, %v7789
        %v7802 = vmax.f32 %v7790, 0.0
        %v7803 = vmax.f32 %v7791, 0.0
        %v7804 = vmax.f32 %v7792, 0.0
        %v7805 = vmax.f32 %v7793, 0.0
        %v7806 = vmax.f32 %v7794, 0.0
        %v7807 = vmax.f32 %v7795, 0.0
        %v7808 = vmax.f32 %v7796, 0.0
        %v7809 = vmax.f32 %v7797, 0.0
        %v7810 = vmax.f32 %v7798, 0.0
        %v7811 = vmax.f32 %v7799, 0.0
        %v7812 = vmax.f32 %v7800, 0.0
        %v7813 = vmax.f32 %v7801, 0.0
        %v7814 = vld [vmem:[#allocation3] sm:$0xff]
        %v7815 = vld [vmem:[#allocation3 + $0x8] sm:$0xff]
        %v7816 = vld [vmem:[#allocation3 + $0x10] sm:$0xff]
        %v7817 = vld [vmem:[#allocation3 + $0x18] sm:$0xff]
        %v7818 = vld [vmem:[#allocation3 + $0x20] sm:$0xff]
        %v7819 = vld [vmem:[#allocation3 + $0x28] sm:$0xff]
        %v7820 = vld [vmem:[#allocation3 + $0x30] sm:$0xff]
        %v7821 = vld [vmem:[#allocation3 + $0x38] sm:$0xff]
        %v7822 = vld [vmem:[#allocation3 + $0x40] sm:$0xff]
        %v7823 = vld [vmem:[#allocation3 + $0x48] sm:$0xff]
        %v7824 = vld [vmem:[#allocation3 + $0x50] sm:$0xff]
        %v7825 = vld [vmem:[#allocation3 + $0x58] sm:$0xff]
        %v7826 = vld [vmem:[%s2 + $0x1] sm:$0x1]
        %v7827 = vlaneseq
        %v7828 = vshrl.u32 %v7827, 7
        %v7829 = vsub.s32 0, %v7828
        %v7830 = vrot.slane %v7826, %v7829
        %v7831 = vadd.f32 %v7814, %v7830
        %v7832 = vadd.f32 %v7815, %v7830
        %v7833 = vadd.f32 %v7816, %v7830
        %v7834 = vadd.f32 %v7817, %v7830
        %v7835 = vadd.f32 %v7818, %v7830
        %v7836 = vadd.f32 %v7819, %v7830
        %v7837 = vadd.f32 %v7820, %v7830
        %v7838 = vadd.f32 %v7821, %v7830
        %v7839 = vadd.f32 %v7822, %v7830
        %v7840 = vadd.f32 %v7823, %v7830
        %v7841 = vadd.f32 %v7824, %v7830
        %v7842 = vadd.f32 %v7825, %v7830
        %v7843 = vmax.f32 %v7831, 0.0
        %v7844 = vmax.f32 %v7832, 0.0
        %v7845 = vmax.f32 %v7833, 0.0
        %v7846 = vmax.f32 %v7834, 0.0
        %v7847 = vmax.f32 %v7835, 0.0
        %v7848 = vmax.f32 %v7836, 0.0
        %v7849 = vmax.f32 %v7837, 0.0
        %v7850 = vmax.f32 %v7838, 0.0
        %v7851 = vmax.f32 %v7839, 0.0
        %v7852 = vmax.f32 %v7840, 0.0
        %v7853 = vmax.f32 %v7841, 0.0
        %v7854 = vmax.f32 %v7842, 0.0
        %v7855 = vpack.c.bf16 %v7803, %v7802
        %v7856 = vpack.c.bf16 %v7805, %v7804
        %v7857 = vpack.c.bf16 %v7807, %v7806
        %v7858 = vpack.c.bf16 %v7809, %v7808
        %v7859 = vpack.c.bf16 %v7811, %v7810
        %v7860 = vpack.c.bf16 %v7813, %v7812
        %v7867 = vunpack.c.l.b16 %v7855
        %v7868 = vunpack.c.h.b16 %v7855
        %v7869 = vunpack.c.l.b16 %v7856
        %v7870 = vunpack.c.h.b16 %v7856
        %v7871 = vunpack.c.l.b16 %v7857
        %v7872 = vunpack.c.h.b16 %v7857
        %v7873 = vunpack.c.l.b16 %v7858
        %v7874 = vunpack.c.h.b16 %v7858
        %v7875 = vunpack.c.l.b16 %v7859
        %v7876 = vunpack.c.h.b16 %v7859
        %v7877 = vunpack.c.l.b16 %v7860
        %v7878 = vunpack.c.h.b16 %v7860
        %v7879 = vpack.c.b16 %v7867, %v7867
        %v7880 = vpack.c.b16 %v7868, %v7868
        %v7881 = vpack.c.b16 %v7869, %v7869
        %v7882 = vpack.c.b16 %v7870, %v7870
        %v7883 = vpack.c.b16 %v7871, %v7871
        %v7884 = vpack.c.b16 %v7872, %v7872
        %v7885 = vpack.c.b16 %v7873, %v7873
        %v7886 = vpack.c.b16 %v7874, %v7874
        %v7887 = vpack.c.b16 %v7875, %v7875
        %v7888 = vpack.c.b16 %v7876, %v7876
        %v7889 = vpack.c.b16 %v7877, %v7877
        %v7890 = vpack.c.b16 %v7878, %v7878
        %vm7903 = vcmask 60416
        %7904 = vst.msk [vmem:[%s313] sm:$0xf] %vm7903, %v7879
        %7905 = vst.msk [vmem:[%s313 + $0x4] sm:$0xf] %vm7903, %v7880
        %7906 = vst.msk [vmem:[%s313 + $0x8] sm:$0xf] %vm7903, %v7881
        %7907 = vst.msk [vmem:[%s313 + $0xc] sm:$0xf] %vm7903, %v7882
        %7908 = vst.msk [vmem:[%s313 + $0x10] sm:$0xf] %vm7903, %v7883
        %7909 = vst.msk [vmem:[%s313 + $0x14] sm:$0xf] %vm7903, %v7884
        %7910 = vst.msk [vmem:[%s313 + $0x18] sm:$0xf] %vm7903, %v7885
        %7911 = vst.msk [vmem:[%s313 + $0x1c] sm:$0xf] %vm7903, %v7886
        %7912 = vst.msk [vmem:[%s313 + $0x20] sm:$0xf] %vm7903, %v7887
        %7913 = vst.msk [vmem:[%s313 + $0x24] sm:$0xf] %vm7903, %v7888
        %7914 = vst.msk [vmem:[%s313 + $0x28] sm:$0xf] %vm7903, %v7889
        %7915 = vst.msk [vmem:[%s313 + $0x2c] sm:$0xf] %vm7903, %v7890
        %v7916 = vpack.c.bf16 %v7844, %v7843
        %v7917 = vpack.c.bf16 %v7846, %v7845
        %v7918 = vpack.c.bf16 %v7848, %v7847
        %v7919 = vpack.c.bf16 %v7850, %v7849
        %v7920 = vpack.c.bf16 %v7852, %v7851
        %v7921 = vpack.c.bf16 %v7854, %v7853
        %v7928 = vunpack.c.l.b16 %v7916
        %v7929 = vunpack.c.h.b16 %v7916
        %v7930 = vunpack.c.l.b16 %v7917
        %v7931 = vunpack.c.h.b16 %v7917
        %v7932 = vunpack.c.l.b16 %v7918
        %v7933 = vunpack.c.h.b16 %v7918
        %v7934 = vunpack.c.l.b16 %v7919
        %v7935 = vunpack.c.h.b16 %v7919
        %v7936 = vunpack.c.l.b16 %v7920
        %v7937 = vunpack.c.h.b16 %v7920
        %v7938 = vunpack.c.l.b16 %v7921
        %v7939 = vunpack.c.h.b16 %v7921
        %v7940 = vpack.c.b16 %v7928, %v7928
        %v7941 = vpack.c.b16 %v7929, %v7929
        %v7942 = vpack.c.b16 %v7930, %v7930
        %v7943 = vpack.c.b16 %v7931, %v7931
        %v7944 = vpack.c.b16 %v7932, %v7932
        %v7945 = vpack.c.b16 %v7933, %v7933
        %v7946 = vpack.c.b16 %v7934, %v7934
        %v7947 = vpack.c.b16 %v7935, %v7935
        %v7948 = vpack.c.b16 %v7936, %v7936
        %v7949 = vpack.c.b16 %v7937, %v7937
        %v7950 = vpack.c.b16 %v7938, %v7938
        %v7951 = vpack.c.b16 %v7939, %v7939
        %7964 = vst.msk [vmem:[%s322] sm:$0xf] %vm7903, %v7940
        %7965 = vst.msk [vmem:[%s322 + $0x4] sm:$0xf] %vm7903, %v7941
        %7966 = vst.msk [vmem:[%s322 + $0x8] sm:$0xf] %vm7903, %v7942
        %7967 = vst.msk [vmem:[%s322 + $0xc] sm:$0xf] %vm7903, %v7943
        %7968 = vst.msk [vmem:[%s322 + $0x10] sm:$0xf] %vm7903, %v7944
        %7969 = vst.msk [vmem:[%s322 + $0x14] sm:$0xf] %vm7903, %v7945
        %7970 = vst.msk [vmem:[%s322 + $0x18] sm:$0xf] %vm7903, %v7946
        %7971 = vst.msk [vmem:[%s322 + $0x1c] sm:$0xf] %vm7903, %v7947
        %7972 = vst.msk [vmem:[%s322 + $0x20] sm:$0xf] %vm7903, %v7948
        %7973 = vst.msk [vmem:[%s322 + $0x24] sm:$0xf] %vm7903, %v7949
        %7974 = vst.msk [vmem:[%s322 + $0x28] sm:$0xf] %vm7903, %v7950
        %7975 = vst.msk [vmem:[%s322 + $0x2c] sm:$0xf] %vm7903, %v7951
        %v7976 = vlaneseq
        %v7977 = vshrl.u32 %v7976, 7
        %v7978 = vadd.s32 %v7977, 8
        %v7979 = vadd.s32 %v7977, 16
        %v7980 = vadd.s32 %v7977, 24
        %v7981 = vadd.s32 %v7977, 32
        %v7982 = vadd.s32 %v7977, 40
        %v7983 = vadd.s32 %v7977, 48
        %v7984 = vadd.s32 %v7977, 56
        %v7985 = vadd.s32 %v7977, 64
        %v7986 = vadd.s32 %v7977, 72
        %v7987 = vadd.s32 %v7977, 80
        %v7988 = vadd.s32 %v7977, 88
        %vm7989 = vcmp.lt.s32.totalorder %v7977, 0
        %v7990 = vsub.s32 0, %v7977
        %v7991 = vsel %vm7989, %v7990, %v7977
        %v7992 = vmul.u32.u64.compose %v7991, 2863311531
        %v7993 = vextract.low.u32 %v7992
        %v7994 = vextract.high.u32 %v7992
        %v7995 = vshrl.u32 %v7994, 3
        %v7996 = vmul.u32 %v7995, 12
        %v7997 = vsub.s32 %v7991, %v7996
        %v7998 = vsub.s32 0, %v7997
        %v7999 = vsel %vm7989, %v7998, %v7997
        %vm8000 = vcmp.lt.s32.totalorder %v7978, 0
        %v8001 = vsub.s32 0, %v7978
        %v8002 = vsel %vm8000, %v8001, %v7978
        %v8003 = vmul.u32.u64.compose %v8002, 2863311531
        %v8004 = vextract.low.u32 %v8003
        %v8005 = vextract.high.u32 %v8003
        %v8006 = vshrl.u32 %v8005, 3
        %v8007 = vmul.u32 %v8006, 12
        %v8008 = vsub.s32 %v8002, %v8007
        %v8009 = vsub.s32 0, %v8008
        %v8010 = vsel %vm8000, %v8009, %v8008
        %vm8011 = vcmp.lt.s32.totalorder %v7979, 0
        %v8012 = vsub.s32 0, %v7979
        %v8013 = vsel %vm8011, %v8012, %v7979
        %v8014 = vmul.u32.u64.compose %v8013, 2863311531
        %v8015 = vextract.low.u32 %v8014
        %v8016 = vextract.high.u32 %v8014
        %v8017 = vshrl.u32 %v8016, 3
        %v8018 = vmul.u32 %v8017, 12
        %v8019 = vsub.s32 %v8013, %v8018
        %v8020 = vsub.s32 0, %v8019
        %v8021 = vsel %vm8011, %v8020, %v8019
        %vm8022 = vcmp.lt.s32.totalorder %v7980, 0
        %v8023 = vsub.s32 0, %v7980
        %v8024 = vsel %vm8022, %v8023, %v7980
        %v8025 = vmul.u32.u64.compose %v8024, 2863311531
        %v8026 = vextract.low.u32 %v8025
        %v8027 = vextract.high.u32 %v8025
        %v8028 = vshrl.u32 %v8027, 3
        %v8029 = vmul.u32 %v8028, 12
        %v8030 = vsub.s32 %v8024, %v8029
        %v8031 = vsub.s32 0, %v8030
        %v8032 = vsel %vm8022, %v8031, %v8030
        %vm8033 = vcmp.lt.s32.totalorder %v7981, 0
        %v8034 = vsub.s32 0, %v7981
        %v8035 = vsel %vm8033, %v8034, %v7981
        %v8036 = vmul.u32.u64.compose %v8035, 2863311531
        %v8037 = vextract.low.u32 %v8036
        %v8038 = vextract.high.u32 %v8036
        %v8039 = vshrl.u32 %v8038, 3
        %v8040 = vmul.u32 %v8039, 12
        %v8041 = vsub.s32 %v8035, %v8040
        %v8042 = vsub.s32 0, %v8041
        %v8043 = vsel %vm8033, %v8042, %v8041
        %vm8044 = vcmp.lt.s32.totalorder %v7982, 0
        %v8045 = vsub.s32 0, %v7982
        %v8046 = vsel %vm8044, %v8045, %v7982
        %v8047 = vmul.u32.u64.compose %v8046, 2863311531
        %v8048 = vextract.low.u32 %v8047
        %v8049 = vextract.high.u32 %v8047
        %v8050 = vshrl.u32 %v8049, 3
        %v8051 = vmul.u32 %v8050, 12
        %v8052 = vsub.s32 %v8046, %v8051
        %v8053 = vsub.s32 0, %v8052
        %v8054 = vsel %vm8044, %v8053, %v8052
        %vm8055 = vcmp.lt.s32.totalorder %v7983, 0
        %v8056 = vsub.s32 0, %v7983
        %v8057 = vsel %vm8055, %v8056, %v7983
        %v8058 = vmul.u32.u64.compose %v8057, 2863311531
        %v8059 = vextract.low.u32 %v8058
        %v8060 = vextract.high.u32 %v8058
        %v8061 = vshrl.u32 %v8060, 3
        %v8062 = vmul.u32 %v8061, 12
        %v8063 = vsub.s32 %v8057, %v8062
        %v8064 = vsub.s32 0, %v8063
        %v8065 = vsel %vm8055, %v8064, %v8063
        %vm8066 = vcmp.lt.s32.totalorder %v7984, 0
        %v8067 = vsub.s32 0, %v7984
        %v8068 = vsel %vm8066, %v8067, %v7984
        %v8069 = vmul.u32.u64.compose %v8068, 2863311531
        %v8070 = vextract.low.u32 %v8069
        %v8071 = vextract.high.u32 %v8069
        %v8072 = vshrl.u32 %v8071, 3
        %v8073 = vmul.u32 %v8072, 12
        %v8074 = vsub.s32 %v8068, %v8073
        %v8075 = vsub.s32 0, %v8074
        %v8076 = vsel %vm8066, %v8075, %v8074
        %vm8077 = vcmp.lt.s32.totalorder %v7985, 0
        %v8078 = vsub.s32 0, %v7985
        %v8079 = vsel %vm8077, %v8078, %v7985
        %v8080 = vmul.u32.u64.compose %v8079, 2863311531
        %v8081 = vextract.low.u32 %v8080
        %v8082 = vextract.high.u32 %v8080
        %v8083 = vshrl.u32 %v8082, 3
        %v8084 = vmul.u32 %v8083, 12
        %v8085 = vsub.s32 %v8079, %v8084
        %v8086 = vsub.s32 0, %v8085
        %v8087 = vsel %vm8077, %v8086, %v8085
        %vm8088 = vcmp.lt.s32.totalorder %v7986, 0
        %v8089 = vsub.s32 0, %v7986
        %v8090 = vsel %vm8088, %v8089, %v7986
        %v8091 = vmul.u32.u64.compose %v8090, 2863311531
        %v8092 = vextract.low.u32 %v8091
        %v8093 = vextract.high.u32 %v8091
        %v8094 = vshrl.u32 %v8093, 3
        %v8095 = vmul.u32 %v8094, 12
        %v8096 = vsub.s32 %v8090, %v8095
        %v8097 = vsub.s32 0, %v8096
        %v8098 = vsel %vm8088, %v8097, %v8096
        %vm8099 = vcmp.lt.s32.totalorder %v7987, 0
        %v8100 = vsub.s32 0, %v7987
        %v8101 = vsel %vm8099, %v8100, %v7987
        %v8102 = vmul.u32.u64.compose %v8101, 2863311531
        %v8103 = vextract.low.u32 %v8102
        %v8104 = vextract.high.u32 %v8102
        %v8105 = vshrl.u32 %v8104, 3
        %v8106 = vmul.u32 %v8105, 12
        %v8107 = vsub.s32 %v8101, %v8106
        %v8108 = vsub.s32 0, %v8107
        %v8109 = vsel %vm8099, %v8108, %v8107
        %vm8110 = vcmp.lt.s32.totalorder %v7988, 0
        %v8111 = vsub.s32 0, %v7988
        %v8112 = vsel %vm8110, %v8111, %v7988
        %v8113 = vmul.u32.u64.compose %v8112, 2863311531
        %v8114 = vextract.low.u32 %v8113
        %v8115 = vextract.high.u32 %v8113
        %v8116 = vshrl.u32 %v8115, 3
        %v8117 = vmul.u32 %v8116, 12
        %v8118 = vsub.s32 %v8112, %v8117
        %v8119 = vsub.s32 0, %v8118
        %v8120 = vsel %vm8110, %v8119, %v8118
        %vm8121 = vcmp.ne.s32.totalorder %v7999, 0
        %vm8122 = vcmp.ne.s32.totalorder %v8010, 0
        %vm8123 = vcmp.ne.s32.totalorder %v8021, 0
        %vm8124 = vcmp.ne.s32.totalorder %v8032, 0
        %vm8125 = vcmp.ne.s32.totalorder %v8043, 0
        %vm8126 = vcmp.ne.s32.totalorder %v8054, 0
        %vm8127 = vcmp.ne.s32.totalorder %v8065, 0
        %vm8128 = vcmp.ne.s32.totalorder %v8076, 0
        %vm8129 = vcmp.ne.s32.totalorder %v8087, 0
        %vm8130 = vcmp.ne.s32.totalorder %v8098, 0
        %vm8131 = vcmp.ne.s32.totalorder %v8109, 0
        %vm8132 = vcmp.ne.s32.totalorder %v8120, 0
        %vm8133 = vcmp.lt.s32.totalorder %v7999, 0
        %vm8134 = vcmp.lt.s32.totalorder %v8010, 0
        %vm8135 = vcmp.lt.s32.totalorder %v8021, 0
        %vm8136 = vcmp.lt.s32.totalorder %v8032, 0
        %vm8137 = vcmp.lt.s32.totalorder %v8043, 0
        %vm8138 = vcmp.lt.s32.totalorder %v8054, 0
        %vm8139 = vcmp.lt.s32.totalorder %v8065, 0
        %vm8140 = vcmp.lt.s32.totalorder %v8076, 0
        %vm8141 = vcmp.lt.s32.totalorder %v8087, 0
        %vm8142 = vcmp.lt.s32.totalorder %v8098, 0
        %vm8143 = vcmp.lt.s32.totalorder %v8109, 0
        %vm8144 = vcmp.lt.s32.totalorder %v8120, 0
        %vm8145 = vmand %vm8133, %vm8121
        %vm8146 = vmand %vm8134, %vm8122
        %vm8147 = vmand %vm8135, %vm8123
        %vm8148 = vmand %vm8136, %vm8124
        %vm8149 = vmand %vm8137, %vm8125
        %vm8150 = vmand %vm8138, %vm8126
        %vm8151 = vmand %vm8139, %vm8127
        %vm8152 = vmand %vm8140, %vm8128
        %vm8153 = vmand %vm8141, %vm8129
        %vm8154 = vmand %vm8142, %vm8130
        %vm8155 = vmand %vm8143, %vm8131
        %vm8156 = vmand %vm8144, %vm8132
        %v8157 = vadd.s32 %v7999, 12
        %v8158 = vadd.s32 %v8010, 12
        %v8159 = vadd.s32 %v8021, 12
        %v8160 = vadd.s32 %v8032, 12
        %v8161 = vadd.s32 %v8043, 12
        %v8162 = vadd.s32 %v8054, 12
        %v8163 = vadd.s32 %v8065, 12
        %v8164 = vadd.s32 %v8076, 12
        %v8165 = vadd.s32 %v8087, 12
        %v8166 = vadd.s32 %v8098, 12
        %v8167 = vadd.s32 %v8109, 12
        %v8168 = vadd.s32 %v8120, 12
        %v8169 = vsel %vm8145, %v8157, %v7999
        %v8170 = vsel %vm8146, %v8158, %v8010
        %v8171 = vsel %vm8147, %v8159, %v8021
        %v8172 = vsel %vm8148, %v8160, %v8032
        %v8173 = vsel %vm8149, %v8161, %v8043
        %v8174 = vsel %vm8150, %v8162, %v8054
        %v8175 = vsel %vm8151, %v8163, %v8065
        %v8176 = vsel %vm8152, %v8164, %v8076
        %v8177 = vsel %vm8153, %v8165, %v8087
        %v8178 = vsel %vm8154, %v8166, %v8098
        %v8179 = vsel %vm8155, %v8167, %v8109
        %v8180 = vsel %vm8156, %v8168, %v8120
        %vm8181 = vcmp.lt.s32.totalorder %v8169, 8
        %vm8182 = vcmp.lt.s32.totalorder %v8170, 8
        %vm8183 = vcmp.lt.s32.totalorder %v8171, 8
        %vm8184 = vcmp.lt.s32.totalorder %v8172, 8
        %vm8185 = vcmp.lt.s32.totalorder %v8173, 8
        %vm8186 = vcmp.lt.s32.totalorder %v8174, 8
        %vm8187 = vcmp.lt.s32.totalorder %v8175, 8
        %vm8188 = vcmp.lt.s32.totalorder %v8176, 8
        %vm8189 = vcmp.lt.s32.totalorder %v8177, 8
        %vm8190 = vcmp.lt.s32.totalorder %v8178, 8
        %vm8191 = vcmp.lt.s32.totalorder %v8179, 8
        %vm8192 = vcmp.lt.s32.totalorder %v8180, 8
        %v8193 = vld [vmem:[#allocation4] sm:$0x1]
        %v8194 = vadd.f32 %v7802, %v7843
        %v8195 = vadd.f32 %v7803, %v7844
        %v8196 = vadd.f32 %v7804, %v7845
        %v8197 = vadd.f32 %v7805, %v7846
        %v8198 = vadd.f32 %v7806, %v7847
        %v8199 = vadd.f32 %v7807, %v7848
        %v8200 = vadd.f32 %v7808, %v7849
        %v8201 = vadd.f32 %v7809, %v7850
        %v8202 = vadd.f32 %v7810, %v7851
        %v8203 = vadd.f32 %v7811, %v7852
        %v8204 = vadd.f32 %v7812, %v7853
        %v8205 = vadd.f32 %v7813, %v7854
        %v8206 = vsel %vm8181, 1, 0
        %v8207 = vsel %vm8182, 1, 0
        %v8208 = vsel %vm8183, 1, 0
        %v8209 = vsel %vm8184, 1, 0
        %v8210 = vsel %vm8185, 1, 0
        %v8211 = vsel %vm8186, 1, 0
        %v8212 = vsel %vm8187, 1, 0
        %v8213 = vsel %vm8188, 1, 0
        %v8214 = vsel %vm8189, 1, 0
        %v8215 = vsel %vm8190, 1, 0
        %v8216 = vsel %vm8191, 1, 0
        %v8217 = vsel %vm8192, 1, 0
        %vm8218 = vcmp.eq.s32.totalorder %v8206, 1
        %vm8219 = vcmp.eq.s32.totalorder %v8207, 1
        %vm8220 = vcmp.eq.s32.totalorder %v8208, 1
        %vm8221 = vcmp.eq.s32.totalorder %v8209, 1
        %vm8222 = vcmp.eq.s32.totalorder %v8210, 1
        %vm8223 = vcmp.eq.s32.totalorder %v8211, 1
        %vm8224 = vcmp.eq.s32.totalorder %v8212, 1
        %vm8225 = vcmp.eq.s32.totalorder %v8213, 1
        %vm8226 = vcmp.eq.s32.totalorder %v8214, 1
        %vm8227 = vcmp.eq.s32.totalorder %v8215, 1
        %vm8228 = vcmp.eq.s32.totalorder %v8216, 1
        %vm8229 = vcmp.eq.s32.totalorder %v8217, 1
        %v8230 = vsel %vm8218, %v8194, 0.0
        %v8231 = vsel %vm8219, %v8195, 0.0
        %v8232 = vsel %vm8220, %v8196, 0.0
        %v8233 = vsel %vm8221, %v8197, 0.0
        %v8234 = vsel %vm8222, %v8198, 0.0
        %v8235 = vsel %vm8223, %v8199, 0.0
        %v8236 = vsel %vm8224, %v8200, 0.0
        %v8237 = vsel %vm8225, %v8201, 0.0
        %v8238 = vsel %vm8226, %v8202, 0.0
        %v8239 = vsel %vm8227, %v8203, 0.0
        %v8240 = vsel %vm8228, %v8204, 0.0
        %v8241 = vsel %vm8229, %v8205, 0.0
        %v8242 = vsel %vm418, %v8230, 0.0
        %v8243 = vsel %vm418, %v8231, 0.0
        %v8244 = vadd.f32 %v8242, %v8243
        %v8245 = vsel %vm418, %v8232, 0.0
        %v8246 = vadd.f32 %v8244, %v8245
        %v8247 = vsel %vm418, %v8233, 0.0
        %v8248 = vadd.f32 %v8246, %v8247
        %v8249 = vsel %vm418, %v8234, 0.0
        %v8250 = vadd.f32 %v8248, %v8249
        %v8251 = vsel %vm418, %v8235, 0.0
        %v8252 = vadd.f32 %v8250, %v8251
        %v8253 = vsel %vm418, %v8236, 0.0
        %v8254 = vadd.f32 %v8252, %v8253
        %v8255 = vsel %vm418, %v8237, 0.0
        %v8256 = vadd.f32 %v8254, %v8255
        %v8257 = vsel %vm418, %v8238, 0.0
        %v8258 = vadd.f32 %v8256, %v8257
        %v8259 = vsel %vm418, %v8239, 0.0
        %v8260 = vadd.f32 %v8258, %v8259
        %v8261 = vsel %vm418, %v8240, 0.0
        %v8262 = vadd.f32 %v8260, %v8261
        %v8263 = vsel %vm418, %v8241, 0.0
        %v8264 = vadd.f32 %v8262, %v8263
        %v8265 = vrot.slane %v8264, 4
        %v8266 = vadd.f32 %v8264, %v8265
        %v8267 = vrot.slane %v8266, 2
        %v8268 = vadd.f32 %v8266, %v8267
        %v8269 = vrot.slane %v8268, 1
        %v8270 = vadd.f32 %v8268, %v8269
        %v8271 = vadd.f32 %v8193, %v8270
        %vm8272 = vcmask 57344
        %8273 = vst.msk [vmem:[#allocation4] sm:$0x1] %vm8272, %v8271
      $region48: #{sk_block_forward.4} parent=31 // pred_fallthru
        _
      %p8274 = scmp.eq.s32.totalorder %s23, 7
      %p8275 = pnand %p7769, %p8274
      %p8276 = pneg %p8275
      // Predicated region
      $region49: #{sk_block_forward.4} parent=31 // pred_check
        _
      $region50: #{sk_block_forward.4} parent=31 // pred_check_branch
        %8278 = sbr.rel (%p8275) target = $region52
      $region51: #{sk_block_forward.4} parent=31 // pred_region
        %v8279 = vld [vmem:[#allocation4] sm:$0x1]
        %vm8280 = vcmask 57344
        %8281 = vst.msk [vmem:[%s325] sm:$0x1] %vm8280, %v8279
      $region52: #{sk_block_forward.4} parent=31 // pred_fallthru
        _
      %p8282 = scmp.lt.s32.totalorder %s22, 1
      %s8283 = scalar_select %p8282, %s22, 1
      %p8284 = scmp.lt.s32.totalorder %s23, 7
      %s8285 = scalar_select %p8284, %s23, 7
      %s8286 = smul.addr %s8285, 12
      %s8287 = smul.addr %s8283, 96
      %s8288 = sadd.s32 %s8286, %s8287
      %s8289 = smul.addr %s8288, 4
      %s8290 = scalar_lea.vmem %s3, %s8289
      %p8291 = scmp.lt.s32.totalorder %s22, 1
      %s8292 = scalar_select %p8291, %s22, 1
      %p8293 = scmp.lt.s32.totalorder %s23, 7
      %s8294 = scalar_select %p8293, %s23, 7
      %s8295 = smul.addr %s8294, 12
      %s8296 = smul.addr %s8292, 96
      %s8297 = sadd.s32 %s8295, %s8296
      %s8298 = smul.addr %s8297, 4
      %s8299 = scalar_lea.vmem %s4, %s8298
      %p8300 = scmp.lt.s32.totalorder %s22, 1
      %s8301 = scalar_select %p8300, %s22, 1
      %s8302 = scalar_lea.vmem %s5, %s8301
      // Predicated region
      $region53: #{sk_block_forward.4} parent=31 // pred_check
        %p8303 = pneg %p133
      $region54: #{sk_block_forward.4} parent=31 // pred_check_branch
        %8305 = sbr.rel (%p8303) target = $region56
      $region55: #{sk_block_forward.4} parent=31 // pred_region
        _
      $region56: #{sk_block_forward.4} parent=31 // pred_fallthru
        _
      // Predicated region
      $region57: #{sk_block_forward.4} parent=31 // pred_check
        %p8306 = pneg %p161
      $region58: #{sk_block_forward.4} parent=31 // pred_check_branch
        %8308 = sbr.rel (%p8306) target = $region60
      $region59: #{sk_block_forward.4} parent=31 // pred_region
        _
      $region60: #{sk_block_forward.4} parent=31 // pred_fallthru
        _
      // Predicated region
      $region61: #{sk_block_forward.4} parent=31 // pred_check
        %p8309 = pneg %p187
      $region62: #{sk_block_forward.4} parent=31 // pred_check_branch
        %8311 = sbr.rel (%p8309) target = $region64
      $region63: #{sk_block_forward.4} parent=31 // pred_region
        _
      $region64: #{sk_block_forward.4} parent=31 // pred_fallthru
        _
    $region32: #{sk_block_forward.4} parent=5 // pred_fallthru
      _
    %p8312 = scmp.le.s32.totalorder 2, %s12
    // Predicated region
    $region65: #{sk_block_forward.4} parent=5 // pred_check
      %p8313 = pneg %p8312
    $region66: #{sk_block_forward.4} parent=5 // pred_check_branch
      %8315 = sbr.rel (%p8313) target = $region68
    $region67: #{sk_block_forward.4} parent=5 // pred_region
      %s8316 = ssub.s32 %s12, 2
      // Predicated region
      $region69: #{sk_block_forward.4} parent=67 // pred_check
        %p8317 = pneg %p139
      $region70: #{sk_block_forward.4} parent=67 // pred_check_branch
        %8319 = sbr.rel (%p8317) target = $region72
      $region71: #{sk_block_forward.4} parent=67 // pred_region
        %p8320 = scmp.lt.s32.totalorder %s25, 1
        %s8321 = scalar_select %p8320, %s25, 1
        %p8322 = scmp.lt.s32.totalorder %s26, 7
        %s8323 = scalar_select %p8322, %s26, 7
        %s8324 = smul.addr %s8323, 12
        %s8325 = smul.addr %s8321, 96
        %s8326 = sadd.s32 %s8324, %s8325
        %s8327 = smul.addr %s8326, 4
        %s8328 = scalar_lea.vmem %s3, %s8327
      $region72: #{sk_block_forward.4} parent=67 // pred_fallthru
        _
      // Predicated region
      $region73: #{sk_block_forward.4} parent=67 // pred_check
        %p8329 = pneg %p167
      $region74: #{sk_block_forward.4} parent=67 // pred_check_branch
        %8331 = sbr.rel (%p8329) target = $region76
      $region75: #{sk_block_forward.4} parent=67 // pred_region
        %p8332 = scmp.lt.s32.totalorder %s25, 1
        %s8333 = scalar_select %p8332, %s25, 1
        %p8334 = scmp.lt.s32.totalorder %s26, 7
        %s8335 = scalar_select %p8334, %s26, 7
        %s8336 = smul.addr %s8335, 12
        %s8337 = smul.addr %s8333, 96
        %s8338 = sadd.s32 %s8336, %s8337
        %s8339 = smul.addr %s8338, 4
        %s8340 = scalar_lea.vmem %s4, %s8339
      $region76: #{sk_block_forward.4} parent=67 // pred_fallthru
        _
      // Predicated region
      $region77: #{sk_block_forward.4} parent=67 // pred_check
        %p8341 = pneg %p193
      $region78: #{sk_block_forward.4} parent=67 // pred_check_branch
        %8343 = sbr.rel (%p8341) target = $region80
      $region79: #{sk_block_forward.4} parent=67 // pred_region
        %p8344 = scmp.lt.s32.totalorder %s25, 1
        %s8345 = scalar_select %p8344, %s25, 1
        %s8346 = scalar_lea.vmem %s5, %s8345
      $region80: #{sk_block_forward.4} parent=67 // pred_fallthru
        _
    $region68: #{sk_block_forward.4} parent=5 // pred_fallthru
      _
  $region6: #{sk_block_forward.4} parent=0 // loop_footer
    %s16 = sadd.s32 1, %s12
  $region7: #{sk_block_forward.4} parent=0 // loop_footer_branch
    %11 = sbr.rel target = $region3
  $region8: #{sk_block_forward.4} parent=0 // loop_exit
    _

</llo_original>
